<compile_context>
chip_gen: v6e
topology: v6e:2x2x1
jax: 0.10.0
libtpu: 0.0.40
codegen_flags: <defaults>
</compile_context>

<pallas_src>
import functools

import jax
import jax.numpy as jnp
from jax import lax
from jax.experimental import pallas as pl
from jax.experimental.pallas import tpu as pltpu

KERNEL_SIZE = 3
EPS = 1e-5
LANE = 128
VMEM_LIMIT_BYTES = 64 * 1024 * 1024  # > v5e(16MiB)/v6e(32MiB) defaults, <= v7x physical.


def _round_up(x, m):
    return (x + m - 1) // m * m


def _cdiv(a, b):
    return -(-a // b)


# ---------------------------------------------------------------------------
# Kernel A: implicit-im2col 3x3 conv + per-tile BN partial statistics
# ---------------------------------------------------------------------------
def conv_partials_kernel(xf_ref, w_ref, y_ref, ps_ref, *, H, W, TQ, EXTRA):
    """One (image n, row-tile q) grid step.

      xf_ref (1, L, CK)      bf16  zero-padded flattened input slab (whole image,
                                   resident across the row-tile grid axis)
      w_ref  (9, CK, Cpad)   bf16  3x3 taps (HWIO order), K / Cout zero-padded
      y_ref  (1, TQ, Cpad)   bf16  pre-BN conv rows [q*TQ, q*TQ+TQ) ("wide" layout,
                                   invalid rows zeroed)
      ps_ref (1, 1, 2, Cpad) f32   per-tile partials [masked sum, masked M2 about
                                   the tile mean]
    """
    Wp = W + 2
    Mq = H * Wp
    r0 = pl.multiple_of(pl.program_id(1) * TQ, TQ)
    # One aligned windowed load; the 9 taps are static shifted views of it.
    xwin = xf_ref[0, pl.ds(r0, TQ + EXTRA), :]

    # Implicit im2col: 9 shifted (TQ, CK) @ (CK, Cpad) MXU matmuls accumulated in a
    # local f32 value (single bf16 store, no output read-modify-write).
    acc = None
    for dh in range(KERNEL_SIZE):
        for dw in range(KERNEL_SIZE):
            off = dh * Wp + dw
            xs = xwin[off:off + TQ, :]
            c = jnp.dot(xs, w_ref[dh * KERNEL_SIZE + dw],
                        preferred_element_type=jnp.float32)
            acc = c if acc is None else acc + c

    # Validity mask (right-pad columns, rows past the image), computed in-kernel.
    row = r0 + lax.broadcasted_iota(jnp.int32, (TQ, 1), 0)
    mask = jnp.logical_and(row < Mq, row % Wp < W).astype(jnp.float32)

    accm = acc * mask
    y_ref[0] = accm.astype(y_ref.dtype)

    # Per-tile statistics about the tile mean (Chan-style stable combine later).
    cnt = jnp.sum(mask)
    inv_cnt = 1.0 / jnp.maximum(cnt, 1.0)
    s = jnp.sum(accm, axis=0, keepdims=True)               # (1, Cpad)
    mean_t = s * inv_cnt
    d = (acc - mean_t) * mask
    m2 = jnp.sum(d * d, axis=0, keepdims=True)              # (1, Cpad)
    sel = lax.broadcasted_iota(jnp.int32, (2, s.shape[-1]), 0)
    ps_ref[0, 0] = jnp.where(sel == 0, s, m2)


# ---------------------------------------------------------------------------
# Kernel B: normalize (global batch stats) + ReLU, invalid rows zeroed
# ---------------------------------------------------------------------------
def bn_relu_kernel(y_ref, sc_ref, sh_ref, o_ref, *, H, W, TQ):
    Wp = W + 2
    Mq = H * Wp
    r0 = pl.program_id(1) * TQ
    row = r0 + lax.broadcasted_iota(jnp.int32, (TQ, 1), 0)
    valid = jnp.logical_and(row < Mq, row % Wp < W)
    a = jnp.maximum(y_ref[0].astype(jnp.float32) * sc_ref[...] + sh_ref[...], 0.0)
    # Zero invalid rows so the "wide" activation doubles as the next stage's
    # zero-padded input slab (stage fusion: a single row-shift pad in between).
    o_ref[0] = jnp.where(valid, a, 0.0).astype(o_ref.dtype)


# ---------------------------------------------------------------------------
# pallas_call wrappers
# ---------------------------------------------------------------------------
def _conv_partials_call(xf, wk, H, W, TQ, nq, EXTRA):
    N, L, CK = xf.shape
    Cpad = wk.shape[-1]
    Mq_pad = nq * TQ
    kernel = functools.partial(conv_partials_kernel, H=H, W=W, TQ=TQ, EXTRA=EXTRA)
    return pl.pallas_call(
        kernel,
        out_shape=(jax.ShapeDtypeStruct((N, Mq_pad, Cpad), jnp.bfloat16),
                   jax.ShapeDtypeStruct((N, nq, 2, Cpad), jnp.float32)),
        grid_spec=pltpu.PrefetchScalarGridSpec(
            num_scalar_prefetch=0,
            grid=(N, nq),
            in_specs=[
                pl.BlockSpec((1, L, CK), lambda n, q: (n, 0, 0)),
                pl.BlockSpec((KERNEL_SIZE * KERNEL_SIZE, CK, Cpad),
                             lambda n, q: (0, 0, 0)),
            ],
            out_specs=(
                pl.BlockSpec((1, TQ, Cpad), lambda n, q: (n, q, 0)),
                pl.BlockSpec((1, 1, 2, Cpad), lambda n, q: (n, q, 0, 0)),
            ),
        ),
        compiler_params=pltpu.CompilerParams(
            dimension_semantics=("parallel", "parallel"),
            vmem_limit_bytes=VMEM_LIMIT_BYTES),
    )(xf, wk)


def _bn_relu_call(y_wide, scale, shift, H, W, TQ, out_dtype):
    N, Mq_pad, Cpad = y_wide.shape
    nq = Mq_pad // TQ
    kernel = functools.partial(bn_relu_kernel, H=H, W=W, TQ=TQ)
    return pl.pallas_call(
        kernel,
        out_shape=jax.ShapeDtypeStruct((N, Mq_pad, Cpad), out_dtype),
        grid_spec=pltpu.PrefetchScalarGridSpec(
            num_scalar_prefetch=0,
            grid=(N, nq),
            in_specs=[
                pl.BlockSpec((1, TQ, Cpad), lambda n, q: (n, q, 0)),
                pl.BlockSpec((1, Cpad), lambda n, q: (0, 0)),
                pl.BlockSpec((1, Cpad), lambda n, q: (0, 0)),
            ],
            out_specs=pl.BlockSpec((1, TQ, Cpad), lambda n, q: (n, q, 0)),
        ),
        compiler_params=pltpu.CompilerParams(
            dimension_semantics=("parallel", "parallel"),
            vmem_limit_bytes=VMEM_LIMIT_BYTES),
    )(y_wide, scale, shift)


# ---------------------------------------------------------------------------
# One fused conv -> BN(batch stats) -> ReLU stage
# ---------------------------------------------------------------------------
def conv_bn_relu_stage(xf, w_hwio, gamma, beta, H, W, TQ, out_dtype):
    """xf: (N, L, CK) bf16 zero-padded flattened slab in padded-image row-major
    coordinates.  Returns the activation in the masked "wide" layout
    (N, nq*TQ, Cpad) with pad rows / pad channels exactly zero."""
    N, L, CK = xf.shape
    cin_w, cout = w_hwio.shape[2], w_hwio.shape[3]
    Wp = W + 2
    Mq = H * Wp
    nq = _cdiv(Mq, TQ)
    Mq_pad = nq * TQ
    EXTRA = _round_up(2 * Wp + 2, 8)
    Cpad = _round_up(cout, LANE)
    assert TQ % 8 == 0 and cin_w <= CK and L >= Mq_pad + EXTRA

    wk = w_hwio.reshape(KERNEL_SIZE * KERNEL_SIZE, cin_w, cout)
    wk = jnp.pad(wk, ((0, 0), (0, CK - cin_w),
                      (0, Cpad - cout))).astype(jnp.bfloat16)

    y_wide, partials = _conv_partials_call(xf, wk, H, W, TQ, nq, EXTRA)

    # Chan parallel-variance combine of the per-(image, row-tile) partials:
    # avoids the E[y^2] - E[y]^2 cancellation.  (Tiny, O(N*nq*Cout) work.)
    count = float(N * H * W)
    r = jnp.arange(Mq_pad)
    cnt_q = jnp.logical_and(r < Mq, r % Wp < W).reshape(nq, TQ).sum(
        axis=1).astype(jnp.float32)                                   # (nq,)
    s_nq = partials[:, :, 0, :]                                        # (N, nq, Cpad)
    m2_nq = partials[:, :, 1, :]
    mean = jnp.sum(s_nq, axis=(0, 1)) / count                          # (Cpad,)
    mean_nq = s_nq / jnp.maximum(cnt_q, 1.0)[None, :, None]
    m2 = (jnp.sum(m2_nq, axis=(0, 1)) +
          jnp.sum(cnt_q[None, :, None] * (mean_nq - mean) ** 2, axis=(0, 1)))
    var = m2 / count                           # biased variance, like PyTorch BN

    g = jnp.pad(gamma.astype(jnp.float32), (0, Cpad - cout))
    b = jnp.pad(beta.astype(jnp.float32), (0, Cpad - cout))
    scale = g * lax.rsqrt(var + EPS)
    shift = b - mean * scale

    return _bn_relu_call(y_wide, scale.reshape(1, Cpad), shift.reshape(1, Cpad),
                         H, W, TQ, out_dtype)


def double_conv(x_nchw, params, tile_rows=None, return_intermediate=False):
    """Forward pass of DoubleConv.  Input/output are NCHW like PyTorch."""
    (w1, b1, g1, be1, w2, b2, g2, be2) = params
    del b1, b2  # conv bias is exactly cancelled by training-mode BN mean subtraction
    N, Cin, H, W = x_nchw.shape
    Cout = w1.shape[-1]
    Cpad = _round_up(Cout, LANE)
    Wp, Hp = W + 2, H + 2
    Mq = H * Wp
    TQ = tile_rows if tile_rows is not None else min(512, _round_up(Mq, 8))
    nq = _cdiv(Mq, TQ)
    Mq_pad = nq * TQ
    EXTRA = _round_up(2 * Wp + 2, 8)
    L = Mq_pad + EXTRA

    # Stage-1 slab: zero-pad H/W by 1, flatten padded rows, right-pad to L rows.
    xh = jnp.transpose(x_nchw, (0, 2, 3, 1)).astype(jnp.bfloat16)
    xp = jnp.pad(xh, ((0, 0), (1, 1), (1, 1), (0, 0)))
    xf1 = jnp.pad(xp.reshape(N, Hp * Wp, Cin),
                  ((0, 0), (0, L - Hp * Wp), (0, 0)))

    a1 = conv_bn_relu_stage(xf1, w1, g1, be1, H, W, TQ, jnp.bfloat16)

    # Stage fusion: the masked "wide" stage-1 activation, shifted by one padded row
    # plus one column (= Wp + 1 rows), IS stage 2's zero-padded input slab (kept at
    # Cpad lane-dense channels; the extra zero K columns are free on the MXU).  A
    # single row-axis pad is the whole inter-stage data movement.
    xf2 = jnp.pad(a1, ((0, 0), (Wp + 1, L - (Wp + 1) - Mq_pad), (0, 0)))

    a2 = conv_bn_relu_stage(xf2, w2, g2, be2, H, W, TQ, jnp.float32)

    def to_nchw(a_wide, dtype):
        p = a_wide[:, :Mq].reshape(N, H, Wp, Cpad)[:, :, :W, :Cout]
        return jnp.transpose(p.astype(dtype), (0, 3, 1, 2))

    out = to_nchw(a2, jnp.float32)
    if return_intermediate:
        return out, to_nchw(a1, jnp.float32)
    return out


# ---------------------------------------------------------------------------
# Pure-JAX f32 reference (XLA conv) matching the PyTorch forward semantics
# ---------------------------------------------------------------------------
def reference(x_nchw, params):
    (w1, b1, g1, be1, w2, b2, g2, be2) = params
    x = jnp.transpose(x_nchw, (0, 2, 3, 1)).astype(jnp.float32)

    def conv(x, w, b):
        y = lax.conv_general_dilated(
            x, w, window_strides=(1, 1), padding=((1, 1), (1, 1)),
            dimension_numbers=("NHWC", "HWIO", "NHWC"))
        return y + b

    def bn_relu(y, g, be):
        m = jnp.mean(y, axis=(0, 1, 2), keepdims=True)
        v = jnp.mean((y - m) ** 2, axis=(0, 1, 2), keepdims=True)
        return jnp.maximum((y - m) * lax.rsqrt(v + EPS) * g + be, 0.0)

    y1 = bn_relu(conv(x, w1, b1), g1, be1)
    y2 = bn_relu(conv(y1, w2, b2), g2, be2)
    return (jnp.transpose(y2, (0, 3, 1, 2)),
            jnp.transpose(y1, (0, 3, 1, 2)))


def init_params(key, in_channels, out_channels):
    """Deterministic synthetic parameters (HWIO conv weights)."""
    k1, k2, k3, k4, k5, k6 = jax.random.split(key, 6)
    w1 = 0.1 * jax.random.normal(
        k1, (KERNEL_SIZE, KERNEL_SIZE, in_channels, out_channels), jnp.float32)
    b1 = 0.05 * jax.random.normal(k2, (out_channels,), jnp.float32)
    g1 = 1.0 + 0.1 * jax.random.normal(k3, (out_channels,), jnp.float32)
    be1 = 0.05 * jax.random.normal(k4, (out_channels,), jnp.float32)
    w2 = 0.1 * jax.random.normal(
        k5, (KERNEL_SIZE, KERNEL_SIZE, out_channels, out_channels), jnp.float32)
    b2 = 0.05 * jax.random.normal(k6, (out_channels,), jnp.float32)
    g2 = jnp.ones((out_channels,), jnp.float32) * 0.9
    be2 = jnp.full((out_channels,), 0.01, jnp.float32)
    return (w1, b1, g1, be1, w2, b2, g2, be2)


if __name__ == "__main__":
    key = jax.random.PRNGKey(0)
    kx, kp = jax.random.split(key)

    N, Cin, Cout, H, W = 2, 4, 8, 16, 16
    x = jax.random.normal(kx, (N, Cin, H, W), jnp.float32)   # NCHW like PyTorch
    params = init_params(kp, Cin, Cout)

    # tile_rows=128 exercises the row-tiled grid (3 tiles/image incl. a masked tail).
    fwd = jax.jit(functools.partial(double_conv, tile_rows=128,
                                    return_intermediate=True))
    out, a1 = jax.block_until_ready(fwd(x, params))
    ref2, ref1 = jax.block_until_ready(jax.jit(reference)(x, params))

    assert out.shape == (N, Cout, H, W), out.shape
    # Per-stage check (tight enough to catch bf16-intermediate regressions).
    d1 = float(jnp.max(jnp.abs(a1 - ref1)))
    assert jnp.allclose(a1, ref1, atol=2.5e-2, rtol=2.5e-2), (
        "stage1 max abs diff: %e" % d1)
    # End-to-end (two stacked conv+BN+ReLU stages, bf16 MXU operands/intermediate).
    d2 = float(jnp.max(jnp.abs(out - ref2)))
    assert jnp.allclose(out, ref2, atol=5e-2, rtol=5e-2), (
        "final max abs diff: %e" % d2)

    print("KERNEL_OK")
</pallas_src>

<mosaic_0001>
module attributes {stable_mosaic.version = 11 : i64} {
  func.func @conv_partials_kernel(%arg0: i32, %arg1: i32, %arg2: memref<1x424x4xbf16, #tpu.memory_space<vmem>>, %arg3: memref<9x4x128xbf16, #tpu.memory_space<vmem>>, %arg4: memref<1x128x128xbf16, #tpu.memory_space<vmem>>, %arg5: memref<1x1x2x128xf32, #tpu.memory_space<vmem>>) attributes {dimension_semantics = [#tpu.dimension_semantics<parallel>, #tpu.dimension_semantics<parallel>], iteration_bounds = array<i64: 2, 3>, scalar_prefetch = 0 : i64, scratch_operands = 0 : i64, tpu.core_type = #tpu.core_type<tc>, window_params = [{transform_indices = @transform_0, window_bounds = array<i64: 1, 424, 4>}, {pipeline_mode = #tpu.pipeline_mode<synchronous>, transform_indices = @transform_1, window_bounds = array<i64: 9, 4, 128>}, {transform_indices = @transform_2, window_bounds = array<i64: 1, 128, 128>}, {transform_indices = @transform_3, window_bounds = array<i64: 1, 1, 2, 128>}]} {
    %c128_i32 = arith.constant 128 : i32
    %0 = arith.muli %arg1, %c128_i32 : i32
    %1 = tpu.assume_multiple %0, 128 : i32
    %c0 = arith.constant 0 : index
    %2 = arith.index_cast %1 : i32 to index
    %c0_0 = arith.constant 0 : index
    %3 = vector.load %arg2[%c0, %2, %c0_0] : memref<1x424x4xbf16, #tpu.memory_space<vmem>>, vector<1x168x4xbf16>
    %4 = vector.shape_cast %3 : vector<1x168x4xbf16> to vector<168x4xbf16>
    %5 = vector.extract_strided_slice %4 {offsets = [0, 0], sizes = [128, 4], strides = [1, 1]} : vector<168x4xbf16> to vector<128x4xbf16>
    %c0_1 = arith.constant 0 : index
    %c0_2 = arith.constant 0 : index
    %c0_3 = arith.constant 0 : index
    %6 = vector.load %arg3[%c0_1, %c0_2, %c0_3] : memref<9x4x128xbf16, #tpu.memory_space<vmem>>, vector<1x4x128xbf16>
    %7 = vector.shape_cast %6 : vector<1x4x128xbf16> to vector<4x128xbf16>
    %cst = arith.constant dense<0.000000e+00> : vector<128x128xf32>
    %8 = tpu.matmul %5, %7, %cst {dimension_numbers = #tpu.dot_dimension_numbers<[1], [0], [0], [1], [0, 0, 1, 1], [], []>} : vector<128x4xbf16>, vector<4x128xbf16>, vector<128x128xf32> -> vector<128x128xf32>
    %9 = vector.extract_strided_slice %4 {offsets = [1, 0], sizes = [128, 4], strides = [1, 1]} : vector<168x4xbf16> to vector<128x4xbf16>
    %c1 = arith.constant 1 : index
    %c0_4 = arith.constant 0 : index
    %c0_5 = arith.constant 0 : index
    %10 = vector.load %arg3[%c1, %c0_4, %c0_5] : memref<9x4x128xbf16, #tpu.memory_space<vmem>>, vector<1x4x128xbf16>
    %11 = vector.shape_cast %10 : vector<1x4x128xbf16> to vector<4x128xbf16>
    %cst_6 = arith.constant dense<0.000000e+00> : vector<128x128xf32>
    %12 = tpu.matmul %9, %11, %cst_6 {dimension_numbers = #tpu.dot_dimension_numbers<[1], [0], [0], [1], [0, 0, 1, 1], [], []>} : vector<128x4xbf16>, vector<4x128xbf16>, vector<128x128xf32> -> vector<128x128xf32>
    %13 = arith.addf %8, %12 : vector<128x128xf32>
    %14 = vector.extract_strided_slice %4 {offsets = [2, 0], sizes = [128, 4], strides = [1, 1]} : vector<168x4xbf16> to vector<128x4xbf16>
    %c2 = arith.constant 2 : index
    %c0_7 = arith.constant 0 : index
    %c0_8 = arith.constant 0 : index
    %15 = vector.load %arg3[%c2, %c0_7, %c0_8] : memref<9x4x128xbf16, #tpu.memory_space<vmem>>, vector<1x4x128xbf16>
    %16 = vector.shape_cast %15 : vector<1x4x128xbf16> to vector<4x128xbf16>
    %cst_9 = arith.constant dense<0.000000e+00> : vector<128x128xf32>
    %17 = tpu.matmul %14, %16, %cst_9 {dimension_numbers = #tpu.dot_dimension_numbers<[1], [0], [0], [1], [0, 0, 1, 1], [], []>} : vector<128x4xbf16>, vector<4x128xbf16>, vector<128x128xf32> -> vector<128x128xf32>
    %18 = arith.addf %13, %17 : vector<128x128xf32>
    %19 = vector.extract_strided_slice %4 {offsets = [18, 0], sizes = [128, 4], strides = [1, 1]} : vector<168x4xbf16> to vector<128x4xbf16>
    %c3 = arith.constant 3 : index
    %c0_10 = arith.constant 0 : index
    %c0_11 = arith.constant 0 : index
    %20 = vector.load %arg3[%c3, %c0_10, %c0_11] : memref<9x4x128xbf16, #tpu.memory_space<vmem>>, vector<1x4x128xbf16>
    %21 = vector.shape_cast %20 : vector<1x4x128xbf16> to vector<4x128xbf16>
    %cst_12 = arith.constant dense<0.000000e+00> : vector<128x128xf32>
    %22 = tpu.matmul %19, %21, %cst_12 {dimension_numbers = #tpu.dot_dimension_numbers<[1], [0], [0], [1], [0, 0, 1, 1], [], []>} : vector<128x4xbf16>, vector<4x128xbf16>, vector<128x128xf32> -> vector<128x128xf32>
    %23 = arith.addf %18, %22 : vector<128x128xf32>
    %24 = vector.extract_strided_slice %4 {offsets = [19, 0], sizes = [128, 4], strides = [1, 1]} : vector<168x4xbf16> to vector<128x4xbf16>
    %c4 = arith.constant 4 : index
    %c0_13 = arith.constant 0 : index
    %c0_14 = arith.constant 0 : index
    %25 = vector.load %arg3[%c4, %c0_13, %c0_14] : memref<9x4x128xbf16, #tpu.memory_space<vmem>>, vector<1x4x128xbf16>
    %26 = vector.shape_cast %25 : vector<1x4x128xbf16> to vector<4x128xbf16>
    %cst_15 = arith.constant dense<0.000000e+00> : vector<128x128xf32>
    %27 = tpu.matmul %24, %26, %cst_15 {dimension_numbers = #tpu.dot_dimension_numbers<[1], [0], [0], [1], [0, 0, 1, 1], [], []>} : vector<128x4xbf16>, vector<4x128xbf16>, vector<128x128xf32> -> vector<128x128xf32>
    %28 = arith.addf %23, %27 : vector<128x128xf32>
    %29 = vector.extract_strided_slice %4 {offsets = [20, 0], sizes = [128, 4], strides = [1, 1]} : vector<168x4xbf16> to vector<128x4xbf16>
    %c5 = arith.constant 5 : index
    %c0_16 = arith.constant 0 : index
    %c0_17 = arith.constant 0 : index
    %30 = vector.load %arg3[%c5, %c0_16, %c0_17] : memref<9x4x128xbf16, #tpu.memory_space<vmem>>, vector<1x4x128xbf16>
    %31 = vector.shape_cast %30 : vector<1x4x128xbf16> to vector<4x128xbf16>
    %cst_18 = arith.constant dense<0.000000e+00> : vector<128x128xf32>
    %32 = tpu.matmul %29, %31, %cst_18 {dimension_numbers = #tpu.dot_dimension_numbers<[1], [0], [0], [1], [0, 0, 1, 1], [], []>} : vector<128x4xbf16>, vector<4x128xbf16>, vector<128x128xf32> -> vector<128x128xf32>
    %33 = arith.addf %28, %32 : vector<128x128xf32>
    %34 = vector.extract_strided_slice %4 {offsets = [36, 0], sizes = [128, 4], strides = [1, 1]} : vector<168x4xbf16> to vector<128x4xbf16>
    %c6 = arith.constant 6 : index
    %c0_19 = arith.constant 0 : index
    %c0_20 = arith.constant 0 : index
    %35 = vector.load %arg3[%c6, %c0_19, %c0_20] : memref<9x4x128xbf16, #tpu.memory_space<vmem>>, vector<1x4x128xbf16>
    %36 = vector.shape_cast %35 : vector<1x4x128xbf16> to vector<4x128xbf16>
    %cst_21 = arith.constant dense<0.000000e+00> : vector<128x128xf32>
    %37 = tpu.matmul %34, %36, %cst_21 {dimension_numbers = #tpu.dot_dimension_numbers<[1], [0], [0], [1], [0, 0, 1, 1], [], []>} : vector<128x4xbf16>, vector<4x128xbf16>, vector<128x128xf32> -> vector<128x128xf32>
    %38 = arith.addf %33, %37 : vector<128x128xf32>
    %39 = vector.extract_strided_slice %4 {offsets = [37, 0], sizes = [128, 4], strides = [1, 1]} : vector<168x4xbf16> to vector<128x4xbf16>
    %c7 = arith.constant 7 : index
    %c0_22 = arith.constant 0 : index
    %c0_23 = arith.constant 0 : index
    %40 = vector.load %arg3[%c7, %c0_22, %c0_23] : memref<9x4x128xbf16, #tpu.memory_space<vmem>>, vector<1x4x128xbf16>
    %41 = vector.shape_cast %40 : vector<1x4x128xbf16> to vector<4x128xbf16>
    %cst_24 = arith.constant dense<0.000000e+00> : vector<128x128xf32>
    %42 = tpu.matmul %39, %41, %cst_24 {dimension_numbers = #tpu.dot_dimension_numbers<[1], [0], [0], [1], [0, 0, 1, 1], [], []>} : vector<128x4xbf16>, vector<4x128xbf16>, vector<128x128xf32> -> vector<128x128xf32>
    %43 = arith.addf %38, %42 : vector<128x128xf32>
    %44 = vector.extract_strided_slice %4 {offsets = [38, 0], sizes = [128, 4], strides = [1, 1]} : vector<168x4xbf16> to vector<128x4xbf16>
    %c8 = arith.constant 8 : index
    %c0_25 = arith.constant 0 : index
    %c0_26 = arith.constant 0 : index
    %45 = vector.load %arg3[%c8, %c0_25, %c0_26] : memref<9x4x128xbf16, #tpu.memory_space<vmem>>, vector<1x4x128xbf16>
    %46 = vector.shape_cast %45 : vector<1x4x128xbf16> to vector<4x128xbf16>
    %cst_27 = arith.constant dense<0.000000e+00> : vector<128x128xf32>
    %47 = tpu.matmul %44, %46, %cst_27 {dimension_numbers = #tpu.dot_dimension_numbers<[1], [0], [0], [1], [0, 0, 1, 1], [], []>} : vector<128x4xbf16>, vector<4x128xbf16>, vector<128x128xf32> -> vector<128x128xf32>
    %48 = arith.addf %43, %47 : vector<128x128xf32>
    %49 = tpu.iota {dimensions = array<i32: 0>} : vector<128x1xi32>
    %50 = vector.broadcast %1 : i32 to vector<128x1xi32>
    %51 = arith.addi %50, %49 : vector<128x1xi32>
    %c288_i32 = arith.constant 288 : i32
    %52 = vector.broadcast %c288_i32 : i32 to vector<128x1xi32>
    %53 = arith.cmpi slt, %51, %52 : vector<128x1xi32>
    %c18_i32 = arith.constant 18 : i32
    %c0_i32 = arith.constant 0 : i32
    %54 = arith.cmpi eq, %c18_i32, %c0_i32 : i32
    %c1_i32 = arith.constant 1 : i32
    %55 = arith.select %54, %c1_i32, %c18_i32 : i32
    %56 = vector.broadcast %55 : i32 to vector<128x1xi32>
    %57 = arith.remsi %51, %56 : vector<128x1xi32>
    %c0_i32_28 = arith.constant 0 : i32
    %58 = vector.broadcast %c0_i32_28 : i32 to vector<128x1xi32>
    %59 = arith.cmpi ne, %57, %58 : vector<128x1xi32>
    %c0_i32_29 = arith.constant 0 : i32
    %60 = vector.broadcast %c0_i32_29 : i32 to vector<128x1xi32>
    %61 = arith.cmpi slt, %57, %60 : vector<128x1xi32>
    %c0_i32_30 = arith.constant 0 : i32
    %62 = arith.cmpi slt, %55, %c0_i32_30 : i32
    %63 = vector.broadcast %62 : i1 to vector<128x1xi1>
    %64 = vector.broadcast %63 : vector<128x1xi1> to vector<128x1xi1>
    %65 = arith.xori %61, %64 : vector<128x1xi1>
    %66 = arith.andi %65, %59 : vector<128x1xi1>
    %67 = vector.broadcast %55 : i32 to vector<128x1xi32>
    %68 = arith.addi %57, %67 : vector<128x1xi32>
    %69 = arith.select %66, %68, %57 : vector<128x1xi1>, vector<128x1xi32>
    %c16_i32 = arith.constant 16 : i32
    %70 = vector.broadcast %c16_i32 : i32 to vector<128x1xi32>
    %71 = arith.cmpi slt, %69, %70 : vector<128x1xi32>
    %72 = arith.andi %53, %71 : vector<128x1xi1>
    %73 = arith.extui %72 : vector<128x1xi1> to vector<128x1xi32>
    %74 = arith.sitofp %73 : vector<128x1xi32> to vector<128x1xf32>
    %75 = vector.broadcast %74 : vector<128x1xf32> to vector<128x128xf32>
    %76 = arith.mulf %48, %75 : vector<128x128xf32>
    %77 = arith.truncf %76 : vector<128x128xf32> to vector<128x128xbf16>
    %c0_31 = arith.constant 0 : index
    %c0_32 = arith.constant 0 : index
    %c0_33 = arith.constant 0 : index
    %78 = vector.load %arg4[%c0_31, %c0_32, %c0_33] : memref<1x128x128xbf16, #tpu.memory_space<vmem>>, vector<1x128x128xbf16>
    %79 = vector.shape_cast %78 : vector<1x128x128xbf16> to vector<128x128xbf16>
    %80 = vector.shape_cast %77 : vector<128x128xbf16> to vector<1x128x128xbf16>
    tpu.vector_store %arg4[%c0_31, %c0_32, %c0_33], %80 {strides = array<i32>} : memref<1x128x128xbf16, #tpu.memory_space<vmem>>, vector<1x128x128xbf16>,
    %81 = vector.shape_cast %74 : vector<128x1xf32> to vector<1x128x1xf32>
    %cst_34 = arith.constant dense<0.000000e+00> : vector<1xf32>
    %82 = vector.multi_reduction <add>, %81, %cst_34 [1, 2] : vector<1x128x1xf32> to vector<1xf32>
    %83 = vector.shape_cast %82 : vector<1xf32> to vector<1x1x1xf32>
    %84 = vector.extract %83[0, 0, 0] : f32 from vector<1x1x1xf32>
    %cst_35 = arith.constant 1.000000e+00 : f32
    %85 = arith.maximumf %84, %cst_35 : f32
    %cst_36 = arith.constant 1.000000e+00 : f32
    %86 = arith.divf %cst_36, %85 : f32
    %cst_37 = arith.constant dense<0.000000e+00> : vector<128xf32>
    %87 = vector.multi_reduction <add>, %76, %cst_37 [0] : vector<128x128xf32> to vector<128xf32>
    %88 = vector.shape_cast %87 : vector<128xf32> to vector<1x128xf32>
    %89 = vector.broadcast %86 : f32 to vector<1x128xf32>
    %90 = arith.mulf %88, %89 : vector<1x128xf32>
    %91 = vector.broadcast %90 : vector<1x128xf32> to vector<128x128xf32>
    %92 = arith.subf %48, %91 : vector<128x128xf32>
    %93 = vector.broadcast %74 : vector<128x1xf32> to vector<128x128xf32>
    %94 = arith.mulf %92, %93 : vector<128x128xf32>
    %95 = arith.mulf %94, %94 : vector<128x128xf32>
    %cst_38 = arith.constant dense<0.000000e+00> : vector<128xf32>
    %96 = vector.multi_reduction <add>, %95, %cst_38 [0] : vector<128x128xf32> to vector<128xf32>
    %97 = vector.shape_cast %96 : vector<128xf32> to vector<1x128xf32>
    %98 = tpu.iota {dimensions = array<i32: 0>} : vector<2x128xi32>
    %c0_i32_39 = arith.constant 0 : i32
    %99 = vector.broadcast %c0_i32_39 : i32 to vector<2x128xi32>
    %100 = arith.cmpi eq, %98, %99 : vector<2x128xi32>
    %101 = vector.shape_cast %88 : vector<1x128xf32> to vector<1x128xf32>
    %102 = vector.broadcast %101 : vector<1x128xf32> to vector<2x128xf32>
    %103 = vector.shape_cast %97 : vector<1x128xf32> to vector<1x128xf32>
    %104 = vector.broadcast %103 : vector<1x128xf32> to vector<2x128xf32>
    %105 = arith.select %100, %102, %104 : vector<2x128xi1>, vector<2x128xf32>
    %c0_40 = arith.constant 0 : index
    %c0_41 = arith.constant 0 : index
    %c0_42 = arith.constant 0 : index
    %c0_43 = arith.constant 0 : index
    %106 = vector.load %arg5[%c0_40, %c0_41, %c0_42, %c0_43] : memref<1x1x2x128xf32, #tpu.memory_space<vmem>>, vector<1x1x2x128xf32>
    %107 = vector.shape_cast %106 : vector<1x1x2x128xf32> to vector<2x128xf32>
    %108 = vector.shape_cast %105 : vector<2x128xf32> to vector<1x1x2x128xf32>
    tpu.vector_store %arg5[%c0_40, %c0_41, %c0_42, %c0_43], %108 {strides = array<i32>} : memref<1x1x2x128xf32, #tpu.memory_space<vmem>>, vector<1x1x2x128xf32>,
    return
  }
  func.func @transform_0(%arg0: i32, %arg1: i32) -> (i32, i32, i32) {
    %c0_i32 = arith.constant 0 : i32
    %c0_i32_0 = arith.constant 0 : i32
    %c0_i32_1 = arith.constant 0 : i32
    return %arg0, %c0_i32, %c0_i32_0 : i32, i32, i32
  }
  func.func @transform_1(%arg0: i32, %arg1: i32) -> (i32, i32, i32) {
    %c0_i32 = arith.constant 0 : i32
    %c0_i32_0 = arith.constant 0 : i32
    %c0_i32_1 = arith.constant 0 : i32
    %c0_i32_2 = arith.constant 0 : i32
    return %c0_i32, %c0_i32_0, %c0_i32_1 : i32, i32, i32
  }
  func.func @transform_2(%arg0: i32, %arg1: i32) -> (i32, i32, i32) {
    %c0_i32 = arith.constant 0 : i32
    %c0_i32_0 = arith.constant 0 : i32
    return %arg0, %arg1, %c0_i32 : i32, i32, i32
  }
  func.func @transform_3(%arg0: i32, %arg1: i32) -> (i32, i32, i32, i32) {
    %c0_i32 = arith.constant 0 : i32
    %c0_i32_0 = arith.constant 0 : i32
    %c0_i32_1 = arith.constant 0 : i32
    return %arg0, %arg1, %c0_i32, %c0_i32_0 : i32, i32, i32, i32
  }
}

module attributes {stable_mosaic.version = 11 : i64} {
  func.func @bn_relu_kernel(%arg0: i32, %arg1: i32, %arg2: memref<1x128x128xbf16, #tpu.memory_space<vmem>>, %arg3: memref<1x128xf32, #tpu.memory_space<vmem>>, %arg4: memref<1x128xf32, #tpu.memory_space<vmem>>, %arg5: memref<1x128x128xbf16, #tpu.memory_space<vmem>>) attributes {dimension_semantics = [#tpu.dimension_semantics<parallel>, #tpu.dimension_semantics<parallel>], iteration_bounds = array<i64: 2, 3>, scalar_prefetch = 0 : i64, scratch_operands = 0 : i64, tpu.core_type = #tpu.core_type<tc>, window_params = [{transform_indices = @transform_0, window_bounds = array<i64: 1, 128, 128>}, {pipeline_mode = #tpu.pipeline_mode<synchronous>, transform_indices = @transform_1, window_bounds = array<i64: 1, 128>}, {pipeline_mode = #tpu.pipeline_mode<synchronous>, transform_indices = @transform_2, window_bounds = array<i64: 1, 128>}, {transform_indices = @transform_3, window_bounds = array<i64: 1, 128, 128>}]} {
    %c128_i32 = arith.constant 128 : i32
    %0 = arith.muli %arg1, %c128_i32 : i32
    %1 = tpu.iota {dimensions = array<i32: 0>} : vector<128x1xi32>
    %2 = vector.broadcast %0 : i32 to vector<128x1xi32>
    %3 = arith.addi %2, %1 : vector<128x1xi32>
    %c288_i32 = arith.constant 288 : i32
    %4 = vector.broadcast %c288_i32 : i32 to vector<128x1xi32>
    %5 = arith.cmpi slt, %3, %4 : vector<128x1xi32>
    %c18_i32 = arith.constant 18 : i32
    %c0_i32 = arith.constant 0 : i32
    %6 = arith.cmpi eq, %c18_i32, %c0_i32 : i32
    %c1_i32 = arith.constant 1 : i32
    %7 = arith.select %6, %c1_i32, %c18_i32 : i32
    %8 = vector.broadcast %7 : i32 to vector<128x1xi32>
    %9 = arith.remsi %3, %8 : vector<128x1xi32>
    %c0_i32_0 = arith.constant 0 : i32
    %10 = vector.broadcast %c0_i32_0 : i32 to vector<128x1xi32>
    %11 = arith.cmpi ne, %9, %10 : vector<128x1xi32>
    %c0_i32_1 = arith.constant 0 : i32
    %12 = vector.broadcast %c0_i32_1 : i32 to vector<128x1xi32>
    %13 = arith.cmpi slt, %9, %12 : vector<128x1xi32>
    %c0_i32_2 = arith.constant 0 : i32
    %14 = arith.cmpi slt, %7, %c0_i32_2 : i32
    %15 = vector.broadcast %14 : i1 to vector<128x1xi1>
    %16 = vector.broadcast %15 : vector<128x1xi1> to vector<128x1xi1>
    %17 = arith.xori %13, %16 : vector<128x1xi1>
    %18 = arith.andi %17, %11 : vector<128x1xi1>
    %19 = vector.broadcast %7 : i32 to vector<128x1xi32>
    %20 = arith.addi %9, %19 : vector<128x1xi32>
    %21 = arith.select %18, %20, %9 : vector<128x1xi1>, vector<128x1xi32>
    %c16_i32 = arith.constant 16 : i32
    %22 = vector.broadcast %c16_i32 : i32 to vector<128x1xi32>
    %23 = arith.cmpi slt, %21, %22 : vector<128x1xi32>
    %24 = arith.andi %5, %23 : vector<128x1xi1>
    %c0 = arith.constant 0 : index
    %c0_3 = arith.constant 0 : index
    %c0_4 = arith.constant 0 : index
    %25 = vector.load %arg2[%c0, %c0_3, %c0_4] : memref<1x128x128xbf16, #tpu.memory_space<vmem>>, vector<1x128x128xbf16>
    %26 = vector.shape_cast %25 : vector<1x128x128xbf16> to vector<128x128xbf16>
    %27 = arith.extf %26 : vector<128x128xbf16> to vector<128x128xf32>
    %c0_5 = arith.constant 0 : index
    %c0_6 = arith.constant 0 : index
    %28 = vector.load %arg3[%c0_5, %c0_6] : memref<1x128xf32, #tpu.memory_space<vmem>>, vector<1x128xf32>
    %29 = vector.broadcast %28 : vector<1x128xf32> to vector<128x128xf32>
    %30 = arith.mulf %27, %29 : vector<128x128xf32>
    %c0_7 = arith.constant 0 : index
    %c0_8 = arith.constant 0 : index
    %31 = vector.load %arg4[%c0_7, %c0_8] : memref<1x128xf32, #tpu.memory_space<vmem>>, vector<1x128xf32>
    %32 = vector.broadcast %31 : vector<1x128xf32> to vector<128x128xf32>
    %33 = arith.addf %30, %32 : vector<128x128xf32>
    %cst = arith.constant 0.000000e+00 : f32
    %34 = vector.broadcast %cst : f32 to vector<128x128xf32>
    %35 = arith.maximumf %33, %34 : vector<128x128xf32>
    %cst_9 = arith.constant 0.000000e+00 : f32
    %36 = vector.shape_cast %24 : vector<128x1xi1> to vector<128x1xi1>
    %37 = vector.broadcast %36 : vector<128x1xi1> to vector<128x128xi1>
    %38 = vector.broadcast %cst_9 : f32 to vector<128x128xf32>
    %39 = arith.select %37, %35, %38 : vector<128x128xi1>, vector<128x128xf32>
    %40 = arith.truncf %39 : vector<128x128xf32> to vector<128x128xbf16>
    %c0_10 = arith.constant 0 : index
    %c0_11 = arith.constant 0 : index
    %c0_12 = arith.constant 0 : index
    %41 = vector.load %arg5[%c0_10, %c0_11, %c0_12] : memref<1x128x128xbf16, #tpu.memory_space<vmem>>, vector<1x128x128xbf16>
    %42 = vector.shape_cast %41 : vector<1x128x128xbf16> to vector<128x128xbf16>
    %43 = vector.shape_cast %40 : vector<128x128xbf16> to vector<1x128x128xbf16>
    tpu.vector_store %arg5[%c0_10, %c0_11, %c0_12], %43 {strides = array<i32>} : memref<1x128x128xbf16, #tpu.memory_space<vmem>>, vector<1x128x128xbf16>,
    return
  }
  func.func @transform_0(%arg0: i32, %arg1: i32) -> (i32, i32, i32) {
    %c0_i32 = arith.constant 0 : i32
    %c0_i32_0 = arith.constant 0 : i32
    return %arg0, %arg1, %c0_i32 : i32, i32, i32
  }
  func.func @transform_1(%arg0: i32, %arg1: i32) -> (i32, i32) {
    %c0_i32 = arith.constant 0 : i32
    %c0_i32_0 = arith.constant 0 : i32
    %c0_i32_1 = arith.constant 0 : i32
    return %c0_i32, %c0_i32_0 : i32, i32
  }
  func.func @transform_2(%arg0: i32, %arg1: i32) -> (i32, i32) {
    %c0_i32 = arith.constant 0 : i32
    %c0_i32_0 = arith.constant 0 : i32
    %c0_i32_1 = arith.constant 0 : i32
    return %c0_i32, %c0_i32_0 : i32, i32
  }
  func.func @transform_3(%arg0: i32, %arg1: i32) -> (i32, i32, i32) {
    %c0_i32 = arith.constant 0 : i32
    %c0_i32_0 = arith.constant 0 : i32
    return %arg0, %arg1, %c0_i32 : i32, i32, i32
  }
}

module attributes {stable_mosaic.version = 11 : i64} {
  func.func @bn_relu_kernel(%arg0: i32, %arg1: i32, %arg2: memref<1x128x128xbf16, #tpu.memory_space<vmem>>, %arg3: memref<1x128xf32, #tpu.memory_space<vmem>>, %arg4: memref<1x128xf32, #tpu.memory_space<vmem>>, %arg5: memref<1x128x128xf32, #tpu.memory_space<vmem>>) attributes {dimension_semantics = [#tpu.dimension_semantics<parallel>, #tpu.dimension_semantics<parallel>], iteration_bounds = array<i64: 2, 3>, scalar_prefetch = 0 : i64, scratch_operands = 0 : i64, tpu.core_type = #tpu.core_type<tc>, window_params = [{transform_indices = @transform_0, window_bounds = array<i64: 1, 128, 128>}, {pipeline_mode = #tpu.pipeline_mode<synchronous>, transform_indices = @transform_1, window_bounds = array<i64: 1, 128>}, {pipeline_mode = #tpu.pipeline_mode<synchronous>, transform_indices = @transform_2, window_bounds = array<i64: 1, 128>}, {transform_indices = @transform_3, window_bounds = array<i64: 1, 128, 128>}]} {
    %c128_i32 = arith.constant 128 : i32
    %0 = arith.muli %arg1, %c128_i32 : i32
    %1 = tpu.iota {dimensions = array<i32: 0>} : vector<128x1xi32>
    %2 = vector.broadcast %0 : i32 to vector<128x1xi32>
    %3 = arith.addi %2, %1 : vector<128x1xi32>
    %c288_i32 = arith.constant 288 : i32
    %4 = vector.broadcast %c288_i32 : i32 to vector<128x1xi32>
    %5 = arith.cmpi slt, %3, %4 : vector<128x1xi32>
    %c18_i32 = arith.constant 18 : i32
    %c0_i32 = arith.constant 0 : i32
    %6 = arith.cmpi eq, %c18_i32, %c0_i32 : i32
    %c1_i32 = arith.constant 1 : i32
    %7 = arith.select %6, %c1_i32, %c18_i32 : i32
    %8 = vector.broadcast %7 : i32 to vector<128x1xi32>
    %9 = arith.remsi %3, %8 : vector<128x1xi32>
    %c0_i32_0 = arith.constant 0 : i32
    %10 = vector.broadcast %c0_i32_0 : i32 to vector<128x1xi32>
    %11 = arith.cmpi ne, %9, %10 : vector<128x1xi32>
    %c0_i32_1 = arith.constant 0 : i32
    %12 = vector.broadcast %c0_i32_1 : i32 to vector<128x1xi32>
    %13 = arith.cmpi slt, %9, %12 : vector<128x1xi32>
    %c0_i32_2 = arith.constant 0 : i32
    %14 = arith.cmpi slt, %7, %c0_i32_2 : i32
    %15 = vector.broadcast %14 : i1 to vector<128x1xi1>
    %16 = vector.broadcast %15 : vector<128x1xi1> to vector<128x1xi1>
    %17 = arith.xori %13, %16 : vector<128x1xi1>
    %18 = arith.andi %17, %11 : vector<128x1xi1>
    %19 = vector.broadcast %7 : i32 to vector<128x1xi32>
    %20 = arith.addi %9, %19 : vector<128x1xi32>
    %21 = arith.select %18, %20, %9 : vector<128x1xi1>, vector<128x1xi32>
    %c16_i32 = arith.constant 16 : i32
    %22 = vector.broadcast %c16_i32 : i32 to vector<128x1xi32>
    %23 = arith.cmpi slt, %21, %22 : vector<128x1xi32>
    %24 = arith.andi %5, %23 : vector<128x1xi1>
    %c0 = arith.constant 0 : index
    %c0_3 = arith.constant 0 : index
    %c0_4 = arith.constant 0 : index
    %25 = vector.load %arg2[%c0, %c0_3, %c0_4] : memref<1x128x128xbf16, #tpu.memory_space<vmem>>, vector<1x128x128xbf16>
    %26 = vector.shape_cast %25 : vector<1x128x128xbf16> to vector<128x128xbf16>
    %27 = arith.extf %26 : vector<128x128xbf16> to vector<128x128xf32>
    %c0_5 = arith.constant 0 : index
    %c0_6 = arith.constant 0 : index
    %28 = vector.load %arg3[%c0_5, %c0_6] : memref<1x128xf32, #tpu.memory_space<vmem>>, vector<1x128xf32>
    %29 = vector.broadcast %28 : vector<1x128xf32> to vector<128x128xf32>
    %30 = arith.mulf %27, %29 : vector<128x128xf32>
    %c0_7 = arith.constant 0 : index
    %c0_8 = arith.constant 0 : index
    %31 = vector.load %arg4[%c0_7, %c0_8] : memref<1x128xf32, #tpu.memory_space<vmem>>, vector<1x128xf32>
    %32 = vector.broadcast %31 : vector<1x128xf32> to vector<128x128xf32>
    %33 = arith.addf %30, %32 : vector<128x128xf32>
    %cst = arith.constant 0.000000e+00 : f32
    %34 = vector.broadcast %cst : f32 to vector<128x128xf32>
    %35 = arith.maximumf %33, %34 : vector<128x128xf32>
    %cst_9 = arith.constant 0.000000e+00 : f32
    %36 = vector.shape_cast %24 : vector<128x1xi1> to vector<128x1xi1>
    %37 = vector.broadcast %36 : vector<128x1xi1> to vector<128x128xi1>
    %38 = vector.broadcast %cst_9 : f32 to vector<128x128xf32>
    %39 = arith.select %37, %35, %38 : vector<128x128xi1>, vector<128x128xf32>
    %c0_10 = arith.constant 0 : index
    %c0_11 = arith.constant 0 : index
    %c0_12 = arith.constant 0 : index
    %40 = vector.load %arg5[%c0_10, %c0_11, %c0_12] : memref<1x128x128xf32, #tpu.memory_space<vmem>>, vector<1x128x128xf32>
    %41 = vector.shape_cast %40 : vector<1x128x128xf32> to vector<128x128xf32>
    %42 = vector.shape_cast %39 : vector<128x128xf32> to vector<1x128x128xf32>
    tpu.vector_store %arg5[%c0_10, %c0_11, %c0_12], %42 {strides = array<i32>} : memref<1x128x128xf32, #tpu.memory_space<vmem>>, vector<1x128x128xf32>,
    return
  }
  func.func @transform_0(%arg0: i32, %arg1: i32) -> (i32, i32, i32) {
    %c0_i32 = arith.constant 0 : i32
    %c0_i32_0 = arith.constant 0 : i32
    return %arg0, %arg1, %c0_i32 : i32, i32, i32
  }
  func.func @transform_1(%arg0: i32, %arg1: i32) -> (i32, i32) {
    %c0_i32 = arith.constant 0 : i32
    %c0_i32_0 = arith.constant 0 : i32
    %c0_i32_1 = arith.constant 0 : i32
    return %c0_i32, %c0_i32_0 : i32, i32
  }
  func.func @transform_2(%arg0: i32, %arg1: i32) -> (i32, i32) {
    %c0_i32 = arith.constant 0 : i32
    %c0_i32_0 = arith.constant 0 : i32
    %c0_i32_1 = arith.constant 0 : i32
    return %c0_i32, %c0_i32_0 : i32, i32
  }
  func.func @transform_3(%arg0: i32, %arg1: i32) -> (i32, i32, i32) {
    %c0_i32 = arith.constant 0 : i32
    %c0_i32_0 = arith.constant 0 : i32
    return %arg0, %arg1, %c0_i32 : i32, i32, i32
  }
}

module attributes {stable_mosaic.version = 11 : i64} {
  func.func @conv_partials_kernel(%arg0: i32, %arg1: i32, %arg2: memref<1x424x128xbf16, #tpu.memory_space<vmem>>, %arg3: memref<9x128x128xbf16, #tpu.memory_space<vmem>>, %arg4: memref<1x128x128xbf16, #tpu.memory_space<vmem>>, %arg5: memref<1x1x2x128xf32, #tpu.memory_space<vmem>>) attributes {dimension_semantics = [#tpu.dimension_semantics<parallel>, #tpu.dimension_semantics<parallel>], iteration_bounds = array<i64: 2, 3>, scalar_prefetch = 0 : i64, scratch_operands = 0 : i64, tpu.core_type = #tpu.core_type<tc>, window_params = [{transform_indices = @transform_0, window_bounds = array<i64: 1, 424, 128>}, {pipeline_mode = #tpu.pipeline_mode<synchronous>, transform_indices = @transform_1, window_bounds = array<i64: 9, 128, 128>}, {transform_indices = @transform_2, window_bounds = array<i64: 1, 128, 128>}, {transform_indices = @transform_3, window_bounds = array<i64: 1, 1, 2, 128>}]} {
    %c128_i32 = arith.constant 128 : i32
    %0 = arith.muli %arg1, %c128_i32 : i32
    %1 = tpu.assume_multiple %0, 128 : i32
    %c0 = arith.constant 0 : index
    %2 = arith.index_cast %1 : i32 to index
    %c0_0 = arith.constant 0 : index
    %3 = vector.load %arg2[%c0, %2, %c0_0] : memref<1x424x128xbf16, #tpu.memory_space<vmem>>, vector<1x168x128xbf16>
    %4 = vector.shape_cast %3 : vector<1x168x128xbf16> to vector<168x128xbf16>
    %5 = vector.extract_strided_slice %4 {offsets = [0, 0], sizes = [128, 128], strides = [1, 1]} : vector<168x128xbf16> to vector<128x128xbf16>
    %c0_1 = arith.constant 0 : index
    %c0_2 = arith.constant 0 : index
    %c0_3 = arith.constant 0 : index
    %6 = vector.load %arg3[%c0_1, %c0_2, %c0_3] : memref<9x128x128xbf16, #tpu.memory_space<vmem>>, vector<1x128x128xbf16>
    %7 = vector.shape_cast %6 : vector<1x128x128xbf16> to vector<128x128xbf16>
    %cst = arith.constant dense<0.000000e+00> : vector<128x128xf32>
    %8 = tpu.matmul %5, %7, %cst {dimension_numbers = #tpu.dot_dimension_numbers<[1], [0], [0], [1], [0, 0, 1, 1], [], []>} : vector<128x128xbf16>, vector<128x128xbf16>, vector<128x128xf32> -> vector<128x128xf32>
    %9 = vector.extract_strided_slice %4 {offsets = [1, 0], sizes = [128, 128], strides = [1, 1]} : vector<168x128xbf16> to vector<128x128xbf16>
    %c1 = arith.constant 1 : index
    %c0_4 = arith.constant 0 : index
    %c0_5 = arith.constant 0 : index
    %10 = vector.load %arg3[%c1, %c0_4, %c0_5] : memref<9x128x128xbf16, #tpu.memory_space<vmem>>, vector<1x128x128xbf16>
    %11 = vector.shape_cast %10 : vector<1x128x128xbf16> to vector<128x128xbf16>
    %cst_6 = arith.constant dense<0.000000e+00> : vector<128x128xf32>
    %12 = tpu.matmul %9, %11, %cst_6 {dimension_numbers = #tpu.dot_dimension_numbers<[1], [0], [0], [1], [0, 0, 1, 1], [], []>} : vector<128x128xbf16>, vector<128x128xbf16>, vector<128x128xf32> -> vector<128x128xf32>
    %13 = arith.addf %8, %12 : vector<128x128xf32>
    %14 = vector.extract_strided_slice %4 {offsets = [2, 0], sizes = [128, 128], strides = [1, 1]} : vector<168x128xbf16> to vector<128x128xbf16>
    %c2 = arith.constant 2 : index
    %c0_7 = arith.constant 0 : index
    %c0_8 = arith.constant 0 : index
    %15 = vector.load %arg3[%c2, %c0_7, %c0_8] : memref<9x128x128xbf16, #tpu.memory_space<vmem>>, vector<1x128x128xbf16>
    %16 = vector.shape_cast %15 : vector<1x128x128xbf16> to vector<128x128xbf16>
    %cst_9 = arith.constant dense<0.000000e+00> : vector<128x128xf32>
    %17 = tpu.matmul %14, %16, %cst_9 {dimension_numbers = #tpu.dot_dimension_numbers<[1], [0], [0], [1], [0, 0, 1, 1], [], []>} : vector<128x128xbf16>, vector<128x128xbf16>, vector<128x128xf32> -> vector<128x128xf32>
    %18 = arith.addf %13, %17 : vector<128x128xf32>
    %19 = vector.extract_strided_slice %4 {offsets = [18, 0], sizes = [128, 128], strides = [1, 1]} : vector<168x128xbf16> to vector<128x128xbf16>
    %c3 = arith.constant 3 : index
    %c0_10 = arith.constant 0 : index
    %c0_11 = arith.constant 0 : index
    %20 = vector.load %arg3[%c3, %c0_10, %c0_11] : memref<9x128x128xbf16, #tpu.memory_space<vmem>>, vector<1x128x128xbf16>
    %21 = vector.shape_cast %20 : vector<1x128x128xbf16> to vector<128x128xbf16>
    %cst_12 = arith.constant dense<0.000000e+00> : vector<128x128xf32>
    %22 = tpu.matmul %19, %21, %cst_12 {dimension_numbers = #tpu.dot_dimension_numbers<[1], [0], [0], [1], [0, 0, 1, 1], [], []>} : vector<128x128xbf16>, vector<128x128xbf16>, vector<128x128xf32> -> vector<128x128xf32>
    %23 = arith.addf %18, %22 : vector<128x128xf32>
    %24 = vector.extract_strided_slice %4 {offsets = [19, 0], sizes = [128, 128], strides = [1, 1]} : vector<168x128xbf16> to vector<128x128xbf16>
    %c4 = arith.constant 4 : index
    %c0_13 = arith.constant 0 : index
    %c0_14 = arith.constant 0 : index
    %25 = vector.load %arg3[%c4, %c0_13, %c0_14] : memref<9x128x128xbf16, #tpu.memory_space<vmem>>, vector<1x128x128xbf16>
    %26 = vector.shape_cast %25 : vector<1x128x128xbf16> to vector<128x128xbf16>
    %cst_15 = arith.constant dense<0.000000e+00> : vector<128x128xf32>
    %27 = tpu.matmul %24, %26, %cst_15 {dimension_numbers = #tpu.dot_dimension_numbers<[1], [0], [0], [1], [0, 0, 1, 1], [], []>} : vector<128x128xbf16>, vector<128x128xbf16>, vector<128x128xf32> -> vector<128x128xf32>
    %28 = arith.addf %23, %27 : vector<128x128xf32>
    %29 = vector.extract_strided_slice %4 {offsets = [20, 0], sizes = [128, 128], strides = [1, 1]} : vector<168x128xbf16> to vector<128x128xbf16>
    %c5 = arith.constant 5 : index
    %c0_16 = arith.constant 0 : index
    %c0_17 = arith.constant 0 : index
    %30 = vector.load %arg3[%c5, %c0_16, %c0_17] : memref<9x128x128xbf16, #tpu.memory_space<vmem>>, vector<1x128x128xbf16>
    %31 = vector.shape_cast %30 : vector<1x128x128xbf16> to vector<128x128xbf16>
    %cst_18 = arith.constant dense<0.000000e+00> : vector<128x128xf32>
    %32 = tpu.matmul %29, %31, %cst_18 {dimension_numbers = #tpu.dot_dimension_numbers<[1], [0], [0], [1], [0, 0, 1, 1], [], []>} : vector<128x128xbf16>, vector<128x128xbf16>, vector<128x128xf32> -> vector<128x128xf32>
    %33 = arith.addf %28, %32 : vector<128x128xf32>
    %34 = vector.extract_strided_slice %4 {offsets = [36, 0], sizes = [128, 128], strides = [1, 1]} : vector<168x128xbf16> to vector<128x128xbf16>
    %c6 = arith.constant 6 : index
    %c0_19 = arith.constant 0 : index
    %c0_20 = arith.constant 0 : index
    %35 = vector.load %arg3[%c6, %c0_19, %c0_20] : memref<9x128x128xbf16, #tpu.memory_space<vmem>>, vector<1x128x128xbf16>
    %36 = vector.shape_cast %35 : vector<1x128x128xbf16> to vector<128x128xbf16>
    %cst_21 = arith.constant dense<0.000000e+00> : vector<128x128xf32>
    %37 = tpu.matmul %34, %36, %cst_21 {dimension_numbers = #tpu.dot_dimension_numbers<[1], [0], [0], [1], [0, 0, 1, 1], [], []>} : vector<128x128xbf16>, vector<128x128xbf16>, vector<128x128xf32> -> vector<128x128xf32>
    %38 = arith.addf %33, %37 : vector<128x128xf32>
    %39 = vector.extract_strided_slice %4 {offsets = [37, 0], sizes = [128, 128], strides = [1, 1]} : vector<168x128xbf16> to vector<128x128xbf16>
    %c7 = arith.constant 7 : index
    %c0_22 = arith.constant 0 : index
    %c0_23 = arith.constant 0 : index
    %40 = vector.load %arg3[%c7, %c0_22, %c0_23] : memref<9x128x128xbf16, #tpu.memory_space<vmem>>, vector<1x128x128xbf16>
    %41 = vector.shape_cast %40 : vector<1x128x128xbf16> to vector<128x128xbf16>
    %cst_24 = arith.constant dense<0.000000e+00> : vector<128x128xf32>
    %42 = tpu.matmul %39, %41, %cst_24 {dimension_numbers = #tpu.dot_dimension_numbers<[1], [0], [0], [1], [0, 0, 1, 1], [], []>} : vector<128x128xbf16>, vector<128x128xbf16>, vector<128x128xf32> -> vector<128x128xf32>
    %43 = arith.addf %38, %42 : vector<128x128xf32>
    %44 = vector.extract_strided_slice %4 {offsets = [38, 0], sizes = [128, 128], strides = [1, 1]} : vector<168x128xbf16> to vector<128x128xbf16>
    %c8 = arith.constant 8 : index
    %c0_25 = arith.constant 0 : index
    %c0_26 = arith.constant 0 : index
    %45 = vector.load %arg3[%c8, %c0_25, %c0_26] : memref<9x128x128xbf16, #tpu.memory_space<vmem>>, vector<1x128x128xbf16>
    %46 = vector.shape_cast %45 : vector<1x128x128xbf16> to vector<128x128xbf16>
    %cst_27 = arith.constant dense<0.000000e+00> : vector<128x128xf32>
    %47 = tpu.matmul %44, %46, %cst_27 {dimension_numbers = #tpu.dot_dimension_numbers<[1], [0], [0], [1], [0, 0, 1, 1], [], []>} : vector<128x128xbf16>, vector<128x128xbf16>, vector<128x128xf32> -> vector<128x128xf32>
    %48 = arith.addf %43, %47 : vector<128x128xf32>
    %49 = tpu.iota {dimensions = array<i32: 0>} : vector<128x1xi32>
    %50 = vector.broadcast %1 : i32 to vector<128x1xi32>
    %51 = arith.addi %50, %49 : vector<128x1xi32>
    %c288_i32 = arith.constant 288 : i32
    %52 = vector.broadcast %c288_i32 : i32 to vector<128x1xi32>
    %53 = arith.cmpi slt, %51, %52 : vector<128x1xi32>
    %c18_i32 = arith.constant 18 : i32
    %c0_i32 = arith.constant 0 : i32
    %54 = arith.cmpi eq, %c18_i32, %c0_i32 : i32
    %c1_i32 = arith.constant 1 : i32
    %55 = arith.select %54, %c1_i32, %c18_i32 : i32
    %56 = vector.broadcast %55 : i32 to vector<128x1xi32>
    %57 = arith.remsi %51, %56 : vector<128x1xi32>
    %c0_i32_28 = arith.constant 0 : i32
    %58 = vector.broadcast %c0_i32_28 : i32 to vector<128x1xi32>
    %59 = arith.cmpi ne, %57, %58 : vector<128x1xi32>
    %c0_i32_29 = arith.constant 0 : i32
    %60 = vector.broadcast %c0_i32_29 : i32 to vector<128x1xi32>
    %61 = arith.cmpi slt, %57, %60 : vector<128x1xi32>
    %c0_i32_30 = arith.constant 0 : i32
    %62 = arith.cmpi slt, %55, %c0_i32_30 : i32
    %63 = vector.broadcast %62 : i1 to vector<128x1xi1>
    %64 = vector.broadcast %63 : vector<128x1xi1> to vector<128x1xi1>
    %65 = arith.xori %61, %64 : vector<128x1xi1>
    %66 = arith.andi %65, %59 : vector<128x1xi1>
    %67 = vector.broadcast %55 : i32 to vector<128x1xi32>
    %68 = arith.addi %57, %67 : vector<128x1xi32>
    %69 = arith.select %66, %68, %57 : vector<128x1xi1>, vector<128x1xi32>
    %c16_i32 = arith.constant 16 : i32
    %70 = vector.broadcast %c16_i32 : i32 to vector<128x1xi32>
    %71 = arith.cmpi slt, %69, %70 : vector<128x1xi32>
    %72 = arith.andi %53, %71 : vector<128x1xi1>
    %73 = arith.extui %72 : vector<128x1xi1> to vector<128x1xi32>
    %74 = arith.sitofp %73 : vector<128x1xi32> to vector<128x1xf32>
    %75 = vector.broadcast %74 : vector<128x1xf32> to vector<128x128xf32>
    %76 = arith.mulf %48, %75 : vector<128x128xf32>
    %77 = arith.truncf %76 : vector<128x128xf32> to vector<128x128xbf16>
    %c0_31 = arith.constant 0 : index
    %c0_32 = arith.constant 0 : index
    %c0_33 = arith.constant 0 : index
    %78 = vector.load %arg4[%c0_31, %c0_32, %c0_33] : memref<1x128x128xbf16, #tpu.memory_space<vmem>>, vector<1x128x128xbf16>
    %79 = vector.shape_cast %78 : vector<1x128x128xbf16> to vector<128x128xbf16>
    %80 = vector.shape_cast %77 : vector<128x128xbf16> to vector<1x128x128xbf16>
    tpu.vector_store %arg4[%c0_31, %c0_32, %c0_33], %80 {strides = array<i32>} : memref<1x128x128xbf16, #tpu.memory_space<vmem>>, vector<1x128x128xbf16>,
    %81 = vector.shape_cast %74 : vector<128x1xf32> to vector<1x128x1xf32>
    %cst_34 = arith.constant dense<0.000000e+00> : vector<1xf32>
    %82 = vector.multi_reduction <add>, %81, %cst_34 [1, 2] : vector<1x128x1xf32> to vector<1xf32>
    %83 = vector.shape_cast %82 : vector<1xf32> to vector<1x1x1xf32>
    %84 = vector.extract %83[0, 0, 0] : f32 from vector<1x1x1xf32>
    %cst_35 = arith.constant 1.000000e+00 : f32
    %85 = arith.maximumf %84, %cst_35 : f32
    %cst_36 = arith.constant 1.000000e+00 : f32
    %86 = arith.divf %cst_36, %85 : f32
    %cst_37 = arith.constant dense<0.000000e+00> : vector<128xf32>
    %87 = vector.multi_reduction <add>, %76, %cst_37 [0] : vector<128x128xf32> to vector<128xf32>
    %88 = vector.shape_cast %87 : vector<128xf32> to vector<1x128xf32>
    %89 = vector.broadcast %86 : f32 to vector<1x128xf32>
    %90 = arith.mulf %88, %89 : vector<1x128xf32>
    %91 = vector.broadcast %90 : vector<1x128xf32> to vector<128x128xf32>
    %92 = arith.subf %48, %91 : vector<128x128xf32>
    %93 = vector.broadcast %74 : vector<128x1xf32> to vector<128x128xf32>
    %94 = arith.mulf %92, %93 : vector<128x128xf32>
    %95 = arith.mulf %94, %94 : vector<128x128xf32>
    %cst_38 = arith.constant dense<0.000000e+00> : vector<128xf32>
    %96 = vector.multi_reduction <add>, %95, %cst_38 [0] : vector<128x128xf32> to vector<128xf32>
    %97 = vector.shape_cast %96 : vector<128xf32> to vector<1x128xf32>
    %98 = tpu.iota {dimensions = array<i32: 0>} : vector<2x128xi32>
    %c0_i32_39 = arith.constant 0 : i32
    %99 = vector.broadcast %c0_i32_39 : i32 to vector<2x128xi32>
    %100 = arith.cmpi eq, %98, %99 : vector<2x128xi32>
    %101 = vector.shape_cast %88 : vector<1x128xf32> to vector<1x128xf32>
    %102 = vector.broadcast %101 : vector<1x128xf32> to vector<2x128xf32>
    %103 = vector.shape_cast %97 : vector<1x128xf32> to vector<1x128xf32>
    %104 = vector.broadcast %103 : vector<1x128xf32> to vector<2x128xf32>
    %105 = arith.select %100, %102, %104 : vector<2x128xi1>, vector<2x128xf32>
    %c0_40 = arith.constant 0 : index
    %c0_41 = arith.constant 0 : index
    %c0_42 = arith.constant 0 : index
    %c0_43 = arith.constant 0 : index
    %106 = vector.load %arg5[%c0_40, %c0_41, %c0_42, %c0_43] : memref<1x1x2x128xf32, #tpu.memory_space<vmem>>, vector<1x1x2x128xf32>
    %107 = vector.shape_cast %106 : vector<1x1x2x128xf32> to vector<2x128xf32>
    %108 = vector.shape_cast %105 : vector<2x128xf32> to vector<1x1x2x128xf32>
    tpu.vector_store %arg5[%c0_40, %c0_41, %c0_42, %c0_43], %108 {strides = array<i32>} : memref<1x1x2x128xf32, #tpu.memory_space<vmem>>, vector<1x1x2x128xf32>,
    return
  }
  func.func @transform_0(%arg0: i32, %arg1: i32) -> (i32, i32, i32) {
    %c0_i32 = arith.constant 0 : i32
    %c0_i32_0 = arith.constant 0 : i32
    %c0_i32_1 = arith.constant 0 : i32
    return %arg0, %c0_i32, %c0_i32_0 : i32, i32, i32
  }
  func.func @transform_1(%arg0: i32, %arg1: i32) -> (i32, i32, i32) {
    %c0_i32 = arith.constant 0 : i32
    %c0_i32_0 = arith.constant 0 : i32
    %c0_i32_1 = arith.constant 0 : i32
    %c0_i32_2 = arith.constant 0 : i32
    return %c0_i32, %c0_i32_0, %c0_i32_1 : i32, i32, i32
  }
  func.func @transform_2(%arg0: i32, %arg1: i32) -> (i32, i32, i32) {
    %c0_i32 = arith.constant 0 : i32
    %c0_i32_0 = arith.constant 0 : i32
    return %arg0, %arg1, %c0_i32 : i32, i32, i32
  }
  func.func @transform_3(%arg0: i32, %arg1: i32) -> (i32, i32, i32, i32) {
    %c0_i32 = arith.constant 0 : i32
    %c0_i32_0 = arith.constant 0 : i32
    %c0_i32_1 = arith.constant 0 : i32
    return %arg0, %arg1, %c0_i32, %c0_i32_0 : i32, i32, i32, i32
  }
}

</mosaic_0001>

<llo_original>
// kernel: double_conv.5
$region0: #{double_conv.5}
  #allocation0 [shape = 'u32[]', space=smem, size = 0x4, offset = 0x4, fixed_abs, tag = 'smem constant byte address 0x4 - core index']
  #allocation1 [shape = 'u32[144,128]{1,0:T(1,128)}', space=vmem, size = 0x12000, scoped, tag = 'internal scratch']
  %s0 = inlined_call_operand.vmem [shape: bf16[2,384,128], index: 0, kind: input, shape index: {}]
  %s1 = inlined_call_operand.vmem [shape: f32[1,128], index: 1, kind: input, shape index: {}]
  %s2 = inlined_call_operand.vmem [shape: f32[1,128], index: 2, kind: input, shape index: {}]
  %s3 = inlined_call_operand.vmem [shape: bf16[2,384,128], index: 3, kind: output, shape index: {}]
  %s4 = sld [smem:[#allocation0]]
  $region45: #{double_conv.5} parent=0
    _
  %s6 = ssub.s32 1, %s4
  %s7 = scalar_select 0, %s6, %s4
  loop: start=0, step=1, limit=8
  $region2: #{double_conv.5} parent=0 // loop_pre_header
    _
  $region3: #{double_conv.5} parent=0 // loop_header
    %s9 = sphi 0, %s13
    %p10 = scmp.ge.s32.totalorder %s9, 8
    %s16 = sphi 0, %s28
    %s17 = sphi 0, %s24
    %s18 = sphi 0, %s16
    %s19 = sphi 0, %s17
    %s20 = sphi 0, %s18
    %s21 = sphi 0, %s19
    %s33 = sphi 0, %s35
    %s36 = sphi 0, %s33
    %s37 = sphi 0, %s36
    %s53 = sphi 0, %s37
    %s57 = sphi 0, %s57
    %s59 = sphi 0, %s57
    %s60 = sphi 0, %s59
    %s74 = sphi 0, %s60
    %s78 = sphi 0, %s78
    %s80 = sphi 0, %s78
    %s81 = sphi 0, %s80
    %s95 = sphi 0, %s81
    %s103 = sphi 0, %s105
    %s106 = sphi 0, %s103
    %s107 = sphi 0, %s106
    %s123 = sphi 0, %s107
  $region4: #{double_conv.5} parent=0 // loop_header_branch
    %12 = sbr.rel (%p10) target = $region8
  $region5: #{double_conv.5} parent=0 // loop_body
    %s14 = ssub.s32 %s9, 1
    %s15 = ssub.s32 %s9, 2
    %s22 = sadd.s32 1, %s17
    %p23 = scmp.ge.s32.totalorder %s22, 3
    %s24 = scalar_select %p23, 0, %s22
    %s25 = sadd.s32 1, %s16
    %s26 = scalar_select %p23, %s25, %s16
    %p27 = scmp.ge.s32.totalorder %s26, 2
    %s28 = scalar_select %p27, 0, %s26
    %s29 = ssub.s32 %s16, %s28
    %s30 = ssub.s32 %s17, %s24
    %s31 = sor.u32 %s29, %s30
    %p32 = scmp.eq.s32.totalorder %s31, 0
    %s34 = sadd.s32 %s33, 1
    %s35 = scalar_select %p32, %s33, %s34
    %p38 = pneg %p32
    %p39 = scmp.eq.s32.totalorder %s9, 5
    %p40 = por %p38, %p39
    %p41 = scmp.ne.s32.totalorder %s33, %s36
    %p42 = scmp.eq.s32.totalorder %s9, 0
    %p43 = por %p41, %p42
    %p44 = scmp.ne.s32.totalorder %s33, %s36
    %p45 = scmp.eq.s32.totalorder %s14, 5
    %p46 = por %p44, %p45
    %p47 = scmp.ne.s32.totalorder %s36, %s37
    %p48 = scmp.eq.s32.totalorder %s14, 0
    %p49 = por %p47, %p48
    %p50 = scmp.ne.s32.totalorder %s36, %s37
    %p51 = scmp.eq.s32.totalorder %s15, 5
    %p52 = por %p50, %p51
    %p54 = scmp.ne.s32.totalorder %s37, %s53
    %p55 = scmp.eq.s32.totalorder %s15, 0
    %p56 = por %p54, %p55
    %s58 = sadd.s32 %s57, 1
    %p61 = scmp.eq.s32.totalorder %s9, 5
    %p62 = scmp.ne.s32.totalorder %s57, %s59
    %p63 = scmp.eq.s32.totalorder %s9, 0
    %p64 = por %p62, %p63
    %p65 = scmp.ne.s32.totalorder %s57, %s59
    %p66 = scmp.eq.s32.totalorder %s14, 5
    %p67 = por %p65, %p66
    %p68 = scmp.ne.s32.totalorder %s59, %s60
    %p69 = scmp.eq.s32.totalorder %s14, 0
    %p70 = por %p68, %p69
    %p71 = scmp.ne.s32.totalorder %s59, %s60
    %p72 = scmp.eq.s32.totalorder %s15, 5
    %p73 = por %p71, %p72
    %p75 = scmp.ne.s32.totalorder %s60, %s74
    %p76 = scmp.eq.s32.totalorder %s15, 0
    %p77 = por %p75, %p76
    %s79 = sadd.s32 %s78, 1
    %p82 = scmp.eq.s32.totalorder %s9, 5
    %p83 = scmp.ne.s32.totalorder %s78, %s80
    %p84 = scmp.eq.s32.totalorder %s9, 0
    %p85 = por %p83, %p84
    %p86 = scmp.ne.s32.totalorder %s78, %s80
    %p87 = scmp.eq.s32.totalorder %s14, 5
    %p88 = por %p86, %p87
    %p89 = scmp.ne.s32.totalorder %s80, %s81
    %p90 = scmp.eq.s32.totalorder %s14, 0
    %p91 = por %p89, %p90
    %p92 = scmp.ne.s32.totalorder %s80, %s81
    %p93 = scmp.eq.s32.totalorder %s15, 5
    %p94 = por %p92, %p93
    %p96 = scmp.ne.s32.totalorder %s81, %s95
    %p97 = scmp.eq.s32.totalorder %s15, 0
    %p98 = por %p96, %p97
    %s99 = ssub.s32 %s16, %s28
    %s100 = ssub.s32 %s17, %s24
    %s101 = sor.u32 %s99, %s100
    %p102 = scmp.eq.s32.totalorder %s101, 0
    %s104 = sadd.s32 %s103, 1
    %s105 = scalar_select %p102, %s103, %s104
    %p108 = pneg %p102
    %p109 = scmp.eq.s32.totalorder %s9, 5
    %p110 = por %p108, %p109
    %p111 = scmp.ne.s32.totalorder %s103, %s106
    %p112 = scmp.eq.s32.totalorder %s9, 0
    %p113 = por %p111, %p112
    %p114 = scmp.ne.s32.totalorder %s103, %s106
    %p115 = scmp.eq.s32.totalorder %s14, 5
    %p116 = por %p114, %p115
    %p117 = scmp.ne.s32.totalorder %s106, %s107
    %p118 = scmp.eq.s32.totalorder %s14, 0
    %p119 = por %p117, %p118
    %p120 = scmp.ne.s32.totalorder %s106, %s107
    %p121 = scmp.eq.s32.totalorder %s15, 5
    %p122 = por %p120, %p121
    %p124 = scmp.ne.s32.totalorder %s107, %s123
    %p125 = scmp.eq.s32.totalorder %s15, 0
    %p126 = por %p124, %p125
    %p127 = scmp.le.s32.totalorder 1, %s9
    %p128 = scmp.lt.s32.totalorder %s9, 7
    %p129 = pnand %p127, %p128
    %p130 = pneg %p129
    // Predicated region
    $region9: #{double_conv.5} parent=5 // pred_check
      _
    $region10: #{double_conv.5} parent=5 // pred_check_branch
      %132 = sbr.rel (%p129) target = $region12
    $region11: #{double_conv.5} parent=5 // pred_region
      %s133 = ssub.s32 %s9, 1
      // Predicated region
      $region13: #{double_conv.5} parent=11 // pred_check
        %p134 = pneg %p70
      $region14: #{double_conv.5} parent=11 // pred_check_branch
        %136 = sbr.rel (%p134) target = $region16
      $region15: #{double_conv.5} parent=11 // pred_region
        _
      $region16: #{double_conv.5} parent=11 // pred_fallthru
        _
      // Predicated region
      $region17: #{double_conv.5} parent=11 // pred_check
        %p137 = pneg %p91
      $region18: #{double_conv.5} parent=11 // pred_check_branch
        %139 = sbr.rel (%p137) target = $region20
      $region19: #{double_conv.5} parent=11 // pred_region
        _
      $region20: #{double_conv.5} parent=11 // pred_fallthru
        _
    $region12: #{double_conv.5} parent=5 // pred_fallthru
      _
    %p140 = scmp.lt.s32.totalorder %s9, 6
    // Predicated region
    $region21: #{double_conv.5} parent=5 // pred_check
      %p141 = pneg %p140
    $region22: #{double_conv.5} parent=5 // pred_check_branch
      %143 = sbr.rel (%p141) target = $region24
    $region23: #{double_conv.5} parent=5 // pred_region
      // Predicated region
      $region25: #{double_conv.5} parent=23 // pred_check
        %p144 = pneg %p43
      $region26: #{double_conv.5} parent=23 // pred_check_branch
        %146 = sbr.rel (%p144) target = $region28
      $region27: #{double_conv.5} parent=23 // pred_region
        %s147 = smul.u32 16, %s17
        %p148 = scmp.lt.s32.totalorder %s16, 1
        %s149 = scalar_select %p148, %s16, 1
        %p150 = scmp.lt.s32.totalorder %s147, 47
        %s151 = scalar_select %p150, %s147, 47
        %s152 = smul.addr %s149, 48
        %s153 = sadd.s32 %s151, %s152
        %s154 = smul.addr %s153, 4
        %s155 = scalar_lea.vmem %s0, %s154
        %s156 = smul.u32 16, %s17
      $region28: #{double_conv.5} parent=23 // pred_fallthru
        _
    $region24: #{double_conv.5} parent=5 // pred_fallthru
      _
    %p157 = scmp.le.s32.totalorder 1, %s9
    %p158 = scmp.lt.s32.totalorder %s9, 7
    %p159 = pnand %p157, %p158
    %p160 = pneg %p159
    // Predicated region
    $region29: #{double_conv.5} parent=5 // pred_check
      _
    $region30: #{double_conv.5} parent=5 // pred_check_branch
      %162 = sbr.rel (%p159) target = $region32
    $region31: #{double_conv.5} parent=5 // pred_region
      %s163 = ssub.s32 %s9, 1
      %s164 = smul.u32 16, %s19
      %p165 = scmp.lt.s32.totalorder %s18, 1
      %s166 = scalar_select %p165, %s18, 1
      %p167 = scmp.lt.s32.totalorder %s164, 47
      %s168 = scalar_select %p167, %s164, 47
      %s169 = smul.addr %s166, 48
      %s170 = sadd.s32 %s168, %s169
      %s171 = smul.addr %s170, 4
      %s172 = scalar_lea.vmem %s0, %s171
      %p173 = pneg %p49
      %p174 = pneg %p46
      %p175 = pneg %p70
      %p176 = pneg %p67
      %p177 = pneg %p91
      %p178 = pneg %p88
      %p179 = pneg %p119
      %p180 = pneg %p116
      %s181 = smul.u32 16, %s19
      %p182 = scmp.lt.s32.totalorder %s18, 1
      %s183 = scalar_select %p182, %s18, 1
      %p184 = scmp.lt.s32.totalorder %s181, 47
      %s185 = scalar_select %p184, %s181, 47
      %s186 = smul.addr %s183, 48
      %s187 = sadd.s32 %s185, %s186
      %s188 = smul.addr %s187, 4
      %s189 = scalar_lea.vmem %s3, %s188
      %s190 = smul.u32 16, %s19
      %p191 = scmp.lt.s32.totalorder %s18, 1
      %s192 = scalar_select %p191, %s18, 1
      %p193 = scmp.lt.s32.totalorder %s190, 47
      %s194 = scalar_select %p193, %s190, 47
      %s195 = smul.addr %s192, 48
      %s196 = sadd.s32 %s194, %s195
      %s197 = smul.addr %s196, 4
      %s198 = scalar_lea.vmem %s0, %s197
      %s199 = smul.u32 16, %s19
      %s200 = smul.u32 16, %s19
      %p201 = scmp.lt.s32.totalorder %s18, 1
      %s202 = scalar_select %p201, %s18, 1
      %p203 = scmp.lt.s32.totalorder %s200, 47
      %s204 = scalar_select %p203, %s200, 47
      %s205 = smul.addr %s202, 48
      %s206 = sadd.s32 %s204, %s205
      %s207 = smul.addr %s206, 4
      %s208 = scalar_lea.vmem %s3, %s207
      %s209 = smul.u32 16, %s19
      %s210 = smul.u32 %s19, 128
      %v211 = vlaneseq
      %v212 = vshrl.u32 %v211, 7
      %v213 = vadd.s32 %v212, 8
      %v214 = vadd.s32 %v212, 16
      %v215 = vadd.s32 %v212, 24
      %v216 = vadd.s32 %v212, 32
      %v217 = vadd.s32 %v212, 40
      %v218 = vadd.s32 %v212, 48
      %v219 = vadd.s32 %v212, 56
      %v220 = vadd.s32 %v212, 64
      %v221 = vadd.s32 %v212, 72
      %v222 = vadd.s32 %v212, 80
      %v223 = vadd.s32 %v212, 88
      %v224 = vadd.s32 %v212, 96
      %v225 = vadd.s32 %v212, 104
      %v226 = vadd.s32 %v212, 112
      %v227 = vadd.s32 %v212, 120
      %v228 = vstv %s210
      %v229 = vadd.s32 %v228, %v212
      %v230 = vadd.s32 %v228, %v213
      %v231 = vadd.s32 %v228, %v214
      %v232 = vadd.s32 %v228, %v215
      %v233 = vadd.s32 %v228, %v216
      %v234 = vadd.s32 %v228, %v217
      %v235 = vadd.s32 %v228, %v218
      %v236 = vadd.s32 %v228, %v219
      %v237 = vadd.s32 %v228, %v220
      %v238 = vadd.s32 %v228, %v221
      %v239 = vadd.s32 %v228, %v222
      %v240 = vadd.s32 %v228, %v223
      %v241 = vadd.s32 %v228, %v224
      %v242 = vadd.s32 %v228, %v225
      %v243 = vadd.s32 %v228, %v226
      %v244 = vadd.s32 %v228, %v227
      %vm245 = vcmp.lt.s32.totalorder %v229, 288
      %vm246 = vcmp.lt.s32.totalorder %v230, 288
      %vm247 = vcmp.lt.s32.totalorder %v231, 288
      %vm248 = vcmp.lt.s32.totalorder %v232, 288
      %vm249 = vcmp.lt.s32.totalorder %v233, 288
      %vm250 = vcmp.lt.s32.totalorder %v234, 288
      %vm251 = vcmp.lt.s32.totalorder %v235, 288
      %vm252 = vcmp.lt.s32.totalorder %v236, 288
      %vm253 = vcmp.lt.s32.totalorder %v237, 288
      %vm254 = vcmp.lt.s32.totalorder %v238, 288
      %vm255 = vcmp.lt.s32.totalorder %v239, 288
      %vm256 = vcmp.lt.s32.totalorder %v240, 288
      %vm257 = vcmp.lt.s32.totalorder %v241, 288
      %vm258 = vcmp.lt.s32.totalorder %v242, 288
      %vm259 = vcmp.lt.s32.totalorder %v243, 288
      %vm260 = vcmp.lt.s32.totalorder %v244, 288
      %vm261 = vcmp.lt.s32.totalorder %v229, 0
      %v262 = vsub.s32 0, %v229
      %v263 = vsel %vm261, %v262, %v229
      %v264 = vmul.u32.u64.compose %v263, 3817748708
      %v265 = vextract.low.u32 %v264
      %v266 = vextract.high.u32 %v264
      %v267 = vshrl.u32 %v266, 4
      %v268 = vmul.u32 %v267, 18
      %v269 = vsub.s32 %v263, %v268
      %v270 = vsub.s32 0, %v269
      %v271 = vsel %vm261, %v270, %v269
      %vm272 = vcmp.lt.s32.totalorder %v230, 0
      %v273 = vsub.s32 0, %v230
      %v274 = vsel %vm272, %v273, %v230
      %v275 = vmul.u32.u64.compose %v274, 3817748708
      %v276 = vextract.low.u32 %v275
      %v277 = vextract.high.u32 %v275
      %v278 = vshrl.u32 %v277, 4
      %v279 = vmul.u32 %v278, 18
      %v280 = vsub.s32 %v274, %v279
      %v281 = vsub.s32 0, %v280
      %v282 = vsel %vm272, %v281, %v280
      %vm283 = vcmp.lt.s32.totalorder %v231, 0
      %v284 = vsub.s32 0, %v231
      %v285 = vsel %vm283, %v284, %v231
      %v286 = vmul.u32.u64.compose %v285, 3817748708
      %v287 = vextract.low.u32 %v286
      %v288 = vextract.high.u32 %v286
      %v289 = vshrl.u32 %v288, 4
      %v290 = vmul.u32 %v289, 18
      %v291 = vsub.s32 %v285, %v290
      %v292 = vsub.s32 0, %v291
      %v293 = vsel %vm283, %v292, %v291
      %vm294 = vcmp.lt.s32.totalorder %v232, 0
      %v295 = vsub.s32 0, %v232
      %v296 = vsel %vm294, %v295, %v232
      %v297 = vmul.u32.u64.compose %v296, 3817748708
      %v298 = vextract.low.u32 %v297
      %v299 = vextract.high.u32 %v297
      %v300 = vshrl.u32 %v299, 4
      %v301 = vmul.u32 %v300, 18
      %v302 = vsub.s32 %v296, %v301
      %v303 = vsub.s32 0, %v302
      %v304 = vsel %vm294, %v303, %v302
      %vm305 = vcmp.lt.s32.totalorder %v233, 0
      %v306 = vsub.s32 0, %v233
      %v307 = vsel %vm305, %v306, %v233
      %v308 = vmul.u32.u64.compose %v307, 3817748708
      %v309 = vextract.low.u32 %v308
      %v310 = vextract.high.u32 %v308
      %v311 = vshrl.u32 %v310, 4
      %v312 = vmul.u32 %v311, 18
      %v313 = vsub.s32 %v307, %v312
      %v314 = vsub.s32 0, %v313
      %v315 = vsel %vm305, %v314, %v313
      %vm316 = vcmp.lt.s32.totalorder %v234, 0
      %v317 = vsub.s32 0, %v234
      %v318 = vsel %vm316, %v317, %v234
      %v319 = vmul.u32.u64.compose %v318, 3817748708
      %v320 = vextract.low.u32 %v319
      %v321 = vextract.high.u32 %v319
      %v322 = vshrl.u32 %v321, 4
      %v323 = vmul.u32 %v322, 18
      %v324 = vsub.s32 %v318, %v323
      %v325 = vsub.s32 0, %v324
      %v326 = vsel %vm316, %v325, %v324
      %vm327 = vcmp.lt.s32.totalorder %v235, 0
      %v328 = vsub.s32 0, %v235
      %v329 = vsel %vm327, %v328, %v235
      %v330 = vmul.u32.u64.compose %v329, 3817748708
      %v331 = vextract.low.u32 %v330
      %v332 = vextract.high.u32 %v330
      %v333 = vshrl.u32 %v332, 4
      %v334 = vmul.u32 %v333, 18
      %v335 = vsub.s32 %v329, %v334
      %v336 = vsub.s32 0, %v335
      %v337 = vsel %vm327, %v336, %v335
      %vm338 = vcmp.lt.s32.totalorder %v236, 0
      %v339 = vsub.s32 0, %v236
      %v340 = vsel %vm338, %v339, %v236
      %v341 = vmul.u32.u64.compose %v340, 3817748708
      %v342 = vextract.low.u32 %v341
      %v343 = vextract.high.u32 %v341
      %v344 = vshrl.u32 %v343, 4
      %v345 = vmul.u32 %v344, 18
      %v346 = vsub.s32 %v340, %v345
      %v347 = vsub.s32 0, %v346
      %v348 = vsel %vm338, %v347, %v346
      %vm349 = vcmp.lt.s32.totalorder %v237, 0
      %v350 = vsub.s32 0, %v237
      %v351 = vsel %vm349, %v350, %v237
      %v352 = vmul.u32.u64.compose %v351, 3817748708
      %v353 = vextract.low.u32 %v352
      %v354 = vextract.high.u32 %v352
      %v355 = vshrl.u32 %v354, 4
      %v356 = vmul.u32 %v355, 18
      %v357 = vsub.s32 %v351, %v356
      %v358 = vsub.s32 0, %v357
      %v359 = vsel %vm349, %v358, %v357
      %vm360 = vcmp.lt.s32.totalorder %v238, 0
      %v361 = vsub.s32 0, %v238
      %v362 = vsel %vm360, %v361, %v238
      %v363 = vmul.u32.u64.compose %v362, 3817748708
      %v364 = vextract.low.u32 %v363
      %v365 = vextract.high.u32 %v363
      %v366 = vshrl.u32 %v365, 4
      %v367 = vmul.u32 %v366, 18
      %v368 = vsub.s32 %v362, %v367
      %v369 = vsub.s32 0, %v368
      %v370 = vsel %vm360, %v369, %v368
      %vm371 = vcmp.lt.s32.totalorder %v239, 0
      %v372 = vsub.s32 0, %v239
      %v373 = vsel %vm371, %v372, %v239
      %v374 = vmul.u32.u64.compose %v373, 3817748708
      %v375 = vextract.low.u32 %v374
      %v376 = vextract.high.u32 %v374
      %v377 = vshrl.u32 %v376, 4
      %v378 = vmul.u32 %v377, 18
      %v379 = vsub.s32 %v373, %v378
      %v380 = vsub.s32 0, %v379
      %v381 = vsel %vm371, %v380, %v379
      %vm382 = vcmp.lt.s32.totalorder %v240, 0
      %v383 = vsub.s32 0, %v240
      %v384 = vsel %vm382, %v383, %v240
      %v385 = vmul.u32.u64.compose %v384, 3817748708
      %v386 = vextract.low.u32 %v385
      %v387 = vextract.high.u32 %v385
      %v388 = vshrl.u32 %v387, 4
      %v389 = vmul.u32 %v388, 18
      %v390 = vsub.s32 %v384, %v389
      %v391 = vsub.s32 0, %v390
      %v392 = vsel %vm382, %v391, %v390
      %vm393 = vcmp.lt.s32.totalorder %v241, 0
      %v394 = vsub.s32 0, %v241
      %v395 = vsel %vm393, %v394, %v241
      %v396 = vmul.u32.u64.compose %v395, 3817748708
      %v397 = vextract.low.u32 %v396
      %v398 = vextract.high.u32 %v396
      %v399 = vshrl.u32 %v398, 4
      %v400 = vmul.u32 %v399, 18
      %v401 = vsub.s32 %v395, %v400
      %v402 = vsub.s32 0, %v401
      %v403 = vsel %vm393, %v402, %v401
      %vm404 = vcmp.lt.s32.totalorder %v242, 0
      %v405 = vsub.s32 0, %v242
      %v406 = vsel %vm404, %v405, %v242
      %v407 = vmul.u32.u64.compose %v406, 3817748708
      %v408 = vextract.low.u32 %v407
      %v409 = vextract.high.u32 %v407
      %v410 = vshrl.u32 %v409, 4
      %v411 = vmul.u32 %v410, 18
      %v412 = vsub.s32 %v406, %v411
      %v413 = vsub.s32 0, %v412
      %v414 = vsel %vm404, %v413, %v412
      %vm415 = vcmp.lt.s32.totalorder %v243, 0
      %v416 = vsub.s32 0, %v243
      %v417 = vsel %vm415, %v416, %v243
      %v418 = vmul.u32.u64.compose %v417, 3817748708
      %v419 = vextract.low.u32 %v418
      %v420 = vextract.high.u32 %v418
      %v421 = vshrl.u32 %v420, 4
      %v422 = vmul.u32 %v421, 18
      %v423 = vsub.s32 %v417, %v422
      %v424 = vsub.s32 0, %v423
      %v425 = vsel %vm415, %v424, %v423
      %vm426 = vcmp.lt.s32.totalorder %v244, 0
      %v427 = vsub.s32 0, %v244
      %v428 = vsel %vm426, %v427, %v244
      %v429 = vmul.u32.u64.compose %v428, 3817748708
      %v430 = vextract.low.u32 %v429
      %v431 = vextract.high.u32 %v429
      %v432 = vshrl.u32 %v431, 4
      %v433 = vmul.u32 %v432, 18
      %v434 = vsub.s32 %v428, %v433
      %v435 = vsub.s32 0, %v434
      %v436 = vsel %vm426, %v435, %v434
      %vm437 = vcmp.ne.s32.totalorder %v271, 0
      %vm438 = vcmp.ne.s32.totalorder %v282, 0
      %vm439 = vcmp.ne.s32.totalorder %v293, 0
      %vm440 = vcmp.ne.s32.totalorder %v304, 0
      %vm441 = vcmp.ne.s32.totalorder %v315, 0
      %vm442 = vcmp.ne.s32.totalorder %v326, 0
      %vm443 = vcmp.ne.s32.totalorder %v337, 0
      %vm444 = vcmp.ne.s32.totalorder %v348, 0
      %vm445 = vcmp.ne.s32.totalorder %v359, 0
      %vm446 = vcmp.ne.s32.totalorder %v370, 0
      %vm447 = vcmp.ne.s32.totalorder %v381, 0
      %vm448 = vcmp.ne.s32.totalorder %v392, 0
      %vm449 = vcmp.ne.s32.totalorder %v403, 0
      %vm450 = vcmp.ne.s32.totalorder %v414, 0
      %vm451 = vcmp.ne.s32.totalorder %v425, 0
      %vm452 = vcmp.ne.s32.totalorder %v436, 0
      %vm453 = vcmp.lt.s32.totalorder %v271, 0
      %vm454 = vcmp.lt.s32.totalorder %v282, 0
      %vm455 = vcmp.lt.s32.totalorder %v293, 0
      %vm456 = vcmp.lt.s32.totalorder %v304, 0
      %vm457 = vcmp.lt.s32.totalorder %v315, 0
      %vm458 = vcmp.lt.s32.totalorder %v326, 0
      %vm459 = vcmp.lt.s32.totalorder %v337, 0
      %vm460 = vcmp.lt.s32.totalorder %v348, 0
      %vm461 = vcmp.lt.s32.totalorder %v359, 0
      %vm462 = vcmp.lt.s32.totalorder %v370, 0
      %vm463 = vcmp.lt.s32.totalorder %v381, 0
      %vm464 = vcmp.lt.s32.totalorder %v392, 0
      %vm465 = vcmp.lt.s32.totalorder %v403, 0
      %vm466 = vcmp.lt.s32.totalorder %v414, 0
      %vm467 = vcmp.lt.s32.totalorder %v425, 0
      %vm468 = vcmp.lt.s32.totalorder %v436, 0
      %vm469 = vmand %vm453, %vm437
      %vm470 = vmand %vm454, %vm438
      %vm471 = vmand %vm455, %vm439
      %vm472 = vmand %vm456, %vm440
      %vm473 = vmand %vm457, %vm441
      %vm474 = vmand %vm458, %vm442
      %vm475 = vmand %vm459, %vm443
      %vm476 = vmand %vm460, %vm444
      %vm477 = vmand %vm461, %vm445
      %vm478 = vmand %vm462, %vm446
      %vm479 = vmand %vm463, %vm447
      %vm480 = vmand %vm464, %vm448
      %vm481 = vmand %vm465, %vm449
      %vm482 = vmand %vm466, %vm450
      %vm483 = vmand %vm467, %vm451
      %vm484 = vmand %vm468, %vm452
      %v485 = vadd.s32 %v271, 18
      %v486 = vadd.s32 %v282, 18
      %v487 = vadd.s32 %v293, 18
      %v488 = vadd.s32 %v304, 18
      %v489 = vadd.s32 %v315, 18
      %v490 = vadd.s32 %v326, 18
      %v491 = vadd.s32 %v337, 18
      %v492 = vadd.s32 %v348, 18
      %v493 = vadd.s32 %v359, 18
      %v494 = vadd.s32 %v370, 18
      %v495 = vadd.s32 %v381, 18
      %v496 = vadd.s32 %v392, 18
      %v497 = vadd.s32 %v403, 18
      %v498 = vadd.s32 %v414, 18
      %v499 = vadd.s32 %v425, 18
      %v500 = vadd.s32 %v436, 18
      %v501 = vsel %vm469, %v485, %v271
      %v502 = vsel %vm470, %v486, %v282
      %v503 = vsel %vm471, %v487, %v293
      %v504 = vsel %vm472, %v488, %v304
      %v505 = vsel %vm473, %v489, %v315
      %v506 = vsel %vm474, %v490, %v326
      %v507 = vsel %vm475, %v491, %v337
      %v508 = vsel %vm476, %v492, %v348
      %v509 = vsel %vm477, %v493, %v359
      %v510 = vsel %vm478, %v494, %v370
      %v511 = vsel %vm479, %v495, %v381
      %v512 = vsel %vm480, %v496, %v392
      %v513 = vsel %vm481, %v497, %v403
      %v514 = vsel %vm482, %v498, %v414
      %v515 = vsel %vm483, %v499, %v425
      %v516 = vsel %vm484, %v500, %v436
      %vm517 = vcmp.lt.s32.totalorder %v501, 16
      %vm518 = vcmp.lt.s32.totalorder %v502, 16
      %vm519 = vcmp.lt.s32.totalorder %v503, 16
      %vm520 = vcmp.lt.s32.totalorder %v504, 16
      %vm521 = vcmp.lt.s32.totalorder %v505, 16
      %vm522 = vcmp.lt.s32.totalorder %v506, 16
      %vm523 = vcmp.lt.s32.totalorder %v507, 16
      %vm524 = vcmp.lt.s32.totalorder %v508, 16
      %vm525 = vcmp.lt.s32.totalorder %v509, 16
      %vm526 = vcmp.lt.s32.totalorder %v510, 16
      %vm527 = vcmp.lt.s32.totalorder %v511, 16
      %vm528 = vcmp.lt.s32.totalorder %v512, 16
      %vm529 = vcmp.lt.s32.totalorder %v513, 16
      %vm530 = vcmp.lt.s32.totalorder %v514, 16
      %vm531 = vcmp.lt.s32.totalorder %v515, 16
      %vm532 = vcmp.lt.s32.totalorder %v516, 16
      %vm533 = vmand %vm245, %vm517
      %vm534 = vmand %vm246, %vm518
      %vm535 = vmand %vm247, %vm519
      %vm536 = vmand %vm248, %vm520
      %vm537 = vmand %vm249, %vm521
      %vm538 = vmand %vm250, %vm522
      %vm539 = vmand %vm251, %vm523
      %vm540 = vmand %vm252, %vm524
      %vm541 = vmand %vm253, %vm525
      %vm542 = vmand %vm254, %vm526
      %vm543 = vmand %vm255, %vm527
      %vm544 = vmand %vm256, %vm528
      %vm545 = vmand %vm257, %vm529
      %vm546 = vmand %vm258, %vm530
      %vm547 = vmand %vm259, %vm531
      %vm548 = vmand %vm260, %vm532
      %v549 = vld [vmem:[%s198] sm:$0xf]
      %v550 = vld [vmem:[%s198 + $0x4] sm:$0xf]
      %v551 = vld [vmem:[%s198 + $0x8] sm:$0xf]
      %v552 = vld [vmem:[%s198 + $0xc] sm:$0xf]
      %v553 = vld [vmem:[%s198 + $0x10] sm:$0xf]
      %v554 = vld [vmem:[%s198 + $0x14] sm:$0xf]
      %v555 = vld [vmem:[%s198 + $0x18] sm:$0xf]
      %v556 = vld [vmem:[%s198 + $0x1c] sm:$0xf]
      %v557 = vld [vmem:[%s198 + $0x20] sm:$0xf]
      %v558 = vld [vmem:[%s198 + $0x24] sm:$0xf]
      %v559 = vld [vmem:[%s198 + $0x28] sm:$0xf]
      %v560 = vld [vmem:[%s198 + $0x2c] sm:$0xf]
      %v561 = vld [vmem:[%s198 + $0x30] sm:$0xf]
      %v562 = vld [vmem:[%s198 + $0x34] sm:$0xf]
      %v563 = vld [vmem:[%s198 + $0x38] sm:$0xf]
      %v564 = vld [vmem:[%s198 + $0x3c] sm:$0xf]
      %v565 = vunpack.c.l.bf16 %v549
      %v566 = vunpack.c.l.bf16 %v550
      %v567 = vunpack.c.l.bf16 %v551
      %v568 = vunpack.c.l.bf16 %v552
      %v569 = vunpack.c.l.bf16 %v553
      %v570 = vunpack.c.l.bf16 %v554
      %v571 = vunpack.c.l.bf16 %v555
      %v572 = vunpack.c.l.bf16 %v556
      %v573 = vunpack.c.l.bf16 %v557
      %v574 = vunpack.c.l.bf16 %v558
      %v575 = vunpack.c.l.bf16 %v559
      %v576 = vunpack.c.l.bf16 %v560
      %v577 = vunpack.c.l.bf16 %v561
      %v578 = vunpack.c.l.bf16 %v562
      %v579 = vunpack.c.l.bf16 %v563
      %v580 = vunpack.c.l.bf16 %v564
      %v581 = vld [vmem:[%s1] sm:$0x1]
      %v583 = vlaneseq
      %v584 = vshrl.u32 %v583, 7
      %v585 = vsub.s32 0, %v584
      %v586 = vrot.slane %v581, %v585
      %v588 = vmul.f32 %v565, %v586
      %v589 = vmul.f32 %v566, %v586
      %v590 = vmul.f32 %v567, %v586
      %v591 = vmul.f32 %v568, %v586
      %v592 = vmul.f32 %v569, %v586
      %v593 = vmul.f32 %v570, %v586
      %v594 = vmul.f32 %v571, %v586
      %v595 = vmul.f32 %v572, %v586
      %v596 = vmul.f32 %v573, %v586
      %v597 = vmul.f32 %v574, %v586
      %v598 = vmul.f32 %v575, %v586
      %v599 = vmul.f32 %v576, %v586
      %v600 = vmul.f32 %v577, %v586
      %v601 = vmul.f32 %v578, %v586
      %v602 = vmul.f32 %v579, %v586
      %v603 = vmul.f32 %v580, %v586
      %v604 = vld [vmem:[%s2] sm:$0x1]
      %v606 = vlaneseq
      %v607 = vshrl.u32 %v606, 7
      %v608 = vsub.s32 0, %v607
      %v609 = vrot.slane %v604, %v608
      %v611 = vadd.f32 %v588, %v609
      %v612 = vadd.f32 %v589, %v609
      %v613 = vadd.f32 %v590, %v609
      %v614 = vadd.f32 %v591, %v609
      %v615 = vadd.f32 %v592, %v609
      %v616 = vadd.f32 %v593, %v609
      %v617 = vadd.f32 %v594, %v609
      %v618 = vadd.f32 %v595, %v609
      %v619 = vadd.f32 %v596, %v609
      %v620 = vadd.f32 %v597, %v609
      %v621 = vadd.f32 %v598, %v609
      %v622 = vadd.f32 %v599, %v609
      %v623 = vadd.f32 %v600, %v609
      %v624 = vadd.f32 %v601, %v609
      %v625 = vadd.f32 %v602, %v609
      %v626 = vadd.f32 %v603, %v609
      %v627 = vmax.f32 %v611, 0.0
      %v628 = vmax.f32 %v612, 0.0
      %v629 = vmax.f32 %v613, 0.0
      %v630 = vmax.f32 %v614, 0.0
      %v631 = vmax.f32 %v615, 0.0
      %v632 = vmax.f32 %v616, 0.0
      %v633 = vmax.f32 %v617, 0.0
      %v634 = vmax.f32 %v618, 0.0
      %v635 = vmax.f32 %v619, 0.0
      %v636 = vmax.f32 %v620, 0.0
      %v637 = vmax.f32 %v621, 0.0
      %v638 = vmax.f32 %v622, 0.0
      %v639 = vmax.f32 %v623, 0.0
      %v640 = vmax.f32 %v624, 0.0
      %v641 = vmax.f32 %v625, 0.0
      %v642 = vmax.f32 %v626, 0.0
      %v643 = vsel %vm533, 1, 0
      %v644 = vsel %vm534, 1, 0
      %v645 = vsel %vm535, 1, 0
      %v646 = vsel %vm536, 1, 0
      %v647 = vsel %vm537, 1, 0
      %v648 = vsel %vm538, 1, 0
      %v649 = vsel %vm539, 1, 0
      %v650 = vsel %vm540, 1, 0
      %v651 = vsel %vm541, 1, 0
      %v652 = vsel %vm542, 1, 0
      %v653 = vsel %vm543, 1, 0
      %v654 = vsel %vm544, 1, 0
      %v655 = vsel %vm545, 1, 0
      %v656 = vsel %vm546, 1, 0
      %v657 = vsel %vm547, 1, 0
      %v658 = vsel %vm548, 1, 0
      %vm659 = vcmp.eq.s32.totalorder %v643, 1
      %vm660 = vcmp.eq.s32.totalorder %v644, 1
      %vm661 = vcmp.eq.s32.totalorder %v645, 1
      %vm662 = vcmp.eq.s32.totalorder %v646, 1
      %vm663 = vcmp.eq.s32.totalorder %v647, 1
      %vm664 = vcmp.eq.s32.totalorder %v648, 1
      %vm665 = vcmp.eq.s32.totalorder %v649, 1
      %vm666 = vcmp.eq.s32.totalorder %v650, 1
      %vm667 = vcmp.eq.s32.totalorder %v651, 1
      %vm668 = vcmp.eq.s32.totalorder %v652, 1
      %vm669 = vcmp.eq.s32.totalorder %v653, 1
      %vm670 = vcmp.eq.s32.totalorder %v654, 1
      %vm671 = vcmp.eq.s32.totalorder %v655, 1
      %vm672 = vcmp.eq.s32.totalorder %v656, 1
      %vm673 = vcmp.eq.s32.totalorder %v657, 1
      %vm674 = vcmp.eq.s32.totalorder %v658, 1
      %v675 = vsel %vm659, %v627, 0.0
      %v676 = vsel %vm660, %v628, 0.0
      %v677 = vsel %vm661, %v629, 0.0
      %v678 = vsel %vm662, %v630, 0.0
      %v679 = vsel %vm663, %v631, 0.0
      %v680 = vsel %vm664, %v632, 0.0
      %v681 = vsel %vm665, %v633, 0.0
      %v682 = vsel %vm666, %v634, 0.0
      %v683 = vsel %vm667, %v635, 0.0
      %v684 = vsel %vm668, %v636, 0.0
      %v685 = vsel %vm669, %v637, 0.0
      %v686 = vsel %vm670, %v638, 0.0
      %v687 = vsel %vm671, %v639, 0.0
      %v688 = vsel %vm672, %v640, 0.0
      %v689 = vsel %vm673, %v641, 0.0
      %v690 = vsel %vm674, %v642, 0.0
      %v691 = vpack.c.bf16 %v676, %v675
      %v692 = vpack.c.bf16 %v678, %v677
      %v693 = vpack.c.bf16 %v680, %v679
      %v694 = vpack.c.bf16 %v682, %v681
      %v695 = vpack.c.bf16 %v684, %v683
      %v696 = vpack.c.bf16 %v686, %v685
      %v697 = vpack.c.bf16 %v688, %v687
      %v698 = vpack.c.bf16 %v690, %v689
      %v707 = vunpack.c.l.b16 %v691
      %v708 = vunpack.c.h.b16 %v691
      %v709 = vunpack.c.l.b16 %v692
      %v710 = vunpack.c.h.b16 %v692
      %v711 = vunpack.c.l.b16 %v693
      %v712 = vunpack.c.h.b16 %v693
      %v713 = vunpack.c.l.b16 %v694
      %v714 = vunpack.c.h.b16 %v694
      %v715 = vunpack.c.l.b16 %v695
      %v716 = vunpack.c.h.b16 %v695
      %v717 = vunpack.c.l.b16 %v696
      %v718 = vunpack.c.h.b16 %v696
      %v719 = vunpack.c.l.b16 %v697
      %v720 = vunpack.c.h.b16 %v697
      %v721 = vunpack.c.l.b16 %v698
      %v722 = vunpack.c.h.b16 %v698
      %v723 = vpack.c.b16 %v707, %v707
      %v724 = vpack.c.b16 %v708, %v708
      %v725 = vpack.c.b16 %v709, %v709
      %v726 = vpack.c.b16 %v710, %v710
      %v727 = vpack.c.b16 %v711, %v711
      %v728 = vpack.c.b16 %v712, %v712
      %v729 = vpack.c.b16 %v713, %v713
      %v730 = vpack.c.b16 %v714, %v714
      %v731 = vpack.c.b16 %v715, %v715
      %v732 = vpack.c.b16 %v716, %v716
      %v733 = vpack.c.b16 %v717, %v717
      %v734 = vpack.c.b16 %v718, %v718
      %v735 = vpack.c.b16 %v719, %v719
      %v736 = vpack.c.b16 %v720, %v720
      %v737 = vpack.c.b16 %v721, %v721
      %v738 = vpack.c.b16 %v722, %v722
      %755 = vst [vmem:[%s208] sm:$0xf] %v723
      %756 = vst [vmem:[%s208 + $0x4] sm:$0xf] %v724
      %757 = vst [vmem:[%s208 + $0x8] sm:$0xf] %v725
      %758 = vst [vmem:[%s208 + $0xc] sm:$0xf] %v726
      %759 = vst [vmem:[%s208 + $0x10] sm:$0xf] %v727
      %760 = vst [vmem:[%s208 + $0x14] sm:$0xf] %v728
      %761 = vst [vmem:[%s208 + $0x18] sm:$0xf] %v729
      %762 = vst [vmem:[%s208 + $0x1c] sm:$0xf] %v730
      %763 = vst [vmem:[%s208 + $0x20] sm:$0xf] %v731
      %764 = vst [vmem:[%s208 + $0x24] sm:$0xf] %v732
      %765 = vst [vmem:[%s208 + $0x28] sm:$0xf] %v733
      %766 = vst [vmem:[%s208 + $0x2c] sm:$0xf] %v734
      %767 = vst [vmem:[%s208 + $0x30] sm:$0xf] %v735
      %768 = vst [vmem:[%s208 + $0x34] sm:$0xf] %v736
      %769 = vst [vmem:[%s208 + $0x38] sm:$0xf] %v737
      %770 = vst [vmem:[%s208 + $0x3c] sm:$0xf] %v738
      %s771 = smul.u32 16, %s19
      %p772 = scmp.lt.s32.totalorder %s18, 1
      %s773 = scalar_select %p772, %s18, 1
      %p774 = scmp.lt.s32.totalorder %s771, 47
      %s775 = scalar_select %p774, %s771, 47
      %s776 = smul.addr %s773, 48
      %s777 = sadd.s32 %s775, %s776
      %s778 = smul.addr %s777, 4
      %s779 = scalar_lea.vmem %s3, %s778
      // Predicated region
      $region33: #{double_conv.5} parent=31 // pred_check
        %p780 = pneg %p116
      $region34: #{double_conv.5} parent=31 // pred_check_branch
        %782 = sbr.rel (%p780) target = $region36
      $region35: #{double_conv.5} parent=31 // pred_region
        %s783 = smul.u32 16, %s19
      $region36: #{double_conv.5} parent=31 // pred_fallthru
        _
    $region32: #{double_conv.5} parent=5 // pred_fallthru
      _
    %p784 = scmp.le.s32.totalorder 2, %s9
    // Predicated region
    $region37: #{double_conv.5} parent=5 // pred_check
      %p785 = pneg %p784
    $region38: #{double_conv.5} parent=5 // pred_check_branch
      %787 = sbr.rel (%p785) target = $region40
    $region39: #{double_conv.5} parent=5 // pred_region
      %s788 = ssub.s32 %s9, 2
      // Predicated region
      $region41: #{double_conv.5} parent=39 // pred_check
        %p789 = pneg %p122
      $region42: #{double_conv.5} parent=39 // pred_check_branch
        %791 = sbr.rel (%p789) target = $region44
      $region43: #{double_conv.5} parent=39 // pred_region
        %s792 = smul.u32 16, %s21
        %p793 = scmp.lt.s32.totalorder %s20, 1
        %s794 = scalar_select %p793, %s20, 1
        %p795 = scmp.lt.s32.totalorder %s792, 47
        %s796 = scalar_select %p795, %s792, 47
        %s797 = smul.addr %s794, 48
        %s798 = sadd.s32 %s796, %s797
        %s799 = smul.addr %s798, 4
        %s800 = scalar_lea.vmem %s3, %s799
      $region44: #{double_conv.5} parent=39 // pred_fallthru
        _
    $region40: #{double_conv.5} parent=5 // pred_fallthru
      _
  $region6: #{double_conv.5} parent=0 // loop_footer
    %s13 = sadd.s32 1, %s9
  $region7: #{double_conv.5} parent=0 // loop_footer_branch
    %8 = sbr.rel target = $region3
  $region8: #{double_conv.5} parent=0 // loop_exit
    _

// kernel: double_conv.4
$region0: #{double_conv.4}
  #allocation0 [shape = 'u32[]', space=smem, size = 0x4, offset = 0x4, fixed_abs, tag = 'smem constant byte address 0x4 - core index']
  #allocation1 [shape = 'u32[144,128]{1,0:T(1,128)}', space=vmem, size = 0x12000, scoped, tag = 'internal scratch']
  %s0 = inlined_call_operand.vmem [shape: bf16[2,424,4], index: 0, kind: input, shape index: {}]
  %s1 = inlined_call_operand.vmem [shape: bf16[9,4,128], index: 1, kind: input, shape index: {}]
  %s2 = inlined_call_operand.vmem [shape: bf16[2,384,128], index: 2, kind: output, shape index: {0}]
  %s3 = inlined_call_operand.vmem [shape: f32[2,3,2,128], index: 3, kind: output, shape index: {1}]
  %4 = xla_tuple %s2, %s3
  %s5 = sld [smem:[#allocation0]]
  $region49: #{double_conv.4} parent=0
    _
  %s7 = ssub.s32 1, %s5
  %s8 = scalar_select 0, %s7, %s5
  loop: start=0, step=1, limit=8
  $region2: #{double_conv.4} parent=0 // loop_pre_header
    _
  $region3: #{double_conv.4} parent=0 // loop_header
    %s10 = sphi 0, %s14
    %p11 = scmp.ge.s32.totalorder %s10, 8
    %s17 = sphi 0, %s29
    %s18 = sphi 0, %s25
    %s19 = sphi 0, %s17
    %s20 = sphi 0, %s18
    %s21 = sphi 0, %s19
    %s22 = sphi 0, %s20
    %s32 = sphi 0, %s34
    %s35 = sphi 0, %s32
    %s36 = sphi 0, %s35
    %s52 = sphi 0, %s36
    %s56 = sphi 0, %s56
    %s58 = sphi 0, %s56
    %s59 = sphi 0, %s58
    %s73 = sphi 0, %s59
    %s81 = sphi 0, %s83
    %s84 = sphi 0, %s81
    %s85 = sphi 0, %s84
    %s101 = sphi 0, %s85
    %s109 = sphi 0, %s111
    %s112 = sphi 0, %s109
    %s113 = sphi 0, %s112
    %s129 = sphi 0, %s113
  $region4: #{double_conv.4} parent=0 // loop_header_branch
    %13 = sbr.rel (%p11) target = $region8
  $region5: #{double_conv.4} parent=0 // loop_body
    %s15 = ssub.s32 %s10, 1
    %s16 = ssub.s32 %s10, 2
    %s23 = sadd.s32 1, %s18
    %p24 = scmp.ge.s32.totalorder %s23, 3
    %s25 = scalar_select %p24, 0, %s23
    %s26 = sadd.s32 1, %s17
    %s27 = scalar_select %p24, %s26, %s17
    %p28 = scmp.ge.s32.totalorder %s27, 2
    %s29 = scalar_select %p28, 0, %s27
    %s30 = ssub.s32 %s17, %s29
    %p31 = scmp.eq.s32.totalorder %s30, 0
    %s33 = sadd.s32 %s32, 1
    %s34 = scalar_select %p31, %s32, %s33
    %p37 = pneg %p31
    %p38 = scmp.eq.s32.totalorder %s10, 5
    %p39 = por %p37, %p38
    %p40 = scmp.ne.s32.totalorder %s32, %s35
    %p41 = scmp.eq.s32.totalorder %s10, 0
    %p42 = por %p40, %p41
    %p43 = scmp.ne.s32.totalorder %s32, %s35
    %p44 = scmp.eq.s32.totalorder %s15, 5
    %p45 = por %p43, %p44
    %p46 = scmp.ne.s32.totalorder %s35, %s36
    %p47 = scmp.eq.s32.totalorder %s15, 0
    %p48 = por %p46, %p47
    %p49 = scmp.ne.s32.totalorder %s35, %s36
    %p50 = scmp.eq.s32.totalorder %s16, 5
    %p51 = por %p49, %p50
    %p53 = scmp.ne.s32.totalorder %s36, %s52
    %p54 = scmp.eq.s32.totalorder %s16, 0
    %p55 = por %p53, %p54
    %s57 = sadd.s32 %s56, 1
    %p60 = scmp.eq.s32.totalorder %s10, 5
    %p61 = scmp.ne.s32.totalorder %s56, %s58
    %p62 = scmp.eq.s32.totalorder %s10, 0
    %p63 = por %p61, %p62
    %p64 = scmp.ne.s32.totalorder %s56, %s58
    %p65 = scmp.eq.s32.totalorder %s15, 5
    %p66 = por %p64, %p65
    %p67 = scmp.ne.s32.totalorder %s58, %s59
    %p68 = scmp.eq.s32.totalorder %s15, 0
    %p69 = por %p67, %p68
    %p70 = scmp.ne.s32.totalorder %s58, %s59
    %p71 = scmp.eq.s32.totalorder %s16, 5
    %p72 = por %p70, %p71
    %p74 = scmp.ne.s32.totalorder %s59, %s73
    %p75 = scmp.eq.s32.totalorder %s16, 0
    %p76 = por %p74, %p75
    %s77 = ssub.s32 %s17, %s29
    %s78 = ssub.s32 %s18, %s25
    %s79 = sor.u32 %s77, %s78
    %p80 = scmp.eq.s32.totalorder %s79, 0
    %s82 = sadd.s32 %s81, 1
    %s83 = scalar_select %p80, %s81, %s82
    %p86 = pneg %p80
    %p87 = scmp.eq.s32.totalorder %s10, 5
    %p88 = por %p86, %p87
    %p89 = scmp.ne.s32.totalorder %s81, %s84
    %p90 = scmp.eq.s32.totalorder %s10, 0
    %p91 = por %p89, %p90
    %p92 = scmp.ne.s32.totalorder %s81, %s84
    %p93 = scmp.eq.s32.totalorder %s15, 5
    %p94 = por %p92, %p93
    %p95 = scmp.ne.s32.totalorder %s84, %s85
    %p96 = scmp.eq.s32.totalorder %s15, 0
    %p97 = por %p95, %p96
    %p98 = scmp.ne.s32.totalorder %s84, %s85
    %p99 = scmp.eq.s32.totalorder %s16, 5
    %p100 = por %p98, %p99
    %p102 = scmp.ne.s32.totalorder %s85, %s101
    %p103 = scmp.eq.s32.totalorder %s16, 0
    %p104 = por %p102, %p103
    %s105 = ssub.s32 %s17, %s29
    %s106 = ssub.s32 %s18, %s25
    %s107 = sor.u32 %s105, %s106
    %p108 = scmp.eq.s32.totalorder %s107, 0
    %s110 = sadd.s32 %s109, 1
    %s111 = scalar_select %p108, %s109, %s110
    %p114 = pneg %p108
    %p115 = scmp.eq.s32.totalorder %s10, 5
    %p116 = por %p114, %p115
    %p117 = scmp.ne.s32.totalorder %s109, %s112
    %p118 = scmp.eq.s32.totalorder %s10, 0
    %p119 = por %p117, %p118
    %p120 = scmp.ne.s32.totalorder %s109, %s112
    %p121 = scmp.eq.s32.totalorder %s15, 5
    %p122 = por %p120, %p121
    %p123 = scmp.ne.s32.totalorder %s112, %s113
    %p124 = scmp.eq.s32.totalorder %s15, 0
    %p125 = por %p123, %p124
    %p126 = scmp.ne.s32.totalorder %s112, %s113
    %p127 = scmp.eq.s32.totalorder %s16, 5
    %p128 = por %p126, %p127
    %p130 = scmp.ne.s32.totalorder %s113, %s129
    %p131 = scmp.eq.s32.totalorder %s16, 0
    %p132 = por %p130, %p131
    %p133 = scmp.le.s32.totalorder 1, %s10
    %p134 = scmp.lt.s32.totalorder %s10, 7
    %p135 = pnand %p133, %p134
    %p136 = pneg %p135
    // Predicated region
    $region9: #{double_conv.4} parent=5 // pred_check
      _
    $region10: #{double_conv.4} parent=5 // pred_check_branch
      %138 = sbr.rel (%p135) target = $region12
    $region11: #{double_conv.4} parent=5 // pred_region
      %s139 = ssub.s32 %s10, 1
      // Predicated region
      $region13: #{double_conv.4} parent=11 // pred_check
        %p140 = pneg %p69
      $region14: #{double_conv.4} parent=11 // pred_check_branch
        %142 = sbr.rel (%p140) target = $region16
      $region15: #{double_conv.4} parent=11 // pred_region
        _
      $region16: #{double_conv.4} parent=11 // pred_fallthru
        _
    $region12: #{double_conv.4} parent=5 // pred_fallthru
      _
    %p143 = scmp.lt.s32.totalorder %s10, 6
    // Predicated region
    $region17: #{double_conv.4} parent=5 // pred_check
      %p144 = pneg %p143
    $region18: #{double_conv.4} parent=5 // pred_check_branch
      %146 = sbr.rel (%p144) target = $region20
    $region19: #{double_conv.4} parent=5 // pred_region
      // Predicated region
      $region21: #{double_conv.4} parent=19 // pred_check
        %p147 = pneg %p42
      $region22: #{double_conv.4} parent=19 // pred_check_branch
        %149 = sbr.rel (%p147) target = $region24
      $region23: #{double_conv.4} parent=19 // pred_region
        %p150 = scmp.lt.s32.totalorder %s17, 1
        %s151 = scalar_select %p150, %s17, 1
        %s152 = smul.addr %s151, 53
        %s153 = smul.addr %s152, 4
        %s154 = scalar_lea.vmem %s0, %s153
      $region24: #{double_conv.4} parent=19 // pred_fallthru
        _
    $region20: #{double_conv.4} parent=5 // pred_fallthru
      _
    %p155 = scmp.le.s32.totalorder 1, %s10
    %p156 = scmp.lt.s32.totalorder %s10, 7
    %p157 = pnand %p155, %p156
    %p158 = pneg %p157
    // Predicated region
    $region25: #{double_conv.4} parent=5 // pred_check
      _
    $region26: #{double_conv.4} parent=5 // pred_check_branch
      %160 = sbr.rel (%p157) target = $region28
    $region27: #{double_conv.4} parent=5 // pred_region
      %s161 = ssub.s32 %s10, 1
      %p162 = scmp.lt.s32.totalorder %s19, 1
      %s163 = scalar_select %p162, %s19, 1
      %s164 = smul.addr %s163, 53
      %s165 = smul.addr %s164, 4
      %s166 = scalar_lea.vmem %s0, %s165
      %p167 = pneg %p48
      %p168 = pneg %p45
      %p169 = pneg %p69
      %p170 = pneg %p66
      %p171 = pneg %p97
      %p172 = pneg %p94
      %s173 = smul.u32 16, %s20
      %p174 = scmp.lt.s32.totalorder %s19, 1
      %s175 = scalar_select %p174, %s19, 1
      %p176 = scmp.lt.s32.totalorder %s173, 47
      %s177 = scalar_select %p176, %s173, 47
      %s178 = smul.addr %s175, 48
      %s179 = sadd.s32 %s177, %s178
      %s180 = smul.addr %s179, 4
      %s181 = scalar_lea.vmem %s2, %s180
      %p182 = pneg %p125
      %p183 = pneg %p122
      %p184 = scmp.lt.s32.totalorder %s19, 1
      %s185 = scalar_select %p184, %s19, 1
      %p186 = scmp.lt.s32.totalorder %s20, 2
      %s187 = scalar_select %p186, %s20, 2
      %s188 = smul.addr %s185, 3
      %s189 = sadd.s32 %s187, %s188
      %s190 = smul.addr %s189, 2
      %s191 = scalar_lea.vmem %s3, %s190
      %p192 = scmp.lt.s32.totalorder %s19, 1
      %s193 = scalar_select %p192, %s19, 1
      %s194 = smul.addr %s193, 53
      %s195 = smul.addr %s194, 4
      %s196 = scalar_lea.vmem %s0, %s195
      %s197 = smul.u32 16, %s20
      %p198 = scmp.lt.s32.totalorder %s19, 1
      %s199 = scalar_select %p198, %s19, 1
      %p200 = scmp.lt.s32.totalorder %s197, 47
      %s201 = scalar_select %p200, %s197, 47
      %s202 = smul.addr %s199, 48
      %s203 = sadd.s32 %s201, %s202
      %s204 = smul.addr %s203, 4
      %s205 = scalar_lea.vmem %s2, %s204
      %s206 = smul.u32 16, %s20
      %p207 = scmp.lt.s32.totalorder %s19, 1
      %s208 = scalar_select %p207, %s19, 1
      %p209 = scmp.lt.s32.totalorder %s20, 2
      %s210 = scalar_select %p209, %s20, 2
      %s211 = smul.addr %s208, 3
      %s212 = sadd.s32 %s210, %s211
      %s213 = smul.addr %s212, 2
      %s214 = scalar_lea.vmem %s3, %s213
      %s216 = smul.u32 %s20, 128
      %s217 = sshra.s32 %s216, 3
      %s218 = sand.u32 %s216, 7
      %s219 = smul.addr %s217, 4
      %s220 = scalar_lea.vmem %s196, %s219
      %v221 = vld [vmem:[%s220] sm:$0xf]
      %v222 = vld [vmem:[%s220 + $0x4] sm:$0xf]
      %v223 = vld [vmem:[%s220 + $0x8] sm:$0xf]
      %v224 = vld [vmem:[%s220 + $0xc] sm:$0xf]
      %v225 = vld [vmem:[%s220 + $0x10] sm:$0xf]
      %v226 = vld [vmem:[%s220 + $0x14] sm:$0xf]
      %v227 = vld [vmem:[%s220 + $0x18] sm:$0xf]
      %v228 = vld [vmem:[%s220 + $0x1c] sm:$0xf]
      %v229 = vld [vmem:[%s220 + $0x20] sm:$0xf]
      %v230 = vld [vmem:[%s220 + $0x24] sm:$0xf]
      %v231 = vld [vmem:[%s220 + $0x28] sm:$0xf]
      %v232 = vld [vmem:[%s220 + $0x2c] sm:$0xf]
      %v233 = vld [vmem:[%s220 + $0x30] sm:$0xf]
      %v234 = vld [vmem:[%s220 + $0x34] sm:$0xf]
      %v235 = vld [vmem:[%s220 + $0x38] sm:$0xf]
      %v236 = vld [vmem:[%s220 + $0x3c] sm:$0xf]
      %v237 = vld [vmem:[%s220 + $0x40] sm:$0xf]
      %v238 = vld [vmem:[%s220 + $0x44] sm:$0xf]
      %v239 = vld [vmem:[%s220 + $0x48] sm:$0xf]
      %v240 = vld [vmem:[%s220 + $0x4c] sm:$0xf]
      %v241 = vld [vmem:[%s220 + $0x50] sm:$0xf]
      %v242 = vld [vmem:[%s1] sm:$0x3]
      %s243 = scalar_lea.vmem %s1, 2
      %v244 = vld [vmem:[%s243] sm:$0x3]
      %v262 = vunpack.c.l.b16 %v221
      %v263 = vunpack.c.l.b16 %v222
      %v264 = vunpack.c.l.b16 %v223
      %v265 = vunpack.c.l.b16 %v224
      %v266 = vunpack.c.l.b16 %v225
      %v267 = vunpack.c.l.b16 %v226
      %v268 = vunpack.c.l.b16 %v227
      %v269 = vunpack.c.l.b16 %v228
      %v270 = vunpack.c.l.b16 %v229
      %v271 = vunpack.c.l.b16 %v230
      %v272 = vunpack.c.l.b16 %v231
      %v273 = vunpack.c.l.b16 %v232
      %v274 = vunpack.c.l.b16 %v233
      %v275 = vunpack.c.l.b16 %v234
      %v276 = vunpack.c.l.b16 %v235
      %v277 = vunpack.c.l.b16 %v236
      %v278 = vunpack.c.l.b16 %v237
      %v279 = vpack.c.b16 %v263, %v262
      %v280 = vpack.c.b16 %v265, %v264
      %v281 = vpack.c.b16 %v267, %v266
      %v282 = vpack.c.b16 %v269, %v268
      %v283 = vpack.c.b16 %v271, %v270
      %v284 = vpack.c.b16 %v273, %v272
      %v285 = vpack.c.b16 %v275, %v274
      %v286 = vpack.c.b16 %v277, %v276
      %v287 = vpack.c.b16 %v278, %v278
      %vm288 = vsmask.f32 7424
      %v290 = vshrl.u32 %v279, 16
      %v292 = vshll.u32 %v279, 16
      %v294 = vrot.slane %v292, 1
      %v295 = vor.u32 %v290, %v294
      %v297 = vshll.u32 %v280, 16
      %v299 = vrot.slane %v297, 1
      %v300 = vsel %vm288, %v295, %v299
      %v301 = vshrl.u32 %v280, 16
      %v303 = vor.u32 %v301, %v299
      %v305 = vshll.u32 %v281, 16
      %v307 = vrot.slane %v305, 1
      %v308 = vsel %vm288, %v303, %v307
      %v309 = vshrl.u32 %v281, 16
      %v311 = vor.u32 %v309, %v307
      %v313 = vshll.u32 %v282, 16
      %v315 = vrot.slane %v313, 1
      %v316 = vsel %vm288, %v311, %v315
      %v317 = vshrl.u32 %v282, 16
      %v319 = vor.u32 %v317, %v315
      %v321 = vshll.u32 %v283, 16
      %v323 = vrot.slane %v321, 1
      %v324 = vsel %vm288, %v319, %v323
      %v325 = vshrl.u32 %v283, 16
      %v327 = vor.u32 %v325, %v323
      %v329 = vshll.u32 %v284, 16
      %v331 = vrot.slane %v329, 1
      %v332 = vsel %vm288, %v327, %v331
      %v333 = vshrl.u32 %v284, 16
      %v335 = vor.u32 %v333, %v331
      %v337 = vshll.u32 %v285, 16
      %v339 = vrot.slane %v337, 1
      %v340 = vsel %vm288, %v335, %v339
      %v341 = vshrl.u32 %v285, 16
      %v343 = vor.u32 %v341, %v339
      %v345 = vshll.u32 %v286, 16
      %v347 = vrot.slane %v345, 1
      %v348 = vsel %vm288, %v343, %v347
      %v349 = vshrl.u32 %v286, 16
      %v351 = vor.u32 %v349, %v347
      %v353 = vshll.u32 %v287, 16
      %v355 = vrot.slane %v353, 1
      %v356 = vsel %vm288, %v351, %v355
      %vm357 = vcmask 31744
      %v359 = vsel %vm357, %v300, 0
      %v362 = vsel %vm357, %v308, 0
      %v365 = vsel %vm357, %v316, 0
      %v368 = vsel %vm357, %v324, 0
      %v371 = vsel %vm357, %v332, 0
      %v374 = vsel %vm357, %v340, 0
      %v377 = vsel %vm357, %v348, 0
      %v380 = vsel %vm357, %v356, 0
      %vm382 = vcmask 1041408
      %v384 = vsel %vm382, %v244, 0
      %386 = vmatprep.subr.bf16.mxu0 0
      %387 = vmatpush1.bf16.msra.mxu0 0
      %388 = vmatprep.subr.bf16.mxu0 0
      %389 = vmatpush1.bf16.msra.mxu0 0
      %390 = vmatprep.subr.bf16.mxu0 0
      %391 = vmatpush1.bf16.msra.mxu0 0
      %392 = vmatprep.subr.bf16.mxu0 0
      %393 = vmatpush1.bf16.msra.mxu0 0
      %394 = vmatprep.subr.bf16.mxu0 0
      %395 = vmatpush1.bf16.msra.mxu0 0
      %396 = vmatprep.subr.bf16.mxu0 0
      %397 = vmatpush1.bf16.msra.mxu0 0
      %398 = vmatprep.subr.bf16.mxu0 0
      %399 = vmatpush1.bf16.msra.mxu0 0
      %400 = vmatprep.subr.bf16.mxu0 0
      %401 = vmatpush1.bf16.msra.mxu0 %v384
      %402 = vmatprep.subr.bf16.mxu0 0
      %403 = vmatpush2.bf16.msra.mxu0 0
      %404 = vmatprep.subr.bf16.mxu0 0
      %405 = vmatpush2.bf16.msra.mxu0 0
      %406 = vmatprep.subr.bf16.mxu0 0
      %407 = vmatpush2.bf16.msra.mxu0 0
      %408 = vmatprep.subr.bf16.mxu0 0
      %409 = vmatpush2.bf16.msra.mxu0 0
      %410 = vmatprep.subr.bf16.mxu0 0
      %411 = vmatpush2.bf16.msra.mxu0 0
      %412 = vmatprep.subr.bf16.mxu0 0
      %413 = vmatpush2.bf16.msra.mxu0 0
      %414 = vmatprep.subr.bf16.mxu0 0
      %415 = vmatpush2.bf16.msra.mxu0 0
      %416 = vmatprep.subr.bf16.mxu0 0
      %417 = vmatpush2.bf16.msra.mxu0 0
      %418 = vmatprep.mubr.bf16.mxu0 0
      %419 = vmatmul.mubr.bf16.gmra.mxu0 %v359
      %v420 = vpop.f32.mrf.mxu0
      %v421 = vadd.f32 0.0, %v420
      %v422 = vpop.f32.mrf.mxu0
      %v423 = vpop.f32.mrf.mxu0
      %v424 = vadd.f32 0.0, %v423
      %v425 = vpop.f32.mrf.mxu0
      %426 = vmatprep.mubr.bf16.mxu0 0
      %427 = vmatmul.mubr.bf16.gmra.mxu0 %v362
      %v428 = vpop.f32.mrf.mxu0
      %v429 = vadd.f32 0.0, %v428
      %v430 = vpop.f32.mrf.mxu0
      %v431 = vpop.f32.mrf.mxu0
      %v432 = vadd.f32 0.0, %v431
      %v433 = vpop.f32.mrf.mxu0
      %434 = vmatprep.mubr.bf16.mxu0 0
      %435 = vmatmul.mubr.bf16.gmra.mxu0 %v365
      %v436 = vpop.f32.mrf.mxu0
      %v437 = vadd.f32 0.0, %v436
      %v438 = vpop.f32.mrf.mxu0
      %v439 = vpop.f32.mrf.mxu0
      %v440 = vadd.f32 0.0, %v439
      %v441 = vpop.f32.mrf.mxu0
      %442 = vmatprep.mubr.bf16.mxu0 0
      %443 = vmatmul.mubr.bf16.gmra.mxu0 %v368
      %v444 = vpop.f32.mrf.mxu0
      %v445 = vadd.f32 0.0, %v444
      %v446 = vpop.f32.mrf.mxu0
      %v447 = vpop.f32.mrf.mxu0
      %v448 = vadd.f32 0.0, %v447
      %v449 = vpop.f32.mrf.mxu0
      %450 = vmatprep.mubr.bf16.mxu0 0
      %451 = vmatmul.mubr.bf16.gmra.mxu0 %v371
      %v452 = vpop.f32.mrf.mxu0
      %v453 = vadd.f32 0.0, %v452
      %v454 = vpop.f32.mrf.mxu0
      %v455 = vpop.f32.mrf.mxu0
      %v456 = vadd.f32 0.0, %v455
      %v457 = vpop.f32.mrf.mxu0
      %458 = vmatprep.mubr.bf16.mxu0 0
      %459 = vmatmul.mubr.bf16.gmra.mxu0 %v374
      %v460 = vpop.f32.mrf.mxu0
      %v461 = vadd.f32 0.0, %v460
      %v462 = vpop.f32.mrf.mxu0
      %v463 = vpop.f32.mrf.mxu0
      %v464 = vadd.f32 0.0, %v463
      %v465 = vpop.f32.mrf.mxu0
      %466 = vmatprep.mubr.bf16.mxu0 0
      %467 = vmatmul.mubr.bf16.gmra.mxu0 %v377
      %v468 = vpop.f32.mrf.mxu0
      %v469 = vadd.f32 0.0, %v468
      %v470 = vpop.f32.mrf.mxu0
      %v471 = vpop.f32.mrf.mxu0
      %v472 = vadd.f32 0.0, %v471
      %v473 = vpop.f32.mrf.mxu0
      %474 = vmatprep.mubr.bf16.mxu0 0
      %475 = vmatmul.mubr.bf16.gmra.mxu0 %v380
      %v476 = vpop.f32.mrf.mxu0
      %v477 = vadd.f32 0.0, %v476
      %v478 = vpop.f32.mrf.mxu0
      %v479 = vpop.f32.mrf.mxu0
      %v480 = vadd.f32 0.0, %v479
      %v481 = vpop.f32.mrf.mxu0
      %482 = vdwg.mxu0
      %v483 = vsel %vm357, %v279, 0
      %v485 = vsel %vm357, %v280, 0
      %v487 = vsel %vm357, %v281, 0
      %v489 = vsel %vm357, %v282, 0
      %v491 = vsel %vm357, %v283, 0
      %v493 = vsel %vm357, %v284, 0
      %v495 = vsel %vm357, %v285, 0
      %v497 = vsel %vm357, %v286, 0
      %v500 = vsel %vm382, %v242, 0
      %502 = vmatprep.subr.bf16.mxu0 0
      %503 = vmatpush1.bf16.msra.mxu0 0
      %504 = vmatprep.subr.bf16.mxu0 0
      %505 = vmatpush1.bf16.msra.mxu0 0
      %506 = vmatprep.subr.bf16.mxu0 0
      %507 = vmatpush1.bf16.msra.mxu0 0
      %508 = vmatprep.subr.bf16.mxu0 0
      %509 = vmatpush1.bf16.msra.mxu0 0
      %510 = vmatprep.subr.bf16.mxu0 0
      %511 = vmatpush1.bf16.msra.mxu0 0
      %512 = vmatprep.subr.bf16.mxu0 0
      %513 = vmatpush1.bf16.msra.mxu0 0
      %514 = vmatprep.subr.bf16.mxu0 0
      %515 = vmatpush1.bf16.msra.mxu0 0
      %516 = vmatprep.subr.bf16.mxu0 0
      %517 = vmatpush1.bf16.msra.mxu0 %v500
      %518 = vmatprep.subr.bf16.mxu0 0
      %519 = vmatpush2.bf16.msra.mxu0 0
      %520 = vmatprep.subr.bf16.mxu0 0
      %521 = vmatpush2.bf16.msra.mxu0 0
      %522 = vmatprep.subr.bf16.mxu0 0
      %523 = vmatpush2.bf16.msra.mxu0 0
      %524 = vmatprep.subr.bf16.mxu0 0
      %525 = vmatpush2.bf16.msra.mxu0 0
      %526 = vmatprep.subr.bf16.mxu0 0
      %527 = vmatpush2.bf16.msra.mxu0 0
      %528 = vmatprep.subr.bf16.mxu0 0
      %529 = vmatpush2.bf16.msra.mxu0 0
      %530 = vmatprep.subr.bf16.mxu0 0
      %531 = vmatpush2.bf16.msra.mxu0 0
      %532 = vmatprep.subr.bf16.mxu0 0
      %533 = vmatpush2.bf16.msra.mxu0 0
      %534 = vmatprep.mubr.bf16.mxu0 0
      %535 = vmatmul.mubr.bf16.gmra.mxu0 %v483
      %v536 = vpop.f32.mrf.mxu0
      %v537 = vadd.f32 %v421, %v536
      %v538 = vpop.f32.mrf.mxu0
      %v539 = vpop.f32.mrf.mxu0
      %v540 = vadd.f32 %v424, %v539
      %v541 = vpop.f32.mrf.mxu0
      %542 = vmatprep.mubr.bf16.mxu0 0
      %543 = vmatmul.mubr.bf16.gmra.mxu0 %v485
      %v544 = vpop.f32.mrf.mxu0
      %v545 = vadd.f32 %v429, %v544
      %v546 = vpop.f32.mrf.mxu0
      %v547 = vpop.f32.mrf.mxu0
      %v548 = vadd.f32 %v432, %v547
      %v549 = vpop.f32.mrf.mxu0
      %550 = vmatprep.mubr.bf16.mxu0 0
      %551 = vmatmul.mubr.bf16.gmra.mxu0 %v487
      %v552 = vpop.f32.mrf.mxu0
      %v553 = vadd.f32 %v437, %v552
      %v554 = vpop.f32.mrf.mxu0
      %v555 = vpop.f32.mrf.mxu0
      %v556 = vadd.f32 %v440, %v555
      %v557 = vpop.f32.mrf.mxu0
      %558 = vmatprep.mubr.bf16.mxu0 0
      %559 = vmatmul.mubr.bf16.gmra.mxu0 %v489
      %v560 = vpop.f32.mrf.mxu0
      %v561 = vadd.f32 %v445, %v560
      %v562 = vpop.f32.mrf.mxu0
      %v563 = vpop.f32.mrf.mxu0
      %v564 = vadd.f32 %v448, %v563
      %v565 = vpop.f32.mrf.mxu0
      %566 = vmatprep.mubr.bf16.mxu0 0
      %567 = vmatmul.mubr.bf16.gmra.mxu0 %v491
      %v568 = vpop.f32.mrf.mxu0
      %v569 = vadd.f32 %v453, %v568
      %v570 = vpop.f32.mrf.mxu0
      %v571 = vpop.f32.mrf.mxu0
      %v572 = vadd.f32 %v456, %v571
      %v573 = vpop.f32.mrf.mxu0
      %574 = vmatprep.mubr.bf16.mxu0 0
      %575 = vmatmul.mubr.bf16.gmra.mxu0 %v493
      %v576 = vpop.f32.mrf.mxu0
      %v577 = vadd.f32 %v461, %v576
      %v578 = vpop.f32.mrf.mxu0
      %v579 = vpop.f32.mrf.mxu0
      %v580 = vadd.f32 %v464, %v579
      %v581 = vpop.f32.mrf.mxu0
      %582 = vmatprep.mubr.bf16.mxu0 0
      %583 = vmatmul.mubr.bf16.gmra.mxu0 %v495
      %v584 = vpop.f32.mrf.mxu0
      %v585 = vadd.f32 %v469, %v584
      %v586 = vpop.f32.mrf.mxu0
      %v587 = vpop.f32.mrf.mxu0
      %v588 = vadd.f32 %v472, %v587
      %v589 = vpop.f32.mrf.mxu0
      %590 = vmatprep.mubr.bf16.mxu0 0
      %591 = vmatmul.mubr.bf16.gmra.mxu0 %v497
      %v592 = vpop.f32.mrf.mxu0
      %v593 = vadd.f32 %v477, %v592
      %v594 = vpop.f32.mrf.mxu0
      %v595 = vpop.f32.mrf.mxu0
      %v596 = vadd.f32 %v480, %v595
      %v597 = vpop.f32.mrf.mxu0
      %598 = vdwg.mxu0
      %s599 = scalar_lea.vmem %s1, 4
      %v600 = vld [vmem:[%s599] sm:$0x3]
      %vm601 = vcmask 1046528
      %v602 = vrot.slane %v279, 1
      %v603 = vrot.slane %v280, 1
      %v604 = vsel %vm601, %v602, %v603
      %v605 = vrot.slane %v281, 1
      %v606 = vsel %vm601, %v603, %v605
      %v607 = vrot.slane %v282, 1
      %v608 = vsel %vm601, %v605, %v607
      %v609 = vrot.slane %v283, 1
      %v610 = vsel %vm601, %v607, %v609
      %v611 = vrot.slane %v284, 1
      %v612 = vsel %vm601, %v609, %v611
      %v613 = vrot.slane %v285, 1
      %v614 = vsel %vm601, %v611, %v613
      %v615 = vrot.slane %v286, 1
      %v616 = vsel %vm601, %v613, %v615
      %v617 = vrot.slane %v287, 1
      %v618 = vsel %vm601, %v615, %v617
      %v620 = vsel %vm357, %v604, 0
      %v623 = vsel %vm357, %v606, 0
      %v626 = vsel %vm357, %v608, 0
      %v629 = vsel %vm357, %v610, 0
      %v632 = vsel %vm357, %v612, 0
      %v635 = vsel %vm357, %v614, 0
      %v638 = vsel %vm357, %v616, 0
      %v641 = vsel %vm357, %v618, 0
      %v644 = vsel %vm382, %v600, 0
      %646 = vmatprep.subr.bf16.mxu0 0
      %647 = vmatpush1.bf16.msra.mxu0 0
      %648 = vmatprep.subr.bf16.mxu0 0
      %649 = vmatpush1.bf16.msra.mxu0 0
      %650 = vmatprep.subr.bf16.mxu0 0
      %651 = vmatpush1.bf16.msra.mxu0 0
      %652 = vmatprep.subr.bf16.mxu0 0
      %653 = vmatpush1.bf16.msra.mxu0 0
      %654 = vmatprep.subr.bf16.mxu0 0
      %655 = vmatpush1.bf16.msra.mxu0 0
      %656 = vmatprep.subr.bf16.mxu0 0
      %657 = vmatpush1.bf16.msra.mxu0 0
      %658 = vmatprep.subr.bf16.mxu0 0
      %659 = vmatpush1.bf16.msra.mxu0 0
      %660 = vmatprep.subr.bf16.mxu0 0
      %661 = vmatpush1.bf16.msra.mxu0 %v644
      %662 = vmatprep.subr.bf16.mxu0 0
      %663 = vmatpush2.bf16.msra.mxu0 0
      %664 = vmatprep.subr.bf16.mxu0 0
      %665 = vmatpush2.bf16.msra.mxu0 0
      %666 = vmatprep.subr.bf16.mxu0 0
      %667 = vmatpush2.bf16.msra.mxu0 0
      %668 = vmatprep.subr.bf16.mxu0 0
      %669 = vmatpush2.bf16.msra.mxu0 0
      %670 = vmatprep.subr.bf16.mxu0 0
      %671 = vmatpush2.bf16.msra.mxu0 0
      %672 = vmatprep.subr.bf16.mxu0 0
      %673 = vmatpush2.bf16.msra.mxu0 0
      %674 = vmatprep.subr.bf16.mxu0 0
      %675 = vmatpush2.bf16.msra.mxu0 0
      %676 = vmatprep.subr.bf16.mxu0 0
      %677 = vmatpush2.bf16.msra.mxu0 0
      %678 = vmatprep.mubr.bf16.mxu0 0
      %679 = vmatmul.mubr.bf16.gmra.mxu0 %v620
      %v680 = vpop.f32.mrf.mxu0
      %v681 = vadd.f32 0.0, %v680
      %v682 = vpop.f32.mrf.mxu0
      %v683 = vpop.f32.mrf.mxu0
      %v684 = vadd.f32 0.0, %v683
      %v685 = vpop.f32.mrf.mxu0
      %686 = vmatprep.mubr.bf16.mxu0 0
      %687 = vmatmul.mubr.bf16.gmra.mxu0 %v623
      %v688 = vpop.f32.mrf.mxu0
      %v689 = vadd.f32 0.0, %v688
      %v690 = vpop.f32.mrf.mxu0
      %v691 = vpop.f32.mrf.mxu0
      %v692 = vadd.f32 0.0, %v691
      %v693 = vpop.f32.mrf.mxu0
      %694 = vmatprep.mubr.bf16.mxu0 0
      %695 = vmatmul.mubr.bf16.gmra.mxu0 %v626
      %v696 = vpop.f32.mrf.mxu0
      %v697 = vadd.f32 0.0, %v696
      %v698 = vpop.f32.mrf.mxu0
      %v699 = vpop.f32.mrf.mxu0
      %v700 = vadd.f32 0.0, %v699
      %v701 = vpop.f32.mrf.mxu0
      %702 = vmatprep.mubr.bf16.mxu0 0
      %703 = vmatmul.mubr.bf16.gmra.mxu0 %v629
      %v704 = vpop.f32.mrf.mxu0
      %v705 = vadd.f32 0.0, %v704
      %v706 = vpop.f32.mrf.mxu0
      %v707 = vpop.f32.mrf.mxu0
      %v708 = vadd.f32 0.0, %v707
      %v709 = vpop.f32.mrf.mxu0
      %710 = vmatprep.mubr.bf16.mxu0 0
      %711 = vmatmul.mubr.bf16.gmra.mxu0 %v632
      %v712 = vpop.f32.mrf.mxu0
      %v713 = vadd.f32 0.0, %v712
      %v714 = vpop.f32.mrf.mxu0
      %v715 = vpop.f32.mrf.mxu0
      %v716 = vadd.f32 0.0, %v715
      %v717 = vpop.f32.mrf.mxu0
      %718 = vmatprep.mubr.bf16.mxu0 0
      %719 = vmatmul.mubr.bf16.gmra.mxu0 %v635
      %v720 = vpop.f32.mrf.mxu0
      %v721 = vadd.f32 0.0, %v720
      %v722 = vpop.f32.mrf.mxu0
      %v723 = vpop.f32.mrf.mxu0
      %v724 = vadd.f32 0.0, %v723
      %v725 = vpop.f32.mrf.mxu0
      %726 = vmatprep.mubr.bf16.mxu0 0
      %727 = vmatmul.mubr.bf16.gmra.mxu0 %v638
      %v728 = vpop.f32.mrf.mxu0
      %v729 = vadd.f32 0.0, %v728
      %v730 = vpop.f32.mrf.mxu0
      %v731 = vpop.f32.mrf.mxu0
      %v732 = vadd.f32 0.0, %v731
      %v733 = vpop.f32.mrf.mxu0
      %734 = vmatprep.mubr.bf16.mxu0 0
      %735 = vmatmul.mubr.bf16.gmra.mxu0 %v641
      %v736 = vpop.f32.mrf.mxu0
      %v737 = vadd.f32 0.0, %v736
      %v738 = vpop.f32.mrf.mxu0
      %v739 = vpop.f32.mrf.mxu0
      %v740 = vadd.f32 0.0, %v739
      %v741 = vpop.f32.mrf.mxu0
      %742 = vdwg.mxu0
      %v743 = vadd.f32 %v537, %v681
      %v744 = vadd.f32 %v540, %v684
      %v745 = vadd.f32 %v545, %v689
      %v746 = vadd.f32 %v548, %v692
      %v747 = vadd.f32 %v553, %v697
      %v748 = vadd.f32 %v556, %v700
      %v749 = vadd.f32 %v561, %v705
      %v750 = vadd.f32 %v564, %v708
      %v751 = vadd.f32 %v569, %v713
      %v752 = vadd.f32 %v572, %v716
      %v753 = vadd.f32 %v577, %v721
      %v754 = vadd.f32 %v580, %v724
      %v755 = vadd.f32 %v585, %v729
      %v756 = vadd.f32 %v588, %v732
      %v757 = vadd.f32 %v593, %v737
      %v758 = vadd.f32 %v596, %v740
      %s759 = scalar_lea.vmem %s1, 6
      %v760 = vld [vmem:[%s759] sm:$0x3]
      %v763 = vunpack.c.l.b16 %v238
      %v764 = vunpack.c.l.b16 %v239
      %v765 = vpack.c.b16 %v763, %v278
      %v766 = vpack.c.b16 %v764, %v764
      %v767 = vrot.slane %v765, 1
      %v768 = vsel %vm601, %v615, %v767
      %v769 = vrot.slane %v766, 1
      %v770 = vsel %vm601, %v767, %v769
      %v772 = vsel %vm357, %v768, 0
      %v775 = vsel %vm357, %v770, 0
      %v778 = vsel %vm382, %v760, 0
      %780 = vmatprep.subr.bf16.mxu0 0
      %781 = vmatpush1.bf16.msra.mxu0 0
      %782 = vmatprep.subr.bf16.mxu0 0
      %783 = vmatpush1.bf16.msra.mxu0 0
      %784 = vmatprep.subr.bf16.mxu0 0
      %785 = vmatpush1.bf16.msra.mxu0 0
      %786 = vmatprep.subr.bf16.mxu0 0
      %787 = vmatpush1.bf16.msra.mxu0 0
      %788 = vmatprep.subr.bf16.mxu0 0
      %789 = vmatpush1.bf16.msra.mxu0 0
      %790 = vmatprep.subr.bf16.mxu0 0
      %791 = vmatpush1.bf16.msra.mxu0 0
      %792 = vmatprep.subr.bf16.mxu0 0
      %793 = vmatpush1.bf16.msra.mxu0 0
      %794 = vmatprep.subr.bf16.mxu0 0
      %795 = vmatpush1.bf16.msra.mxu0 %v778
      %796 = vmatprep.subr.bf16.mxu0 0
      %797 = vmatpush2.bf16.msra.mxu0 0
      %798 = vmatprep.subr.bf16.mxu0 0
      %799 = vmatpush2.bf16.msra.mxu0 0
      %800 = vmatprep.subr.bf16.mxu0 0
      %801 = vmatpush2.bf16.msra.mxu0 0
      %802 = vmatprep.subr.bf16.mxu0 0
      %803 = vmatpush2.bf16.msra.mxu0 0
      %804 = vmatprep.subr.bf16.mxu0 0
      %805 = vmatpush2.bf16.msra.mxu0 0
      %806 = vmatprep.subr.bf16.mxu0 0
      %807 = vmatpush2.bf16.msra.mxu0 0
      %808 = vmatprep.subr.bf16.mxu0 0
      %809 = vmatpush2.bf16.msra.mxu0 0
      %810 = vmatprep.subr.bf16.mxu0 0
      %811 = vmatpush2.bf16.msra.mxu0 0
      %812 = vmatprep.mubr.bf16.mxu0 0
      %813 = vmatmul.mubr.bf16.gmra.mxu0 %v623
      %v814 = vpop.f32.mrf.mxu0
      %v815 = vadd.f32 0.0, %v814
      %v816 = vpop.f32.mrf.mxu0
      %v817 = vpop.f32.mrf.mxu0
      %v818 = vadd.f32 0.0, %v817
      %v819 = vpop.f32.mrf.mxu0
      %820 = vmatprep.mubr.bf16.mxu0 0
      %821 = vmatmul.mubr.bf16.gmra.mxu0 %v626
      %v822 = vpop.f32.mrf.mxu0
      %v823 = vadd.f32 0.0, %v822
      %v824 = vpop.f32.mrf.mxu0
      %v825 = vpop.f32.mrf.mxu0
      %v826 = vadd.f32 0.0, %v825
      %v827 = vpop.f32.mrf.mxu0
      %828 = vmatprep.mubr.bf16.mxu0 0
      %829 = vmatmul.mubr.bf16.gmra.mxu0 %v629
      %v830 = vpop.f32.mrf.mxu0
      %v831 = vadd.f32 0.0, %v830
      %v832 = vpop.f32.mrf.mxu0
      %v833 = vpop.f32.mrf.mxu0
      %v834 = vadd.f32 0.0, %v833
      %v835 = vpop.f32.mrf.mxu0
      %836 = vmatprep.mubr.bf16.mxu0 0
      %837 = vmatmul.mubr.bf16.gmra.mxu0 %v632
      %v838 = vpop.f32.mrf.mxu0
      %v839 = vadd.f32 0.0, %v838
      %v840 = vpop.f32.mrf.mxu0
      %v841 = vpop.f32.mrf.mxu0
      %v842 = vadd.f32 0.0, %v841
      %v843 = vpop.f32.mrf.mxu0
      %844 = vmatprep.mubr.bf16.mxu0 0
      %845 = vmatmul.mubr.bf16.gmra.mxu0 %v635
      %v846 = vpop.f32.mrf.mxu0
      %v847 = vadd.f32 0.0, %v846
      %v848 = vpop.f32.mrf.mxu0
      %v849 = vpop.f32.mrf.mxu0
      %v850 = vadd.f32 0.0, %v849
      %v851 = vpop.f32.mrf.mxu0
      %852 = vmatprep.mubr.bf16.mxu0 0
      %853 = vmatmul.mubr.bf16.gmra.mxu0 %v638
      %v854 = vpop.f32.mrf.mxu0
      %v855 = vadd.f32 0.0, %v854
      %v856 = vpop.f32.mrf.mxu0
      %v857 = vpop.f32.mrf.mxu0
      %v858 = vadd.f32 0.0, %v857
      %v859 = vpop.f32.mrf.mxu0
      %860 = vmatprep.mubr.bf16.mxu0 0
      %861 = vmatmul.mubr.bf16.gmra.mxu0 %v772
      %v862 = vpop.f32.mrf.mxu0
      %v863 = vadd.f32 0.0, %v862
      %v864 = vpop.f32.mrf.mxu0
      %v865 = vpop.f32.mrf.mxu0
      %v866 = vadd.f32 0.0, %v865
      %v867 = vpop.f32.mrf.mxu0
      %868 = vmatprep.mubr.bf16.mxu0 0
      %869 = vmatmul.mubr.bf16.gmra.mxu0 %v775
      %v870 = vpop.f32.mrf.mxu0
      %v871 = vadd.f32 0.0, %v870
      %v872 = vpop.f32.mrf.mxu0
      %v873 = vpop.f32.mrf.mxu0
      %v874 = vadd.f32 0.0, %v873
      %v875 = vpop.f32.mrf.mxu0
      %876 = vdwg.mxu0
      %v877 = vadd.f32 %v743, %v815
      %v878 = vadd.f32 %v744, %v818
      %v879 = vadd.f32 %v745, %v823
      %v880 = vadd.f32 %v746, %v826
      %v881 = vadd.f32 %v747, %v831
      %v882 = vadd.f32 %v748, %v834
      %v883 = vadd.f32 %v749, %v839
      %v884 = vadd.f32 %v750, %v842
      %v885 = vadd.f32 %v751, %v847
      %v886 = vadd.f32 %v752, %v850
      %v887 = vadd.f32 %v753, %v855
      %v888 = vadd.f32 %v754, %v858
      %v889 = vadd.f32 %v755, %v863
      %v890 = vadd.f32 %v756, %v866
      %v891 = vadd.f32 %v757, %v871
      %v892 = vadd.f32 %v758, %v874
      %s893 = scalar_lea.vmem %s1, 8
      %v894 = vld [vmem:[%s893] sm:$0x3]
      %vm895 = vsmask.f32 6400
      %v896 = vrot.slane %v301, 1
      %v897 = vrot.slane %v297, 2
      %v898 = vor.u32 %v896, %v897
      %v899 = vrot.slane %v309, 1
      %v900 = vrot.slane %v305, 2
      %v901 = vor.u32 %v899, %v900
      %v902 = vsel %vm895, %v898, %v901
      %v903 = vrot.slane %v317, 1
      %v904 = vrot.slane %v313, 2
      %v905 = vor.u32 %v903, %v904
      %v906 = vsel %vm895, %v901, %v905
      %v907 = vrot.slane %v325, 1
      %v908 = vrot.slane %v321, 2
      %v909 = vor.u32 %v907, %v908
      %v910 = vsel %vm895, %v905, %v909
      %v911 = vrot.slane %v333, 1
      %v912 = vrot.slane %v329, 2
      %v913 = vor.u32 %v911, %v912
      %v914 = vsel %vm895, %v909, %v913
      %v915 = vrot.slane %v341, 1
      %v916 = vrot.slane %v337, 2
      %v917 = vor.u32 %v915, %v916
      %v918 = vsel %vm895, %v913, %v917
      %v919 = vrot.slane %v349, 1
      %v920 = vrot.slane %v345, 2
      %v921 = vor.u32 %v919, %v920
      %v922 = vsel %vm895, %v917, %v921
      %v924 = vshrl.u32 %v765, 16
      %v926 = vrot.slane %v924, 1
      %v927 = vshll.u32 %v765, 16
      %v929 = vrot.slane %v927, 2
      %v930 = vor.u32 %v926, %v929
      %v931 = vsel %vm895, %v921, %v930
      %v933 = vshrl.u32 %v766, 16
      %v935 = vrot.slane %v933, 1
      %v936 = vshll.u32 %v766, 16
      %v938 = vrot.slane %v936, 2
      %v939 = vor.u32 %v935, %v938
      %v940 = vsel %vm895, %v930, %v939
      %v942 = vsel %vm357, %v902, 0
      %v945 = vsel %vm357, %v906, 0
      %v948 = vsel %vm357, %v910, 0
      %v951 = vsel %vm357, %v914, 0
      %v954 = vsel %vm357, %v918, 0
      %v957 = vsel %vm357, %v922, 0
      %v960 = vsel %vm357, %v931, 0
      %v963 = vsel %vm357, %v940, 0
      %v966 = vsel %vm382, %v894, 0
      %968 = vmatprep.subr.bf16.mxu0 0
      %969 = vmatpush1.bf16.msra.mxu0 0
      %970 = vmatprep.subr.bf16.mxu0 0
      %971 = vmatpush1.bf16.msra.mxu0 0
      %972 = vmatprep.subr.bf16.mxu0 0
      %973 = vmatpush1.bf16.msra.mxu0 0
      %974 = vmatprep.subr.bf16.mxu0 0
      %975 = vmatpush1.bf16.msra.mxu0 0
      %976 = vmatprep.subr.bf16.mxu0 0
      %977 = vmatpush1.bf16.msra.mxu0 0
      %978 = vmatprep.subr.bf16.mxu0 0
      %979 = vmatpush1.bf16.msra.mxu0 0
      %980 = vmatprep.subr.bf16.mxu0 0
      %981 = vmatpush1.bf16.msra.mxu0 0
      %982 = vmatprep.subr.bf16.mxu0 0
      %983 = vmatpush1.bf16.msra.mxu0 %v966
      %984 = vmatprep.subr.bf16.mxu0 0
      %985 = vmatpush2.bf16.msra.mxu0 0
      %986 = vmatprep.subr.bf16.mxu0 0
      %987 = vmatpush2.bf16.msra.mxu0 0
      %988 = vmatprep.subr.bf16.mxu0 0
      %989 = vmatpush2.bf16.msra.mxu0 0
      %990 = vmatprep.subr.bf16.mxu0 0
      %991 = vmatpush2.bf16.msra.mxu0 0
      %992 = vmatprep.subr.bf16.mxu0 0
      %993 = vmatpush2.bf16.msra.mxu0 0
      %994 = vmatprep.subr.bf16.mxu0 0
      %995 = vmatpush2.bf16.msra.mxu0 0
      %996 = vmatprep.subr.bf16.mxu0 0
      %997 = vmatpush2.bf16.msra.mxu0 0
      %998 = vmatprep.subr.bf16.mxu0 0
      %999 = vmatpush2.bf16.msra.mxu0 0
      %1000 = vmatprep.mubr.bf16.mxu0 0
      %1001 = vmatmul.mubr.bf16.gmra.mxu0 %v942
      %v1002 = vpop.f32.mrf.mxu0
      %v1003 = vadd.f32 0.0, %v1002
      %v1004 = vpop.f32.mrf.mxu0
      %v1005 = vpop.f32.mrf.mxu0
      %v1006 = vadd.f32 0.0, %v1005
      %v1007 = vpop.f32.mrf.mxu0
      %1008 = vmatprep.mubr.bf16.mxu0 0
      %1009 = vmatmul.mubr.bf16.gmra.mxu0 %v945
      %v1010 = vpop.f32.mrf.mxu0
      %v1011 = vadd.f32 0.0, %v1010
      %v1012 = vpop.f32.mrf.mxu0
      %v1013 = vpop.f32.mrf.mxu0
      %v1014 = vadd.f32 0.0, %v1013
      %v1015 = vpop.f32.mrf.mxu0
      %1016 = vmatprep.mubr.bf16.mxu0 0
      %1017 = vmatmul.mubr.bf16.gmra.mxu0 %v948
      %v1018 = vpop.f32.mrf.mxu0
      %v1019 = vadd.f32 0.0, %v1018
      %v1020 = vpop.f32.mrf.mxu0
      %v1021 = vpop.f32.mrf.mxu0
      %v1022 = vadd.f32 0.0, %v1021
      %v1023 = vpop.f32.mrf.mxu0
      %1024 = vmatprep.mubr.bf16.mxu0 0
      %1025 = vmatmul.mubr.bf16.gmra.mxu0 %v951
      %v1026 = vpop.f32.mrf.mxu0
      %v1027 = vadd.f32 0.0, %v1026
      %v1028 = vpop.f32.mrf.mxu0
      %v1029 = vpop.f32.mrf.mxu0
      %v1030 = vadd.f32 0.0, %v1029
      %v1031 = vpop.f32.mrf.mxu0
      %1032 = vmatprep.mubr.bf16.mxu0 0
      %1033 = vmatmul.mubr.bf16.gmra.mxu0 %v954
      %v1034 = vpop.f32.mrf.mxu0
      %v1035 = vadd.f32 0.0, %v1034
      %v1036 = vpop.f32.mrf.mxu0
      %v1037 = vpop.f32.mrf.mxu0
      %v1038 = vadd.f32 0.0, %v1037
      %v1039 = vpop.f32.mrf.mxu0
      %1040 = vmatprep.mubr.bf16.mxu0 0
      %1041 = vmatmul.mubr.bf16.gmra.mxu0 %v957
      %v1042 = vpop.f32.mrf.mxu0
      %v1043 = vadd.f32 0.0, %v1042
      %v1044 = vpop.f32.mrf.mxu0
      %v1045 = vpop.f32.mrf.mxu0
      %v1046 = vadd.f32 0.0, %v1045
      %v1047 = vpop.f32.mrf.mxu0
      %1048 = vmatprep.mubr.bf16.mxu0 0
      %1049 = vmatmul.mubr.bf16.gmra.mxu0 %v960
      %v1050 = vpop.f32.mrf.mxu0
      %v1051 = vadd.f32 0.0, %v1050
      %v1052 = vpop.f32.mrf.mxu0
      %v1053 = vpop.f32.mrf.mxu0
      %v1054 = vadd.f32 0.0, %v1053
      %v1055 = vpop.f32.mrf.mxu0
      %1056 = vmatprep.mubr.bf16.mxu0 0
      %1057 = vmatmul.mubr.bf16.gmra.mxu0 %v963
      %v1058 = vpop.f32.mrf.mxu0
      %v1059 = vadd.f32 0.0, %v1058
      %v1060 = vpop.f32.mrf.mxu0
      %v1061 = vpop.f32.mrf.mxu0
      %v1062 = vadd.f32 0.0, %v1061
      %v1063 = vpop.f32.mrf.mxu0
      %1064 = vdwg.mxu0
      %v1065 = vadd.f32 %v877, %v1003
      %v1066 = vadd.f32 %v878, %v1006
      %v1067 = vadd.f32 %v879, %v1011
      %v1068 = vadd.f32 %v880, %v1014
      %v1069 = vadd.f32 %v881, %v1019
      %v1070 = vadd.f32 %v882, %v1022
      %v1071 = vadd.f32 %v883, %v1027
      %v1072 = vadd.f32 %v884, %v1030
      %v1073 = vadd.f32 %v885, %v1035
      %v1074 = vadd.f32 %v886, %v1038
      %v1075 = vadd.f32 %v887, %v1043
      %v1076 = vadd.f32 %v888, %v1046
      %v1077 = vadd.f32 %v889, %v1051
      %v1078 = vadd.f32 %v890, %v1054
      %v1079 = vadd.f32 %v891, %v1059
      %v1080 = vadd.f32 %v892, %v1062
      %s1081 = scalar_lea.vmem %s1, 10
      %v1082 = vld [vmem:[%s1081] sm:$0x3]
      %vm1083 = vcmask 1045504
      %v1084 = vrot.slane %v280, 2
      %v1085 = vrot.slane %v281, 2
      %v1086 = vsel %vm1083, %v1084, %v1085
      %v1087 = vrot.slane %v282, 2
      %v1088 = vsel %vm1083, %v1085, %v1087
      %v1089 = vrot.slane %v283, 2
      %v1090 = vsel %vm1083, %v1087, %v1089
      %v1091 = vrot.slane %v284, 2
      %v1092 = vsel %vm1083, %v1089, %v1091
      %v1093 = vrot.slane %v285, 2
      %v1094 = vsel %vm1083, %v1091, %v1093
      %v1095 = vrot.slane %v286, 2
      %v1096 = vsel %vm1083, %v1093, %v1095
      %v1097 = vrot.slane %v765, 2
      %v1098 = vsel %vm1083, %v1095, %v1097
      %v1099 = vrot.slane %v766, 2
      %v1100 = vsel %vm1083, %v1097, %v1099
      %v1102 = vsel %vm357, %v1086, 0
      %v1105 = vsel %vm357, %v1088, 0
      %v1108 = vsel %vm357, %v1090, 0
      %v1111 = vsel %vm357, %v1092, 0
      %v1114 = vsel %vm357, %v1094, 0
      %v1117 = vsel %vm357, %v1096, 0
      %v1120 = vsel %vm357, %v1098, 0
      %v1123 = vsel %vm357, %v1100, 0
      %v1126 = vsel %vm382, %v1082, 0
      %1128 = vmatprep.subr.bf16.mxu0 0
      %1129 = vmatpush1.bf16.msra.mxu0 0
      %1130 = vmatprep.subr.bf16.mxu0 0
      %1131 = vmatpush1.bf16.msra.mxu0 0
      %1132 = vmatprep.subr.bf16.mxu0 0
      %1133 = vmatpush1.bf16.msra.mxu0 0
      %1134 = vmatprep.subr.bf16.mxu0 0
      %1135 = vmatpush1.bf16.msra.mxu0 0
      %1136 = vmatprep.subr.bf16.mxu0 0
      %1137 = vmatpush1.bf16.msra.mxu0 0
      %1138 = vmatprep.subr.bf16.mxu0 0
      %1139 = vmatpush1.bf16.msra.mxu0 0
      %1140 = vmatprep.subr.bf16.mxu0 0
      %1141 = vmatpush1.bf16.msra.mxu0 0
      %1142 = vmatprep.subr.bf16.mxu0 0
      %1143 = vmatpush1.bf16.msra.mxu0 %v1126
      %1144 = vmatprep.subr.bf16.mxu0 0
      %1145 = vmatpush2.bf16.msra.mxu0 0
      %1146 = vmatprep.subr.bf16.mxu0 0
      %1147 = vmatpush2.bf16.msra.mxu0 0
      %1148 = vmatprep.subr.bf16.mxu0 0
      %1149 = vmatpush2.bf16.msra.mxu0 0
      %1150 = vmatprep.subr.bf16.mxu0 0
      %1151 = vmatpush2.bf16.msra.mxu0 0
      %1152 = vmatprep.subr.bf16.mxu0 0
      %1153 = vmatpush2.bf16.msra.mxu0 0
      %1154 = vmatprep.subr.bf16.mxu0 0
      %1155 = vmatpush2.bf16.msra.mxu0 0
      %1156 = vmatprep.subr.bf16.mxu0 0
      %1157 = vmatpush2.bf16.msra.mxu0 0
      %1158 = vmatprep.subr.bf16.mxu0 0
      %1159 = vmatpush2.bf16.msra.mxu0 0
      %1160 = vmatprep.mubr.bf16.mxu0 0
      %1161 = vmatmul.mubr.bf16.gmra.mxu0 %v1102
      %v1162 = vpop.f32.mrf.mxu0
      %v1163 = vadd.f32 0.0, %v1162
      %v1164 = vpop.f32.mrf.mxu0
      %v1165 = vpop.f32.mrf.mxu0
      %v1166 = vadd.f32 0.0, %v1165
      %v1167 = vpop.f32.mrf.mxu0
      %1168 = vmatprep.mubr.bf16.mxu0 0
      %1169 = vmatmul.mubr.bf16.gmra.mxu0 %v1105
      %v1170 = vpop.f32.mrf.mxu0
      %v1171 = vadd.f32 0.0, %v1170
      %v1172 = vpop.f32.mrf.mxu0
      %v1173 = vpop.f32.mrf.mxu0
      %v1174 = vadd.f32 0.0, %v1173
      %v1175 = vpop.f32.mrf.mxu0
      %1176 = vmatprep.mubr.bf16.mxu0 0
      %1177 = vmatmul.mubr.bf16.gmra.mxu0 %v1108
      %v1178 = vpop.f32.mrf.mxu0
      %v1179 = vadd.f32 0.0, %v1178
      %v1180 = vpop.f32.mrf.mxu0
      %v1181 = vpop.f32.mrf.mxu0
      %v1182 = vadd.f32 0.0, %v1181
      %v1183 = vpop.f32.mrf.mxu0
      %1184 = vmatprep.mubr.bf16.mxu0 0
      %1185 = vmatmul.mubr.bf16.gmra.mxu0 %v1111
      %v1186 = vpop.f32.mrf.mxu0
      %v1187 = vadd.f32 0.0, %v1186
      %v1188 = vpop.f32.mrf.mxu0
      %v1189 = vpop.f32.mrf.mxu0
      %v1190 = vadd.f32 0.0, %v1189
      %v1191 = vpop.f32.mrf.mxu0
      %1192 = vmatprep.mubr.bf16.mxu0 0
      %1193 = vmatmul.mubr.bf16.gmra.mxu0 %v1114
      %v1194 = vpop.f32.mrf.mxu0
      %v1195 = vadd.f32 0.0, %v1194
      %v1196 = vpop.f32.mrf.mxu0
      %v1197 = vpop.f32.mrf.mxu0
      %v1198 = vadd.f32 0.0, %v1197
      %v1199 = vpop.f32.mrf.mxu0
      %1200 = vmatprep.mubr.bf16.mxu0 0
      %1201 = vmatmul.mubr.bf16.gmra.mxu0 %v1117
      %v1202 = vpop.f32.mrf.mxu0
      %v1203 = vadd.f32 0.0, %v1202
      %v1204 = vpop.f32.mrf.mxu0
      %v1205 = vpop.f32.mrf.mxu0
      %v1206 = vadd.f32 0.0, %v1205
      %v1207 = vpop.f32.mrf.mxu0
      %1208 = vmatprep.mubr.bf16.mxu0 0
      %1209 = vmatmul.mubr.bf16.gmra.mxu0 %v1120
      %v1210 = vpop.f32.mrf.mxu0
      %v1211 = vadd.f32 0.0, %v1210
      %v1212 = vpop.f32.mrf.mxu0
      %v1213 = vpop.f32.mrf.mxu0
      %v1214 = vadd.f32 0.0, %v1213
      %v1215 = vpop.f32.mrf.mxu0
      %1216 = vmatprep.mubr.bf16.mxu0 0
      %1217 = vmatmul.mubr.bf16.gmra.mxu0 %v1123
      %v1218 = vpop.f32.mrf.mxu0
      %v1219 = vadd.f32 0.0, %v1218
      %v1220 = vpop.f32.mrf.mxu0
      %v1221 = vpop.f32.mrf.mxu0
      %v1222 = vadd.f32 0.0, %v1221
      %v1223 = vpop.f32.mrf.mxu0
      %1224 = vdwg.mxu0
      %v1225 = vadd.f32 %v1065, %v1163
      %v1226 = vadd.f32 %v1066, %v1166
      %v1227 = vadd.f32 %v1067, %v1171
      %v1228 = vadd.f32 %v1068, %v1174
      %v1229 = vadd.f32 %v1069, %v1179
      %v1230 = vadd.f32 %v1070, %v1182
      %v1231 = vadd.f32 %v1071, %v1187
      %v1232 = vadd.f32 %v1072, %v1190
      %v1233 = vadd.f32 %v1073, %v1195
      %v1234 = vadd.f32 %v1074, %v1198
      %v1235 = vadd.f32 %v1075, %v1203
      %v1236 = vadd.f32 %v1076, %v1206
      %v1237 = vadd.f32 %v1077, %v1211
      %v1238 = vadd.f32 %v1078, %v1214
      %v1239 = vadd.f32 %v1079, %v1219
      %v1240 = vadd.f32 %v1080, %v1222
      %s1241 = scalar_lea.vmem %s1, 12
      %v1242 = vld [vmem:[%s1241] sm:$0x3]
      %v1245 = vunpack.c.l.b16 %v240
      %v1246 = vunpack.c.l.b16 %v241
      %v1247 = vpack.c.b16 %v1245, %v764
      %v1248 = vpack.c.b16 %v1246, %v1246
      %v1249 = vrot.slane %v1247, 2
      %v1250 = vsel %vm1083, %v1097, %v1249
      %v1251 = vrot.slane %v1248, 2
      %v1252 = vsel %vm1083, %v1249, %v1251
      %v1254 = vsel %vm357, %v1250, 0
      %v1257 = vsel %vm357, %v1252, 0
      %v1260 = vsel %vm382, %v1242, 0
      %1262 = vmatprep.subr.bf16.mxu0 0
      %1263 = vmatpush1.bf16.msra.mxu0 0
      %1264 = vmatprep.subr.bf16.mxu0 0
      %1265 = vmatpush1.bf16.msra.mxu0 0
      %1266 = vmatprep.subr.bf16.mxu0 0
      %1267 = vmatpush1.bf16.msra.mxu0 0
      %1268 = vmatprep.subr.bf16.mxu0 0
      %1269 = vmatpush1.bf16.msra.mxu0 0
      %1270 = vmatprep.subr.bf16.mxu0 0
      %1271 = vmatpush1.bf16.msra.mxu0 0
      %1272 = vmatprep.subr.bf16.mxu0 0
      %1273 = vmatpush1.bf16.msra.mxu0 0
      %1274 = vmatprep.subr.bf16.mxu0 0
      %1275 = vmatpush1.bf16.msra.mxu0 0
      %1276 = vmatprep.subr.bf16.mxu0 0
      %1277 = vmatpush1.bf16.msra.mxu0 %v1260
      %1278 = vmatprep.subr.bf16.mxu0 0
      %1279 = vmatpush2.bf16.msra.mxu0 0
      %1280 = vmatprep.subr.bf16.mxu0 0
      %1281 = vmatpush2.bf16.msra.mxu0 0
      %1282 = vmatprep.subr.bf16.mxu0 0
      %1283 = vmatpush2.bf16.msra.mxu0 0
      %1284 = vmatprep.subr.bf16.mxu0 0
      %1285 = vmatpush2.bf16.msra.mxu0 0
      %1286 = vmatprep.subr.bf16.mxu0 0
      %1287 = vmatpush2.bf16.msra.mxu0 0
      %1288 = vmatprep.subr.bf16.mxu0 0
      %1289 = vmatpush2.bf16.msra.mxu0 0
      %1290 = vmatprep.subr.bf16.mxu0 0
      %1291 = vmatpush2.bf16.msra.mxu0 0
      %1292 = vmatprep.subr.bf16.mxu0 0
      %1293 = vmatpush2.bf16.msra.mxu0 0
      %1294 = vmatprep.mubr.bf16.mxu0 0
      %1295 = vmatmul.mubr.bf16.gmra.mxu0 %v1105
      %v1296 = vpop.f32.mrf.mxu0
      %v1297 = vadd.f32 0.0, %v1296
      %v1298 = vpop.f32.mrf.mxu0
      %v1299 = vpop.f32.mrf.mxu0
      %v1300 = vadd.f32 0.0, %v1299
      %v1301 = vpop.f32.mrf.mxu0
      %1302 = vmatprep.mubr.bf16.mxu0 0
      %1303 = vmatmul.mubr.bf16.gmra.mxu0 %v1108
      %v1304 = vpop.f32.mrf.mxu0
      %v1305 = vadd.f32 0.0, %v1304
      %v1306 = vpop.f32.mrf.mxu0
      %v1307 = vpop.f32.mrf.mxu0
      %v1308 = vadd.f32 0.0, %v1307
      %v1309 = vpop.f32.mrf.mxu0
      %1310 = vmatprep.mubr.bf16.mxu0 0
      %1311 = vmatmul.mubr.bf16.gmra.mxu0 %v1111
      %v1312 = vpop.f32.mrf.mxu0
      %v1313 = vadd.f32 0.0, %v1312
      %v1314 = vpop.f32.mrf.mxu0
      %v1315 = vpop.f32.mrf.mxu0
      %v1316 = vadd.f32 0.0, %v1315
      %v1317 = vpop.f32.mrf.mxu0
      %1318 = vmatprep.mubr.bf16.mxu0 0
      %1319 = vmatmul.mubr.bf16.gmra.mxu0 %v1114
      %v1320 = vpop.f32.mrf.mxu0
      %v1321 = vadd.f32 0.0, %v1320
      %v1322 = vpop.f32.mrf.mxu0
      %v1323 = vpop.f32.mrf.mxu0
      %v1324 = vadd.f32 0.0, %v1323
      %v1325 = vpop.f32.mrf.mxu0
      %1326 = vmatprep.mubr.bf16.mxu0 0
      %1327 = vmatmul.mubr.bf16.gmra.mxu0 %v1117
      %v1328 = vpop.f32.mrf.mxu0
      %v1329 = vadd.f32 0.0, %v1328
      %v1330 = vpop.f32.mrf.mxu0
      %v1331 = vpop.f32.mrf.mxu0
      %v1332 = vadd.f32 0.0, %v1331
      %v1333 = vpop.f32.mrf.mxu0
      %1334 = vmatprep.mubr.bf16.mxu0 0
      %1335 = vmatmul.mubr.bf16.gmra.mxu0 %v1120
      %v1336 = vpop.f32.mrf.mxu0
      %v1337 = vadd.f32 0.0, %v1336
      %v1338 = vpop.f32.mrf.mxu0
      %v1339 = vpop.f32.mrf.mxu0
      %v1340 = vadd.f32 0.0, %v1339
      %v1341 = vpop.f32.mrf.mxu0
      %1342 = vmatprep.mubr.bf16.mxu0 0
      %1343 = vmatmul.mubr.bf16.gmra.mxu0 %v1254
      %v1344 = vpop.f32.mrf.mxu0
      %v1345 = vadd.f32 0.0, %v1344
      %v1346 = vpop.f32.mrf.mxu0
      %v1347 = vpop.f32.mrf.mxu0
      %v1348 = vadd.f32 0.0, %v1347
      %v1349 = vpop.f32.mrf.mxu0
      %1350 = vmatprep.mubr.bf16.mxu0 0
      %1351 = vmatmul.mubr.bf16.gmra.mxu0 %v1257
      %v1352 = vpop.f32.mrf.mxu0
      %v1353 = vadd.f32 0.0, %v1352
      %v1354 = vpop.f32.mrf.mxu0
      %v1355 = vpop.f32.mrf.mxu0
      %v1356 = vadd.f32 0.0, %v1355
      %v1357 = vpop.f32.mrf.mxu0
      %1358 = vdwg.mxu0
      %v1359 = vadd.f32 %v1225, %v1297
      %v1360 = vadd.f32 %v1226, %v1300
      %v1361 = vadd.f32 %v1227, %v1305
      %v1362 = vadd.f32 %v1228, %v1308
      %v1363 = vadd.f32 %v1229, %v1313
      %v1364 = vadd.f32 %v1230, %v1316
      %v1365 = vadd.f32 %v1231, %v1321
      %v1366 = vadd.f32 %v1232, %v1324
      %v1367 = vadd.f32 %v1233, %v1329
      %v1368 = vadd.f32 %v1234, %v1332
      %v1369 = vadd.f32 %v1235, %v1337
      %v1370 = vadd.f32 %v1236, %v1340
      %v1371 = vadd.f32 %v1237, %v1345
      %v1372 = vadd.f32 %v1238, %v1348
      %v1373 = vadd.f32 %v1239, %v1353
      %v1374 = vadd.f32 %v1240, %v1356
      %s1375 = scalar_lea.vmem %s1, 14
      %v1376 = vld [vmem:[%s1375] sm:$0x3]
      %vm1377 = vsmask.f32 5376
      %v1378 = vrot.slane %v309, 2
      %v1379 = vrot.slane %v305, 3
      %v1380 = vor.u32 %v1378, %v1379
      %v1381 = vrot.slane %v317, 2
      %v1382 = vrot.slane %v313, 3
      %v1383 = vor.u32 %v1381, %v1382
      %v1384 = vsel %vm1377, %v1380, %v1383
      %v1385 = vrot.slane %v325, 2
      %v1386 = vrot.slane %v321, 3
      %v1387 = vor.u32 %v1385, %v1386
      %v1388 = vsel %vm1377, %v1383, %v1387
      %v1389 = vrot.slane %v333, 2
      %v1390 = vrot.slane %v329, 3
      %v1391 = vor.u32 %v1389, %v1390
      %v1392 = vsel %vm1377, %v1387, %v1391
      %v1393 = vrot.slane %v341, 2
      %v1394 = vrot.slane %v337, 3
      %v1395 = vor.u32 %v1393, %v1394
      %v1396 = vsel %vm1377, %v1391, %v1395
      %v1397 = vrot.slane %v349, 2
      %v1398 = vrot.slane %v345, 3
      %v1399 = vor.u32 %v1397, %v1398
      %v1400 = vsel %vm1377, %v1395, %v1399
      %v1401 = vrot.slane %v924, 2
      %v1402 = vrot.slane %v927, 3
      %v1403 = vor.u32 %v1401, %v1402
      %v1404 = vsel %vm1377, %v1399, %v1403
      %v1406 = vshrl.u32 %v1247, 16
      %v1408 = vrot.slane %v1406, 2
      %v1409 = vshll.u32 %v1247, 16
      %v1411 = vrot.slane %v1409, 3
      %v1412 = vor.u32 %v1408, %v1411
      %v1413 = vsel %vm1377, %v1403, %v1412
      %v1415 = vshrl.u32 %v1248, 16
      %v1417 = vrot.slane %v1415, 2
      %v1418 = vshll.u32 %v1248, 16
      %v1420 = vrot.slane %v1418, 3
      %v1421 = vor.u32 %v1417, %v1420
      %v1422 = vsel %vm1377, %v1412, %v1421
      %v1424 = vsel %vm357, %v1384, 0
      %v1427 = vsel %vm357, %v1388, 0
      %v1430 = vsel %vm357, %v1392, 0
      %v1433 = vsel %vm357, %v1396, 0
      %v1436 = vsel %vm357, %v1400, 0
      %v1439 = vsel %vm357, %v1404, 0
      %v1442 = vsel %vm357, %v1413, 0
      %v1445 = vsel %vm357, %v1422, 0
      %v1448 = vsel %vm382, %v1376, 0
      %1450 = vmatprep.subr.bf16.mxu0 0
      %1451 = vmatpush1.bf16.msra.mxu0 0
      %1452 = vmatprep.subr.bf16.mxu0 0
      %1453 = vmatpush1.bf16.msra.mxu0 0
      %1454 = vmatprep.subr.bf16.mxu0 0
      %1455 = vmatpush1.bf16.msra.mxu0 0
      %1456 = vmatprep.subr.bf16.mxu0 0
      %1457 = vmatpush1.bf16.msra.mxu0 0
      %1458 = vmatprep.subr.bf16.mxu0 0
      %1459 = vmatpush1.bf16.msra.mxu0 0
      %1460 = vmatprep.subr.bf16.mxu0 0
      %1461 = vmatpush1.bf16.msra.mxu0 0
      %1462 = vmatprep.subr.bf16.mxu0 0
      %1463 = vmatpush1.bf16.msra.mxu0 0
      %1464 = vmatprep.subr.bf16.mxu0 0
      %1465 = vmatpush1.bf16.msra.mxu0 %v1448
      %1466 = vmatprep.subr.bf16.mxu0 0
      %1467 = vmatpush2.bf16.msra.mxu0 0
      %1468 = vmatprep.subr.bf16.mxu0 0
      %1469 = vmatpush2.bf16.msra.mxu0 0
      %1470 = vmatprep.subr.bf16.mxu0 0
      %1471 = vmatpush2.bf16.msra.mxu0 0
      %1472 = vmatprep.subr.bf16.mxu0 0
      %1473 = vmatpush2.bf16.msra.mxu0 0
      %1474 = vmatprep.subr.bf16.mxu0 0
      %1475 = vmatpush2.bf16.msra.mxu0 0
      %1476 = vmatprep.subr.bf16.mxu0 0
      %1477 = vmatpush2.bf16.msra.mxu0 0
      %1478 = vmatprep.subr.bf16.mxu0 0
      %1479 = vmatpush2.bf16.msra.mxu0 0
      %1480 = vmatprep.subr.bf16.mxu0 0
      %1481 = vmatpush2.bf16.msra.mxu0 0
      %1482 = vmatprep.mubr.bf16.mxu0 0
      %1483 = vmatmul.mubr.bf16.gmra.mxu0 %v1424
      %v1484 = vpop.f32.mrf.mxu0
      %v1485 = vadd.f32 0.0, %v1484
      %v1486 = vpop.f32.mrf.mxu0
      %v1487 = vpop.f32.mrf.mxu0
      %v1488 = vadd.f32 0.0, %v1487
      %v1489 = vpop.f32.mrf.mxu0
      %1490 = vmatprep.mubr.bf16.mxu0 0
      %1491 = vmatmul.mubr.bf16.gmra.mxu0 %v1427
      %v1492 = vpop.f32.mrf.mxu0
      %v1493 = vadd.f32 0.0, %v1492
      %v1494 = vpop.f32.mrf.mxu0
      %v1495 = vpop.f32.mrf.mxu0
      %v1496 = vadd.f32 0.0, %v1495
      %v1497 = vpop.f32.mrf.mxu0
      %1498 = vmatprep.mubr.bf16.mxu0 0
      %1499 = vmatmul.mubr.bf16.gmra.mxu0 %v1430
      %v1500 = vpop.f32.mrf.mxu0
      %v1501 = vadd.f32 0.0, %v1500
      %v1502 = vpop.f32.mrf.mxu0
      %v1503 = vpop.f32.mrf.mxu0
      %v1504 = vadd.f32 0.0, %v1503
      %v1505 = vpop.f32.mrf.mxu0
      %1506 = vmatprep.mubr.bf16.mxu0 0
      %1507 = vmatmul.mubr.bf16.gmra.mxu0 %v1433
      %v1508 = vpop.f32.mrf.mxu0
      %v1509 = vadd.f32 0.0, %v1508
      %v1510 = vpop.f32.mrf.mxu0
      %v1511 = vpop.f32.mrf.mxu0
      %v1512 = vadd.f32 0.0, %v1511
      %v1513 = vpop.f32.mrf.mxu0
      %1514 = vmatprep.mubr.bf16.mxu0 0
      %1515 = vmatmul.mubr.bf16.gmra.mxu0 %v1436
      %v1516 = vpop.f32.mrf.mxu0
      %v1517 = vadd.f32 0.0, %v1516
      %v1518 = vpop.f32.mrf.mxu0
      %v1519 = vpop.f32.mrf.mxu0
      %v1520 = vadd.f32 0.0, %v1519
      %v1521 = vpop.f32.mrf.mxu0
      %1522 = vmatprep.mubr.bf16.mxu0 0
      %1523 = vmatmul.mubr.bf16.gmra.mxu0 %v1439
      %v1524 = vpop.f32.mrf.mxu0
      %v1525 = vadd.f32 0.0, %v1524
      %v1526 = vpop.f32.mrf.mxu0
      %v1527 = vpop.f32.mrf.mxu0
      %v1528 = vadd.f32 0.0, %v1527
      %v1529 = vpop.f32.mrf.mxu0
      %1530 = vmatprep.mubr.bf16.mxu0 0
      %1531 = vmatmul.mubr.bf16.gmra.mxu0 %v1442
      %v1532 = vpop.f32.mrf.mxu0
      %v1533 = vadd.f32 0.0, %v1532
      %v1534 = vpop.f32.mrf.mxu0
      %v1535 = vpop.f32.mrf.mxu0
      %v1536 = vadd.f32 0.0, %v1535
      %v1537 = vpop.f32.mrf.mxu0
      %1538 = vmatprep.mubr.bf16.mxu0 0
      %1539 = vmatmul.mubr.bf16.gmra.mxu0 %v1445
      %v1540 = vpop.f32.mrf.mxu0
      %v1541 = vadd.f32 0.0, %v1540
      %v1542 = vpop.f32.mrf.mxu0
      %v1543 = vpop.f32.mrf.mxu0
      %v1544 = vadd.f32 0.0, %v1543
      %v1545 = vpop.f32.mrf.mxu0
      %1546 = vdwg.mxu0
      %v1547 = vadd.f32 %v1359, %v1485
      %v1548 = vadd.f32 %v1360, %v1488
      %v1549 = vadd.f32 %v1361, %v1493
      %v1550 = vadd.f32 %v1362, %v1496
      %v1551 = vadd.f32 %v1363, %v1501
      %v1552 = vadd.f32 %v1364, %v1504
      %v1553 = vadd.f32 %v1365, %v1509
      %v1554 = vadd.f32 %v1366, %v1512
      %v1555 = vadd.f32 %v1367, %v1517
      %v1556 = vadd.f32 %v1368, %v1520
      %v1557 = vadd.f32 %v1369, %v1525
      %v1558 = vadd.f32 %v1370, %v1528
      %v1559 = vadd.f32 %v1371, %v1533
      %v1560 = vadd.f32 %v1372, %v1536
      %v1561 = vadd.f32 %v1373, %v1541
      %v1562 = vadd.f32 %v1374, %v1544
      %s1563 = scalar_lea.vmem %s1, 16
      %v1564 = vld [vmem:[%s1563] sm:$0x3]
      %vm1565 = vcmask 1044480
      %v1566 = vrot.slane %v281, 3
      %v1567 = vrot.slane %v282, 3
      %v1568 = vsel %vm1565, %v1566, %v1567
      %v1569 = vrot.slane %v283, 3
      %v1570 = vsel %vm1565, %v1567, %v1569
      %v1571 = vrot.slane %v284, 3
      %v1572 = vsel %vm1565, %v1569, %v1571
      %v1573 = vrot.slane %v285, 3
      %v1574 = vsel %vm1565, %v1571, %v1573
      %v1575 = vrot.slane %v286, 3
      %v1576 = vsel %vm1565, %v1573, %v1575
      %v1577 = vrot.slane %v765, 3
      %v1578 = vsel %vm1565, %v1575, %v1577
      %v1579 = vrot.slane %v1247, 3
      %v1580 = vsel %vm1565, %v1577, %v1579
      %v1581 = vrot.slane %v1248, 3
      %v1582 = vsel %vm1565, %v1579, %v1581
      %v1584 = vsel %vm357, %v1568, 0
      %v1587 = vsel %vm357, %v1570, 0
      %v1590 = vsel %vm357, %v1572, 0
      %v1593 = vsel %vm357, %v1574, 0
      %v1596 = vsel %vm357, %v1576, 0
      %v1599 = vsel %vm357, %v1578, 0
      %v1602 = vsel %vm357, %v1580, 0
      %v1605 = vsel %vm357, %v1582, 0
      %v1608 = vsel %vm382, %v1564, 0
      %1610 = vmatprep.subr.bf16.mxu0 0
      %1611 = vmatpush1.bf16.msra.mxu0 0
      %1612 = vmatprep.subr.bf16.mxu0 0
      %1613 = vmatpush1.bf16.msra.mxu0 0
      %1614 = vmatprep.subr.bf16.mxu0 0
      %1615 = vmatpush1.bf16.msra.mxu0 0
      %1616 = vmatprep.subr.bf16.mxu0 0
      %1617 = vmatpush1.bf16.msra.mxu0 0
      %1618 = vmatprep.subr.bf16.mxu0 0
      %1619 = vmatpush1.bf16.msra.mxu0 0
      %1620 = vmatprep.subr.bf16.mxu0 0
      %1621 = vmatpush1.bf16.msra.mxu0 0
      %1622 = vmatprep.subr.bf16.mxu0 0
      %1623 = vmatpush1.bf16.msra.mxu0 0
      %1624 = vmatprep.subr.bf16.mxu0 0
      %1625 = vmatpush1.bf16.msra.mxu0 %v1608
      %1626 = vmatprep.subr.bf16.mxu0 0
      %1627 = vmatpush2.bf16.msra.mxu0 0
      %1628 = vmatprep.subr.bf16.mxu0 0
      %1629 = vmatpush2.bf16.msra.mxu0 0
      %1630 = vmatprep.subr.bf16.mxu0 0
      %1631 = vmatpush2.bf16.msra.mxu0 0
      %1632 = vmatprep.subr.bf16.mxu0 0
      %1633 = vmatpush2.bf16.msra.mxu0 0
      %1634 = vmatprep.subr.bf16.mxu0 0
      %1635 = vmatpush2.bf16.msra.mxu0 0
      %1636 = vmatprep.subr.bf16.mxu0 0
      %1637 = vmatpush2.bf16.msra.mxu0 0
      %1638 = vmatprep.subr.bf16.mxu0 0
      %1639 = vmatpush2.bf16.msra.mxu0 0
      %1640 = vmatprep.subr.bf16.mxu0 0
      %1641 = vmatpush2.bf16.msra.mxu0 0
      %1642 = vmatprep.mubr.bf16.mxu0 0
      %1643 = vmatmul.mubr.bf16.gmra.mxu0 %v1584
      %v1644 = vpop.f32.mrf.mxu0
      %v1645 = vadd.f32 0.0, %v1644
      %v1646 = vpop.f32.mrf.mxu0
      %v1647 = vpop.f32.mrf.mxu0
      %v1648 = vadd.f32 0.0, %v1647
      %v1649 = vpop.f32.mrf.mxu0
      %1650 = vmatprep.mubr.bf16.mxu0 0
      %1651 = vmatmul.mubr.bf16.gmra.mxu0 %v1587
      %v1652 = vpop.f32.mrf.mxu0
      %v1653 = vadd.f32 0.0, %v1652
      %v1654 = vpop.f32.mrf.mxu0
      %v1655 = vpop.f32.mrf.mxu0
      %v1656 = vadd.f32 0.0, %v1655
      %v1657 = vpop.f32.mrf.mxu0
      %1658 = vmatprep.mubr.bf16.mxu0 0
      %1659 = vmatmul.mubr.bf16.gmra.mxu0 %v1590
      %v1660 = vpop.f32.mrf.mxu0
      %v1661 = vadd.f32 0.0, %v1660
      %v1662 = vpop.f32.mrf.mxu0
      %v1663 = vpop.f32.mrf.mxu0
      %v1664 = vadd.f32 0.0, %v1663
      %v1665 = vpop.f32.mrf.mxu0
      %1666 = vmatprep.mubr.bf16.mxu0 0
      %1667 = vmatmul.mubr.bf16.gmra.mxu0 %v1593
      %v1668 = vpop.f32.mrf.mxu0
      %v1669 = vadd.f32 0.0, %v1668
      %v1670 = vpop.f32.mrf.mxu0
      %v1671 = vpop.f32.mrf.mxu0
      %v1672 = vadd.f32 0.0, %v1671
      %v1673 = vpop.f32.mrf.mxu0
      %1674 = vmatprep.mubr.bf16.mxu0 0
      %1675 = vmatmul.mubr.bf16.gmra.mxu0 %v1596
      %v1676 = vpop.f32.mrf.mxu0
      %v1677 = vadd.f32 0.0, %v1676
      %v1678 = vpop.f32.mrf.mxu0
      %v1679 = vpop.f32.mrf.mxu0
      %v1680 = vadd.f32 0.0, %v1679
      %v1681 = vpop.f32.mrf.mxu0
      %1682 = vmatprep.mubr.bf16.mxu0 0
      %1683 = vmatmul.mubr.bf16.gmra.mxu0 %v1599
      %v1684 = vpop.f32.mrf.mxu0
      %v1685 = vadd.f32 0.0, %v1684
      %v1686 = vpop.f32.mrf.mxu0
      %v1687 = vpop.f32.mrf.mxu0
      %v1688 = vadd.f32 0.0, %v1687
      %v1689 = vpop.f32.mrf.mxu0
      %1690 = vmatprep.mubr.bf16.mxu0 0
      %1691 = vmatmul.mubr.bf16.gmra.mxu0 %v1602
      %v1692 = vpop.f32.mrf.mxu0
      %v1693 = vadd.f32 0.0, %v1692
      %v1694 = vpop.f32.mrf.mxu0
      %v1695 = vpop.f32.mrf.mxu0
      %v1696 = vadd.f32 0.0, %v1695
      %v1697 = vpop.f32.mrf.mxu0
      %1698 = vmatprep.mubr.bf16.mxu0 0
      %1699 = vmatmul.mubr.bf16.gmra.mxu0 %v1605
      %v1700 = vpop.f32.mrf.mxu0
      %v1701 = vadd.f32 0.0, %v1700
      %v1702 = vpop.f32.mrf.mxu0
      %v1703 = vpop.f32.mrf.mxu0
      %v1704 = vadd.f32 0.0, %v1703
      %v1705 = vpop.f32.mrf.mxu0
      %1706 = vdwg.mxu0
      %v1707 = vadd.f32 %v1547, %v1645
      %v1708 = vadd.f32 %v1548, %v1648
      %v1709 = vadd.f32 %v1549, %v1653
      %v1710 = vadd.f32 %v1550, %v1656
      %v1711 = vadd.f32 %v1551, %v1661
      %v1712 = vadd.f32 %v1552, %v1664
      %v1713 = vadd.f32 %v1553, %v1669
      %v1714 = vadd.f32 %v1554, %v1672
      %v1715 = vadd.f32 %v1555, %v1677
      %v1716 = vadd.f32 %v1556, %v1680
      %v1717 = vadd.f32 %v1557, %v1685
      %v1718 = vadd.f32 %v1558, %v1688
      %v1719 = vadd.f32 %v1559, %v1693
      %v1720 = vadd.f32 %v1560, %v1696
      %v1721 = vadd.f32 %v1561, %v1701
      %v1722 = vadd.f32 %v1562, %v1704
      %v1723 = vlaneseq
      %v1724 = vshrl.u32 %v1723, 7
      %v1725 = vadd.s32 %v1724, 8
      %v1726 = vadd.s32 %v1724, 16
      %v1727 = vadd.s32 %v1724, 24
      %v1728 = vadd.s32 %v1724, 32
      %v1729 = vadd.s32 %v1724, 40
      %v1730 = vadd.s32 %v1724, 48
      %v1731 = vadd.s32 %v1724, 56
      %v1732 = vadd.s32 %v1724, 64
      %v1733 = vadd.s32 %v1724, 72
      %v1734 = vadd.s32 %v1724, 80
      %v1735 = vadd.s32 %v1724, 88
      %v1736 = vadd.s32 %v1724, 96
      %v1737 = vadd.s32 %v1724, 104
      %v1738 = vadd.s32 %v1724, 112
      %v1739 = vadd.s32 %v1724, 120
      %v1740 = vstv %s216
      %v1741 = vadd.s32 %v1740, %v1724
      %v1742 = vadd.s32 %v1740, %v1725
      %v1743 = vadd.s32 %v1740, %v1726
      %v1744 = vadd.s32 %v1740, %v1727
      %v1745 = vadd.s32 %v1740, %v1728
      %v1746 = vadd.s32 %v1740, %v1729
      %v1747 = vadd.s32 %v1740, %v1730
      %v1748 = vadd.s32 %v1740, %v1731
      %v1749 = vadd.s32 %v1740, %v1732
      %v1750 = vadd.s32 %v1740, %v1733
      %v1751 = vadd.s32 %v1740, %v1734
      %v1752 = vadd.s32 %v1740, %v1735
      %v1753 = vadd.s32 %v1740, %v1736
      %v1754 = vadd.s32 %v1740, %v1737
      %v1755 = vadd.s32 %v1740, %v1738
      %v1756 = vadd.s32 %v1740, %v1739
      %vm1757 = vcmp.lt.s32.totalorder %v1741, 288
      %vm1758 = vcmp.lt.s32.totalorder %v1742, 288
      %vm1759 = vcmp.lt.s32.totalorder %v1743, 288
      %vm1760 = vcmp.lt.s32.totalorder %v1744, 288
      %vm1761 = vcmp.lt.s32.totalorder %v1745, 288
      %vm1762 = vcmp.lt.s32.totalorder %v1746, 288
      %vm1763 = vcmp.lt.s32.totalorder %v1747, 288
      %vm1764 = vcmp.lt.s32.totalorder %v1748, 288
      %vm1765 = vcmp.lt.s32.totalorder %v1749, 288
      %vm1766 = vcmp.lt.s32.totalorder %v1750, 288
      %vm1767 = vcmp.lt.s32.totalorder %v1751, 288
      %vm1768 = vcmp.lt.s32.totalorder %v1752, 288
      %vm1769 = vcmp.lt.s32.totalorder %v1753, 288
      %vm1770 = vcmp.lt.s32.totalorder %v1754, 288
      %vm1771 = vcmp.lt.s32.totalorder %v1755, 288
      %vm1772 = vcmp.lt.s32.totalorder %v1756, 288
      %vm1773 = vcmp.lt.s32.totalorder %v1741, 0
      %v1774 = vsub.s32 0, %v1741
      %v1775 = vsel %vm1773, %v1774, %v1741
      %v1776 = vmul.u32.u64.compose %v1775, 3817748708
      %v1777 = vextract.low.u32 %v1776
      %v1778 = vextract.high.u32 %v1776
      %v1779 = vshrl.u32 %v1778, 4
      %v1780 = vmul.u32 %v1779, 18
      %v1781 = vsub.s32 %v1775, %v1780
      %v1782 = vsub.s32 0, %v1781
      %v1783 = vsel %vm1773, %v1782, %v1781
      %vm1784 = vcmp.lt.s32.totalorder %v1742, 0
      %v1785 = vsub.s32 0, %v1742
      %v1786 = vsel %vm1784, %v1785, %v1742
      %v1787 = vmul.u32.u64.compose %v1786, 3817748708
      %v1788 = vextract.low.u32 %v1787
      %v1789 = vextract.high.u32 %v1787
      %v1790 = vshrl.u32 %v1789, 4
      %v1791 = vmul.u32 %v1790, 18
      %v1792 = vsub.s32 %v1786, %v1791
      %v1793 = vsub.s32 0, %v1792
      %v1794 = vsel %vm1784, %v1793, %v1792
      %vm1795 = vcmp.lt.s32.totalorder %v1743, 0
      %v1796 = vsub.s32 0, %v1743
      %v1797 = vsel %vm1795, %v1796, %v1743
      %v1798 = vmul.u32.u64.compose %v1797, 3817748708
      %v1799 = vextract.low.u32 %v1798
      %v1800 = vextract.high.u32 %v1798
      %v1801 = vshrl.u32 %v1800, 4
      %v1802 = vmul.u32 %v1801, 18
      %v1803 = vsub.s32 %v1797, %v1802
      %v1804 = vsub.s32 0, %v1803
      %v1805 = vsel %vm1795, %v1804, %v1803
      %vm1806 = vcmp.lt.s32.totalorder %v1744, 0
      %v1807 = vsub.s32 0, %v1744
      %v1808 = vsel %vm1806, %v1807, %v1744
      %v1809 = vmul.u32.u64.compose %v1808, 3817748708
      %v1810 = vextract.low.u32 %v1809
      %v1811 = vextract.high.u32 %v1809
      %v1812 = vshrl.u32 %v1811, 4
      %v1813 = vmul.u32 %v1812, 18
      %v1814 = vsub.s32 %v1808, %v1813
      %v1815 = vsub.s32 0, %v1814
      %v1816 = vsel %vm1806, %v1815, %v1814
      %vm1817 = vcmp.lt.s32.totalorder %v1745, 0
      %v1818 = vsub.s32 0, %v1745
      %v1819 = vsel %vm1817, %v1818, %v1745
      %v1820 = vmul.u32.u64.compose %v1819, 3817748708
      %v1821 = vextract.low.u32 %v1820
      %v1822 = vextract.high.u32 %v1820
      %v1823 = vshrl.u32 %v1822, 4
      %v1824 = vmul.u32 %v1823, 18
      %v1825 = vsub.s32 %v1819, %v1824
      %v1826 = vsub.s32 0, %v1825
      %v1827 = vsel %vm1817, %v1826, %v1825
      %vm1828 = vcmp.lt.s32.totalorder %v1746, 0
      %v1829 = vsub.s32 0, %v1746
      %v1830 = vsel %vm1828, %v1829, %v1746
      %v1831 = vmul.u32.u64.compose %v1830, 3817748708
      %v1832 = vextract.low.u32 %v1831
      %v1833 = vextract.high.u32 %v1831
      %v1834 = vshrl.u32 %v1833, 4
      %v1835 = vmul.u32 %v1834, 18
      %v1836 = vsub.s32 %v1830, %v1835
      %v1837 = vsub.s32 0, %v1836
      %v1838 = vsel %vm1828, %v1837, %v1836
      %vm1839 = vcmp.lt.s32.totalorder %v1747, 0
      %v1840 = vsub.s32 0, %v1747
      %v1841 = vsel %vm1839, %v1840, %v1747
      %v1842 = vmul.u32.u64.compose %v1841, 3817748708
      %v1843 = vextract.low.u32 %v1842
      %v1844 = vextract.high.u32 %v1842
      %v1845 = vshrl.u32 %v1844, 4
      %v1846 = vmul.u32 %v1845, 18
      %v1847 = vsub.s32 %v1841, %v1846
      %v1848 = vsub.s32 0, %v1847
      %v1849 = vsel %vm1839, %v1848, %v1847
      %vm1850 = vcmp.lt.s32.totalorder %v1748, 0
      %v1851 = vsub.s32 0, %v1748
      %v1852 = vsel %vm1850, %v1851, %v1748
      %v1853 = vmul.u32.u64.compose %v1852, 3817748708
      %v1854 = vextract.low.u32 %v1853
      %v1855 = vextract.high.u32 %v1853
      %v1856 = vshrl.u32 %v1855, 4
      %v1857 = vmul.u32 %v1856, 18
      %v1858 = vsub.s32 %v1852, %v1857
      %v1859 = vsub.s32 0, %v1858
      %v1860 = vsel %vm1850, %v1859, %v1858
      %vm1861 = vcmp.lt.s32.totalorder %v1749, 0
      %v1862 = vsub.s32 0, %v1749
      %v1863 = vsel %vm1861, %v1862, %v1749
      %v1864 = vmul.u32.u64.compose %v1863, 3817748708
      %v1865 = vextract.low.u32 %v1864
      %v1866 = vextract.high.u32 %v1864
      %v1867 = vshrl.u32 %v1866, 4
      %v1868 = vmul.u32 %v1867, 18
      %v1869 = vsub.s32 %v1863, %v1868
      %v1870 = vsub.s32 0, %v1869
      %v1871 = vsel %vm1861, %v1870, %v1869
      %vm1872 = vcmp.lt.s32.totalorder %v1750, 0
      %v1873 = vsub.s32 0, %v1750
      %v1874 = vsel %vm1872, %v1873, %v1750
      %v1875 = vmul.u32.u64.compose %v1874, 3817748708
      %v1876 = vextract.low.u32 %v1875
      %v1877 = vextract.high.u32 %v1875
      %v1878 = vshrl.u32 %v1877, 4
      %v1879 = vmul.u32 %v1878, 18
      %v1880 = vsub.s32 %v1874, %v1879
      %v1881 = vsub.s32 0, %v1880
      %v1882 = vsel %vm1872, %v1881, %v1880
      %vm1883 = vcmp.lt.s32.totalorder %v1751, 0
      %v1884 = vsub.s32 0, %v1751
      %v1885 = vsel %vm1883, %v1884, %v1751
      %v1886 = vmul.u32.u64.compose %v1885, 3817748708
      %v1887 = vextract.low.u32 %v1886
      %v1888 = vextract.high.u32 %v1886
      %v1889 = vshrl.u32 %v1888, 4
      %v1890 = vmul.u32 %v1889, 18
      %v1891 = vsub.s32 %v1885, %v1890
      %v1892 = vsub.s32 0, %v1891
      %v1893 = vsel %vm1883, %v1892, %v1891
      %vm1894 = vcmp.lt.s32.totalorder %v1752, 0
      %v1895 = vsub.s32 0, %v1752
      %v1896 = vsel %vm1894, %v1895, %v1752
      %v1897 = vmul.u32.u64.compose %v1896, 3817748708
      %v1898 = vextract.low.u32 %v1897
      %v1899 = vextract.high.u32 %v1897
      %v1900 = vshrl.u32 %v1899, 4
      %v1901 = vmul.u32 %v1900, 18
      %v1902 = vsub.s32 %v1896, %v1901
      %v1903 = vsub.s32 0, %v1902
      %v1904 = vsel %vm1894, %v1903, %v1902
      %vm1905 = vcmp.lt.s32.totalorder %v1753, 0
      %v1906 = vsub.s32 0, %v1753
      %v1907 = vsel %vm1905, %v1906, %v1753
      %v1908 = vmul.u32.u64.compose %v1907, 3817748708
      %v1909 = vextract.low.u32 %v1908
      %v1910 = vextract.high.u32 %v1908
      %v1911 = vshrl.u32 %v1910, 4
      %v1912 = vmul.u32 %v1911, 18
      %v1913 = vsub.s32 %v1907, %v1912
      %v1914 = vsub.s32 0, %v1913
      %v1915 = vsel %vm1905, %v1914, %v1913
      %vm1916 = vcmp.lt.s32.totalorder %v1754, 0
      %v1917 = vsub.s32 0, %v1754
      %v1918 = vsel %vm1916, %v1917, %v1754
      %v1919 = vmul.u32.u64.compose %v1918, 3817748708
      %v1920 = vextract.low.u32 %v1919
      %v1921 = vextract.high.u32 %v1919
      %v1922 = vshrl.u32 %v1921, 4
      %v1923 = vmul.u32 %v1922, 18
      %v1924 = vsub.s32 %v1918, %v1923
      %v1925 = vsub.s32 0, %v1924
      %v1926 = vsel %vm1916, %v1925, %v1924
      %vm1927 = vcmp.lt.s32.totalorder %v1755, 0
      %v1928 = vsub.s32 0, %v1755
      %v1929 = vsel %vm1927, %v1928, %v1755
      %v1930 = vmul.u32.u64.compose %v1929, 3817748708
      %v1931 = vextract.low.u32 %v1930
      %v1932 = vextract.high.u32 %v1930
      %v1933 = vshrl.u32 %v1932, 4
      %v1934 = vmul.u32 %v1933, 18
      %v1935 = vsub.s32 %v1929, %v1934
      %v1936 = vsub.s32 0, %v1935
      %v1937 = vsel %vm1927, %v1936, %v1935
      %vm1938 = vcmp.lt.s32.totalorder %v1756, 0
      %v1939 = vsub.s32 0, %v1756
      %v1940 = vsel %vm1938, %v1939, %v1756
      %v1941 = vmul.u32.u64.compose %v1940, 3817748708
      %v1942 = vextract.low.u32 %v1941
      %v1943 = vextract.high.u32 %v1941
      %v1944 = vshrl.u32 %v1943, 4
      %v1945 = vmul.u32 %v1944, 18
      %v1946 = vsub.s32 %v1940, %v1945
      %v1947 = vsub.s32 0, %v1946
      %v1948 = vsel %vm1938, %v1947, %v1946
      %vm1949 = vcmp.ne.s32.totalorder %v1783, 0
      %vm1950 = vcmp.ne.s32.totalorder %v1794, 0
      %vm1951 = vcmp.ne.s32.totalorder %v1805, 0
      %vm1952 = vcmp.ne.s32.totalorder %v1816, 0
      %vm1953 = vcmp.ne.s32.totalorder %v1827, 0
      %vm1954 = vcmp.ne.s32.totalorder %v1838, 0
      %vm1955 = vcmp.ne.s32.totalorder %v1849, 0
      %vm1956 = vcmp.ne.s32.totalorder %v1860, 0
      %vm1957 = vcmp.ne.s32.totalorder %v1871, 0
      %vm1958 = vcmp.ne.s32.totalorder %v1882, 0
      %vm1959 = vcmp.ne.s32.totalorder %v1893, 0
      %vm1960 = vcmp.ne.s32.totalorder %v1904, 0
      %vm1961 = vcmp.ne.s32.totalorder %v1915, 0
      %vm1962 = vcmp.ne.s32.totalorder %v1926, 0
      %vm1963 = vcmp.ne.s32.totalorder %v1937, 0
      %vm1964 = vcmp.ne.s32.totalorder %v1948, 0
      %vm1965 = vcmp.lt.s32.totalorder %v1783, 0
      %vm1966 = vcmp.lt.s32.totalorder %v1794, 0
      %vm1967 = vcmp.lt.s32.totalorder %v1805, 0
      %vm1968 = vcmp.lt.s32.totalorder %v1816, 0
      %vm1969 = vcmp.lt.s32.totalorder %v1827, 0
      %vm1970 = vcmp.lt.s32.totalorder %v1838, 0
      %vm1971 = vcmp.lt.s32.totalorder %v1849, 0
      %vm1972 = vcmp.lt.s32.totalorder %v1860, 0
      %vm1973 = vcmp.lt.s32.totalorder %v1871, 0
      %vm1974 = vcmp.lt.s32.totalorder %v1882, 0
      %vm1975 = vcmp.lt.s32.totalorder %v1893, 0
      %vm1976 = vcmp.lt.s32.totalorder %v1904, 0
      %vm1977 = vcmp.lt.s32.totalorder %v1915, 0
      %vm1978 = vcmp.lt.s32.totalorder %v1926, 0
      %vm1979 = vcmp.lt.s32.totalorder %v1937, 0
      %vm1980 = vcmp.lt.s32.totalorder %v1948, 0
      %vm1981 = vmand %vm1965, %vm1949
      %vm1982 = vmand %vm1966, %vm1950
      %vm1983 = vmand %vm1967, %vm1951
      %vm1984 = vmand %vm1968, %vm1952
      %vm1985 = vmand %vm1969, %vm1953
      %vm1986 = vmand %vm1970, %vm1954
      %vm1987 = vmand %vm1971, %vm1955
      %vm1988 = vmand %vm1972, %vm1956
      %vm1989 = vmand %vm1973, %vm1957
      %vm1990 = vmand %vm1974, %vm1958
      %vm1991 = vmand %vm1975, %vm1959
      %vm1992 = vmand %vm1976, %vm1960
      %vm1993 = vmand %vm1977, %vm1961
      %vm1994 = vmand %vm1978, %vm1962
      %vm1995 = vmand %vm1979, %vm1963
      %vm1996 = vmand %vm1980, %vm1964
      %v1997 = vadd.s32 %v1783, 18
      %v1998 = vadd.s32 %v1794, 18
      %v1999 = vadd.s32 %v1805, 18
      %v2000 = vadd.s32 %v1816, 18
      %v2001 = vadd.s32 %v1827, 18
      %v2002 = vadd.s32 %v1838, 18
      %v2003 = vadd.s32 %v1849, 18
      %v2004 = vadd.s32 %v1860, 18
      %v2005 = vadd.s32 %v1871, 18
      %v2006 = vadd.s32 %v1882, 18
      %v2007 = vadd.s32 %v1893, 18
      %v2008 = vadd.s32 %v1904, 18
      %v2009 = vadd.s32 %v1915, 18
      %v2010 = vadd.s32 %v1926, 18
      %v2011 = vadd.s32 %v1937, 18
      %v2012 = vadd.s32 %v1948, 18
      %v2013 = vsel %vm1981, %v1997, %v1783
      %v2014 = vsel %vm1982, %v1998, %v1794
      %v2015 = vsel %vm1983, %v1999, %v1805
      %v2016 = vsel %vm1984, %v2000, %v1816
      %v2017 = vsel %vm1985, %v2001, %v1827
      %v2018 = vsel %vm1986, %v2002, %v1838
      %v2019 = vsel %vm1987, %v2003, %v1849
      %v2020 = vsel %vm1988, %v2004, %v1860
      %v2021 = vsel %vm1989, %v2005, %v1871
      %v2022 = vsel %vm1990, %v2006, %v1882
      %v2023 = vsel %vm1991, %v2007, %v1893
      %v2024 = vsel %vm1992, %v2008, %v1904
      %v2025 = vsel %vm1993, %v2009, %v1915
      %v2026 = vsel %vm1994, %v2010, %v1926
      %v2027 = vsel %vm1995, %v2011, %v1937
      %v2028 = vsel %vm1996, %v2012, %v1948
      %vm2029 = vcmp.lt.s32.totalorder %v2013, 16
      %vm2030 = vcmp.lt.s32.totalorder %v2014, 16
      %vm2031 = vcmp.lt.s32.totalorder %v2015, 16
      %vm2032 = vcmp.lt.s32.totalorder %v2016, 16
      %vm2033 = vcmp.lt.s32.totalorder %v2017, 16
      %vm2034 = vcmp.lt.s32.totalorder %v2018, 16
      %vm2035 = vcmp.lt.s32.totalorder %v2019, 16
      %vm2036 = vcmp.lt.s32.totalorder %v2020, 16
      %vm2037 = vcmp.lt.s32.totalorder %v2021, 16
      %vm2038 = vcmp.lt.s32.totalorder %v2022, 16
      %vm2039 = vcmp.lt.s32.totalorder %v2023, 16
      %vm2040 = vcmp.lt.s32.totalorder %v2024, 16
      %vm2041 = vcmp.lt.s32.totalorder %v2025, 16
      %vm2042 = vcmp.lt.s32.totalorder %v2026, 16
      %vm2043 = vcmp.lt.s32.totalorder %v2027, 16
      %vm2044 = vcmp.lt.s32.totalorder %v2028, 16
      %vm2045 = vmand %vm1757, %vm2029
      %vm2046 = vmand %vm1758, %vm2030
      %vm2047 = vmand %vm1759, %vm2031
      %vm2048 = vmand %vm1760, %vm2032
      %vm2049 = vmand %vm1761, %vm2033
      %vm2050 = vmand %vm1762, %vm2034
      %vm2051 = vmand %vm1763, %vm2035
      %vm2052 = vmand %vm1764, %vm2036
      %vm2053 = vmand %vm1765, %vm2037
      %vm2054 = vmand %vm1766, %vm2038
      %vm2055 = vmand %vm1767, %vm2039
      %vm2056 = vmand %vm1768, %vm2040
      %vm2057 = vmand %vm1769, %vm2041
      %vm2058 = vmand %vm1770, %vm2042
      %vm2059 = vmand %vm1771, %vm2043
      %vm2060 = vmand %vm1772, %vm2044
      %v2061 = vsel %vm2045, 1, 0
      %v2062 = vsel %vm2046, 1, 0
      %v2063 = vsel %vm2047, 1, 0
      %v2064 = vsel %vm2048, 1, 0
      %v2065 = vsel %vm2049, 1, 0
      %v2066 = vsel %vm2050, 1, 0
      %v2067 = vsel %vm2051, 1, 0
      %v2068 = vsel %vm2052, 1, 0
      %v2069 = vsel %vm2053, 1, 0
      %v2070 = vsel %vm2054, 1, 0
      %v2071 = vsel %vm2055, 1, 0
      %v2072 = vsel %vm2056, 1, 0
      %v2073 = vsel %vm2057, 1, 0
      %v2074 = vsel %vm2058, 1, 0
      %v2075 = vsel %vm2059, 1, 0
      %v2076 = vsel %vm2060, 1, 0
      %v2077 = vcvt.s32.f32 %v2061
      %v2078 = vcvt.s32.f32 %v2062
      %v2079 = vcvt.s32.f32 %v2063
      %v2080 = vcvt.s32.f32 %v2064
      %v2081 = vcvt.s32.f32 %v2065
      %v2082 = vcvt.s32.f32 %v2066
      %v2083 = vcvt.s32.f32 %v2067
      %v2084 = vcvt.s32.f32 %v2068
      %v2085 = vcvt.s32.f32 %v2069
      %v2086 = vcvt.s32.f32 %v2070
      %v2087 = vcvt.s32.f32 %v2071
      %v2088 = vcvt.s32.f32 %v2072
      %v2089 = vcvt.s32.f32 %v2073
      %v2090 = vcvt.s32.f32 %v2074
      %v2091 = vcvt.s32.f32 %v2075
      %v2092 = vcvt.s32.f32 %v2076
      %v2093 = vmul.f32 %v1707, %v2077
      %v2094 = vmul.f32 %v1708, %v2078
      %v2095 = vmul.f32 %v1709, %v2079
      %v2096 = vmul.f32 %v1710, %v2080
      %v2097 = vmul.f32 %v1711, %v2081
      %v2098 = vmul.f32 %v1712, %v2082
      %v2099 = vmul.f32 %v1713, %v2083
      %v2100 = vmul.f32 %v1714, %v2084
      %v2101 = vmul.f32 %v1715, %v2085
      %v2102 = vmul.f32 %v1716, %v2086
      %v2103 = vmul.f32 %v1717, %v2087
      %v2104 = vmul.f32 %v1718, %v2088
      %v2105 = vmul.f32 %v1719, %v2089
      %v2106 = vmul.f32 %v1720, %v2090
      %v2107 = vmul.f32 %v1721, %v2091
      %v2108 = vmul.f32 %v1722, %v2092
      %v2109 = vpack.c.bf16 %v2094, %v2093
      %v2110 = vpack.c.bf16 %v2096, %v2095
      %v2111 = vpack.c.bf16 %v2098, %v2097
      %v2112 = vpack.c.bf16 %v2100, %v2099
      %v2113 = vpack.c.bf16 %v2102, %v2101
      %v2114 = vpack.c.bf16 %v2104, %v2103
      %v2115 = vpack.c.bf16 %v2106, %v2105
      %v2116 = vpack.c.bf16 %v2108, %v2107
      %v2125 = vunpack.c.l.b16 %v2109
      %v2126 = vunpack.c.h.b16 %v2109
      %v2127 = vunpack.c.l.b16 %v2110
      %v2128 = vunpack.c.h.b16 %v2110
      %v2129 = vunpack.c.l.b16 %v2111
      %v2130 = vunpack.c.h.b16 %v2111
      %v2131 = vunpack.c.l.b16 %v2112
      %v2132 = vunpack.c.h.b16 %v2112
      %v2133 = vunpack.c.l.b16 %v2113
      %v2134 = vunpack.c.h.b16 %v2113
      %v2135 = vunpack.c.l.b16 %v2114
      %v2136 = vunpack.c.h.b16 %v2114
      %v2137 = vunpack.c.l.b16 %v2115
      %v2138 = vunpack.c.h.b16 %v2115
      %v2139 = vunpack.c.l.b16 %v2116
      %v2140 = vunpack.c.h.b16 %v2116
      %v2141 = vpack.c.b16 %v2125, %v2125
      %v2142 = vpack.c.b16 %v2126, %v2126
      %v2143 = vpack.c.b16 %v2127, %v2127
      %v2144 = vpack.c.b16 %v2128, %v2128
      %v2145 = vpack.c.b16 %v2129, %v2129
      %v2146 = vpack.c.b16 %v2130, %v2130
      %v2147 = vpack.c.b16 %v2131, %v2131
      %v2148 = vpack.c.b16 %v2132, %v2132
      %v2149 = vpack.c.b16 %v2133, %v2133
      %v2150 = vpack.c.b16 %v2134, %v2134
      %v2151 = vpack.c.b16 %v2135, %v2135
      %v2152 = vpack.c.b16 %v2136, %v2136
      %v2153 = vpack.c.b16 %v2137, %v2137
      %v2154 = vpack.c.b16 %v2138, %v2138
      %v2155 = vpack.c.b16 %v2139, %v2139
      %v2156 = vpack.c.b16 %v2140, %v2140
      %2173 = vst [vmem:[%s205] sm:$0xf] %v2141
      %2174 = vst [vmem:[%s205 + $0x4] sm:$0xf] %v2142
      %2175 = vst [vmem:[%s205 + $0x8] sm:$0xf] %v2143
      %2176 = vst [vmem:[%s205 + $0xc] sm:$0xf] %v2144
      %2177 = vst [vmem:[%s205 + $0x10] sm:$0xf] %v2145
      %2178 = vst [vmem:[%s205 + $0x14] sm:$0xf] %v2146
      %2179 = vst [vmem:[%s205 + $0x18] sm:$0xf] %v2147
      %2180 = vst [vmem:[%s205 + $0x1c] sm:$0xf] %v2148
      %2181 = vst [vmem:[%s205 + $0x20] sm:$0xf] %v2149
      %2182 = vst [vmem:[%s205 + $0x24] sm:$0xf] %v2150
      %2183 = vst [vmem:[%s205 + $0x28] sm:$0xf] %v2151
      %2184 = vst [vmem:[%s205 + $0x2c] sm:$0xf] %v2152
      %2185 = vst [vmem:[%s205 + $0x30] sm:$0xf] %v2153
      %2186 = vst [vmem:[%s205 + $0x34] sm:$0xf] %v2154
      %2187 = vst [vmem:[%s205 + $0x38] sm:$0xf] %v2155
      %2188 = vst [vmem:[%s205 + $0x3c] sm:$0xf] %v2156
      %vm2189 = vcmask 7168
      %v2190 = vsel %vm2189, %v2077, 0.0
      %v2191 = vsel %vm2189, %v2078, 0.0
      %v2192 = vadd.f32 %v2190, %v2191
      %v2193 = vsel %vm2189, %v2079, 0.0
      %v2194 = vadd.f32 %v2192, %v2193
      %v2195 = vsel %vm2189, %v2080, 0.0
      %v2196 = vadd.f32 %v2194, %v2195
      %v2197 = vsel %vm2189, %v2081, 0.0
      %v2198 = vadd.f32 %v2196, %v2197
      %v2199 = vsel %vm2189, %v2082, 0.0
      %v2200 = vadd.f32 %v2198, %v2199
      %v2201 = vsel %vm2189, %v2083, 0.0
      %v2202 = vadd.f32 %v2200, %v2201
      %v2203 = vsel %vm2189, %v2084, 0.0
      %v2204 = vadd.f32 %v2202, %v2203
      %v2205 = vsel %vm2189, %v2085, 0.0
      %v2206 = vadd.f32 %v2204, %v2205
      %v2207 = vsel %vm2189, %v2086, 0.0
      %v2208 = vadd.f32 %v2206, %v2207
      %v2209 = vsel %vm2189, %v2087, 0.0
      %v2210 = vadd.f32 %v2208, %v2209
      %v2211 = vsel %vm2189, %v2088, 0.0
      %v2212 = vadd.f32 %v2210, %v2211
      %v2213 = vsel %vm2189, %v2089, 0.0
      %v2214 = vadd.f32 %v2212, %v2213
      %v2215 = vsel %vm2189, %v2090, 0.0
      %v2216 = vadd.f32 %v2214, %v2215
      %v2217 = vsel %vm2189, %v2091, 0.0
      %v2218 = vadd.f32 %v2216, %v2217
      %v2219 = vsel %vm2189, %v2092, 0.0
      %v2220 = vadd.f32 %v2218, %v2219
      %2221 = vadd.xlane.f32.xlu0 %v2220
      %v2222 = vpop.xlane.xlu0 %2221
      %v2223 = vrot.slane %v2222, 4
      %v2224 = vadd.f32 %v2222, %v2223
      %v2225 = vrot.slane %v2224, 2
      %v2226 = vadd.f32 %v2224, %v2225
      %v2227 = vrot.slane %v2226, 1
      %v2228 = vadd.f32 %v2226, %v2227
      %s2229 = vtos %v2228
      %s2230 = smax.f32 %s2229, 1.0
      %v2231 = vstv %s2230
      %v2232 = vrcp.pop %v2231
      %s2233 = vtos %v2232
      %v2234 = vadd.f32 %v2093, %v2094
      %v2235 = vadd.f32 %v2234, %v2095
      %v2236 = vadd.f32 %v2235, %v2096
      %v2237 = vadd.f32 %v2236, %v2097
      %v2238 = vadd.f32 %v2237, %v2098
      %v2239 = vadd.f32 %v2238, %v2099
      %v2240 = vadd.f32 %v2239, %v2100
      %v2241 = vadd.f32 %v2240, %v2101
      %v2242 = vadd.f32 %v2241, %v2102
      %v2243 = vadd.f32 %v2242, %v2103
      %v2244 = vadd.f32 %v2243, %v2104
      %v2245 = vadd.f32 %v2244, %v2105
      %v2246 = vadd.f32 %v2245, %v2106
      %v2247 = vadd.f32 %v2246, %v2107
      %v2248 = vadd.f32 %v2247, %v2108
      %v2249 = vrot.slane %v2248, 4
      %v2250 = vadd.f32 %v2248, %v2249
      %v2251 = vrot.slane %v2250, 2
      %v2252 = vadd.f32 %v2250, %v2251
      %v2253 = vrot.slane %v2252, 1
      %v2254 = vadd.f32 %v2252, %v2253
      %v2255 = vstv %s2233
      %v2256 = vmul.f32 %v2254, %v2255
      %v2257 = vsub.f32 %v1707, %v2256
      %v2258 = vsub.f32 %v1708, %v2256
      %v2259 = vsub.f32 %v1709, %v2256
      %v2260 = vsub.f32 %v1710, %v2256
      %v2261 = vsub.f32 %v1711, %v2256
      %v2262 = vsub.f32 %v1712, %v2256
      %v2263 = vsub.f32 %v1713, %v2256
      %v2264 = vsub.f32 %v1714, %v2256
      %v2265 = vsub.f32 %v1715, %v2256
      %v2266 = vsub.f32 %v1716, %v2256
      %v2267 = vsub.f32 %v1717, %v2256
      %v2268 = vsub.f32 %v1718, %v2256
      %v2269 = vsub.f32 %v1719, %v2256
      %v2270 = vsub.f32 %v1720, %v2256
      %v2271 = vsub.f32 %v1721, %v2256
      %v2272 = vsub.f32 %v1722, %v2256
      %v2273 = vmul.f32 %v2257, %v2077
      %v2274 = vmul.f32 %v2258, %v2078
      %v2275 = vmul.f32 %v2259, %v2079
      %v2276 = vmul.f32 %v2260, %v2080
      %v2277 = vmul.f32 %v2261, %v2081
      %v2278 = vmul.f32 %v2262, %v2082
      %v2279 = vmul.f32 %v2263, %v2083
      %v2280 = vmul.f32 %v2264, %v2084
      %v2281 = vmul.f32 %v2265, %v2085
      %v2282 = vmul.f32 %v2266, %v2086
      %v2283 = vmul.f32 %v2267, %v2087
      %v2284 = vmul.f32 %v2268, %v2088
      %v2285 = vmul.f32 %v2269, %v2089
      %v2286 = vmul.f32 %v2270, %v2090
      %v2287 = vmul.f32 %v2271, %v2091
      %v2288 = vmul.f32 %v2272, %v2092
      %v2289 = vmul.f32 %v2273, %v2273
      %v2290 = vmul.f32 %v2274, %v2274
      %v2291 = vmul.f32 %v2275, %v2275
      %v2292 = vmul.f32 %v2276, %v2276
      %v2293 = vmul.f32 %v2277, %v2277
      %v2294 = vmul.f32 %v2278, %v2278
      %v2295 = vmul.f32 %v2279, %v2279
      %v2296 = vmul.f32 %v2280, %v2280
      %v2297 = vmul.f32 %v2281, %v2281
      %v2298 = vmul.f32 %v2282, %v2282
      %v2299 = vmul.f32 %v2283, %v2283
      %v2300 = vmul.f32 %v2284, %v2284
      %v2301 = vmul.f32 %v2285, %v2285
      %v2302 = vmul.f32 %v2286, %v2286
      %v2303 = vmul.f32 %v2287, %v2287
      %v2304 = vmul.f32 %v2288, %v2288
      %v2305 = vadd.f32 %v2289, %v2290
      %v2306 = vadd.f32 %v2305, %v2291
      %v2307 = vadd.f32 %v2306, %v2292
      %v2308 = vadd.f32 %v2307, %v2293
      %v2309 = vadd.f32 %v2308, %v2294
      %v2310 = vadd.f32 %v2309, %v2295
      %v2311 = vadd.f32 %v2310, %v2296
      %v2312 = vadd.f32 %v2311, %v2297
      %v2313 = vadd.f32 %v2312, %v2298
      %v2314 = vadd.f32 %v2313, %v2299
      %v2315 = vadd.f32 %v2314, %v2300
      %v2316 = vadd.f32 %v2315, %v2301
      %v2317 = vadd.f32 %v2316, %v2302
      %v2318 = vadd.f32 %v2317, %v2303
      %v2319 = vadd.f32 %v2318, %v2304
      %v2320 = vrot.slane %v2319, 4
      %v2321 = vadd.f32 %v2319, %v2320
      %v2322 = vrot.slane %v2321, 2
      %v2323 = vadd.f32 %v2321, %v2322
      %v2324 = vrot.slane %v2323, 1
      %v2325 = vadd.f32 %v2323, %v2324
      %vm2326 = vcmp.eq.s32.totalorder %v1724, 0
      %v2327 = vsel %vm2326, %v2254, %v2325
      %2328 = vst [vmem:[%s214] sm:$0x3] %v2327
      %s2329 = smul.u32 16, %s20
      %p2330 = scmp.lt.s32.totalorder %s19, 1
      %s2331 = scalar_select %p2330, %s19, 1
      %p2332 = scmp.lt.s32.totalorder %s2329, 47
      %s2333 = scalar_select %p2332, %s2329, 47
      %s2334 = smul.addr %s2331, 48
      %s2335 = sadd.s32 %s2333, %s2334
      %s2336 = smul.addr %s2335, 4
      %s2337 = scalar_lea.vmem %s2, %s2336
      %p2338 = scmp.lt.s32.totalorder %s19, 1
      %s2339 = scalar_select %p2338, %s19, 1
      %p2340 = scmp.lt.s32.totalorder %s20, 2
      %s2341 = scalar_select %p2340, %s20, 2
      %s2342 = smul.addr %s2339, 3
      %s2343 = sadd.s32 %s2341, %s2342
      %s2344 = smul.addr %s2343, 2
      %s2345 = scalar_lea.vmem %s3, %s2344
      // Predicated region
      $region29: #{double_conv.4} parent=27 // pred_check
        %p2346 = pneg %p94
      $region30: #{double_conv.4} parent=27 // pred_check_branch
        %2348 = sbr.rel (%p2346) target = $region32
      $region31: #{double_conv.4} parent=27 // pred_region
        %s2349 = smul.u32 16, %s20
      $region32: #{double_conv.4} parent=27 // pred_fallthru
        _
      // Predicated region
      $region33: #{double_conv.4} parent=27 // pred_check
        %p2350 = pneg %p122
      $region34: #{double_conv.4} parent=27 // pred_check_branch
        %2352 = sbr.rel (%p2350) target = $region36
      $region35: #{double_conv.4} parent=27 // pred_region
        _
      $region36: #{double_conv.4} parent=27 // pred_fallthru
        _
    $region28: #{double_conv.4} parent=5 // pred_fallthru
      _
    %p2353 = scmp.le.s32.totalorder 2, %s10
    // Predicated region
    $region37: #{double_conv.4} parent=5 // pred_check
      %p2354 = pneg %p2353
    $region38: #{double_conv.4} parent=5 // pred_check_branch
      %2356 = sbr.rel (%p2354) target = $region40
    $region39: #{double_conv.4} parent=5 // pred_region
      %s2357 = ssub.s32 %s10, 2
      // Predicated region
      $region41: #{double_conv.4} parent=39 // pred_check
        %p2358 = pneg %p100
      $region42: #{double_conv.4} parent=39 // pred_check_branch
        %2360 = sbr.rel (%p2358) target = $region44
      $region43: #{double_conv.4} parent=39 // pred_region
        %s2361 = smul.u32 16, %s22
        %p2362 = scmp.lt.s32.totalorder %s21, 1
        %s2363 = scalar_select %p2362, %s21, 1
        %p2364 = scmp.lt.s32.totalorder %s2361, 47
        %s2365 = scalar_select %p2364, %s2361, 47
        %s2366 = smul.addr %s2363, 48
        %s2367 = sadd.s32 %s2365, %s2366
        %s2368 = smul.addr %s2367, 4
        %s2369 = scalar_lea.vmem %s2, %s2368
      $region44: #{double_conv.4} parent=39 // pred_fallthru
        _
      // Predicated region
      $region45: #{double_conv.4} parent=39 // pred_check
        %p2370 = pneg %p128
      $region46: #{double_conv.4} parent=39 // pred_check_branch
        %2372 = sbr.rel (%p2370) target = $region48
      $region47: #{double_conv.4} parent=39 // pred_region
        %p2373 = scmp.lt.s32.totalorder %s21, 1
        %s2374 = scalar_select %p2373, %s21, 1
        %p2375 = scmp.lt.s32.totalorder %s22, 2
        %s2376 = scalar_select %p2375, %s22, 2
        %s2377 = smul.addr %s2374, 3
        %s2378 = sadd.s32 %s2376, %s2377
        %s2379 = smul.addr %s2378, 2
        %s2380 = scalar_lea.vmem %s3, %s2379
      $region48: #{double_conv.4} parent=39 // pred_fallthru
        _
    $region40: #{double_conv.4} parent=5 // pred_fallthru
      _
  $region6: #{double_conv.4} parent=0 // loop_footer
    %s14 = sadd.s32 1, %s10
  $region7: #{double_conv.4} parent=0 // loop_footer_branch
    %9 = sbr.rel target = $region3
  $region8: #{double_conv.4} parent=0 // loop_exit
    _

// kernel: double_conv.7
$region0: #{double_conv.7}
  #allocation0 [shape = 'u32[]', space=smem, size = 0x4, offset = 0x4, fixed_abs, tag = 'smem constant byte address 0x4 - core index']
  #allocation1 [shape = 'u32[144,128]{1,0:T(1,128)}', space=vmem, size = 0x12000, scoped, tag = 'internal scratch']
  %s0 = inlined_call_operand.vmem [shape: bf16[2,384,128], index: 0, kind: input, shape index: {}]
  %s1 = inlined_call_operand.vmem [shape: f32[1,128], index: 1, kind: input, shape index: {}]
  %s2 = inlined_call_operand.vmem [shape: f32[1,128], index: 2, kind: input, shape index: {}]
  %s3 = inlined_call_operand.vmem [shape: f32[2,384,128], index: 3, kind: output, shape index: {}]
  %s4 = sld [smem:[#allocation0]]
  $region45: #{double_conv.7} parent=0
    _
  %s6 = ssub.s32 1, %s4
  %s7 = scalar_select 0, %s6, %s4
  loop: start=0, step=1, limit=8
  $region2: #{double_conv.7} parent=0 // loop_pre_header
    _
  $region3: #{double_conv.7} parent=0 // loop_header
    %s9 = sphi 0, %s13
    %p10 = scmp.ge.s32.totalorder %s9, 8
    %s16 = sphi 0, %s28
    %s17 = sphi 0, %s24
    %s18 = sphi 0, %s16
    %s19 = sphi 0, %s17
    %s20 = sphi 0, %s18
    %s21 = sphi 0, %s19
    %s33 = sphi 0, %s35
    %s36 = sphi 0, %s33
    %s37 = sphi 0, %s36
    %s53 = sphi 0, %s37
    %s57 = sphi 0, %s57
    %s59 = sphi 0, %s57
    %s60 = sphi 0, %s59
    %s74 = sphi 0, %s60
    %s78 = sphi 0, %s78
    %s80 = sphi 0, %s78
    %s81 = sphi 0, %s80
    %s95 = sphi 0, %s81
    %s103 = sphi 0, %s105
    %s106 = sphi 0, %s103
    %s107 = sphi 0, %s106
    %s123 = sphi 0, %s107
  $region4: #{double_conv.7} parent=0 // loop_header_branch
    %12 = sbr.rel (%p10) target = $region8
  $region5: #{double_conv.7} parent=0 // loop_body
    %s14 = ssub.s32 %s9, 1
    %s15 = ssub.s32 %s9, 2
    %s22 = sadd.s32 1, %s17
    %p23 = scmp.ge.s32.totalorder %s22, 3
    %s24 = scalar_select %p23, 0, %s22
    %s25 = sadd.s32 1, %s16
    %s26 = scalar_select %p23, %s25, %s16
    %p27 = scmp.ge.s32.totalorder %s26, 2
    %s28 = scalar_select %p27, 0, %s26
    %s29 = ssub.s32 %s16, %s28
    %s30 = ssub.s32 %s17, %s24
    %s31 = sor.u32 %s29, %s30
    %p32 = scmp.eq.s32.totalorder %s31, 0
    %s34 = sadd.s32 %s33, 1
    %s35 = scalar_select %p32, %s33, %s34
    %p38 = pneg %p32
    %p39 = scmp.eq.s32.totalorder %s9, 5
    %p40 = por %p38, %p39
    %p41 = scmp.ne.s32.totalorder %s33, %s36
    %p42 = scmp.eq.s32.totalorder %s9, 0
    %p43 = por %p41, %p42
    %p44 = scmp.ne.s32.totalorder %s33, %s36
    %p45 = scmp.eq.s32.totalorder %s14, 5
    %p46 = por %p44, %p45
    %p47 = scmp.ne.s32.totalorder %s36, %s37
    %p48 = scmp.eq.s32.totalorder %s14, 0
    %p49 = por %p47, %p48
    %p50 = scmp.ne.s32.totalorder %s36, %s37
    %p51 = scmp.eq.s32.totalorder %s15, 5
    %p52 = por %p50, %p51
    %p54 = scmp.ne.s32.totalorder %s37, %s53
    %p55 = scmp.eq.s32.totalorder %s15, 0
    %p56 = por %p54, %p55
    %s58 = sadd.s32 %s57, 1
    %p61 = scmp.eq.s32.totalorder %s9, 5
    %p62 = scmp.ne.s32.totalorder %s57, %s59
    %p63 = scmp.eq.s32.totalorder %s9, 0
    %p64 = por %p62, %p63
    %p65 = scmp.ne.s32.totalorder %s57, %s59
    %p66 = scmp.eq.s32.totalorder %s14, 5
    %p67 = por %p65, %p66
    %p68 = scmp.ne.s32.totalorder %s59, %s60
    %p69 = scmp.eq.s32.totalorder %s14, 0
    %p70 = por %p68, %p69
    %p71 = scmp.ne.s32.totalorder %s59, %s60
    %p72 = scmp.eq.s32.totalorder %s15, 5
    %p73 = por %p71, %p72
    %p75 = scmp.ne.s32.totalorder %s60, %s74
    %p76 = scmp.eq.s32.totalorder %s15, 0
    %p77 = por %p75, %p76
    %s79 = sadd.s32 %s78, 1
    %p82 = scmp.eq.s32.totalorder %s9, 5
    %p83 = scmp.ne.s32.totalorder %s78, %s80
    %p84 = scmp.eq.s32.totalorder %s9, 0
    %p85 = por %p83, %p84
    %p86 = scmp.ne.s32.totalorder %s78, %s80
    %p87 = scmp.eq.s32.totalorder %s14, 5
    %p88 = por %p86, %p87
    %p89 = scmp.ne.s32.totalorder %s80, %s81
    %p90 = scmp.eq.s32.totalorder %s14, 0
    %p91 = por %p89, %p90
    %p92 = scmp.ne.s32.totalorder %s80, %s81
    %p93 = scmp.eq.s32.totalorder %s15, 5
    %p94 = por %p92, %p93
    %p96 = scmp.ne.s32.totalorder %s81, %s95
    %p97 = scmp.eq.s32.totalorder %s15, 0
    %p98 = por %p96, %p97
    %s99 = ssub.s32 %s16, %s28
    %s100 = ssub.s32 %s17, %s24
    %s101 = sor.u32 %s99, %s100
    %p102 = scmp.eq.s32.totalorder %s101, 0
    %s104 = sadd.s32 %s103, 1
    %s105 = scalar_select %p102, %s103, %s104
    %p108 = pneg %p102
    %p109 = scmp.eq.s32.totalorder %s9, 5
    %p110 = por %p108, %p109
    %p111 = scmp.ne.s32.totalorder %s103, %s106
    %p112 = scmp.eq.s32.totalorder %s9, 0
    %p113 = por %p111, %p112
    %p114 = scmp.ne.s32.totalorder %s103, %s106
    %p115 = scmp.eq.s32.totalorder %s14, 5
    %p116 = por %p114, %p115
    %p117 = scmp.ne.s32.totalorder %s106, %s107
    %p118 = scmp.eq.s32.totalorder %s14, 0
    %p119 = por %p117, %p118
    %p120 = scmp.ne.s32.totalorder %s106, %s107
    %p121 = scmp.eq.s32.totalorder %s15, 5
    %p122 = por %p120, %p121
    %p124 = scmp.ne.s32.totalorder %s107, %s123
    %p125 = scmp.eq.s32.totalorder %s15, 0
    %p126 = por %p124, %p125
    %p127 = scmp.le.s32.totalorder 1, %s9
    %p128 = scmp.lt.s32.totalorder %s9, 7
    %p129 = pnand %p127, %p128
    %p130 = pneg %p129
    // Predicated region
    $region9: #{double_conv.7} parent=5 // pred_check
      _
    $region10: #{double_conv.7} parent=5 // pred_check_branch
      %132 = sbr.rel (%p129) target = $region12
    $region11: #{double_conv.7} parent=5 // pred_region
      %s133 = ssub.s32 %s9, 1
      // Predicated region
      $region13: #{double_conv.7} parent=11 // pred_check
        %p134 = pneg %p70
      $region14: #{double_conv.7} parent=11 // pred_check_branch
        %136 = sbr.rel (%p134) target = $region16
      $region15: #{double_conv.7} parent=11 // pred_region
        _
      $region16: #{double_conv.7} parent=11 // pred_fallthru
        _
      // Predicated region
      $region17: #{double_conv.7} parent=11 // pred_check
        %p137 = pneg %p91
      $region18: #{double_conv.7} parent=11 // pred_check_branch
        %139 = sbr.rel (%p137) target = $region20
      $region19: #{double_conv.7} parent=11 // pred_region
        _
      $region20: #{double_conv.7} parent=11 // pred_fallthru
        _
    $region12: #{double_conv.7} parent=5 // pred_fallthru
      _
    %p140 = scmp.lt.s32.totalorder %s9, 6
    // Predicated region
    $region21: #{double_conv.7} parent=5 // pred_check
      %p141 = pneg %p140
    $region22: #{double_conv.7} parent=5 // pred_check_branch
      %143 = sbr.rel (%p141) target = $region24
    $region23: #{double_conv.7} parent=5 // pred_region
      // Predicated region
      $region25: #{double_conv.7} parent=23 // pred_check
        %p144 = pneg %p43
      $region26: #{double_conv.7} parent=23 // pred_check_branch
        %146 = sbr.rel (%p144) target = $region28
      $region27: #{double_conv.7} parent=23 // pred_region
        %s147 = smul.u32 16, %s17
        %p148 = scmp.lt.s32.totalorder %s16, 1
        %s149 = scalar_select %p148, %s16, 1
        %p150 = scmp.lt.s32.totalorder %s147, 47
        %s151 = scalar_select %p150, %s147, 47
        %s152 = smul.addr %s149, 48
        %s153 = sadd.s32 %s151, %s152
        %s154 = smul.addr %s153, 4
        %s155 = scalar_lea.vmem %s0, %s154
        %s156 = smul.u32 16, %s17
      $region28: #{double_conv.7} parent=23 // pred_fallthru
        _
    $region24: #{double_conv.7} parent=5 // pred_fallthru
      _
    %p157 = scmp.le.s32.totalorder 1, %s9
    %p158 = scmp.lt.s32.totalorder %s9, 7
    %p159 = pnand %p157, %p158
    %p160 = pneg %p159
    // Predicated region
    $region29: #{double_conv.7} parent=5 // pred_check
      _
    $region30: #{double_conv.7} parent=5 // pred_check_branch
      %162 = sbr.rel (%p159) target = $region32
    $region31: #{double_conv.7} parent=5 // pred_region
      %s163 = ssub.s32 %s9, 1
      %s164 = smul.u32 16, %s19
      %p165 = scmp.lt.s32.totalorder %s18, 1
      %s166 = scalar_select %p165, %s18, 1
      %p167 = scmp.lt.s32.totalorder %s164, 47
      %s168 = scalar_select %p167, %s164, 47
      %s169 = smul.addr %s166, 48
      %s170 = sadd.s32 %s168, %s169
      %s171 = smul.addr %s170, 4
      %s172 = scalar_lea.vmem %s0, %s171
      %p173 = pneg %p49
      %p174 = pneg %p46
      %p175 = pneg %p70
      %p176 = pneg %p67
      %p177 = pneg %p91
      %p178 = pneg %p88
      %p179 = pneg %p119
      %p180 = pneg %p116
      %s181 = smul.u32 16, %s19
      %p182 = scmp.lt.s32.totalorder %s18, 1
      %s183 = scalar_select %p182, %s18, 1
      %p184 = scmp.lt.s32.totalorder %s181, 47
      %s185 = scalar_select %p184, %s181, 47
      %s186 = smul.addr %s183, 48
      %s187 = sadd.s32 %s185, %s186
      %s188 = smul.addr %s187, 8
      %s189 = scalar_lea.vmem %s3, %s188
      %s190 = smul.u32 16, %s19
      %p191 = scmp.lt.s32.totalorder %s18, 1
      %s192 = scalar_select %p191, %s18, 1
      %p193 = scmp.lt.s32.totalorder %s190, 47
      %s194 = scalar_select %p193, %s190, 47
      %s195 = smul.addr %s192, 48
      %s196 = sadd.s32 %s194, %s195
      %s197 = smul.addr %s196, 4
      %s198 = scalar_lea.vmem %s0, %s197
      %s199 = smul.u32 16, %s19
      %s200 = smul.u32 16, %s19
      %p201 = scmp.lt.s32.totalorder %s18, 1
      %s202 = scalar_select %p201, %s18, 1
      %p203 = scmp.lt.s32.totalorder %s200, 47
      %s204 = scalar_select %p203, %s200, 47
      %s205 = smul.addr %s202, 48
      %s206 = sadd.s32 %s204, %s205
      %s207 = smul.addr %s206, 8
      %s208 = scalar_lea.vmem %s3, %s207
      %s209 = smul.u32 16, %s19
      %s210 = smul.u32 %s19, 128
      %v211 = vlaneseq
      %v212 = vshrl.u32 %v211, 7
      %v213 = vadd.s32 %v212, 8
      %v214 = vadd.s32 %v212, 16
      %v215 = vadd.s32 %v212, 24
      %v216 = vadd.s32 %v212, 32
      %v217 = vadd.s32 %v212, 40
      %v218 = vadd.s32 %v212, 48
      %v219 = vadd.s32 %v212, 56
      %v220 = vadd.s32 %v212, 64
      %v221 = vadd.s32 %v212, 72
      %v222 = vadd.s32 %v212, 80
      %v223 = vadd.s32 %v212, 88
      %v224 = vadd.s32 %v212, 96
      %v225 = vadd.s32 %v212, 104
      %v226 = vadd.s32 %v212, 112
      %v227 = vadd.s32 %v212, 120
      %v228 = vstv %s210
      %v229 = vadd.s32 %v228, %v212
      %v230 = vadd.s32 %v228, %v213
      %v231 = vadd.s32 %v228, %v214
      %v232 = vadd.s32 %v228, %v215
      %v233 = vadd.s32 %v228, %v216
      %v234 = vadd.s32 %v228, %v217
      %v235 = vadd.s32 %v228, %v218
      %v236 = vadd.s32 %v228, %v219
      %v237 = vadd.s32 %v228, %v220
      %v238 = vadd.s32 %v228, %v221
      %v239 = vadd.s32 %v228, %v222
      %v240 = vadd.s32 %v228, %v223
      %v241 = vadd.s32 %v228, %v224
      %v242 = vadd.s32 %v228, %v225
      %v243 = vadd.s32 %v228, %v226
      %v244 = vadd.s32 %v228, %v227
      %vm245 = vcmp.lt.s32.totalorder %v229, 288
      %vm246 = vcmp.lt.s32.totalorder %v230, 288
      %vm247 = vcmp.lt.s32.totalorder %v231, 288
      %vm248 = vcmp.lt.s32.totalorder %v232, 288
      %vm249 = vcmp.lt.s32.totalorder %v233, 288
      %vm250 = vcmp.lt.s32.totalorder %v234, 288
      %vm251 = vcmp.lt.s32.totalorder %v235, 288
      %vm252 = vcmp.lt.s32.totalorder %v236, 288
      %vm253 = vcmp.lt.s32.totalorder %v237, 288
      %vm254 = vcmp.lt.s32.totalorder %v238, 288
      %vm255 = vcmp.lt.s32.totalorder %v239, 288
      %vm256 = vcmp.lt.s32.totalorder %v240, 288
      %vm257 = vcmp.lt.s32.totalorder %v241, 288
      %vm258 = vcmp.lt.s32.totalorder %v242, 288
      %vm259 = vcmp.lt.s32.totalorder %v243, 288
      %vm260 = vcmp.lt.s32.totalorder %v244, 288
      %vm261 = vcmp.lt.s32.totalorder %v229, 0
      %v262 = vsub.s32 0, %v229
      %v263 = vsel %vm261, %v262, %v229
      %v264 = vmul.u32.u64.compose %v263, 3817748708
      %v265 = vextract.low.u32 %v264
      %v266 = vextract.high.u32 %v264
      %v267 = vshrl.u32 %v266, 4
      %v268 = vmul.u32 %v267, 18
      %v269 = vsub.s32 %v263, %v268
      %v270 = vsub.s32 0, %v269
      %v271 = vsel %vm261, %v270, %v269
      %vm272 = vcmp.lt.s32.totalorder %v230, 0
      %v273 = vsub.s32 0, %v230
      %v274 = vsel %vm272, %v273, %v230
      %v275 = vmul.u32.u64.compose %v274, 3817748708
      %v276 = vextract.low.u32 %v275
      %v277 = vextract.high.u32 %v275
      %v278 = vshrl.u32 %v277, 4
      %v279 = vmul.u32 %v278, 18
      %v280 = vsub.s32 %v274, %v279
      %v281 = vsub.s32 0, %v280
      %v282 = vsel %vm272, %v281, %v280
      %vm283 = vcmp.lt.s32.totalorder %v231, 0
      %v284 = vsub.s32 0, %v231
      %v285 = vsel %vm283, %v284, %v231
      %v286 = vmul.u32.u64.compose %v285, 3817748708
      %v287 = vextract.low.u32 %v286
      %v288 = vextract.high.u32 %v286
      %v289 = vshrl.u32 %v288, 4
      %v290 = vmul.u32 %v289, 18
      %v291 = vsub.s32 %v285, %v290
      %v292 = vsub.s32 0, %v291
      %v293 = vsel %vm283, %v292, %v291
      %vm294 = vcmp.lt.s32.totalorder %v232, 0
      %v295 = vsub.s32 0, %v232
      %v296 = vsel %vm294, %v295, %v232
      %v297 = vmul.u32.u64.compose %v296, 3817748708
      %v298 = vextract.low.u32 %v297
      %v299 = vextract.high.u32 %v297
      %v300 = vshrl.u32 %v299, 4
      %v301 = vmul.u32 %v300, 18
      %v302 = vsub.s32 %v296, %v301
      %v303 = vsub.s32 0, %v302
      %v304 = vsel %vm294, %v303, %v302
      %vm305 = vcmp.lt.s32.totalorder %v233, 0
      %v306 = vsub.s32 0, %v233
      %v307 = vsel %vm305, %v306, %v233
      %v308 = vmul.u32.u64.compose %v307, 3817748708
      %v309 = vextract.low.u32 %v308
      %v310 = vextract.high.u32 %v308
      %v311 = vshrl.u32 %v310, 4
      %v312 = vmul.u32 %v311, 18
      %v313 = vsub.s32 %v307, %v312
      %v314 = vsub.s32 0, %v313
      %v315 = vsel %vm305, %v314, %v313
      %vm316 = vcmp.lt.s32.totalorder %v234, 0
      %v317 = vsub.s32 0, %v234
      %v318 = vsel %vm316, %v317, %v234
      %v319 = vmul.u32.u64.compose %v318, 3817748708
      %v320 = vextract.low.u32 %v319
      %v321 = vextract.high.u32 %v319
      %v322 = vshrl.u32 %v321, 4
      %v323 = vmul.u32 %v322, 18
      %v324 = vsub.s32 %v318, %v323
      %v325 = vsub.s32 0, %v324
      %v326 = vsel %vm316, %v325, %v324
      %vm327 = vcmp.lt.s32.totalorder %v235, 0
      %v328 = vsub.s32 0, %v235
      %v329 = vsel %vm327, %v328, %v235
      %v330 = vmul.u32.u64.compose %v329, 3817748708
      %v331 = vextract.low.u32 %v330
      %v332 = vextract.high.u32 %v330
      %v333 = vshrl.u32 %v332, 4
      %v334 = vmul.u32 %v333, 18
      %v335 = vsub.s32 %v329, %v334
      %v336 = vsub.s32 0, %v335
      %v337 = vsel %vm327, %v336, %v335
      %vm338 = vcmp.lt.s32.totalorder %v236, 0
      %v339 = vsub.s32 0, %v236
      %v340 = vsel %vm338, %v339, %v236
      %v341 = vmul.u32.u64.compose %v340, 3817748708
      %v342 = vextract.low.u32 %v341
      %v343 = vextract.high.u32 %v341
      %v344 = vshrl.u32 %v343, 4
      %v345 = vmul.u32 %v344, 18
      %v346 = vsub.s32 %v340, %v345
      %v347 = vsub.s32 0, %v346
      %v348 = vsel %vm338, %v347, %v346
      %vm349 = vcmp.lt.s32.totalorder %v237, 0
      %v350 = vsub.s32 0, %v237
      %v351 = vsel %vm349, %v350, %v237
      %v352 = vmul.u32.u64.compose %v351, 3817748708
      %v353 = vextract.low.u32 %v352
      %v354 = vextract.high.u32 %v352
      %v355 = vshrl.u32 %v354, 4
      %v356 = vmul.u32 %v355, 18
      %v357 = vsub.s32 %v351, %v356
      %v358 = vsub.s32 0, %v357
      %v359 = vsel %vm349, %v358, %v357
      %vm360 = vcmp.lt.s32.totalorder %v238, 0
      %v361 = vsub.s32 0, %v238
      %v362 = vsel %vm360, %v361, %v238
      %v363 = vmul.u32.u64.compose %v362, 3817748708
      %v364 = vextract.low.u32 %v363
      %v365 = vextract.high.u32 %v363
      %v366 = vshrl.u32 %v365, 4
      %v367 = vmul.u32 %v366, 18
      %v368 = vsub.s32 %v362, %v367
      %v369 = vsub.s32 0, %v368
      %v370 = vsel %vm360, %v369, %v368
      %vm371 = vcmp.lt.s32.totalorder %v239, 0
      %v372 = vsub.s32 0, %v239
      %v373 = vsel %vm371, %v372, %v239
      %v374 = vmul.u32.u64.compose %v373, 3817748708
      %v375 = vextract.low.u32 %v374
      %v376 = vextract.high.u32 %v374
      %v377 = vshrl.u32 %v376, 4
      %v378 = vmul.u32 %v377, 18
      %v379 = vsub.s32 %v373, %v378
      %v380 = vsub.s32 0, %v379
      %v381 = vsel %vm371, %v380, %v379
      %vm382 = vcmp.lt.s32.totalorder %v240, 0
      %v383 = vsub.s32 0, %v240
      %v384 = vsel %vm382, %v383, %v240
      %v385 = vmul.u32.u64.compose %v384, 3817748708
      %v386 = vextract.low.u32 %v385
      %v387 = vextract.high.u32 %v385
      %v388 = vshrl.u32 %v387, 4
      %v389 = vmul.u32 %v388, 18
      %v390 = vsub.s32 %v384, %v389
      %v391 = vsub.s32 0, %v390
      %v392 = vsel %vm382, %v391, %v390
      %vm393 = vcmp.lt.s32.totalorder %v241, 0
      %v394 = vsub.s32 0, %v241
      %v395 = vsel %vm393, %v394, %v241
      %v396 = vmul.u32.u64.compose %v395, 3817748708
      %v397 = vextract.low.u32 %v396
      %v398 = vextract.high.u32 %v396
      %v399 = vshrl.u32 %v398, 4
      %v400 = vmul.u32 %v399, 18
      %v401 = vsub.s32 %v395, %v400
      %v402 = vsub.s32 0, %v401
      %v403 = vsel %vm393, %v402, %v401
      %vm404 = vcmp.lt.s32.totalorder %v242, 0
      %v405 = vsub.s32 0, %v242
      %v406 = vsel %vm404, %v405, %v242
      %v407 = vmul.u32.u64.compose %v406, 3817748708
      %v408 = vextract.low.u32 %v407
      %v409 = vextract.high.u32 %v407
      %v410 = vshrl.u32 %v409, 4
      %v411 = vmul.u32 %v410, 18
      %v412 = vsub.s32 %v406, %v411
      %v413 = vsub.s32 0, %v412
      %v414 = vsel %vm404, %v413, %v412
      %vm415 = vcmp.lt.s32.totalorder %v243, 0
      %v416 = vsub.s32 0, %v243
      %v417 = vsel %vm415, %v416, %v243
      %v418 = vmul.u32.u64.compose %v417, 3817748708
      %v419 = vextract.low.u32 %v418
      %v420 = vextract.high.u32 %v418
      %v421 = vshrl.u32 %v420, 4
      %v422 = vmul.u32 %v421, 18
      %v423 = vsub.s32 %v417, %v422
      %v424 = vsub.s32 0, %v423
      %v425 = vsel %vm415, %v424, %v423
      %vm426 = vcmp.lt.s32.totalorder %v244, 0
      %v427 = vsub.s32 0, %v244
      %v428 = vsel %vm426, %v427, %v244
      %v429 = vmul.u32.u64.compose %v428, 3817748708
      %v430 = vextract.low.u32 %v429
      %v431 = vextract.high.u32 %v429
      %v432 = vshrl.u32 %v431, 4
      %v433 = vmul.u32 %v432, 18
      %v434 = vsub.s32 %v428, %v433
      %v435 = vsub.s32 0, %v434
      %v436 = vsel %vm426, %v435, %v434
      %vm437 = vcmp.ne.s32.totalorder %v271, 0
      %vm438 = vcmp.ne.s32.totalorder %v282, 0
      %vm439 = vcmp.ne.s32.totalorder %v293, 0
      %vm440 = vcmp.ne.s32.totalorder %v304, 0
      %vm441 = vcmp.ne.s32.totalorder %v315, 0
      %vm442 = vcmp.ne.s32.totalorder %v326, 0
      %vm443 = vcmp.ne.s32.totalorder %v337, 0
      %vm444 = vcmp.ne.s32.totalorder %v348, 0
      %vm445 = vcmp.ne.s32.totalorder %v359, 0
      %vm446 = vcmp.ne.s32.totalorder %v370, 0
      %vm447 = vcmp.ne.s32.totalorder %v381, 0
      %vm448 = vcmp.ne.s32.totalorder %v392, 0
      %vm449 = vcmp.ne.s32.totalorder %v403, 0
      %vm450 = vcmp.ne.s32.totalorder %v414, 0
      %vm451 = vcmp.ne.s32.totalorder %v425, 0
      %vm452 = vcmp.ne.s32.totalorder %v436, 0
      %vm453 = vcmp.lt.s32.totalorder %v271, 0
      %vm454 = vcmp.lt.s32.totalorder %v282, 0
      %vm455 = vcmp.lt.s32.totalorder %v293, 0
      %vm456 = vcmp.lt.s32.totalorder %v304, 0
      %vm457 = vcmp.lt.s32.totalorder %v315, 0
      %vm458 = vcmp.lt.s32.totalorder %v326, 0
      %vm459 = vcmp.lt.s32.totalorder %v337, 0
      %vm460 = vcmp.lt.s32.totalorder %v348, 0
      %vm461 = vcmp.lt.s32.totalorder %v359, 0
      %vm462 = vcmp.lt.s32.totalorder %v370, 0
      %vm463 = vcmp.lt.s32.totalorder %v381, 0
      %vm464 = vcmp.lt.s32.totalorder %v392, 0
      %vm465 = vcmp.lt.s32.totalorder %v403, 0
      %vm466 = vcmp.lt.s32.totalorder %v414, 0
      %vm467 = vcmp.lt.s32.totalorder %v425, 0
      %vm468 = vcmp.lt.s32.totalorder %v436, 0
      %vm469 = vmand %vm453, %vm437
      %vm470 = vmand %vm454, %vm438
      %vm471 = vmand %vm455, %vm439
      %vm472 = vmand %vm456, %vm440
      %vm473 = vmand %vm457, %vm441
      %vm474 = vmand %vm458, %vm442
      %vm475 = vmand %vm459, %vm443
      %vm476 = vmand %vm460, %vm444
      %vm477 = vmand %vm461, %vm445
      %vm478 = vmand %vm462, %vm446
      %vm479 = vmand %vm463, %vm447
      %vm480 = vmand %vm464, %vm448
      %vm481 = vmand %vm465, %vm449
      %vm482 = vmand %vm466, %vm450
      %vm483 = vmand %vm467, %vm451
      %vm484 = vmand %vm468, %vm452
      %v485 = vadd.s32 %v271, 18
      %v486 = vadd.s32 %v282, 18
      %v487 = vadd.s32 %v293, 18
      %v488 = vadd.s32 %v304, 18
      %v489 = vadd.s32 %v315, 18
      %v490 = vadd.s32 %v326, 18
      %v491 = vadd.s32 %v337, 18
      %v492 = vadd.s32 %v348, 18
      %v493 = vadd.s32 %v359, 18
      %v494 = vadd.s32 %v370, 18
      %v495 = vadd.s32 %v381, 18
      %v496 = vadd.s32 %v392, 18
      %v497 = vadd.s32 %v403, 18
      %v498 = vadd.s32 %v414, 18
      %v499 = vadd.s32 %v425, 18
      %v500 = vadd.s32 %v436, 18
      %v501 = vsel %vm469, %v485, %v271
      %v502 = vsel %vm470, %v486, %v282
      %v503 = vsel %vm471, %v487, %v293
      %v504 = vsel %vm472, %v488, %v304
      %v505 = vsel %vm473, %v489, %v315
      %v506 = vsel %vm474, %v490, %v326
      %v507 = vsel %vm475, %v491, %v337
      %v508 = vsel %vm476, %v492, %v348
      %v509 = vsel %vm477, %v493, %v359
      %v510 = vsel %vm478, %v494, %v370
      %v511 = vsel %vm479, %v495, %v381
      %v512 = vsel %vm480, %v496, %v392
      %v513 = vsel %vm481, %v497, %v403
      %v514 = vsel %vm482, %v498, %v414
      %v515 = vsel %vm483, %v499, %v425
      %v516 = vsel %vm484, %v500, %v436
      %vm517 = vcmp.lt.s32.totalorder %v501, 16
      %vm518 = vcmp.lt.s32.totalorder %v502, 16
      %vm519 = vcmp.lt.s32.totalorder %v503, 16
      %vm520 = vcmp.lt.s32.totalorder %v504, 16
      %vm521 = vcmp.lt.s32.totalorder %v505, 16
      %vm522 = vcmp.lt.s32.totalorder %v506, 16
      %vm523 = vcmp.lt.s32.totalorder %v507, 16
      %vm524 = vcmp.lt.s32.totalorder %v508, 16
      %vm525 = vcmp.lt.s32.totalorder %v509, 16
      %vm526 = vcmp.lt.s32.totalorder %v510, 16
      %vm527 = vcmp.lt.s32.totalorder %v511, 16
      %vm528 = vcmp.lt.s32.totalorder %v512, 16
      %vm529 = vcmp.lt.s32.totalorder %v513, 16
      %vm530 = vcmp.lt.s32.totalorder %v514, 16
      %vm531 = vcmp.lt.s32.totalorder %v515, 16
      %vm532 = vcmp.lt.s32.totalorder %v516, 16
      %vm533 = vmand %vm245, %vm517
      %vm534 = vmand %vm246, %vm518
      %vm535 = vmand %vm247, %vm519
      %vm536 = vmand %vm248, %vm520
      %vm537 = vmand %vm249, %vm521
      %vm538 = vmand %vm250, %vm522
      %vm539 = vmand %vm251, %vm523
      %vm540 = vmand %vm252, %vm524
      %vm541 = vmand %vm253, %vm525
      %vm542 = vmand %vm254, %vm526
      %vm543 = vmand %vm255, %vm527
      %vm544 = vmand %vm256, %vm528
      %vm545 = vmand %vm257, %vm529
      %vm546 = vmand %vm258, %vm530
      %vm547 = vmand %vm259, %vm531
      %vm548 = vmand %vm260, %vm532
      %v549 = vld [vmem:[%s198] sm:$0xf]
      %v550 = vld [vmem:[%s198 + $0x4] sm:$0xf]
      %v551 = vld [vmem:[%s198 + $0x8] sm:$0xf]
      %v552 = vld [vmem:[%s198 + $0xc] sm:$0xf]
      %v553 = vld [vmem:[%s198 + $0x10] sm:$0xf]
      %v554 = vld [vmem:[%s198 + $0x14] sm:$0xf]
      %v555 = vld [vmem:[%s198 + $0x18] sm:$0xf]
      %v556 = vld [vmem:[%s198 + $0x1c] sm:$0xf]
      %v557 = vld [vmem:[%s198 + $0x20] sm:$0xf]
      %v558 = vld [vmem:[%s198 + $0x24] sm:$0xf]
      %v559 = vld [vmem:[%s198 + $0x28] sm:$0xf]
      %v560 = vld [vmem:[%s198 + $0x2c] sm:$0xf]
      %v561 = vld [vmem:[%s198 + $0x30] sm:$0xf]
      %v562 = vld [vmem:[%s198 + $0x34] sm:$0xf]
      %v563 = vld [vmem:[%s198 + $0x38] sm:$0xf]
      %v564 = vld [vmem:[%s198 + $0x3c] sm:$0xf]
      %v565 = vunpack.c.l.bf16 %v549
      %v566 = vunpack.c.l.bf16 %v550
      %v567 = vunpack.c.l.bf16 %v551
      %v568 = vunpack.c.l.bf16 %v552
      %v569 = vunpack.c.l.bf16 %v553
      %v570 = vunpack.c.l.bf16 %v554
      %v571 = vunpack.c.l.bf16 %v555
      %v572 = vunpack.c.l.bf16 %v556
      %v573 = vunpack.c.l.bf16 %v557
      %v574 = vunpack.c.l.bf16 %v558
      %v575 = vunpack.c.l.bf16 %v559
      %v576 = vunpack.c.l.bf16 %v560
      %v577 = vunpack.c.l.bf16 %v561
      %v578 = vunpack.c.l.bf16 %v562
      %v579 = vunpack.c.l.bf16 %v563
      %v580 = vunpack.c.l.bf16 %v564
      %v581 = vld [vmem:[%s1] sm:$0x1]
      %v583 = vlaneseq
      %v584 = vshrl.u32 %v583, 7
      %v585 = vsub.s32 0, %v584
      %v586 = vrot.slane %v581, %v585
      %v588 = vmul.f32 %v565, %v586
      %v589 = vmul.f32 %v566, %v586
      %v590 = vmul.f32 %v567, %v586
      %v591 = vmul.f32 %v568, %v586
      %v592 = vmul.f32 %v569, %v586
      %v593 = vmul.f32 %v570, %v586
      %v594 = vmul.f32 %v571, %v586
      %v595 = vmul.f32 %v572, %v586
      %v596 = vmul.f32 %v573, %v586
      %v597 = vmul.f32 %v574, %v586
      %v598 = vmul.f32 %v575, %v586
      %v599 = vmul.f32 %v576, %v586
      %v600 = vmul.f32 %v577, %v586
      %v601 = vmul.f32 %v578, %v586
      %v602 = vmul.f32 %v579, %v586
      %v603 = vmul.f32 %v580, %v586
      %v604 = vld [vmem:[%s2] sm:$0x1]
      %v606 = vlaneseq
      %v607 = vshrl.u32 %v606, 7
      %v608 = vsub.s32 0, %v607
      %v609 = vrot.slane %v604, %v608
      %v611 = vadd.f32 %v588, %v609
      %v612 = vadd.f32 %v589, %v609
      %v613 = vadd.f32 %v590, %v609
      %v614 = vadd.f32 %v591, %v609
      %v615 = vadd.f32 %v592, %v609
      %v616 = vadd.f32 %v593, %v609
      %v617 = vadd.f32 %v594, %v609
      %v618 = vadd.f32 %v595, %v609
      %v619 = vadd.f32 %v596, %v609
      %v620 = vadd.f32 %v597, %v609
      %v621 = vadd.f32 %v598, %v609
      %v622 = vadd.f32 %v599, %v609
      %v623 = vadd.f32 %v600, %v609
      %v624 = vadd.f32 %v601, %v609
      %v625 = vadd.f32 %v602, %v609
      %v626 = vadd.f32 %v603, %v609
      %v627 = vmax.f32 %v611, 0.0
      %v628 = vmax.f32 %v612, 0.0
      %v629 = vmax.f32 %v613, 0.0
      %v630 = vmax.f32 %v614, 0.0
      %v631 = vmax.f32 %v615, 0.0
      %v632 = vmax.f32 %v616, 0.0
      %v633 = vmax.f32 %v617, 0.0
      %v634 = vmax.f32 %v618, 0.0
      %v635 = vmax.f32 %v619, 0.0
      %v636 = vmax.f32 %v620, 0.0
      %v637 = vmax.f32 %v621, 0.0
      %v638 = vmax.f32 %v622, 0.0
      %v639 = vmax.f32 %v623, 0.0
      %v640 = vmax.f32 %v624, 0.0
      %v641 = vmax.f32 %v625, 0.0
      %v642 = vmax.f32 %v626, 0.0
      %v643 = vsel %vm533, 1, 0
      %v644 = vsel %vm534, 1, 0
      %v645 = vsel %vm535, 1, 0
      %v646 = vsel %vm536, 1, 0
      %v647 = vsel %vm537, 1, 0
      %v648 = vsel %vm538, 1, 0
      %v649 = vsel %vm539, 1, 0
      %v650 = vsel %vm540, 1, 0
      %v651 = vsel %vm541, 1, 0
      %v652 = vsel %vm542, 1, 0
      %v653 = vsel %vm543, 1, 0
      %v654 = vsel %vm544, 1, 0
      %v655 = vsel %vm545, 1, 0
      %v656 = vsel %vm546, 1, 0
      %v657 = vsel %vm547, 1, 0
      %v658 = vsel %vm548, 1, 0
      %vm659 = vcmp.eq.s32.totalorder %v643, 1
      %vm660 = vcmp.eq.s32.totalorder %v644, 1
      %vm661 = vcmp.eq.s32.totalorder %v645, 1
      %vm662 = vcmp.eq.s32.totalorder %v646, 1
      %vm663 = vcmp.eq.s32.totalorder %v647, 1
      %vm664 = vcmp.eq.s32.totalorder %v648, 1
      %vm665 = vcmp.eq.s32.totalorder %v649, 1
      %vm666 = vcmp.eq.s32.totalorder %v650, 1
      %vm667 = vcmp.eq.s32.totalorder %v651, 1
      %vm668 = vcmp.eq.s32.totalorder %v652, 1
      %vm669 = vcmp.eq.s32.totalorder %v653, 1
      %vm670 = vcmp.eq.s32.totalorder %v654, 1
      %vm671 = vcmp.eq.s32.totalorder %v655, 1
      %vm672 = vcmp.eq.s32.totalorder %v656, 1
      %vm673 = vcmp.eq.s32.totalorder %v657, 1
      %vm674 = vcmp.eq.s32.totalorder %v658, 1
      %v675 = vsel %vm659, %v627, 0.0
      %v676 = vsel %vm660, %v628, 0.0
      %v677 = vsel %vm661, %v629, 0.0
      %v678 = vsel %vm662, %v630, 0.0
      %v679 = vsel %vm663, %v631, 0.0
      %v680 = vsel %vm664, %v632, 0.0
      %v681 = vsel %vm665, %v633, 0.0
      %v682 = vsel %vm666, %v634, 0.0
      %v683 = vsel %vm667, %v635, 0.0
      %v684 = vsel %vm668, %v636, 0.0
      %v685 = vsel %vm669, %v637, 0.0
      %v686 = vsel %vm670, %v638, 0.0
      %v687 = vsel %vm671, %v639, 0.0
      %v688 = vsel %vm672, %v640, 0.0
      %v689 = vsel %vm673, %v641, 0.0
      %v690 = vsel %vm674, %v642, 0.0
      %691 = vst [vmem:[%s208] sm:$0xff] %v675
      %692 = vst [vmem:[%s208 + $0x8] sm:$0xff] %v676
      %693 = vst [vmem:[%s208 + $0x10] sm:$0xff] %v677
      %694 = vst [vmem:[%s208 + $0x18] sm:$0xff] %v678
      %695 = vst [vmem:[%s208 + $0x20] sm:$0xff] %v679
      %696 = vst [vmem:[%s208 + $0x28] sm:$0xff] %v680
      %697 = vst [vmem:[%s208 + $0x30] sm:$0xff] %v681
      %698 = vst [vmem:[%s208 + $0x38] sm:$0xff] %v682
      %699 = vst [vmem:[%s208 + $0x40] sm:$0xff] %v683
      %700 = vst [vmem:[%s208 + $0x48] sm:$0xff] %v684
      %701 = vst [vmem:[%s208 + $0x50] sm:$0xff] %v685
      %702 = vst [vmem:[%s208 + $0x58] sm:$0xff] %v686
      %703 = vst [vmem:[%s208 + $0x60] sm:$0xff] %v687
      %704 = vst [vmem:[%s208 + $0x68] sm:$0xff] %v688
      %705 = vst [vmem:[%s208 + $0x70] sm:$0xff] %v689
      %706 = vst [vmem:[%s208 + $0x78] sm:$0xff] %v690
      %s707 = smul.u32 16, %s19
      %p708 = scmp.lt.s32.totalorder %s18, 1
      %s709 = scalar_select %p708, %s18, 1
      %p710 = scmp.lt.s32.totalorder %s707, 47
      %s711 = scalar_select %p710, %s707, 47
      %s712 = smul.addr %s709, 48
      %s713 = sadd.s32 %s711, %s712
      %s714 = smul.addr %s713, 8
      %s715 = scalar_lea.vmem %s3, %s714
      // Predicated region
      $region33: #{double_conv.7} parent=31 // pred_check
        %p716 = pneg %p116
      $region34: #{double_conv.7} parent=31 // pred_check_branch
        %718 = sbr.rel (%p716) target = $region36
      $region35: #{double_conv.7} parent=31 // pred_region
        %s719 = smul.u32 16, %s19
      $region36: #{double_conv.7} parent=31 // pred_fallthru
        _
    $region32: #{double_conv.7} parent=5 // pred_fallthru
      _
    %p720 = scmp.le.s32.totalorder 2, %s9
    // Predicated region
    $region37: #{double_conv.7} parent=5 // pred_check
      %p721 = pneg %p720
    $region38: #{double_conv.7} parent=5 // pred_check_branch
      %723 = sbr.rel (%p721) target = $region40
    $region39: #{double_conv.7} parent=5 // pred_region
      %s724 = ssub.s32 %s9, 2
      // Predicated region
      $region41: #{double_conv.7} parent=39 // pred_check
        %p725 = pneg %p122
      $region42: #{double_conv.7} parent=39 // pred_check_branch
        %727 = sbr.rel (%p725) target = $region44
      $region43: #{double_conv.7} parent=39 // pred_region
        %s728 = smul.u32 16, %s21
        %p729 = scmp.lt.s32.totalorder %s20, 1
        %s730 = scalar_select %p729, %s20, 1
        %p731 = scmp.lt.s32.totalorder %s728, 47
        %s732 = scalar_select %p731, %s728, 47
        %s733 = smul.addr %s730, 48
        %s734 = sadd.s32 %s732, %s733
        %s735 = smul.addr %s734, 8
        %s736 = scalar_lea.vmem %s3, %s735
      $region44: #{double_conv.7} parent=39 // pred_fallthru
        _
    $region40: #{double_conv.7} parent=5 // pred_fallthru
      _
  $region6: #{double_conv.7} parent=0 // loop_footer
    %s13 = sadd.s32 1, %s9
  $region7: #{double_conv.7} parent=0 // loop_footer_branch
    %8 = sbr.rel target = $region3
  $region8: #{double_conv.7} parent=0 // loop_exit
    _

// kernel: double_conv.6
$region0: #{double_conv.6}
  #allocation0 [shape = 'u32[]', space=smem, size = 0x4, offset = 0x4, fixed_abs, tag = 'smem constant byte address 0x4 - core index']
  #allocation1 [shape = 'u32[144,128]{1,0:T(1,128)}', space=vmem, size = 0x12000, scoped, tag = 'internal scratch']
  %s0 = inlined_call_operand.vmem [shape: bf16[2,424,128], index: 0, kind: input, shape index: {}]
  %s1 = inlined_call_operand.vmem [shape: bf16[9,128,128], index: 1, kind: input, shape index: {}]
  %s2 = inlined_call_operand.vmem [shape: bf16[2,384,128], index: 2, kind: output, shape index: {0}]
  %s3 = inlined_call_operand.vmem [shape: f32[2,3,2,128], index: 3, kind: output, shape index: {1}]
  %4 = xla_tuple %s2, %s3
  %s5 = sld [smem:[#allocation0]]
  $region49: #{double_conv.6} parent=0
    _
  %s7 = ssub.s32 1, %s5
  %s8 = scalar_select 0, %s7, %s5
  loop: start=0, step=1, limit=8
  $region2: #{double_conv.6} parent=0 // loop_pre_header
    _
  $region3: #{double_conv.6} parent=0 // loop_header
    %s10 = sphi 0, %s14
    %p11 = scmp.ge.s32.totalorder %s10, 8
    %s17 = sphi 0, %s29
    %s18 = sphi 0, %s25
    %s19 = sphi 0, %s17
    %s20 = sphi 0, %s18
    %s21 = sphi 0, %s19
    %s22 = sphi 0, %s20
    %s32 = sphi 0, %s34
    %s35 = sphi 0, %s32
    %s36 = sphi 0, %s35
    %s52 = sphi 0, %s36
    %s56 = sphi 0, %s56
    %s58 = sphi 0, %s56
    %s59 = sphi 0, %s58
    %s73 = sphi 0, %s59
    %s81 = sphi 0, %s83
    %s84 = sphi 0, %s81
    %s85 = sphi 0, %s84
    %s101 = sphi 0, %s85
    %s109 = sphi 0, %s111
    %s112 = sphi 0, %s109
    %s113 = sphi 0, %s112
    %s129 = sphi 0, %s113
  $region4: #{double_conv.6} parent=0 // loop_header_branch
    %13 = sbr.rel (%p11) target = $region8
  $region5: #{double_conv.6} parent=0 // loop_body
    %s15 = ssub.s32 %s10, 1
    %s16 = ssub.s32 %s10, 2
    %s23 = sadd.s32 1, %s18
    %p24 = scmp.ge.s32.totalorder %s23, 3
    %s25 = scalar_select %p24, 0, %s23
    %s26 = sadd.s32 1, %s17
    %s27 = scalar_select %p24, %s26, %s17
    %p28 = scmp.ge.s32.totalorder %s27, 2
    %s29 = scalar_select %p28, 0, %s27
    %s30 = ssub.s32 %s17, %s29
    %p31 = scmp.eq.s32.totalorder %s30, 0
    %s33 = sadd.s32 %s32, 1
    %s34 = scalar_select %p31, %s32, %s33
    %p37 = pneg %p31
    %p38 = scmp.eq.s32.totalorder %s10, 5
    %p39 = por %p37, %p38
    %p40 = scmp.ne.s32.totalorder %s32, %s35
    %p41 = scmp.eq.s32.totalorder %s10, 0
    %p42 = por %p40, %p41
    %p43 = scmp.ne.s32.totalorder %s32, %s35
    %p44 = scmp.eq.s32.totalorder %s15, 5
    %p45 = por %p43, %p44
    %p46 = scmp.ne.s32.totalorder %s35, %s36
    %p47 = scmp.eq.s32.totalorder %s15, 0
    %p48 = por %p46, %p47
    %p49 = scmp.ne.s32.totalorder %s35, %s36
    %p50 = scmp.eq.s32.totalorder %s16, 5
    %p51 = por %p49, %p50
    %p53 = scmp.ne.s32.totalorder %s36, %s52
    %p54 = scmp.eq.s32.totalorder %s16, 0
    %p55 = por %p53, %p54
    %s57 = sadd.s32 %s56, 1
    %p60 = scmp.eq.s32.totalorder %s10, 5
    %p61 = scmp.ne.s32.totalorder %s56, %s58
    %p62 = scmp.eq.s32.totalorder %s10, 0
    %p63 = por %p61, %p62
    %p64 = scmp.ne.s32.totalorder %s56, %s58
    %p65 = scmp.eq.s32.totalorder %s15, 5
    %p66 = por %p64, %p65
    %p67 = scmp.ne.s32.totalorder %s58, %s59
    %p68 = scmp.eq.s32.totalorder %s15, 0
    %p69 = por %p67, %p68
    %p70 = scmp.ne.s32.totalorder %s58, %s59
    %p71 = scmp.eq.s32.totalorder %s16, 5
    %p72 = por %p70, %p71
    %p74 = scmp.ne.s32.totalorder %s59, %s73
    %p75 = scmp.eq.s32.totalorder %s16, 0
    %p76 = por %p74, %p75
    %s77 = ssub.s32 %s17, %s29
    %s78 = ssub.s32 %s18, %s25
    %s79 = sor.u32 %s77, %s78
    %p80 = scmp.eq.s32.totalorder %s79, 0
    %s82 = sadd.s32 %s81, 1
    %s83 = scalar_select %p80, %s81, %s82
    %p86 = pneg %p80
    %p87 = scmp.eq.s32.totalorder %s10, 5
    %p88 = por %p86, %p87
    %p89 = scmp.ne.s32.totalorder %s81, %s84
    %p90 = scmp.eq.s32.totalorder %s10, 0
    %p91 = por %p89, %p90
    %p92 = scmp.ne.s32.totalorder %s81, %s84
    %p93 = scmp.eq.s32.totalorder %s15, 5
    %p94 = por %p92, %p93
    %p95 = scmp.ne.s32.totalorder %s84, %s85
    %p96 = scmp.eq.s32.totalorder %s15, 0
    %p97 = por %p95, %p96
    %p98 = scmp.ne.s32.totalorder %s84, %s85
    %p99 = scmp.eq.s32.totalorder %s16, 5
    %p100 = por %p98, %p99
    %p102 = scmp.ne.s32.totalorder %s85, %s101
    %p103 = scmp.eq.s32.totalorder %s16, 0
    %p104 = por %p102, %p103
    %s105 = ssub.s32 %s17, %s29
    %s106 = ssub.s32 %s18, %s25
    %s107 = sor.u32 %s105, %s106
    %p108 = scmp.eq.s32.totalorder %s107, 0
    %s110 = sadd.s32 %s109, 1
    %s111 = scalar_select %p108, %s109, %s110
    %p114 = pneg %p108
    %p115 = scmp.eq.s32.totalorder %s10, 5
    %p116 = por %p114, %p115
    %p117 = scmp.ne.s32.totalorder %s109, %s112
    %p118 = scmp.eq.s32.totalorder %s10, 0
    %p119 = por %p117, %p118
    %p120 = scmp.ne.s32.totalorder %s109, %s112
    %p121 = scmp.eq.s32.totalorder %s15, 5
    %p122 = por %p120, %p121
    %p123 = scmp.ne.s32.totalorder %s112, %s113
    %p124 = scmp.eq.s32.totalorder %s15, 0
    %p125 = por %p123, %p124
    %p126 = scmp.ne.s32.totalorder %s112, %s113
    %p127 = scmp.eq.s32.totalorder %s16, 5
    %p128 = por %p126, %p127
    %p130 = scmp.ne.s32.totalorder %s113, %s129
    %p131 = scmp.eq.s32.totalorder %s16, 0
    %p132 = por %p130, %p131
    %p133 = scmp.le.s32.totalorder 1, %s10
    %p134 = scmp.lt.s32.totalorder %s10, 7
    %p135 = pnand %p133, %p134
    %p136 = pneg %p135
    // Predicated region
    $region9: #{double_conv.6} parent=5 // pred_check
      _
    $region10: #{double_conv.6} parent=5 // pred_check_branch
      %138 = sbr.rel (%p135) target = $region12
    $region11: #{double_conv.6} parent=5 // pred_region
      %s139 = ssub.s32 %s10, 1
      // Predicated region
      $region13: #{double_conv.6} parent=11 // pred_check
        %p140 = pneg %p69
      $region14: #{double_conv.6} parent=11 // pred_check_branch
        %142 = sbr.rel (%p140) target = $region16
      $region15: #{double_conv.6} parent=11 // pred_region
        _
      $region16: #{double_conv.6} parent=11 // pred_fallthru
        _
    $region12: #{double_conv.6} parent=5 // pred_fallthru
      _
    %p143 = scmp.lt.s32.totalorder %s10, 6
    // Predicated region
    $region17: #{double_conv.6} parent=5 // pred_check
      %p144 = pneg %p143
    $region18: #{double_conv.6} parent=5 // pred_check_branch
      %146 = sbr.rel (%p144) target = $region20
    $region19: #{double_conv.6} parent=5 // pred_region
      // Predicated region
      $region21: #{double_conv.6} parent=19 // pred_check
        %p147 = pneg %p42
      $region22: #{double_conv.6} parent=19 // pred_check_branch
        %149 = sbr.rel (%p147) target = $region24
      $region23: #{double_conv.6} parent=19 // pred_region
        %p150 = scmp.lt.s32.totalorder %s17, 1
        %s151 = scalar_select %p150, %s17, 1
        %s152 = smul.addr %s151, 53
        %s153 = smul.addr %s152, 4
        %s154 = scalar_lea.vmem %s0, %s153
      $region24: #{double_conv.6} parent=19 // pred_fallthru
        _
    $region20: #{double_conv.6} parent=5 // pred_fallthru
      _
    %p155 = scmp.le.s32.totalorder 1, %s10
    %p156 = scmp.lt.s32.totalorder %s10, 7
    %p157 = pnand %p155, %p156
    %p158 = pneg %p157
    // Predicated region
    $region25: #{double_conv.6} parent=5 // pred_check
      _
    $region26: #{double_conv.6} parent=5 // pred_check_branch
      %160 = sbr.rel (%p157) target = $region28
    $region27: #{double_conv.6} parent=5 // pred_region
      %s161 = ssub.s32 %s10, 1
      %p162 = scmp.lt.s32.totalorder %s19, 1
      %s163 = scalar_select %p162, %s19, 1
      %s164 = smul.addr %s163, 53
      %s165 = smul.addr %s164, 4
      %s166 = scalar_lea.vmem %s0, %s165
      %p167 = pneg %p48
      %p168 = pneg %p45
      %p169 = pneg %p69
      %p170 = pneg %p66
      %p171 = pneg %p97
      %p172 = pneg %p94
      %s173 = smul.u32 16, %s20
      %p174 = scmp.lt.s32.totalorder %s19, 1
      %s175 = scalar_select %p174, %s19, 1
      %p176 = scmp.lt.s32.totalorder %s173, 47
      %s177 = scalar_select %p176, %s173, 47
      %s178 = smul.addr %s175, 48
      %s179 = sadd.s32 %s177, %s178
      %s180 = smul.addr %s179, 4
      %s181 = scalar_lea.vmem %s2, %s180
      %p182 = pneg %p125
      %p183 = pneg %p122
      %p184 = scmp.lt.s32.totalorder %s19, 1
      %s185 = scalar_select %p184, %s19, 1
      %p186 = scmp.lt.s32.totalorder %s20, 2
      %s187 = scalar_select %p186, %s20, 2
      %s188 = smul.addr %s185, 3
      %s189 = sadd.s32 %s187, %s188
      %s190 = smul.addr %s189, 2
      %s191 = scalar_lea.vmem %s3, %s190
      %p192 = scmp.lt.s32.totalorder %s19, 1
      %s193 = scalar_select %p192, %s19, 1
      %s194 = smul.addr %s193, 53
      %s195 = smul.addr %s194, 4
      %s196 = scalar_lea.vmem %s0, %s195
      %s197 = smul.u32 16, %s20
      %p198 = scmp.lt.s32.totalorder %s19, 1
      %s199 = scalar_select %p198, %s19, 1
      %p200 = scmp.lt.s32.totalorder %s197, 47
      %s201 = scalar_select %p200, %s197, 47
      %s202 = smul.addr %s199, 48
      %s203 = sadd.s32 %s201, %s202
      %s204 = smul.addr %s203, 4
      %s205 = scalar_lea.vmem %s2, %s204
      %s206 = smul.u32 16, %s20
      %p207 = scmp.lt.s32.totalorder %s19, 1
      %s208 = scalar_select %p207, %s19, 1
      %p209 = scmp.lt.s32.totalorder %s20, 2
      %s210 = scalar_select %p209, %s20, 2
      %s211 = smul.addr %s208, 3
      %s212 = sadd.s32 %s210, %s211
      %s213 = smul.addr %s212, 2
      %s214 = scalar_lea.vmem %s3, %s213
      %s216 = smul.u32 %s20, 128
      %s217 = sshra.s32 %s216, 3
      %s218 = sand.u32 %s216, 7
      %s219 = smul.addr %s217, 4
      %s220 = scalar_lea.vmem %s196, %s219
      %v221 = vld [vmem:[%s220] sm:$0xf]
      %v222 = vld [vmem:[%s220 + $0x4] sm:$0xf]
      %v223 = vld [vmem:[%s220 + $0x8] sm:$0xf]
      %v224 = vld [vmem:[%s220 + $0xc] sm:$0xf]
      %v225 = vld [vmem:[%s220 + $0x10] sm:$0xf]
      %v226 = vld [vmem:[%s220 + $0x14] sm:$0xf]
      %v227 = vld [vmem:[%s220 + $0x18] sm:$0xf]
      %v228 = vld [vmem:[%s220 + $0x1c] sm:$0xf]
      %v229 = vld [vmem:[%s220 + $0x20] sm:$0xf]
      %v230 = vld [vmem:[%s220 + $0x24] sm:$0xf]
      %v231 = vld [vmem:[%s220 + $0x28] sm:$0xf]
      %v232 = vld [vmem:[%s220 + $0x2c] sm:$0xf]
      %v233 = vld [vmem:[%s220 + $0x30] sm:$0xf]
      %v234 = vld [vmem:[%s220 + $0x34] sm:$0xf]
      %v235 = vld [vmem:[%s220 + $0x38] sm:$0xf]
      %v236 = vld [vmem:[%s220 + $0x3c] sm:$0xf]
      %v237 = vld [vmem:[%s220 + $0x40] sm:$0xf]
      %v238 = vld [vmem:[%s220 + $0x44] sm:$0xf]
      %v239 = vld [vmem:[%s220 + $0x48] sm:$0xf]
      %v240 = vld [vmem:[%s220 + $0x4c] sm:$0xf]
      %v241 = vld [vmem:[%s220 + $0x50] sm:$0xf]
      %v242 = vld [vmem:[%s1] sm:$0xf]
      %v243 = vld [vmem:[%s1 + $0x4] sm:$0xf]
      %v244 = vld [vmem:[%s1 + $0x8] sm:$0xf]
      %v245 = vld [vmem:[%s1 + $0xc] sm:$0xf]
      %v246 = vld [vmem:[%s1 + $0x10] sm:$0xf]
      %v247 = vld [vmem:[%s1 + $0x14] sm:$0xf]
      %v248 = vld [vmem:[%s1 + $0x18] sm:$0xf]
      %v249 = vld [vmem:[%s1 + $0x1c] sm:$0xf]
      %v250 = vld [vmem:[%s1 + $0x20] sm:$0xf]
      %v251 = vld [vmem:[%s1 + $0x24] sm:$0xf]
      %v252 = vld [vmem:[%s1 + $0x28] sm:$0xf]
      %v253 = vld [vmem:[%s1 + $0x2c] sm:$0xf]
      %v254 = vld [vmem:[%s1 + $0x30] sm:$0xf]
      %v255 = vld [vmem:[%s1 + $0x34] sm:$0xf]
      %v256 = vld [vmem:[%s1 + $0x38] sm:$0xf]
      %v257 = vld [vmem:[%s1 + $0x3c] sm:$0xf]
      %s258 = scalar_lea.vmem %s1, 64
      %v259 = vld [vmem:[%s258] sm:$0xf]
      %v260 = vld [vmem:[%s258 + $0x4] sm:$0xf]
      %v261 = vld [vmem:[%s258 + $0x8] sm:$0xf]
      %v262 = vld [vmem:[%s258 + $0xc] sm:$0xf]
      %v263 = vld [vmem:[%s258 + $0x10] sm:$0xf]
      %v264 = vld [vmem:[%s258 + $0x14] sm:$0xf]
      %v265 = vld [vmem:[%s258 + $0x18] sm:$0xf]
      %v266 = vld [vmem:[%s258 + $0x1c] sm:$0xf]
      %v267 = vld [vmem:[%s258 + $0x20] sm:$0xf]
      %v268 = vld [vmem:[%s258 + $0x24] sm:$0xf]
      %v269 = vld [vmem:[%s258 + $0x28] sm:$0xf]
      %v270 = vld [vmem:[%s258 + $0x2c] sm:$0xf]
      %v271 = vld [vmem:[%s258 + $0x30] sm:$0xf]
      %v272 = vld [vmem:[%s258 + $0x34] sm:$0xf]
      %v273 = vld [vmem:[%s258 + $0x38] sm:$0xf]
      %v274 = vld [vmem:[%s258 + $0x3c] sm:$0xf]
      %v292 = vunpack.c.l.b16 %v221
      %v293 = vunpack.c.l.b16 %v222
      %v294 = vunpack.c.l.b16 %v223
      %v295 = vunpack.c.l.b16 %v224
      %v296 = vunpack.c.l.b16 %v225
      %v297 = vunpack.c.l.b16 %v226
      %v298 = vunpack.c.l.b16 %v227
      %v299 = vunpack.c.l.b16 %v228
      %v300 = vunpack.c.l.b16 %v229
      %v301 = vunpack.c.l.b16 %v230
      %v302 = vunpack.c.l.b16 %v231
      %v303 = vunpack.c.l.b16 %v232
      %v304 = vunpack.c.l.b16 %v233
      %v305 = vunpack.c.l.b16 %v234
      %v306 = vunpack.c.l.b16 %v235
      %v307 = vunpack.c.l.b16 %v236
      %v308 = vunpack.c.l.b16 %v237
      %v309 = vpack.c.b16 %v293, %v292
      %v310 = vpack.c.b16 %v295, %v294
      %v311 = vpack.c.b16 %v297, %v296
      %v312 = vpack.c.b16 %v299, %v298
      %v313 = vpack.c.b16 %v301, %v300
      %v314 = vpack.c.b16 %v303, %v302
      %v315 = vpack.c.b16 %v305, %v304
      %v316 = vpack.c.b16 %v307, %v306
      %v317 = vpack.c.b16 %v308, %v308
      %vm318 = vsmask.f32 7424
      %v320 = vshrl.u32 %v309, 16
      %v322 = vshll.u32 %v309, 16
      %v324 = vrot.slane %v322, 1
      %v325 = vor.u32 %v320, %v324
      %v327 = vshll.u32 %v310, 16
      %v329 = vrot.slane %v327, 1
      %v330 = vsel %vm318, %v325, %v329
      %v331 = vshrl.u32 %v310, 16
      %v333 = vor.u32 %v331, %v329
      %v335 = vshll.u32 %v311, 16
      %v337 = vrot.slane %v335, 1
      %v338 = vsel %vm318, %v333, %v337
      %v339 = vshrl.u32 %v311, 16
      %v341 = vor.u32 %v339, %v337
      %v343 = vshll.u32 %v312, 16
      %v345 = vrot.slane %v343, 1
      %v346 = vsel %vm318, %v341, %v345
      %v347 = vshrl.u32 %v312, 16
      %v349 = vor.u32 %v347, %v345
      %v351 = vshll.u32 %v313, 16
      %v353 = vrot.slane %v351, 1
      %v354 = vsel %vm318, %v349, %v353
      %v355 = vshrl.u32 %v313, 16
      %v357 = vor.u32 %v355, %v353
      %v359 = vshll.u32 %v314, 16
      %v361 = vrot.slane %v359, 1
      %v362 = vsel %vm318, %v357, %v361
      %v363 = vshrl.u32 %v314, 16
      %v365 = vor.u32 %v363, %v361
      %v367 = vshll.u32 %v315, 16
      %v369 = vrot.slane %v367, 1
      %v370 = vsel %vm318, %v365, %v369
      %v371 = vshrl.u32 %v315, 16
      %v373 = vor.u32 %v371, %v369
      %v375 = vshll.u32 %v316, 16
      %v377 = vrot.slane %v375, 1
      %v378 = vsel %vm318, %v373, %v377
      %v379 = vshrl.u32 %v316, 16
      %v381 = vor.u32 %v379, %v377
      %v383 = vshll.u32 %v317, 16
      %v385 = vrot.slane %v383, 1
      %v386 = vsel %vm318, %v381, %v385
      %v411 = vunpack.c.l.b16 %v259
      %v412 = vunpack.c.l.b16 %v260
      %v413 = vunpack.c.l.b16 %v261
      %v414 = vunpack.c.l.b16 %v262
      %v415 = vunpack.c.l.b16 %v263
      %v416 = vunpack.c.l.b16 %v264
      %v417 = vunpack.c.l.b16 %v265
      %v418 = vunpack.c.l.b16 %v266
      %v419 = vunpack.c.l.b16 %v267
      %v420 = vunpack.c.l.b16 %v268
      %v421 = vunpack.c.l.b16 %v269
      %v422 = vunpack.c.l.b16 %v270
      %v423 = vunpack.c.l.b16 %v271
      %v424 = vunpack.c.l.b16 %v272
      %v425 = vunpack.c.l.b16 %v273
      %v426 = vunpack.c.l.b16 %v274
      %v427 = vpack.c.b16 %v412, %v411
      %v428 = vpack.c.b16 %v414, %v413
      %v429 = vpack.c.b16 %v416, %v415
      %v430 = vpack.c.b16 %v418, %v417
      %v431 = vpack.c.b16 %v420, %v419
      %v432 = vpack.c.b16 %v422, %v421
      %v433 = vpack.c.b16 %v424, %v423
      %v434 = vpack.c.b16 %v426, %v425
      %443 = vmatprep.subr.bf16.mxu0 0
      %444 = vmatpush1.bf16.msra.mxu0 %v434
      %445 = vmatprep.subr.bf16.mxu0 0
      %446 = vmatpush1.bf16.msra.mxu0 %v433
      %447 = vmatprep.subr.bf16.mxu0 0
      %448 = vmatpush1.bf16.msra.mxu0 %v432
      %449 = vmatprep.subr.bf16.mxu0 0
      %450 = vmatpush1.bf16.msra.mxu0 %v431
      %451 = vmatprep.subr.bf16.mxu0 0
      %452 = vmatpush1.bf16.msra.mxu0 %v430
      %453 = vmatprep.subr.bf16.mxu0 0
      %454 = vmatpush1.bf16.msra.mxu0 %v429
      %455 = vmatprep.subr.bf16.mxu0 0
      %456 = vmatpush1.bf16.msra.mxu0 %v428
      %457 = vmatprep.subr.bf16.mxu0 0
      %458 = vmatpush1.bf16.msra.mxu0 %v427
      %459 = vmatprep.subr.bf16.mxu0 0
      %460 = vmatpush2.bf16.msra.mxu0 0
      %461 = vmatprep.subr.bf16.mxu0 0
      %462 = vmatpush2.bf16.msra.mxu0 0
      %463 = vmatprep.subr.bf16.mxu0 0
      %464 = vmatpush2.bf16.msra.mxu0 0
      %465 = vmatprep.subr.bf16.mxu0 0
      %466 = vmatpush2.bf16.msra.mxu0 0
      %467 = vmatprep.subr.bf16.mxu0 0
      %468 = vmatpush2.bf16.msra.mxu0 0
      %469 = vmatprep.subr.bf16.mxu0 0
      %470 = vmatpush2.bf16.msra.mxu0 0
      %471 = vmatprep.subr.bf16.mxu0 0
      %472 = vmatpush2.bf16.msra.mxu0 0
      %473 = vmatprep.subr.bf16.mxu0 0
      %474 = vmatpush2.bf16.msra.mxu0 0
      %475 = vmatprep.mubr.bf16.mxu0 0
      %476 = vmatmul.mubr.bf16.gmra.mxu0 %v330
      %v477 = vpop.f32.mrf.mxu0
      %v478 = vadd.f32 0.0, %v477
      %v479 = vpop.f32.mrf.mxu0
      %v480 = vpop.f32.mrf.mxu0
      %v481 = vadd.f32 0.0, %v480
      %v482 = vpop.f32.mrf.mxu0
      %483 = vmatprep.mubr.bf16.mxu0 0
      %484 = vmatmul.mubr.bf16.gmra.mxu0 %v338
      %v485 = vpop.f32.mrf.mxu0
      %v486 = vadd.f32 0.0, %v485
      %v487 = vpop.f32.mrf.mxu0
      %v488 = vpop.f32.mrf.mxu0
      %v489 = vadd.f32 0.0, %v488
      %v490 = vpop.f32.mrf.mxu0
      %491 = vmatprep.mubr.bf16.mxu0 0
      %492 = vmatmul.mubr.bf16.gmra.mxu0 %v346
      %v493 = vpop.f32.mrf.mxu0
      %v494 = vadd.f32 0.0, %v493
      %v495 = vpop.f32.mrf.mxu0
      %v496 = vpop.f32.mrf.mxu0
      %v497 = vadd.f32 0.0, %v496
      %v498 = vpop.f32.mrf.mxu0
      %499 = vmatprep.mubr.bf16.mxu0 0
      %500 = vmatmul.mubr.bf16.gmra.mxu0 %v354
      %v501 = vpop.f32.mrf.mxu0
      %v502 = vadd.f32 0.0, %v501
      %v503 = vpop.f32.mrf.mxu0
      %v504 = vpop.f32.mrf.mxu0
      %v505 = vadd.f32 0.0, %v504
      %v506 = vpop.f32.mrf.mxu0
      %507 = vmatprep.mubr.bf16.mxu0 0
      %508 = vmatmul.mubr.bf16.gmra.mxu0 %v362
      %v509 = vpop.f32.mrf.mxu0
      %v510 = vadd.f32 0.0, %v509
      %v511 = vpop.f32.mrf.mxu0
      %v512 = vpop.f32.mrf.mxu0
      %v513 = vadd.f32 0.0, %v512
      %v514 = vpop.f32.mrf.mxu0
      %515 = vmatprep.mubr.bf16.mxu0 0
      %516 = vmatmul.mubr.bf16.gmra.mxu0 %v370
      %v517 = vpop.f32.mrf.mxu0
      %v518 = vadd.f32 0.0, %v517
      %v519 = vpop.f32.mrf.mxu0
      %v520 = vpop.f32.mrf.mxu0
      %v521 = vadd.f32 0.0, %v520
      %v522 = vpop.f32.mrf.mxu0
      %523 = vmatprep.mubr.bf16.mxu0 0
      %524 = vmatmul.mubr.bf16.gmra.mxu0 %v378
      %v525 = vpop.f32.mrf.mxu0
      %v526 = vadd.f32 0.0, %v525
      %v527 = vpop.f32.mrf.mxu0
      %v528 = vpop.f32.mrf.mxu0
      %v529 = vadd.f32 0.0, %v528
      %v530 = vpop.f32.mrf.mxu0
      %531 = vmatprep.mubr.bf16.mxu0 0
      %532 = vmatmul.mubr.bf16.gmra.mxu0 %v386
      %v533 = vpop.f32.mrf.mxu0
      %v534 = vadd.f32 0.0, %v533
      %v535 = vpop.f32.mrf.mxu0
      %v536 = vpop.f32.mrf.mxu0
      %v537 = vadd.f32 0.0, %v536
      %v538 = vpop.f32.mrf.mxu0
      %539 = vdwg.mxu0
      %v564 = vunpack.c.l.b16 %v242
      %v565 = vunpack.c.l.b16 %v243
      %v566 = vunpack.c.l.b16 %v244
      %v567 = vunpack.c.l.b16 %v245
      %v568 = vunpack.c.l.b16 %v246
      %v569 = vunpack.c.l.b16 %v247
      %v570 = vunpack.c.l.b16 %v248
      %v571 = vunpack.c.l.b16 %v249
      %v572 = vunpack.c.l.b16 %v250
      %v573 = vunpack.c.l.b16 %v251
      %v574 = vunpack.c.l.b16 %v252
      %v575 = vunpack.c.l.b16 %v253
      %v576 = vunpack.c.l.b16 %v254
      %v577 = vunpack.c.l.b16 %v255
      %v578 = vunpack.c.l.b16 %v256
      %v579 = vunpack.c.l.b16 %v257
      %v580 = vpack.c.b16 %v565, %v564
      %v581 = vpack.c.b16 %v567, %v566
      %v582 = vpack.c.b16 %v569, %v568
      %v583 = vpack.c.b16 %v571, %v570
      %v584 = vpack.c.b16 %v573, %v572
      %v585 = vpack.c.b16 %v575, %v574
      %v586 = vpack.c.b16 %v577, %v576
      %v587 = vpack.c.b16 %v579, %v578
      %596 = vmatprep.subr.bf16.mxu0 0
      %597 = vmatpush1.bf16.msra.mxu0 %v587
      %598 = vmatprep.subr.bf16.mxu0 0
      %599 = vmatpush1.bf16.msra.mxu0 %v586
      %600 = vmatprep.subr.bf16.mxu0 0
      %601 = vmatpush1.bf16.msra.mxu0 %v585
      %602 = vmatprep.subr.bf16.mxu0 0
      %603 = vmatpush1.bf16.msra.mxu0 %v584
      %604 = vmatprep.subr.bf16.mxu0 0
      %605 = vmatpush1.bf16.msra.mxu0 %v583
      %606 = vmatprep.subr.bf16.mxu0 0
      %607 = vmatpush1.bf16.msra.mxu0 %v582
      %608 = vmatprep.subr.bf16.mxu0 0
      %609 = vmatpush1.bf16.msra.mxu0 %v581
      %610 = vmatprep.subr.bf16.mxu0 0
      %611 = vmatpush1.bf16.msra.mxu0 %v580
      %612 = vmatprep.subr.bf16.mxu0 0
      %613 = vmatpush2.bf16.msra.mxu0 0
      %614 = vmatprep.subr.bf16.mxu0 0
      %615 = vmatpush2.bf16.msra.mxu0 0
      %616 = vmatprep.subr.bf16.mxu0 0
      %617 = vmatpush2.bf16.msra.mxu0 0
      %618 = vmatprep.subr.bf16.mxu0 0
      %619 = vmatpush2.bf16.msra.mxu0 0
      %620 = vmatprep.subr.bf16.mxu0 0
      %621 = vmatpush2.bf16.msra.mxu0 0
      %622 = vmatprep.subr.bf16.mxu0 0
      %623 = vmatpush2.bf16.msra.mxu0 0
      %624 = vmatprep.subr.bf16.mxu0 0
      %625 = vmatpush2.bf16.msra.mxu0 0
      %626 = vmatprep.subr.bf16.mxu0 0
      %627 = vmatpush2.bf16.msra.mxu0 0
      %628 = vmatprep.mubr.bf16.mxu0 0
      %629 = vmatmul.mubr.bf16.gmra.mxu0 %v309
      %v630 = vpop.f32.mrf.mxu0
      %v631 = vadd.f32 %v478, %v630
      %v632 = vpop.f32.mrf.mxu0
      %v633 = vpop.f32.mrf.mxu0
      %v634 = vadd.f32 %v481, %v633
      %v635 = vpop.f32.mrf.mxu0
      %636 = vmatprep.mubr.bf16.mxu0 0
      %637 = vmatmul.mubr.bf16.gmra.mxu0 %v310
      %v638 = vpop.f32.mrf.mxu0
      %v639 = vadd.f32 %v486, %v638
      %v640 = vpop.f32.mrf.mxu0
      %v641 = vpop.f32.mrf.mxu0
      %v642 = vadd.f32 %v489, %v641
      %v643 = vpop.f32.mrf.mxu0
      %644 = vmatprep.mubr.bf16.mxu0 0
      %645 = vmatmul.mubr.bf16.gmra.mxu0 %v311
      %v646 = vpop.f32.mrf.mxu0
      %v647 = vadd.f32 %v494, %v646
      %v648 = vpop.f32.mrf.mxu0
      %v649 = vpop.f32.mrf.mxu0
      %v650 = vadd.f32 %v497, %v649
      %v651 = vpop.f32.mrf.mxu0
      %652 = vmatprep.mubr.bf16.mxu0 0
      %653 = vmatmul.mubr.bf16.gmra.mxu0 %v312
      %v654 = vpop.f32.mrf.mxu0
      %v655 = vadd.f32 %v502, %v654
      %v656 = vpop.f32.mrf.mxu0
      %v657 = vpop.f32.mrf.mxu0
      %v658 = vadd.f32 %v505, %v657
      %v659 = vpop.f32.mrf.mxu0
      %660 = vmatprep.mubr.bf16.mxu0 0
      %661 = vmatmul.mubr.bf16.gmra.mxu0 %v313
      %v662 = vpop.f32.mrf.mxu0
      %v663 = vadd.f32 %v510, %v662
      %v664 = vpop.f32.mrf.mxu0
      %v665 = vpop.f32.mrf.mxu0
      %v666 = vadd.f32 %v513, %v665
      %v667 = vpop.f32.mrf.mxu0
      %668 = vmatprep.mubr.bf16.mxu0 0
      %669 = vmatmul.mubr.bf16.gmra.mxu0 %v314
      %v670 = vpop.f32.mrf.mxu0
      %v671 = vadd.f32 %v518, %v670
      %v672 = vpop.f32.mrf.mxu0
      %v673 = vpop.f32.mrf.mxu0
      %v674 = vadd.f32 %v521, %v673
      %v675 = vpop.f32.mrf.mxu0
      %676 = vmatprep.mubr.bf16.mxu0 0
      %677 = vmatmul.mubr.bf16.gmra.mxu0 %v315
      %v678 = vpop.f32.mrf.mxu0
      %v679 = vadd.f32 %v526, %v678
      %v680 = vpop.f32.mrf.mxu0
      %v681 = vpop.f32.mrf.mxu0
      %v682 = vadd.f32 %v529, %v681
      %v683 = vpop.f32.mrf.mxu0
      %684 = vmatprep.mubr.bf16.mxu0 0
      %685 = vmatmul.mubr.bf16.gmra.mxu0 %v316
      %v686 = vpop.f32.mrf.mxu0
      %v687 = vadd.f32 %v534, %v686
      %v688 = vpop.f32.mrf.mxu0
      %v689 = vpop.f32.mrf.mxu0
      %v690 = vadd.f32 %v537, %v689
      %v691 = vpop.f32.mrf.mxu0
      %692 = vdwg.mxu0
      %s693 = scalar_lea.vmem %s1, 128
      %v694 = vld [vmem:[%s693] sm:$0xf]
      %v695 = vld [vmem:[%s693 + $0x4] sm:$0xf]
      %v696 = vld [vmem:[%s693 + $0x8] sm:$0xf]
      %v697 = vld [vmem:[%s693 + $0xc] sm:$0xf]
      %v698 = vld [vmem:[%s693 + $0x10] sm:$0xf]
      %v699 = vld [vmem:[%s693 + $0x14] sm:$0xf]
      %v700 = vld [vmem:[%s693 + $0x18] sm:$0xf]
      %v701 = vld [vmem:[%s693 + $0x1c] sm:$0xf]
      %v702 = vld [vmem:[%s693 + $0x20] sm:$0xf]
      %v703 = vld [vmem:[%s693 + $0x24] sm:$0xf]
      %v704 = vld [vmem:[%s693 + $0x28] sm:$0xf]
      %v705 = vld [vmem:[%s693 + $0x2c] sm:$0xf]
      %v706 = vld [vmem:[%s693 + $0x30] sm:$0xf]
      %v707 = vld [vmem:[%s693 + $0x34] sm:$0xf]
      %v708 = vld [vmem:[%s693 + $0x38] sm:$0xf]
      %v709 = vld [vmem:[%s693 + $0x3c] sm:$0xf]
      %vm710 = vcmask 1046528
      %v711 = vrot.slane %v309, 1
      %v712 = vrot.slane %v310, 1
      %v713 = vsel %vm710, %v711, %v712
      %v714 = vrot.slane %v311, 1
      %v715 = vsel %vm710, %v712, %v714
      %v716 = vrot.slane %v312, 1
      %v717 = vsel %vm710, %v714, %v716
      %v718 = vrot.slane %v313, 1
      %v719 = vsel %vm710, %v716, %v718
      %v720 = vrot.slane %v314, 1
      %v721 = vsel %vm710, %v718, %v720
      %v722 = vrot.slane %v315, 1
      %v723 = vsel %vm710, %v720, %v722
      %v724 = vrot.slane %v316, 1
      %v725 = vsel %vm710, %v722, %v724
      %v726 = vrot.slane %v317, 1
      %v727 = vsel %vm710, %v724, %v726
      %v752 = vunpack.c.l.b16 %v694
      %v753 = vunpack.c.l.b16 %v695
      %v754 = vunpack.c.l.b16 %v696
      %v755 = vunpack.c.l.b16 %v697
      %v756 = vunpack.c.l.b16 %v698
      %v757 = vunpack.c.l.b16 %v699
      %v758 = vunpack.c.l.b16 %v700
      %v759 = vunpack.c.l.b16 %v701
      %v760 = vunpack.c.l.b16 %v702
      %v761 = vunpack.c.l.b16 %v703
      %v762 = vunpack.c.l.b16 %v704
      %v763 = vunpack.c.l.b16 %v705
      %v764 = vunpack.c.l.b16 %v706
      %v765 = vunpack.c.l.b16 %v707
      %v766 = vunpack.c.l.b16 %v708
      %v767 = vunpack.c.l.b16 %v709
      %v768 = vpack.c.b16 %v753, %v752
      %v769 = vpack.c.b16 %v755, %v754
      %v770 = vpack.c.b16 %v757, %v756
      %v771 = vpack.c.b16 %v759, %v758
      %v772 = vpack.c.b16 %v761, %v760
      %v773 = vpack.c.b16 %v763, %v762
      %v774 = vpack.c.b16 %v765, %v764
      %v775 = vpack.c.b16 %v767, %v766
      %784 = vmatprep.subr.bf16.mxu0 0
      %785 = vmatpush1.bf16.msra.mxu0 %v775
      %786 = vmatprep.subr.bf16.mxu0 0
      %787 = vmatpush1.bf16.msra.mxu0 %v774
      %788 = vmatprep.subr.bf16.mxu0 0
      %789 = vmatpush1.bf16.msra.mxu0 %v773
      %790 = vmatprep.subr.bf16.mxu0 0
      %791 = vmatpush1.bf16.msra.mxu0 %v772
      %792 = vmatprep.subr.bf16.mxu0 0
      %793 = vmatpush1.bf16.msra.mxu0 %v771
      %794 = vmatprep.subr.bf16.mxu0 0
      %795 = vmatpush1.bf16.msra.mxu0 %v770
      %796 = vmatprep.subr.bf16.mxu0 0
      %797 = vmatpush1.bf16.msra.mxu0 %v769
      %798 = vmatprep.subr.bf16.mxu0 0
      %799 = vmatpush1.bf16.msra.mxu0 %v768
      %800 = vmatprep.subr.bf16.mxu0 0
      %801 = vmatpush2.bf16.msra.mxu0 0
      %802 = vmatprep.subr.bf16.mxu0 0
      %803 = vmatpush2.bf16.msra.mxu0 0
      %804 = vmatprep.subr.bf16.mxu0 0
      %805 = vmatpush2.bf16.msra.mxu0 0
      %806 = vmatprep.subr.bf16.mxu0 0
      %807 = vmatpush2.bf16.msra.mxu0 0
      %808 = vmatprep.subr.bf16.mxu0 0
      %809 = vmatpush2.bf16.msra.mxu0 0
      %810 = vmatprep.subr.bf16.mxu0 0
      %811 = vmatpush2.bf16.msra.mxu0 0
      %812 = vmatprep.subr.bf16.mxu0 0
      %813 = vmatpush2.bf16.msra.mxu0 0
      %814 = vmatprep.subr.bf16.mxu0 0
      %815 = vmatpush2.bf16.msra.mxu0 0
      %816 = vmatprep.mubr.bf16.mxu0 0
      %817 = vmatmul.mubr.bf16.gmra.mxu0 %v713
      %v818 = vpop.f32.mrf.mxu0
      %v819 = vadd.f32 0.0, %v818
      %v820 = vpop.f32.mrf.mxu0
      %v821 = vpop.f32.mrf.mxu0
      %v822 = vadd.f32 0.0, %v821
      %v823 = vpop.f32.mrf.mxu0
      %824 = vmatprep.mubr.bf16.mxu0 0
      %825 = vmatmul.mubr.bf16.gmra.mxu0 %v715
      %v826 = vpop.f32.mrf.mxu0
      %v827 = vadd.f32 0.0, %v826
      %v828 = vpop.f32.mrf.mxu0
      %v829 = vpop.f32.mrf.mxu0
      %v830 = vadd.f32 0.0, %v829
      %v831 = vpop.f32.mrf.mxu0
      %832 = vmatprep.mubr.bf16.mxu0 0
      %833 = vmatmul.mubr.bf16.gmra.mxu0 %v717
      %v834 = vpop.f32.mrf.mxu0
      %v835 = vadd.f32 0.0, %v834
      %v836 = vpop.f32.mrf.mxu0
      %v837 = vpop.f32.mrf.mxu0
      %v838 = vadd.f32 0.0, %v837
      %v839 = vpop.f32.mrf.mxu0
      %840 = vmatprep.mubr.bf16.mxu0 0
      %841 = vmatmul.mubr.bf16.gmra.mxu0 %v719
      %v842 = vpop.f32.mrf.mxu0
      %v843 = vadd.f32 0.0, %v842
      %v844 = vpop.f32.mrf.mxu0
      %v845 = vpop.f32.mrf.mxu0
      %v846 = vadd.f32 0.0, %v845
      %v847 = vpop.f32.mrf.mxu0
      %848 = vmatprep.mubr.bf16.mxu0 0
      %849 = vmatmul.mubr.bf16.gmra.mxu0 %v721
      %v850 = vpop.f32.mrf.mxu0
      %v851 = vadd.f32 0.0, %v850
      %v852 = vpop.f32.mrf.mxu0
      %v853 = vpop.f32.mrf.mxu0
      %v854 = vadd.f32 0.0, %v853
      %v855 = vpop.f32.mrf.mxu0
      %856 = vmatprep.mubr.bf16.mxu0 0
      %857 = vmatmul.mubr.bf16.gmra.mxu0 %v723
      %v858 = vpop.f32.mrf.mxu0
      %v859 = vadd.f32 0.0, %v858
      %v860 = vpop.f32.mrf.mxu0
      %v861 = vpop.f32.mrf.mxu0
      %v862 = vadd.f32 0.0, %v861
      %v863 = vpop.f32.mrf.mxu0
      %864 = vmatprep.mubr.bf16.mxu0 0
      %865 = vmatmul.mubr.bf16.gmra.mxu0 %v725
      %v866 = vpop.f32.mrf.mxu0
      %v867 = vadd.f32 0.0, %v866
      %v868 = vpop.f32.mrf.mxu0
      %v869 = vpop.f32.mrf.mxu0
      %v870 = vadd.f32 0.0, %v869
      %v871 = vpop.f32.mrf.mxu0
      %872 = vmatprep.mubr.bf16.mxu0 0
      %873 = vmatmul.mubr.bf16.gmra.mxu0 %v727
      %v874 = vpop.f32.mrf.mxu0
      %v875 = vadd.f32 0.0, %v874
      %v876 = vpop.f32.mrf.mxu0
      %v877 = vpop.f32.mrf.mxu0
      %v878 = vadd.f32 0.0, %v877
      %v879 = vpop.f32.mrf.mxu0
      %880 = vdwg.mxu0
      %v881 = vadd.f32 %v631, %v819
      %v882 = vadd.f32 %v634, %v822
      %v883 = vadd.f32 %v639, %v827
      %v884 = vadd.f32 %v642, %v830
      %v885 = vadd.f32 %v647, %v835
      %v886 = vadd.f32 %v650, %v838
      %v887 = vadd.f32 %v655, %v843
      %v888 = vadd.f32 %v658, %v846
      %v889 = vadd.f32 %v663, %v851
      %v890 = vadd.f32 %v666, %v854
      %v891 = vadd.f32 %v671, %v859
      %v892 = vadd.f32 %v674, %v862
      %v893 = vadd.f32 %v679, %v867
      %v894 = vadd.f32 %v682, %v870
      %v895 = vadd.f32 %v687, %v875
      %v896 = vadd.f32 %v690, %v878
      %s897 = scalar_lea.vmem %s1, 192
      %v898 = vld [vmem:[%s897] sm:$0xf]
      %v899 = vld [vmem:[%s897 + $0x4] sm:$0xf]
      %v900 = vld [vmem:[%s897 + $0x8] sm:$0xf]
      %v901 = vld [vmem:[%s897 + $0xc] sm:$0xf]
      %v902 = vld [vmem:[%s897 + $0x10] sm:$0xf]
      %v903 = vld [vmem:[%s897 + $0x14] sm:$0xf]
      %v904 = vld [vmem:[%s897 + $0x18] sm:$0xf]
      %v905 = vld [vmem:[%s897 + $0x1c] sm:$0xf]
      %v906 = vld [vmem:[%s897 + $0x20] sm:$0xf]
      %v907 = vld [vmem:[%s897 + $0x24] sm:$0xf]
      %v908 = vld [vmem:[%s897 + $0x28] sm:$0xf]
      %v909 = vld [vmem:[%s897 + $0x2c] sm:$0xf]
      %v910 = vld [vmem:[%s897 + $0x30] sm:$0xf]
      %v911 = vld [vmem:[%s897 + $0x34] sm:$0xf]
      %v912 = vld [vmem:[%s897 + $0x38] sm:$0xf]
      %v913 = vld [vmem:[%s897 + $0x3c] sm:$0xf]
      %v916 = vunpack.c.l.b16 %v238
      %v917 = vunpack.c.l.b16 %v239
      %v918 = vpack.c.b16 %v916, %v308
      %v919 = vpack.c.b16 %v917, %v917
      %v920 = vrot.slane %v918, 1
      %v921 = vsel %vm710, %v724, %v920
      %v922 = vrot.slane %v919, 1
      %v923 = vsel %vm710, %v920, %v922
      %v942 = vunpack.c.l.b16 %v898
      %v943 = vunpack.c.l.b16 %v899
      %v944 = vunpack.c.l.b16 %v900
      %v945 = vunpack.c.l.b16 %v901
      %v946 = vunpack.c.l.b16 %v902
      %v947 = vunpack.c.l.b16 %v903
      %v948 = vunpack.c.l.b16 %v904
      %v949 = vunpack.c.l.b16 %v905
      %v950 = vunpack.c.l.b16 %v906
      %v951 = vunpack.c.l.b16 %v907
      %v952 = vunpack.c.l.b16 %v908
      %v953 = vunpack.c.l.b16 %v909
      %v954 = vunpack.c.l.b16 %v910
      %v955 = vunpack.c.l.b16 %v911
      %v956 = vunpack.c.l.b16 %v912
      %v957 = vunpack.c.l.b16 %v913
      %v958 = vpack.c.b16 %v943, %v942
      %v959 = vpack.c.b16 %v945, %v944
      %v960 = vpack.c.b16 %v947, %v946
      %v961 = vpack.c.b16 %v949, %v948
      %v962 = vpack.c.b16 %v951, %v950
      %v963 = vpack.c.b16 %v953, %v952
      %v964 = vpack.c.b16 %v955, %v954
      %v965 = vpack.c.b16 %v957, %v956
      %974 = vmatprep.subr.bf16.mxu0 0
      %975 = vmatpush1.bf16.msra.mxu0 %v965
      %976 = vmatprep.subr.bf16.mxu0 0
      %977 = vmatpush1.bf16.msra.mxu0 %v964
      %978 = vmatprep.subr.bf16.mxu0 0
      %979 = vmatpush1.bf16.msra.mxu0 %v963
      %980 = vmatprep.subr.bf16.mxu0 0
      %981 = vmatpush1.bf16.msra.mxu0 %v962
      %982 = vmatprep.subr.bf16.mxu0 0
      %983 = vmatpush1.bf16.msra.mxu0 %v961
      %984 = vmatprep.subr.bf16.mxu0 0
      %985 = vmatpush1.bf16.msra.mxu0 %v960
      %986 = vmatprep.subr.bf16.mxu0 0
      %987 = vmatpush1.bf16.msra.mxu0 %v959
      %988 = vmatprep.subr.bf16.mxu0 0
      %989 = vmatpush1.bf16.msra.mxu0 %v958
      %990 = vmatprep.subr.bf16.mxu0 0
      %991 = vmatpush2.bf16.msra.mxu0 0
      %992 = vmatprep.subr.bf16.mxu0 0
      %993 = vmatpush2.bf16.msra.mxu0 0
      %994 = vmatprep.subr.bf16.mxu0 0
      %995 = vmatpush2.bf16.msra.mxu0 0
      %996 = vmatprep.subr.bf16.mxu0 0
      %997 = vmatpush2.bf16.msra.mxu0 0
      %998 = vmatprep.subr.bf16.mxu0 0
      %999 = vmatpush2.bf16.msra.mxu0 0
      %1000 = vmatprep.subr.bf16.mxu0 0
      %1001 = vmatpush2.bf16.msra.mxu0 0
      %1002 = vmatprep.subr.bf16.mxu0 0
      %1003 = vmatpush2.bf16.msra.mxu0 0
      %1004 = vmatprep.subr.bf16.mxu0 0
      %1005 = vmatpush2.bf16.msra.mxu0 0
      %1006 = vmatprep.mubr.bf16.mxu0 0
      %1007 = vmatmul.mubr.bf16.gmra.mxu0 %v715
      %v1008 = vpop.f32.mrf.mxu0
      %v1009 = vadd.f32 0.0, %v1008
      %v1010 = vpop.f32.mrf.mxu0
      %v1011 = vpop.f32.mrf.mxu0
      %v1012 = vadd.f32 0.0, %v1011
      %v1013 = vpop.f32.mrf.mxu0
      %1014 = vmatprep.mubr.bf16.mxu0 0
      %1015 = vmatmul.mubr.bf16.gmra.mxu0 %v717
      %v1016 = vpop.f32.mrf.mxu0
      %v1017 = vadd.f32 0.0, %v1016
      %v1018 = vpop.f32.mrf.mxu0
      %v1019 = vpop.f32.mrf.mxu0
      %v1020 = vadd.f32 0.0, %v1019
      %v1021 = vpop.f32.mrf.mxu0
      %1022 = vmatprep.mubr.bf16.mxu0 0
      %1023 = vmatmul.mubr.bf16.gmra.mxu0 %v719
      %v1024 = vpop.f32.mrf.mxu0
      %v1025 = vadd.f32 0.0, %v1024
      %v1026 = vpop.f32.mrf.mxu0
      %v1027 = vpop.f32.mrf.mxu0
      %v1028 = vadd.f32 0.0, %v1027
      %v1029 = vpop.f32.mrf.mxu0
      %1030 = vmatprep.mubr.bf16.mxu0 0
      %1031 = vmatmul.mubr.bf16.gmra.mxu0 %v721
      %v1032 = vpop.f32.mrf.mxu0
      %v1033 = vadd.f32 0.0, %v1032
      %v1034 = vpop.f32.mrf.mxu0
      %v1035 = vpop.f32.mrf.mxu0
      %v1036 = vadd.f32 0.0, %v1035
      %v1037 = vpop.f32.mrf.mxu0
      %1038 = vmatprep.mubr.bf16.mxu0 0
      %1039 = vmatmul.mubr.bf16.gmra.mxu0 %v723
      %v1040 = vpop.f32.mrf.mxu0
      %v1041 = vadd.f32 0.0, %v1040
      %v1042 = vpop.f32.mrf.mxu0
      %v1043 = vpop.f32.mrf.mxu0
      %v1044 = vadd.f32 0.0, %v1043
      %v1045 = vpop.f32.mrf.mxu0
      %1046 = vmatprep.mubr.bf16.mxu0 0
      %1047 = vmatmul.mubr.bf16.gmra.mxu0 %v725
      %v1048 = vpop.f32.mrf.mxu0
      %v1049 = vadd.f32 0.0, %v1048
      %v1050 = vpop.f32.mrf.mxu0
      %v1051 = vpop.f32.mrf.mxu0
      %v1052 = vadd.f32 0.0, %v1051
      %v1053 = vpop.f32.mrf.mxu0
      %1054 = vmatprep.mubr.bf16.mxu0 0
      %1055 = vmatmul.mubr.bf16.gmra.mxu0 %v921
      %v1056 = vpop.f32.mrf.mxu0
      %v1057 = vadd.f32 0.0, %v1056
      %v1058 = vpop.f32.mrf.mxu0
      %v1059 = vpop.f32.mrf.mxu0
      %v1060 = vadd.f32 0.0, %v1059
      %v1061 = vpop.f32.mrf.mxu0
      %1062 = vmatprep.mubr.bf16.mxu0 0
      %1063 = vmatmul.mubr.bf16.gmra.mxu0 %v923
      %v1064 = vpop.f32.mrf.mxu0
      %v1065 = vadd.f32 0.0, %v1064
      %v1066 = vpop.f32.mrf.mxu0
      %v1067 = vpop.f32.mrf.mxu0
      %v1068 = vadd.f32 0.0, %v1067
      %v1069 = vpop.f32.mrf.mxu0
      %1070 = vdwg.mxu0
      %v1071 = vadd.f32 %v881, %v1009
      %v1072 = vadd.f32 %v882, %v1012
      %v1073 = vadd.f32 %v883, %v1017
      %v1074 = vadd.f32 %v884, %v1020
      %v1075 = vadd.f32 %v885, %v1025
      %v1076 = vadd.f32 %v886, %v1028
      %v1077 = vadd.f32 %v887, %v1033
      %v1078 = vadd.f32 %v888, %v1036
      %v1079 = vadd.f32 %v889, %v1041
      %v1080 = vadd.f32 %v890, %v1044
      %v1081 = vadd.f32 %v891, %v1049
      %v1082 = vadd.f32 %v892, %v1052
      %v1083 = vadd.f32 %v893, %v1057
      %v1084 = vadd.f32 %v894, %v1060
      %v1085 = vadd.f32 %v895, %v1065
      %v1086 = vadd.f32 %v896, %v1068
      %s1087 = scalar_lea.vmem %s1, 256
      %v1088 = vld [vmem:[%s1087] sm:$0xf]
      %v1089 = vld [vmem:[%s1087 + $0x4] sm:$0xf]
      %v1090 = vld [vmem:[%s1087 + $0x8] sm:$0xf]
      %v1091 = vld [vmem:[%s1087 + $0xc] sm:$0xf]
      %v1092 = vld [vmem:[%s1087 + $0x10] sm:$0xf]
      %v1093 = vld [vmem:[%s1087 + $0x14] sm:$0xf]
      %v1094 = vld [vmem:[%s1087 + $0x18] sm:$0xf]
      %v1095 = vld [vmem:[%s1087 + $0x1c] sm:$0xf]
      %v1096 = vld [vmem:[%s1087 + $0x20] sm:$0xf]
      %v1097 = vld [vmem:[%s1087 + $0x24] sm:$0xf]
      %v1098 = vld [vmem:[%s1087 + $0x28] sm:$0xf]
      %v1099 = vld [vmem:[%s1087 + $0x2c] sm:$0xf]
      %v1100 = vld [vmem:[%s1087 + $0x30] sm:$0xf]
      %v1101 = vld [vmem:[%s1087 + $0x34] sm:$0xf]
      %v1102 = vld [vmem:[%s1087 + $0x38] sm:$0xf]
      %v1103 = vld [vmem:[%s1087 + $0x3c] sm:$0xf]
      %vm1104 = vsmask.f32 6400
      %v1105 = vrot.slane %v331, 1
      %v1106 = vrot.slane %v327, 2
      %v1107 = vor.u32 %v1105, %v1106
      %v1108 = vrot.slane %v339, 1
      %v1109 = vrot.slane %v335, 2
      %v1110 = vor.u32 %v1108, %v1109
      %v1111 = vsel %vm1104, %v1107, %v1110
      %v1112 = vrot.slane %v347, 1
      %v1113 = vrot.slane %v343, 2
      %v1114 = vor.u32 %v1112, %v1113
      %v1115 = vsel %vm1104, %v1110, %v1114
      %v1116 = vrot.slane %v355, 1
      %v1117 = vrot.slane %v351, 2
      %v1118 = vor.u32 %v1116, %v1117
      %v1119 = vsel %vm1104, %v1114, %v1118
      %v1120 = vrot.slane %v363, 1
      %v1121 = vrot.slane %v359, 2
      %v1122 = vor.u32 %v1120, %v1121
      %v1123 = vsel %vm1104, %v1118, %v1122
      %v1124 = vrot.slane %v371, 1
      %v1125 = vrot.slane %v367, 2
      %v1126 = vor.u32 %v1124, %v1125
      %v1127 = vsel %vm1104, %v1122, %v1126
      %v1128 = vrot.slane %v379, 1
      %v1129 = vrot.slane %v375, 2
      %v1130 = vor.u32 %v1128, %v1129
      %v1131 = vsel %vm1104, %v1126, %v1130
      %v1133 = vshrl.u32 %v918, 16
      %v1135 = vrot.slane %v1133, 1
      %v1136 = vshll.u32 %v918, 16
      %v1138 = vrot.slane %v1136, 2
      %v1139 = vor.u32 %v1135, %v1138
      %v1140 = vsel %vm1104, %v1130, %v1139
      %v1142 = vshrl.u32 %v919, 16
      %v1144 = vrot.slane %v1142, 1
      %v1145 = vshll.u32 %v919, 16
      %v1147 = vrot.slane %v1145, 2
      %v1148 = vor.u32 %v1144, %v1147
      %v1149 = vsel %vm1104, %v1139, %v1148
      %v1174 = vunpack.c.l.b16 %v1088
      %v1175 = vunpack.c.l.b16 %v1089
      %v1176 = vunpack.c.l.b16 %v1090
      %v1177 = vunpack.c.l.b16 %v1091
      %v1178 = vunpack.c.l.b16 %v1092
      %v1179 = vunpack.c.l.b16 %v1093
      %v1180 = vunpack.c.l.b16 %v1094
      %v1181 = vunpack.c.l.b16 %v1095
      %v1182 = vunpack.c.l.b16 %v1096
      %v1183 = vunpack.c.l.b16 %v1097
      %v1184 = vunpack.c.l.b16 %v1098
      %v1185 = vunpack.c.l.b16 %v1099
      %v1186 = vunpack.c.l.b16 %v1100
      %v1187 = vunpack.c.l.b16 %v1101
      %v1188 = vunpack.c.l.b16 %v1102
      %v1189 = vunpack.c.l.b16 %v1103
      %v1190 = vpack.c.b16 %v1175, %v1174
      %v1191 = vpack.c.b16 %v1177, %v1176
      %v1192 = vpack.c.b16 %v1179, %v1178
      %v1193 = vpack.c.b16 %v1181, %v1180
      %v1194 = vpack.c.b16 %v1183, %v1182
      %v1195 = vpack.c.b16 %v1185, %v1184
      %v1196 = vpack.c.b16 %v1187, %v1186
      %v1197 = vpack.c.b16 %v1189, %v1188
      %1206 = vmatprep.subr.bf16.mxu0 0
      %1207 = vmatpush1.bf16.msra.mxu0 %v1197
      %1208 = vmatprep.subr.bf16.mxu0 0
      %1209 = vmatpush1.bf16.msra.mxu0 %v1196
      %1210 = vmatprep.subr.bf16.mxu0 0
      %1211 = vmatpush1.bf16.msra.mxu0 %v1195
      %1212 = vmatprep.subr.bf16.mxu0 0
      %1213 = vmatpush1.bf16.msra.mxu0 %v1194
      %1214 = vmatprep.subr.bf16.mxu0 0
      %1215 = vmatpush1.bf16.msra.mxu0 %v1193
      %1216 = vmatprep.subr.bf16.mxu0 0
      %1217 = vmatpush1.bf16.msra.mxu0 %v1192
      %1218 = vmatprep.subr.bf16.mxu0 0
      %1219 = vmatpush1.bf16.msra.mxu0 %v1191
      %1220 = vmatprep.subr.bf16.mxu0 0
      %1221 = vmatpush1.bf16.msra.mxu0 %v1190
      %1222 = vmatprep.subr.bf16.mxu0 0
      %1223 = vmatpush2.bf16.msra.mxu0 0
      %1224 = vmatprep.subr.bf16.mxu0 0
      %1225 = vmatpush2.bf16.msra.mxu0 0
      %1226 = vmatprep.subr.bf16.mxu0 0
      %1227 = vmatpush2.bf16.msra.mxu0 0
      %1228 = vmatprep.subr.bf16.mxu0 0
      %1229 = vmatpush2.bf16.msra.mxu0 0
      %1230 = vmatprep.subr.bf16.mxu0 0
      %1231 = vmatpush2.bf16.msra.mxu0 0
      %1232 = vmatprep.subr.bf16.mxu0 0
      %1233 = vmatpush2.bf16.msra.mxu0 0
      %1234 = vmatprep.subr.bf16.mxu0 0
      %1235 = vmatpush2.bf16.msra.mxu0 0
      %1236 = vmatprep.subr.bf16.mxu0 0
      %1237 = vmatpush2.bf16.msra.mxu0 0
      %1238 = vmatprep.mubr.bf16.mxu0 0
      %1239 = vmatmul.mubr.bf16.gmra.mxu0 %v1111
      %v1240 = vpop.f32.mrf.mxu0
      %v1241 = vadd.f32 0.0, %v1240
      %v1242 = vpop.f32.mrf.mxu0
      %v1243 = vpop.f32.mrf.mxu0
      %v1244 = vadd.f32 0.0, %v1243
      %v1245 = vpop.f32.mrf.mxu0
      %1246 = vmatprep.mubr.bf16.mxu0 0
      %1247 = vmatmul.mubr.bf16.gmra.mxu0 %v1115
      %v1248 = vpop.f32.mrf.mxu0
      %v1249 = vadd.f32 0.0, %v1248
      %v1250 = vpop.f32.mrf.mxu0
      %v1251 = vpop.f32.mrf.mxu0
      %v1252 = vadd.f32 0.0, %v1251
      %v1253 = vpop.f32.mrf.mxu0
      %1254 = vmatprep.mubr.bf16.mxu0 0
      %1255 = vmatmul.mubr.bf16.gmra.mxu0 %v1119
      %v1256 = vpop.f32.mrf.mxu0
      %v1257 = vadd.f32 0.0, %v1256
      %v1258 = vpop.f32.mrf.mxu0
      %v1259 = vpop.f32.mrf.mxu0
      %v1260 = vadd.f32 0.0, %v1259
      %v1261 = vpop.f32.mrf.mxu0
      %1262 = vmatprep.mubr.bf16.mxu0 0
      %1263 = vmatmul.mubr.bf16.gmra.mxu0 %v1123
      %v1264 = vpop.f32.mrf.mxu0
      %v1265 = vadd.f32 0.0, %v1264
      %v1266 = vpop.f32.mrf.mxu0
      %v1267 = vpop.f32.mrf.mxu0
      %v1268 = vadd.f32 0.0, %v1267
      %v1269 = vpop.f32.mrf.mxu0
      %1270 = vmatprep.mubr.bf16.mxu0 0
      %1271 = vmatmul.mubr.bf16.gmra.mxu0 %v1127
      %v1272 = vpop.f32.mrf.mxu0
      %v1273 = vadd.f32 0.0, %v1272
      %v1274 = vpop.f32.mrf.mxu0
      %v1275 = vpop.f32.mrf.mxu0
      %v1276 = vadd.f32 0.0, %v1275
      %v1277 = vpop.f32.mrf.mxu0
      %1278 = vmatprep.mubr.bf16.mxu0 0
      %1279 = vmatmul.mubr.bf16.gmra.mxu0 %v1131
      %v1280 = vpop.f32.mrf.mxu0
      %v1281 = vadd.f32 0.0, %v1280
      %v1282 = vpop.f32.mrf.mxu0
      %v1283 = vpop.f32.mrf.mxu0
      %v1284 = vadd.f32 0.0, %v1283
      %v1285 = vpop.f32.mrf.mxu0
      %1286 = vmatprep.mubr.bf16.mxu0 0
      %1287 = vmatmul.mubr.bf16.gmra.mxu0 %v1140
      %v1288 = vpop.f32.mrf.mxu0
      %v1289 = vadd.f32 0.0, %v1288
      %v1290 = vpop.f32.mrf.mxu0
      %v1291 = vpop.f32.mrf.mxu0
      %v1292 = vadd.f32 0.0, %v1291
      %v1293 = vpop.f32.mrf.mxu0
      %1294 = vmatprep.mubr.bf16.mxu0 0
      %1295 = vmatmul.mubr.bf16.gmra.mxu0 %v1149
      %v1296 = vpop.f32.mrf.mxu0
      %v1297 = vadd.f32 0.0, %v1296
      %v1298 = vpop.f32.mrf.mxu0
      %v1299 = vpop.f32.mrf.mxu0
      %v1300 = vadd.f32 0.0, %v1299
      %v1301 = vpop.f32.mrf.mxu0
      %1302 = vdwg.mxu0
      %v1303 = vadd.f32 %v1071, %v1241
      %v1304 = vadd.f32 %v1072, %v1244
      %v1305 = vadd.f32 %v1073, %v1249
      %v1306 = vadd.f32 %v1074, %v1252
      %v1307 = vadd.f32 %v1075, %v1257
      %v1308 = vadd.f32 %v1076, %v1260
      %v1309 = vadd.f32 %v1077, %v1265
      %v1310 = vadd.f32 %v1078, %v1268
      %v1311 = vadd.f32 %v1079, %v1273
      %v1312 = vadd.f32 %v1080, %v1276
      %v1313 = vadd.f32 %v1081, %v1281
      %v1314 = vadd.f32 %v1082, %v1284
      %v1315 = vadd.f32 %v1083, %v1289
      %v1316 = vadd.f32 %v1084, %v1292
      %v1317 = vadd.f32 %v1085, %v1297
      %v1318 = vadd.f32 %v1086, %v1300
      %s1319 = scalar_lea.vmem %s1, 320
      %v1320 = vld [vmem:[%s1319] sm:$0xf]
      %v1321 = vld [vmem:[%s1319 + $0x4] sm:$0xf]
      %v1322 = vld [vmem:[%s1319 + $0x8] sm:$0xf]
      %v1323 = vld [vmem:[%s1319 + $0xc] sm:$0xf]
      %v1324 = vld [vmem:[%s1319 + $0x10] sm:$0xf]
      %v1325 = vld [vmem:[%s1319 + $0x14] sm:$0xf]
      %v1326 = vld [vmem:[%s1319 + $0x18] sm:$0xf]
      %v1327 = vld [vmem:[%s1319 + $0x1c] sm:$0xf]
      %v1328 = vld [vmem:[%s1319 + $0x20] sm:$0xf]
      %v1329 = vld [vmem:[%s1319 + $0x24] sm:$0xf]
      %v1330 = vld [vmem:[%s1319 + $0x28] sm:$0xf]
      %v1331 = vld [vmem:[%s1319 + $0x2c] sm:$0xf]
      %v1332 = vld [vmem:[%s1319 + $0x30] sm:$0xf]
      %v1333 = vld [vmem:[%s1319 + $0x34] sm:$0xf]
      %v1334 = vld [vmem:[%s1319 + $0x38] sm:$0xf]
      %v1335 = vld [vmem:[%s1319 + $0x3c] sm:$0xf]
      %vm1336 = vcmask 1045504
      %v1337 = vrot.slane %v310, 2
      %v1338 = vrot.slane %v311, 2
      %v1339 = vsel %vm1336, %v1337, %v1338
      %v1340 = vrot.slane %v312, 2
      %v1341 = vsel %vm1336, %v1338, %v1340
      %v1342 = vrot.slane %v313, 2
      %v1343 = vsel %vm1336, %v1340, %v1342
      %v1344 = vrot.slane %v314, 2
      %v1345 = vsel %vm1336, %v1342, %v1344
      %v1346 = vrot.slane %v315, 2
      %v1347 = vsel %vm1336, %v1344, %v1346
      %v1348 = vrot.slane %v316, 2
      %v1349 = vsel %vm1336, %v1346, %v1348
      %v1350 = vrot.slane %v918, 2
      %v1351 = vsel %vm1336, %v1348, %v1350
      %v1352 = vrot.slane %v919, 2
      %v1353 = vsel %vm1336, %v1350, %v1352
      %v1378 = vunpack.c.l.b16 %v1320
      %v1379 = vunpack.c.l.b16 %v1321
      %v1380 = vunpack.c.l.b16 %v1322
      %v1381 = vunpack.c.l.b16 %v1323
      %v1382 = vunpack.c.l.b16 %v1324
      %v1383 = vunpack.c.l.b16 %v1325
      %v1384 = vunpack.c.l.b16 %v1326
      %v1385 = vunpack.c.l.b16 %v1327
      %v1386 = vunpack.c.l.b16 %v1328
      %v1387 = vunpack.c.l.b16 %v1329
      %v1388 = vunpack.c.l.b16 %v1330
      %v1389 = vunpack.c.l.b16 %v1331
      %v1390 = vunpack.c.l.b16 %v1332
      %v1391 = vunpack.c.l.b16 %v1333
      %v1392 = vunpack.c.l.b16 %v1334
      %v1393 = vunpack.c.l.b16 %v1335
      %v1394 = vpack.c.b16 %v1379, %v1378
      %v1395 = vpack.c.b16 %v1381, %v1380
      %v1396 = vpack.c.b16 %v1383, %v1382
      %v1397 = vpack.c.b16 %v1385, %v1384
      %v1398 = vpack.c.b16 %v1387, %v1386
      %v1399 = vpack.c.b16 %v1389, %v1388
      %v1400 = vpack.c.b16 %v1391, %v1390
      %v1401 = vpack.c.b16 %v1393, %v1392
      %1410 = vmatprep.subr.bf16.mxu0 0
      %1411 = vmatpush1.bf16.msra.mxu0 %v1401
      %1412 = vmatprep.subr.bf16.mxu0 0
      %1413 = vmatpush1.bf16.msra.mxu0 %v1400
      %1414 = vmatprep.subr.bf16.mxu0 0
      %1415 = vmatpush1.bf16.msra.mxu0 %v1399
      %1416 = vmatprep.subr.bf16.mxu0 0
      %1417 = vmatpush1.bf16.msra.mxu0 %v1398
      %1418 = vmatprep.subr.bf16.mxu0 0
      %1419 = vmatpush1.bf16.msra.mxu0 %v1397
      %1420 = vmatprep.subr.bf16.mxu0 0
      %1421 = vmatpush1.bf16.msra.mxu0 %v1396
      %1422 = vmatprep.subr.bf16.mxu0 0
      %1423 = vmatpush1.bf16.msra.mxu0 %v1395
      %1424 = vmatprep.subr.bf16.mxu0 0
      %1425 = vmatpush1.bf16.msra.mxu0 %v1394
      %1426 = vmatprep.subr.bf16.mxu0 0
      %1427 = vmatpush2.bf16.msra.mxu0 0
      %1428 = vmatprep.subr.bf16.mxu0 0
      %1429 = vmatpush2.bf16.msra.mxu0 0
      %1430 = vmatprep.subr.bf16.mxu0 0
      %1431 = vmatpush2.bf16.msra.mxu0 0
      %1432 = vmatprep.subr.bf16.mxu0 0
      %1433 = vmatpush2.bf16.msra.mxu0 0
      %1434 = vmatprep.subr.bf16.mxu0 0
      %1435 = vmatpush2.bf16.msra.mxu0 0
      %1436 = vmatprep.subr.bf16.mxu0 0
      %1437 = vmatpush2.bf16.msra.mxu0 0
      %1438 = vmatprep.subr.bf16.mxu0 0
      %1439 = vmatpush2.bf16.msra.mxu0 0
      %1440 = vmatprep.subr.bf16.mxu0 0
      %1441 = vmatpush2.bf16.msra.mxu0 0
      %1442 = vmatprep.mubr.bf16.mxu0 0
      %1443 = vmatmul.mubr.bf16.gmra.mxu0 %v1339
      %v1444 = vpop.f32.mrf.mxu0
      %v1445 = vadd.f32 0.0, %v1444
      %v1446 = vpop.f32.mrf.mxu0
      %v1447 = vpop.f32.mrf.mxu0
      %v1448 = vadd.f32 0.0, %v1447
      %v1449 = vpop.f32.mrf.mxu0
      %1450 = vmatprep.mubr.bf16.mxu0 0
      %1451 = vmatmul.mubr.bf16.gmra.mxu0 %v1341
      %v1452 = vpop.f32.mrf.mxu0
      %v1453 = vadd.f32 0.0, %v1452
      %v1454 = vpop.f32.mrf.mxu0
      %v1455 = vpop.f32.mrf.mxu0
      %v1456 = vadd.f32 0.0, %v1455
      %v1457 = vpop.f32.mrf.mxu0
      %1458 = vmatprep.mubr.bf16.mxu0 0
      %1459 = vmatmul.mubr.bf16.gmra.mxu0 %v1343
      %v1460 = vpop.f32.mrf.mxu0
      %v1461 = vadd.f32 0.0, %v1460
      %v1462 = vpop.f32.mrf.mxu0
      %v1463 = vpop.f32.mrf.mxu0
      %v1464 = vadd.f32 0.0, %v1463
      %v1465 = vpop.f32.mrf.mxu0
      %1466 = vmatprep.mubr.bf16.mxu0 0
      %1467 = vmatmul.mubr.bf16.gmra.mxu0 %v1345
      %v1468 = vpop.f32.mrf.mxu0
      %v1469 = vadd.f32 0.0, %v1468
      %v1470 = vpop.f32.mrf.mxu0
      %v1471 = vpop.f32.mrf.mxu0
      %v1472 = vadd.f32 0.0, %v1471
      %v1473 = vpop.f32.mrf.mxu0
      %1474 = vmatprep.mubr.bf16.mxu0 0
      %1475 = vmatmul.mubr.bf16.gmra.mxu0 %v1347
      %v1476 = vpop.f32.mrf.mxu0
      %v1477 = vadd.f32 0.0, %v1476
      %v1478 = vpop.f32.mrf.mxu0
      %v1479 = vpop.f32.mrf.mxu0
      %v1480 = vadd.f32 0.0, %v1479
      %v1481 = vpop.f32.mrf.mxu0
      %1482 = vmatprep.mubr.bf16.mxu0 0
      %1483 = vmatmul.mubr.bf16.gmra.mxu0 %v1349
      %v1484 = vpop.f32.mrf.mxu0
      %v1485 = vadd.f32 0.0, %v1484
      %v1486 = vpop.f32.mrf.mxu0
      %v1487 = vpop.f32.mrf.mxu0
      %v1488 = vadd.f32 0.0, %v1487
      %v1489 = vpop.f32.mrf.mxu0
      %1490 = vmatprep.mubr.bf16.mxu0 0
      %1491 = vmatmul.mubr.bf16.gmra.mxu0 %v1351
      %v1492 = vpop.f32.mrf.mxu0
      %v1493 = vadd.f32 0.0, %v1492
      %v1494 = vpop.f32.mrf.mxu0
      %v1495 = vpop.f32.mrf.mxu0
      %v1496 = vadd.f32 0.0, %v1495
      %v1497 = vpop.f32.mrf.mxu0
      %1498 = vmatprep.mubr.bf16.mxu0 0
      %1499 = vmatmul.mubr.bf16.gmra.mxu0 %v1353
      %v1500 = vpop.f32.mrf.mxu0
      %v1501 = vadd.f32 0.0, %v1500
      %v1502 = vpop.f32.mrf.mxu0
      %v1503 = vpop.f32.mrf.mxu0
      %v1504 = vadd.f32 0.0, %v1503
      %v1505 = vpop.f32.mrf.mxu0
      %1506 = vdwg.mxu0
      %v1507 = vadd.f32 %v1303, %v1445
      %v1508 = vadd.f32 %v1304, %v1448
      %v1509 = vadd.f32 %v1305, %v1453
      %v1510 = vadd.f32 %v1306, %v1456
      %v1511 = vadd.f32 %v1307, %v1461
      %v1512 = vadd.f32 %v1308, %v1464
      %v1513 = vadd.f32 %v1309, %v1469
      %v1514 = vadd.f32 %v1310, %v1472
      %v1515 = vadd.f32 %v1311, %v1477
      %v1516 = vadd.f32 %v1312, %v1480
      %v1517 = vadd.f32 %v1313, %v1485
      %v1518 = vadd.f32 %v1314, %v1488
      %v1519 = vadd.f32 %v1315, %v1493
      %v1520 = vadd.f32 %v1316, %v1496
      %v1521 = vadd.f32 %v1317, %v1501
      %v1522 = vadd.f32 %v1318, %v1504
      %s1523 = scalar_lea.vmem %s1, 384
      %v1524 = vld [vmem:[%s1523] sm:$0xf]
      %v1525 = vld [vmem:[%s1523 + $0x4] sm:$0xf]
      %v1526 = vld [vmem:[%s1523 + $0x8] sm:$0xf]
      %v1527 = vld [vmem:[%s1523 + $0xc] sm:$0xf]
      %v1528 = vld [vmem:[%s1523 + $0x10] sm:$0xf]
      %v1529 = vld [vmem:[%s1523 + $0x14] sm:$0xf]
      %v1530 = vld [vmem:[%s1523 + $0x18] sm:$0xf]
      %v1531 = vld [vmem:[%s1523 + $0x1c] sm:$0xf]
      %v1532 = vld [vmem:[%s1523 + $0x20] sm:$0xf]
      %v1533 = vld [vmem:[%s1523 + $0x24] sm:$0xf]
      %v1534 = vld [vmem:[%s1523 + $0x28] sm:$0xf]
      %v1535 = vld [vmem:[%s1523 + $0x2c] sm:$0xf]
      %v1536 = vld [vmem:[%s1523 + $0x30] sm:$0xf]
      %v1537 = vld [vmem:[%s1523 + $0x34] sm:$0xf]
      %v1538 = vld [vmem:[%s1523 + $0x38] sm:$0xf]
      %v1539 = vld [vmem:[%s1523 + $0x3c] sm:$0xf]
      %v1542 = vunpack.c.l.b16 %v240
      %v1543 = vunpack.c.l.b16 %v241
      %v1544 = vpack.c.b16 %v1542, %v917
      %v1545 = vpack.c.b16 %v1543, %v1543
      %v1546 = vrot.slane %v1544, 2
      %v1547 = vsel %vm1336, %v1350, %v1546
      %v1548 = vrot.slane %v1545, 2
      %v1549 = vsel %vm1336, %v1546, %v1548
      %v1568 = vunpack.c.l.b16 %v1524
      %v1569 = vunpack.c.l.b16 %v1525
      %v1570 = vunpack.c.l.b16 %v1526
      %v1571 = vunpack.c.l.b16 %v1527
      %v1572 = vunpack.c.l.b16 %v1528
      %v1573 = vunpack.c.l.b16 %v1529
      %v1574 = vunpack.c.l.b16 %v1530
      %v1575 = vunpack.c.l.b16 %v1531
      %v1576 = vunpack.c.l.b16 %v1532
      %v1577 = vunpack.c.l.b16 %v1533
      %v1578 = vunpack.c.l.b16 %v1534
      %v1579 = vunpack.c.l.b16 %v1535
      %v1580 = vunpack.c.l.b16 %v1536
      %v1581 = vunpack.c.l.b16 %v1537
      %v1582 = vunpack.c.l.b16 %v1538
      %v1583 = vunpack.c.l.b16 %v1539
      %v1584 = vpack.c.b16 %v1569, %v1568
      %v1585 = vpack.c.b16 %v1571, %v1570
      %v1586 = vpack.c.b16 %v1573, %v1572
      %v1587 = vpack.c.b16 %v1575, %v1574
      %v1588 = vpack.c.b16 %v1577, %v1576
      %v1589 = vpack.c.b16 %v1579, %v1578
      %v1590 = vpack.c.b16 %v1581, %v1580
      %v1591 = vpack.c.b16 %v1583, %v1582
      %1600 = vmatprep.subr.bf16.mxu0 0
      %1601 = vmatpush1.bf16.msra.mxu0 %v1591
      %1602 = vmatprep.subr.bf16.mxu0 0
      %1603 = vmatpush1.bf16.msra.mxu0 %v1590
      %1604 = vmatprep.subr.bf16.mxu0 0
      %1605 = vmatpush1.bf16.msra.mxu0 %v1589
      %1606 = vmatprep.subr.bf16.mxu0 0
      %1607 = vmatpush1.bf16.msra.mxu0 %v1588
      %1608 = vmatprep.subr.bf16.mxu0 0
      %1609 = vmatpush1.bf16.msra.mxu0 %v1587
      %1610 = vmatprep.subr.bf16.mxu0 0
      %1611 = vmatpush1.bf16.msra.mxu0 %v1586
      %1612 = vmatprep.subr.bf16.mxu0 0
      %1613 = vmatpush1.bf16.msra.mxu0 %v1585
      %1614 = vmatprep.subr.bf16.mxu0 0
      %1615 = vmatpush1.bf16.msra.mxu0 %v1584
      %1616 = vmatprep.subr.bf16.mxu0 0
      %1617 = vmatpush2.bf16.msra.mxu0 0
      %1618 = vmatprep.subr.bf16.mxu0 0
      %1619 = vmatpush2.bf16.msra.mxu0 0
      %1620 = vmatprep.subr.bf16.mxu0 0
      %1621 = vmatpush2.bf16.msra.mxu0 0
      %1622 = vmatprep.subr.bf16.mxu0 0
      %1623 = vmatpush2.bf16.msra.mxu0 0
      %1624 = vmatprep.subr.bf16.mxu0 0
      %1625 = vmatpush2.bf16.msra.mxu0 0
      %1626 = vmatprep.subr.bf16.mxu0 0
      %1627 = vmatpush2.bf16.msra.mxu0 0
      %1628 = vmatprep.subr.bf16.mxu0 0
      %1629 = vmatpush2.bf16.msra.mxu0 0
      %1630 = vmatprep.subr.bf16.mxu0 0
      %1631 = vmatpush2.bf16.msra.mxu0 0
      %1632 = vmatprep.mubr.bf16.mxu0 0
      %1633 = vmatmul.mubr.bf16.gmra.mxu0 %v1341
      %v1634 = vpop.f32.mrf.mxu0
      %v1635 = vadd.f32 0.0, %v1634
      %v1636 = vpop.f32.mrf.mxu0
      %v1637 = vpop.f32.mrf.mxu0
      %v1638 = vadd.f32 0.0, %v1637
      %v1639 = vpop.f32.mrf.mxu0
      %1640 = vmatprep.mubr.bf16.mxu0 0
      %1641 = vmatmul.mubr.bf16.gmra.mxu0 %v1343
      %v1642 = vpop.f32.mrf.mxu0
      %v1643 = vadd.f32 0.0, %v1642
      %v1644 = vpop.f32.mrf.mxu0
      %v1645 = vpop.f32.mrf.mxu0
      %v1646 = vadd.f32 0.0, %v1645
      %v1647 = vpop.f32.mrf.mxu0
      %1648 = vmatprep.mubr.bf16.mxu0 0
      %1649 = vmatmul.mubr.bf16.gmra.mxu0 %v1345
      %v1650 = vpop.f32.mrf.mxu0
      %v1651 = vadd.f32 0.0, %v1650
      %v1652 = vpop.f32.mrf.mxu0
      %v1653 = vpop.f32.mrf.mxu0
      %v1654 = vadd.f32 0.0, %v1653
      %v1655 = vpop.f32.mrf.mxu0
      %1656 = vmatprep.mubr.bf16.mxu0 0
      %1657 = vmatmul.mubr.bf16.gmra.mxu0 %v1347
      %v1658 = vpop.f32.mrf.mxu0
      %v1659 = vadd.f32 0.0, %v1658
      %v1660 = vpop.f32.mrf.mxu0
      %v1661 = vpop.f32.mrf.mxu0
      %v1662 = vadd.f32 0.0, %v1661
      %v1663 = vpop.f32.mrf.mxu0
      %1664 = vmatprep.mubr.bf16.mxu0 0
      %1665 = vmatmul.mubr.bf16.gmra.mxu0 %v1349
      %v1666 = vpop.f32.mrf.mxu0
      %v1667 = vadd.f32 0.0, %v1666
      %v1668 = vpop.f32.mrf.mxu0
      %v1669 = vpop.f32.mrf.mxu0
      %v1670 = vadd.f32 0.0, %v1669
      %v1671 = vpop.f32.mrf.mxu0
      %1672 = vmatprep.mubr.bf16.mxu0 0
      %1673 = vmatmul.mubr.bf16.gmra.mxu0 %v1351
      %v1674 = vpop.f32.mrf.mxu0
      %v1675 = vadd.f32 0.0, %v1674
      %v1676 = vpop.f32.mrf.mxu0
      %v1677 = vpop.f32.mrf.mxu0
      %v1678 = vadd.f32 0.0, %v1677
      %v1679 = vpop.f32.mrf.mxu0
      %1680 = vmatprep.mubr.bf16.mxu0 0
      %1681 = vmatmul.mubr.bf16.gmra.mxu0 %v1547
      %v1682 = vpop.f32.mrf.mxu0
      %v1683 = vadd.f32 0.0, %v1682
      %v1684 = vpop.f32.mrf.mxu0
      %v1685 = vpop.f32.mrf.mxu0
      %v1686 = vadd.f32 0.0, %v1685
      %v1687 = vpop.f32.mrf.mxu0
      %1688 = vmatprep.mubr.bf16.mxu0 0
      %1689 = vmatmul.mubr.bf16.gmra.mxu0 %v1549
      %v1690 = vpop.f32.mrf.mxu0
      %v1691 = vadd.f32 0.0, %v1690
      %v1692 = vpop.f32.mrf.mxu0
      %v1693 = vpop.f32.mrf.mxu0
      %v1694 = vadd.f32 0.0, %v1693
      %v1695 = vpop.f32.mrf.mxu0
      %1696 = vdwg.mxu0
      %v1697 = vadd.f32 %v1507, %v1635
      %v1698 = vadd.f32 %v1508, %v1638
      %v1699 = vadd.f32 %v1509, %v1643
      %v1700 = vadd.f32 %v1510, %v1646
      %v1701 = vadd.f32 %v1511, %v1651
      %v1702 = vadd.f32 %v1512, %v1654
      %v1703 = vadd.f32 %v1513, %v1659
      %v1704 = vadd.f32 %v1514, %v1662
      %v1705 = vadd.f32 %v1515, %v1667
      %v1706 = vadd.f32 %v1516, %v1670
      %v1707 = vadd.f32 %v1517, %v1675
      %v1708 = vadd.f32 %v1518, %v1678
      %v1709 = vadd.f32 %v1519, %v1683
      %v1710 = vadd.f32 %v1520, %v1686
      %v1711 = vadd.f32 %v1521, %v1691
      %v1712 = vadd.f32 %v1522, %v1694
      %s1713 = scalar_lea.vmem %s1, 448
      %v1714 = vld [vmem:[%s1713] sm:$0xf]
      %v1715 = vld [vmem:[%s1713 + $0x4] sm:$0xf]
      %v1716 = vld [vmem:[%s1713 + $0x8] sm:$0xf]
      %v1717 = vld [vmem:[%s1713 + $0xc] sm:$0xf]
      %v1718 = vld [vmem:[%s1713 + $0x10] sm:$0xf]
      %v1719 = vld [vmem:[%s1713 + $0x14] sm:$0xf]
      %v1720 = vld [vmem:[%s1713 + $0x18] sm:$0xf]
      %v1721 = vld [vmem:[%s1713 + $0x1c] sm:$0xf]
      %v1722 = vld [vmem:[%s1713 + $0x20] sm:$0xf]
      %v1723 = vld [vmem:[%s1713 + $0x24] sm:$0xf]
      %v1724 = vld [vmem:[%s1713 + $0x28] sm:$0xf]
      %v1725 = vld [vmem:[%s1713 + $0x2c] sm:$0xf]
      %v1726 = vld [vmem:[%s1713 + $0x30] sm:$0xf]
      %v1727 = vld [vmem:[%s1713 + $0x34] sm:$0xf]
      %v1728 = vld [vmem:[%s1713 + $0x38] sm:$0xf]
      %v1729 = vld [vmem:[%s1713 + $0x3c] sm:$0xf]
      %vm1730 = vsmask.f32 5376
      %v1731 = vrot.slane %v339, 2
      %v1732 = vrot.slane %v335, 3
      %v1733 = vor.u32 %v1731, %v1732
      %v1734 = vrot.slane %v347, 2
      %v1735 = vrot.slane %v343, 3
      %v1736 = vor.u32 %v1734, %v1735
      %v1737 = vsel %vm1730, %v1733, %v1736
      %v1738 = vrot.slane %v355, 2
      %v1739 = vrot.slane %v351, 3
      %v1740 = vor.u32 %v1738, %v1739
      %v1741 = vsel %vm1730, %v1736, %v1740
      %v1742 = vrot.slane %v363, 2
      %v1743 = vrot.slane %v359, 3
      %v1744 = vor.u32 %v1742, %v1743
      %v1745 = vsel %vm1730, %v1740, %v1744
      %v1746 = vrot.slane %v371, 2
      %v1747 = vrot.slane %v367, 3
      %v1748 = vor.u32 %v1746, %v1747
      %v1749 = vsel %vm1730, %v1744, %v1748
      %v1750 = vrot.slane %v379, 2
      %v1751 = vrot.slane %v375, 3
      %v1752 = vor.u32 %v1750, %v1751
      %v1753 = vsel %vm1730, %v1748, %v1752
      %v1754 = vrot.slane %v1133, 2
      %v1755 = vrot.slane %v1136, 3
      %v1756 = vor.u32 %v1754, %v1755
      %v1757 = vsel %vm1730, %v1752, %v1756
      %v1759 = vshrl.u32 %v1544, 16
      %v1761 = vrot.slane %v1759, 2
      %v1762 = vshll.u32 %v1544, 16
      %v1764 = vrot.slane %v1762, 3
      %v1765 = vor.u32 %v1761, %v1764
      %v1766 = vsel %vm1730, %v1756, %v1765
      %v1768 = vshrl.u32 %v1545, 16
      %v1770 = vrot.slane %v1768, 2
      %v1771 = vshll.u32 %v1545, 16
      %v1773 = vrot.slane %v1771, 3
      %v1774 = vor.u32 %v1770, %v1773
      %v1775 = vsel %vm1730, %v1765, %v1774
      %v1800 = vunpack.c.l.b16 %v1714
      %v1801 = vunpack.c.l.b16 %v1715
      %v1802 = vunpack.c.l.b16 %v1716
      %v1803 = vunpack.c.l.b16 %v1717
      %v1804 = vunpack.c.l.b16 %v1718
      %v1805 = vunpack.c.l.b16 %v1719
      %v1806 = vunpack.c.l.b16 %v1720
      %v1807 = vunpack.c.l.b16 %v1721
      %v1808 = vunpack.c.l.b16 %v1722
      %v1809 = vunpack.c.l.b16 %v1723
      %v1810 = vunpack.c.l.b16 %v1724
      %v1811 = vunpack.c.l.b16 %v1725
      %v1812 = vunpack.c.l.b16 %v1726
      %v1813 = vunpack.c.l.b16 %v1727
      %v1814 = vunpack.c.l.b16 %v1728
      %v1815 = vunpack.c.l.b16 %v1729
      %v1816 = vpack.c.b16 %v1801, %v1800
      %v1817 = vpack.c.b16 %v1803, %v1802
      %v1818 = vpack.c.b16 %v1805, %v1804
      %v1819 = vpack.c.b16 %v1807, %v1806
      %v1820 = vpack.c.b16 %v1809, %v1808
      %v1821 = vpack.c.b16 %v1811, %v1810
      %v1822 = vpack.c.b16 %v1813, %v1812
      %v1823 = vpack.c.b16 %v1815, %v1814
      %1832 = vmatprep.subr.bf16.mxu0 0
      %1833 = vmatpush1.bf16.msra.mxu0 %v1823
      %1834 = vmatprep.subr.bf16.mxu0 0
      %1835 = vmatpush1.bf16.msra.mxu0 %v1822
      %1836 = vmatprep.subr.bf16.mxu0 0
      %1837 = vmatpush1.bf16.msra.mxu0 %v1821
      %1838 = vmatprep.subr.bf16.mxu0 0
      %1839 = vmatpush1.bf16.msra.mxu0 %v1820
      %1840 = vmatprep.subr.bf16.mxu0 0
      %1841 = vmatpush1.bf16.msra.mxu0 %v1819
      %1842 = vmatprep.subr.bf16.mxu0 0
      %1843 = vmatpush1.bf16.msra.mxu0 %v1818
      %1844 = vmatprep.subr.bf16.mxu0 0
      %1845 = vmatpush1.bf16.msra.mxu0 %v1817
      %1846 = vmatprep.subr.bf16.mxu0 0
      %1847 = vmatpush1.bf16.msra.mxu0 %v1816
      %1848 = vmatprep.subr.bf16.mxu0 0
      %1849 = vmatpush2.bf16.msra.mxu0 0
      %1850 = vmatprep.subr.bf16.mxu0 0
      %1851 = vmatpush2.bf16.msra.mxu0 0
      %1852 = vmatprep.subr.bf16.mxu0 0
      %1853 = vmatpush2.bf16.msra.mxu0 0
      %1854 = vmatprep.subr.bf16.mxu0 0
      %1855 = vmatpush2.bf16.msra.mxu0 0
      %1856 = vmatprep.subr.bf16.mxu0 0
      %1857 = vmatpush2.bf16.msra.mxu0 0
      %1858 = vmatprep.subr.bf16.mxu0 0
      %1859 = vmatpush2.bf16.msra.mxu0 0
      %1860 = vmatprep.subr.bf16.mxu0 0
      %1861 = vmatpush2.bf16.msra.mxu0 0
      %1862 = vmatprep.subr.bf16.mxu0 0
      %1863 = vmatpush2.bf16.msra.mxu0 0
      %1864 = vmatprep.mubr.bf16.mxu0 0
      %1865 = vmatmul.mubr.bf16.gmra.mxu0 %v1737
      %v1866 = vpop.f32.mrf.mxu0
      %v1867 = vadd.f32 0.0, %v1866
      %v1868 = vpop.f32.mrf.mxu0
      %v1869 = vpop.f32.mrf.mxu0
      %v1870 = vadd.f32 0.0, %v1869
      %v1871 = vpop.f32.mrf.mxu0
      %1872 = vmatprep.mubr.bf16.mxu0 0
      %1873 = vmatmul.mubr.bf16.gmra.mxu0 %v1741
      %v1874 = vpop.f32.mrf.mxu0
      %v1875 = vadd.f32 0.0, %v1874
      %v1876 = vpop.f32.mrf.mxu0
      %v1877 = vpop.f32.mrf.mxu0
      %v1878 = vadd.f32 0.0, %v1877
      %v1879 = vpop.f32.mrf.mxu0
      %1880 = vmatprep.mubr.bf16.mxu0 0
      %1881 = vmatmul.mubr.bf16.gmra.mxu0 %v1745
      %v1882 = vpop.f32.mrf.mxu0
      %v1883 = vadd.f32 0.0, %v1882
      %v1884 = vpop.f32.mrf.mxu0
      %v1885 = vpop.f32.mrf.mxu0
      %v1886 = vadd.f32 0.0, %v1885
      %v1887 = vpop.f32.mrf.mxu0
      %1888 = vmatprep.mubr.bf16.mxu0 0
      %1889 = vmatmul.mubr.bf16.gmra.mxu0 %v1749
      %v1890 = vpop.f32.mrf.mxu0
      %v1891 = vadd.f32 0.0, %v1890
      %v1892 = vpop.f32.mrf.mxu0
      %v1893 = vpop.f32.mrf.mxu0
      %v1894 = vadd.f32 0.0, %v1893
      %v1895 = vpop.f32.mrf.mxu0
      %1896 = vmatprep.mubr.bf16.mxu0 0
      %1897 = vmatmul.mubr.bf16.gmra.mxu0 %v1753
      %v1898 = vpop.f32.mrf.mxu0
      %v1899 = vadd.f32 0.0, %v1898
      %v1900 = vpop.f32.mrf.mxu0
      %v1901 = vpop.f32.mrf.mxu0
      %v1902 = vadd.f32 0.0, %v1901
      %v1903 = vpop.f32.mrf.mxu0
      %1904 = vmatprep.mubr.bf16.mxu0 0
      %1905 = vmatmul.mubr.bf16.gmra.mxu0 %v1757
      %v1906 = vpop.f32.mrf.mxu0
      %v1907 = vadd.f32 0.0, %v1906
      %v1908 = vpop.f32.mrf.mxu0
      %v1909 = vpop.f32.mrf.mxu0
      %v1910 = vadd.f32 0.0, %v1909
      %v1911 = vpop.f32.mrf.mxu0
      %1912 = vmatprep.mubr.bf16.mxu0 0
      %1913 = vmatmul.mubr.bf16.gmra.mxu0 %v1766
      %v1914 = vpop.f32.mrf.mxu0
      %v1915 = vadd.f32 0.0, %v1914
      %v1916 = vpop.f32.mrf.mxu0
      %v1917 = vpop.f32.mrf.mxu0
      %v1918 = vadd.f32 0.0, %v1917
      %v1919 = vpop.f32.mrf.mxu0
      %1920 = vmatprep.mubr.bf16.mxu0 0
      %1921 = vmatmul.mubr.bf16.gmra.mxu0 %v1775
      %v1922 = vpop.f32.mrf.mxu0
      %v1923 = vadd.f32 0.0, %v1922
      %v1924 = vpop.f32.mrf.mxu0
      %v1925 = vpop.f32.mrf.mxu0
      %v1926 = vadd.f32 0.0, %v1925
      %v1927 = vpop.f32.mrf.mxu0
      %1928 = vdwg.mxu0
      %v1929 = vadd.f32 %v1697, %v1867
      %v1930 = vadd.f32 %v1698, %v1870
      %v1931 = vadd.f32 %v1699, %v1875
      %v1932 = vadd.f32 %v1700, %v1878
      %v1933 = vadd.f32 %v1701, %v1883
      %v1934 = vadd.f32 %v1702, %v1886
      %v1935 = vadd.f32 %v1703, %v1891
      %v1936 = vadd.f32 %v1704, %v1894
      %v1937 = vadd.f32 %v1705, %v1899
      %v1938 = vadd.f32 %v1706, %v1902
      %v1939 = vadd.f32 %v1707, %v1907
      %v1940 = vadd.f32 %v1708, %v1910
      %v1941 = vadd.f32 %v1709, %v1915
      %v1942 = vadd.f32 %v1710, %v1918
      %v1943 = vadd.f32 %v1711, %v1923
      %v1944 = vadd.f32 %v1712, %v1926
      %s1945 = scalar_lea.vmem %s1, 512
      %v1946 = vld [vmem:[%s1945] sm:$0xf]
      %v1947 = vld [vmem:[%s1945 + $0x4] sm:$0xf]
      %v1948 = vld [vmem:[%s1945 + $0x8] sm:$0xf]
      %v1949 = vld [vmem:[%s1945 + $0xc] sm:$0xf]
      %v1950 = vld [vmem:[%s1945 + $0x10] sm:$0xf]
      %v1951 = vld [vmem:[%s1945 + $0x14] sm:$0xf]
      %v1952 = vld [vmem:[%s1945 + $0x18] sm:$0xf]
      %v1953 = vld [vmem:[%s1945 + $0x1c] sm:$0xf]
      %v1954 = vld [vmem:[%s1945 + $0x20] sm:$0xf]
      %v1955 = vld [vmem:[%s1945 + $0x24] sm:$0xf]
      %v1956 = vld [vmem:[%s1945 + $0x28] sm:$0xf]
      %v1957 = vld [vmem:[%s1945 + $0x2c] sm:$0xf]
      %v1958 = vld [vmem:[%s1945 + $0x30] sm:$0xf]
      %v1959 = vld [vmem:[%s1945 + $0x34] sm:$0xf]
      %v1960 = vld [vmem:[%s1945 + $0x38] sm:$0xf]
      %v1961 = vld [vmem:[%s1945 + $0x3c] sm:$0xf]
      %vm1962 = vcmask 1044480
      %v1963 = vrot.slane %v311, 3
      %v1964 = vrot.slane %v312, 3
      %v1965 = vsel %vm1962, %v1963, %v1964
      %v1966 = vrot.slane %v313, 3
      %v1967 = vsel %vm1962, %v1964, %v1966
      %v1968 = vrot.slane %v314, 3
      %v1969 = vsel %vm1962, %v1966, %v1968
      %v1970 = vrot.slane %v315, 3
      %v1971 = vsel %vm1962, %v1968, %v1970
      %v1972 = vrot.slane %v316, 3
      %v1973 = vsel %vm1962, %v1970, %v1972
      %v1974 = vrot.slane %v918, 3
      %v1975 = vsel %vm1962, %v1972, %v1974
      %v1976 = vrot.slane %v1544, 3
      %v1977 = vsel %vm1962, %v1974, %v1976
      %v1978 = vrot.slane %v1545, 3
      %v1979 = vsel %vm1962, %v1976, %v1978
      %v2004 = vunpack.c.l.b16 %v1946
      %v2005 = vunpack.c.l.b16 %v1947
      %v2006 = vunpack.c.l.b16 %v1948
      %v2007 = vunpack.c.l.b16 %v1949
      %v2008 = vunpack.c.l.b16 %v1950
      %v2009 = vunpack.c.l.b16 %v1951
      %v2010 = vunpack.c.l.b16 %v1952
      %v2011 = vunpack.c.l.b16 %v1953
      %v2012 = vunpack.c.l.b16 %v1954
      %v2013 = vunpack.c.l.b16 %v1955
      %v2014 = vunpack.c.l.b16 %v1956
      %v2015 = vunpack.c.l.b16 %v1957
      %v2016 = vunpack.c.l.b16 %v1958
      %v2017 = vunpack.c.l.b16 %v1959
      %v2018 = vunpack.c.l.b16 %v1960
      %v2019 = vunpack.c.l.b16 %v1961
      %v2020 = vpack.c.b16 %v2005, %v2004
      %v2021 = vpack.c.b16 %v2007, %v2006
      %v2022 = vpack.c.b16 %v2009, %v2008
      %v2023 = vpack.c.b16 %v2011, %v2010
      %v2024 = vpack.c.b16 %v2013, %v2012
      %v2025 = vpack.c.b16 %v2015, %v2014
      %v2026 = vpack.c.b16 %v2017, %v2016
      %v2027 = vpack.c.b16 %v2019, %v2018
      %2036 = vmatprep.subr.bf16.mxu0 0
      %2037 = vmatpush1.bf16.msra.mxu0 %v2027
      %2038 = vmatprep.subr.bf16.mxu0 0
      %2039 = vmatpush1.bf16.msra.mxu0 %v2026
      %2040 = vmatprep.subr.bf16.mxu0 0
      %2041 = vmatpush1.bf16.msra.mxu0 %v2025
      %2042 = vmatprep.subr.bf16.mxu0 0
      %2043 = vmatpush1.bf16.msra.mxu0 %v2024
      %2044 = vmatprep.subr.bf16.mxu0 0
      %2045 = vmatpush1.bf16.msra.mxu0 %v2023
      %2046 = vmatprep.subr.bf16.mxu0 0
      %2047 = vmatpush1.bf16.msra.mxu0 %v2022
      %2048 = vmatprep.subr.bf16.mxu0 0
      %2049 = vmatpush1.bf16.msra.mxu0 %v2021
      %2050 = vmatprep.subr.bf16.mxu0 0
      %2051 = vmatpush1.bf16.msra.mxu0 %v2020
      %2052 = vmatprep.subr.bf16.mxu0 0
      %2053 = vmatpush2.bf16.msra.mxu0 0
      %2054 = vmatprep.subr.bf16.mxu0 0
      %2055 = vmatpush2.bf16.msra.mxu0 0
      %2056 = vmatprep.subr.bf16.mxu0 0
      %2057 = vmatpush2.bf16.msra.mxu0 0
      %2058 = vmatprep.subr.bf16.mxu0 0
      %2059 = vmatpush2.bf16.msra.mxu0 0
      %2060 = vmatprep.subr.bf16.mxu0 0
      %2061 = vmatpush2.bf16.msra.mxu0 0
      %2062 = vmatprep.subr.bf16.mxu0 0
      %2063 = vmatpush2.bf16.msra.mxu0 0
      %2064 = vmatprep.subr.bf16.mxu0 0
      %2065 = vmatpush2.bf16.msra.mxu0 0
      %2066 = vmatprep.subr.bf16.mxu0 0
      %2067 = vmatpush2.bf16.msra.mxu0 0
      %2068 = vmatprep.mubr.bf16.mxu0 0
      %2069 = vmatmul.mubr.bf16.gmra.mxu0 %v1965
      %v2070 = vpop.f32.mrf.mxu0
      %v2071 = vadd.f32 0.0, %v2070
      %v2072 = vpop.f32.mrf.mxu0
      %v2073 = vpop.f32.mrf.mxu0
      %v2074 = vadd.f32 0.0, %v2073
      %v2075 = vpop.f32.mrf.mxu0
      %2076 = vmatprep.mubr.bf16.mxu0 0
      %2077 = vmatmul.mubr.bf16.gmra.mxu0 %v1967
      %v2078 = vpop.f32.mrf.mxu0
      %v2079 = vadd.f32 0.0, %v2078
      %v2080 = vpop.f32.mrf.mxu0
      %v2081 = vpop.f32.mrf.mxu0
      %v2082 = vadd.f32 0.0, %v2081
      %v2083 = vpop.f32.mrf.mxu0
      %2084 = vmatprep.mubr.bf16.mxu0 0
      %2085 = vmatmul.mubr.bf16.gmra.mxu0 %v1969
      %v2086 = vpop.f32.mrf.mxu0
      %v2087 = vadd.f32 0.0, %v2086
      %v2088 = vpop.f32.mrf.mxu0
      %v2089 = vpop.f32.mrf.mxu0
      %v2090 = vadd.f32 0.0, %v2089
      %v2091 = vpop.f32.mrf.mxu0
      %2092 = vmatprep.mubr.bf16.mxu0 0
      %2093 = vmatmul.mubr.bf16.gmra.mxu0 %v1971
      %v2094 = vpop.f32.mrf.mxu0
      %v2095 = vadd.f32 0.0, %v2094
      %v2096 = vpop.f32.mrf.mxu0
      %v2097 = vpop.f32.mrf.mxu0
      %v2098 = vadd.f32 0.0, %v2097
      %v2099 = vpop.f32.mrf.mxu0
      %2100 = vmatprep.mubr.bf16.mxu0 0
      %2101 = vmatmul.mubr.bf16.gmra.mxu0 %v1973
      %v2102 = vpop.f32.mrf.mxu0
      %v2103 = vadd.f32 0.0, %v2102
      %v2104 = vpop.f32.mrf.mxu0
      %v2105 = vpop.f32.mrf.mxu0
      %v2106 = vadd.f32 0.0, %v2105
      %v2107 = vpop.f32.mrf.mxu0
      %2108 = vmatprep.mubr.bf16.mxu0 0
      %2109 = vmatmul.mubr.bf16.gmra.mxu0 %v1975
      %v2110 = vpop.f32.mrf.mxu0
      %v2111 = vadd.f32 0.0, %v2110
      %v2112 = vpop.f32.mrf.mxu0
      %v2113 = vpop.f32.mrf.mxu0
      %v2114 = vadd.f32 0.0, %v2113
      %v2115 = vpop.f32.mrf.mxu0
      %2116 = vmatprep.mubr.bf16.mxu0 0
      %2117 = vmatmul.mubr.bf16.gmra.mxu0 %v1977
      %v2118 = vpop.f32.mrf.mxu0
      %v2119 = vadd.f32 0.0, %v2118
      %v2120 = vpop.f32.mrf.mxu0
      %v2121 = vpop.f32.mrf.mxu0
      %v2122 = vadd.f32 0.0, %v2121
      %v2123 = vpop.f32.mrf.mxu0
      %2124 = vmatprep.mubr.bf16.mxu0 0
      %2125 = vmatmul.mubr.bf16.gmra.mxu0 %v1979
      %v2126 = vpop.f32.mrf.mxu0
      %v2127 = vadd.f32 0.0, %v2126
      %v2128 = vpop.f32.mrf.mxu0
      %v2129 = vpop.f32.mrf.mxu0
      %v2130 = vadd.f32 0.0, %v2129
      %v2131 = vpop.f32.mrf.mxu0
      %2132 = vdwg.mxu0
      %v2133 = vadd.f32 %v1929, %v2071
      %v2134 = vadd.f32 %v1930, %v2074
      %v2135 = vadd.f32 %v1931, %v2079
      %v2136 = vadd.f32 %v1932, %v2082
      %v2137 = vadd.f32 %v1933, %v2087
      %v2138 = vadd.f32 %v1934, %v2090
      %v2139 = vadd.f32 %v1935, %v2095
      %v2140 = vadd.f32 %v1936, %v2098
      %v2141 = vadd.f32 %v1937, %v2103
      %v2142 = vadd.f32 %v1938, %v2106
      %v2143 = vadd.f32 %v1939, %v2111
      %v2144 = vadd.f32 %v1940, %v2114
      %v2145 = vadd.f32 %v1941, %v2119
      %v2146 = vadd.f32 %v1942, %v2122
      %v2147 = vadd.f32 %v1943, %v2127
      %v2148 = vadd.f32 %v1944, %v2130
      %v2149 = vlaneseq
      %v2150 = vshrl.u32 %v2149, 7
      %v2151 = vadd.s32 %v2150, 8
      %v2152 = vadd.s32 %v2150, 16
      %v2153 = vadd.s32 %v2150, 24
      %v2154 = vadd.s32 %v2150, 32
      %v2155 = vadd.s32 %v2150, 40
      %v2156 = vadd.s32 %v2150, 48
      %v2157 = vadd.s32 %v2150, 56
      %v2158 = vadd.s32 %v2150, 64
      %v2159 = vadd.s32 %v2150, 72
      %v2160 = vadd.s32 %v2150, 80
      %v2161 = vadd.s32 %v2150, 88
      %v2162 = vadd.s32 %v2150, 96
      %v2163 = vadd.s32 %v2150, 104
      %v2164 = vadd.s32 %v2150, 112
      %v2165 = vadd.s32 %v2150, 120
      %v2166 = vstv %s216
      %v2167 = vadd.s32 %v2166, %v2150
      %v2168 = vadd.s32 %v2166, %v2151
      %v2169 = vadd.s32 %v2166, %v2152
      %v2170 = vadd.s32 %v2166, %v2153
      %v2171 = vadd.s32 %v2166, %v2154
      %v2172 = vadd.s32 %v2166, %v2155
      %v2173 = vadd.s32 %v2166, %v2156
      %v2174 = vadd.s32 %v2166, %v2157
      %v2175 = vadd.s32 %v2166, %v2158
      %v2176 = vadd.s32 %v2166, %v2159
      %v2177 = vadd.s32 %v2166, %v2160
      %v2178 = vadd.s32 %v2166, %v2161
      %v2179 = vadd.s32 %v2166, %v2162
      %v2180 = vadd.s32 %v2166, %v2163
      %v2181 = vadd.s32 %v2166, %v2164
      %v2182 = vadd.s32 %v2166, %v2165
      %vm2183 = vcmp.lt.s32.totalorder %v2167, 288
      %vm2184 = vcmp.lt.s32.totalorder %v2168, 288
      %vm2185 = vcmp.lt.s32.totalorder %v2169, 288
      %vm2186 = vcmp.lt.s32.totalorder %v2170, 288
      %vm2187 = vcmp.lt.s32.totalorder %v2171, 288
      %vm2188 = vcmp.lt.s32.totalorder %v2172, 288
      %vm2189 = vcmp.lt.s32.totalorder %v2173, 288
      %vm2190 = vcmp.lt.s32.totalorder %v2174, 288
      %vm2191 = vcmp.lt.s32.totalorder %v2175, 288
      %vm2192 = vcmp.lt.s32.totalorder %v2176, 288
      %vm2193 = vcmp.lt.s32.totalorder %v2177, 288
      %vm2194 = vcmp.lt.s32.totalorder %v2178, 288
      %vm2195 = vcmp.lt.s32.totalorder %v2179, 288
      %vm2196 = vcmp.lt.s32.totalorder %v2180, 288
      %vm2197 = vcmp.lt.s32.totalorder %v2181, 288
      %vm2198 = vcmp.lt.s32.totalorder %v2182, 288
      %vm2199 = vcmp.lt.s32.totalorder %v2167, 0
      %v2200 = vsub.s32 0, %v2167
      %v2201 = vsel %vm2199, %v2200, %v2167
      %v2202 = vmul.u32.u64.compose %v2201, 3817748708
      %v2203 = vextract.low.u32 %v2202
      %v2204 = vextract.high.u32 %v2202
      %v2205 = vshrl.u32 %v2204, 4
      %v2206 = vmul.u32 %v2205, 18
      %v2207 = vsub.s32 %v2201, %v2206
      %v2208 = vsub.s32 0, %v2207
      %v2209 = vsel %vm2199, %v2208, %v2207
      %vm2210 = vcmp.lt.s32.totalorder %v2168, 0
      %v2211 = vsub.s32 0, %v2168
      %v2212 = vsel %vm2210, %v2211, %v2168
      %v2213 = vmul.u32.u64.compose %v2212, 3817748708
      %v2214 = vextract.low.u32 %v2213
      %v2215 = vextract.high.u32 %v2213
      %v2216 = vshrl.u32 %v2215, 4
      %v2217 = vmul.u32 %v2216, 18
      %v2218 = vsub.s32 %v2212, %v2217
      %v2219 = vsub.s32 0, %v2218
      %v2220 = vsel %vm2210, %v2219, %v2218
      %vm2221 = vcmp.lt.s32.totalorder %v2169, 0
      %v2222 = vsub.s32 0, %v2169
      %v2223 = vsel %vm2221, %v2222, %v2169
      %v2224 = vmul.u32.u64.compose %v2223, 3817748708
      %v2225 = vextract.low.u32 %v2224
      %v2226 = vextract.high.u32 %v2224
      %v2227 = vshrl.u32 %v2226, 4
      %v2228 = vmul.u32 %v2227, 18
      %v2229 = vsub.s32 %v2223, %v2228
      %v2230 = vsub.s32 0, %v2229
      %v2231 = vsel %vm2221, %v2230, %v2229
      %vm2232 = vcmp.lt.s32.totalorder %v2170, 0
      %v2233 = vsub.s32 0, %v2170
      %v2234 = vsel %vm2232, %v2233, %v2170
      %v2235 = vmul.u32.u64.compose %v2234, 3817748708
      %v2236 = vextract.low.u32 %v2235
      %v2237 = vextract.high.u32 %v2235
      %v2238 = vshrl.u32 %v2237, 4
      %v2239 = vmul.u32 %v2238, 18
      %v2240 = vsub.s32 %v2234, %v2239
      %v2241 = vsub.s32 0, %v2240
      %v2242 = vsel %vm2232, %v2241, %v2240
      %vm2243 = vcmp.lt.s32.totalorder %v2171, 0
      %v2244 = vsub.s32 0, %v2171
      %v2245 = vsel %vm2243, %v2244, %v2171
      %v2246 = vmul.u32.u64.compose %v2245, 3817748708
      %v2247 = vextract.low.u32 %v2246
      %v2248 = vextract.high.u32 %v2246
      %v2249 = vshrl.u32 %v2248, 4
      %v2250 = vmul.u32 %v2249, 18
      %v2251 = vsub.s32 %v2245, %v2250
      %v2252 = vsub.s32 0, %v2251
      %v2253 = vsel %vm2243, %v2252, %v2251
      %vm2254 = vcmp.lt.s32.totalorder %v2172, 0
      %v2255 = vsub.s32 0, %v2172
      %v2256 = vsel %vm2254, %v2255, %v2172
      %v2257 = vmul.u32.u64.compose %v2256, 3817748708
      %v2258 = vextract.low.u32 %v2257
      %v2259 = vextract.high.u32 %v2257
      %v2260 = vshrl.u32 %v2259, 4
      %v2261 = vmul.u32 %v2260, 18
      %v2262 = vsub.s32 %v2256, %v2261
      %v2263 = vsub.s32 0, %v2262
      %v2264 = vsel %vm2254, %v2263, %v2262
      %vm2265 = vcmp.lt.s32.totalorder %v2173, 0
      %v2266 = vsub.s32 0, %v2173
      %v2267 = vsel %vm2265, %v2266, %v2173
      %v2268 = vmul.u32.u64.compose %v2267, 3817748708
      %v2269 = vextract.low.u32 %v2268
      %v2270 = vextract.high.u32 %v2268
      %v2271 = vshrl.u32 %v2270, 4
      %v2272 = vmul.u32 %v2271, 18
      %v2273 = vsub.s32 %v2267, %v2272
      %v2274 = vsub.s32 0, %v2273
      %v2275 = vsel %vm2265, %v2274, %v2273
      %vm2276 = vcmp.lt.s32.totalorder %v2174, 0
      %v2277 = vsub.s32 0, %v2174
      %v2278 = vsel %vm2276, %v2277, %v2174
      %v2279 = vmul.u32.u64.compose %v2278, 3817748708
      %v2280 = vextract.low.u32 %v2279
      %v2281 = vextract.high.u32 %v2279
      %v2282 = vshrl.u32 %v2281, 4
      %v2283 = vmul.u32 %v2282, 18
      %v2284 = vsub.s32 %v2278, %v2283
      %v2285 = vsub.s32 0, %v2284
      %v2286 = vsel %vm2276, %v2285, %v2284
      %vm2287 = vcmp.lt.s32.totalorder %v2175, 0
      %v2288 = vsub.s32 0, %v2175
      %v2289 = vsel %vm2287, %v2288, %v2175
      %v2290 = vmul.u32.u64.compose %v2289, 3817748708
      %v2291 = vextract.low.u32 %v2290
      %v2292 = vextract.high.u32 %v2290
      %v2293 = vshrl.u32 %v2292, 4
      %v2294 = vmul.u32 %v2293, 18
      %v2295 = vsub.s32 %v2289, %v2294
      %v2296 = vsub.s32 0, %v2295
      %v2297 = vsel %vm2287, %v2296, %v2295
      %vm2298 = vcmp.lt.s32.totalorder %v2176, 0
      %v2299 = vsub.s32 0, %v2176
      %v2300 = vsel %vm2298, %v2299, %v2176
      %v2301 = vmul.u32.u64.compose %v2300, 3817748708
      %v2302 = vextract.low.u32 %v2301
      %v2303 = vextract.high.u32 %v2301
      %v2304 = vshrl.u32 %v2303, 4
      %v2305 = vmul.u32 %v2304, 18
      %v2306 = vsub.s32 %v2300, %v2305
      %v2307 = vsub.s32 0, %v2306
      %v2308 = vsel %vm2298, %v2307, %v2306
      %vm2309 = vcmp.lt.s32.totalorder %v2177, 0
      %v2310 = vsub.s32 0, %v2177
      %v2311 = vsel %vm2309, %v2310, %v2177
      %v2312 = vmul.u32.u64.compose %v2311, 3817748708
      %v2313 = vextract.low.u32 %v2312
      %v2314 = vextract.high.u32 %v2312
      %v2315 = vshrl.u32 %v2314, 4
      %v2316 = vmul.u32 %v2315, 18
      %v2317 = vsub.s32 %v2311, %v2316
      %v2318 = vsub.s32 0, %v2317
      %v2319 = vsel %vm2309, %v2318, %v2317
      %vm2320 = vcmp.lt.s32.totalorder %v2178, 0
      %v2321 = vsub.s32 0, %v2178
      %v2322 = vsel %vm2320, %v2321, %v2178
      %v2323 = vmul.u32.u64.compose %v2322, 3817748708
      %v2324 = vextract.low.u32 %v2323
      %v2325 = vextract.high.u32 %v2323
      %v2326 = vshrl.u32 %v2325, 4
      %v2327 = vmul.u32 %v2326, 18
      %v2328 = vsub.s32 %v2322, %v2327
      %v2329 = vsub.s32 0, %v2328
      %v2330 = vsel %vm2320, %v2329, %v2328
      %vm2331 = vcmp.lt.s32.totalorder %v2179, 0
      %v2332 = vsub.s32 0, %v2179
      %v2333 = vsel %vm2331, %v2332, %v2179
      %v2334 = vmul.u32.u64.compose %v2333, 3817748708
      %v2335 = vextract.low.u32 %v2334
      %v2336 = vextract.high.u32 %v2334
      %v2337 = vshrl.u32 %v2336, 4
      %v2338 = vmul.u32 %v2337, 18
      %v2339 = vsub.s32 %v2333, %v2338
      %v2340 = vsub.s32 0, %v2339
      %v2341 = vsel %vm2331, %v2340, %v2339
      %vm2342 = vcmp.lt.s32.totalorder %v2180, 0
      %v2343 = vsub.s32 0, %v2180
      %v2344 = vsel %vm2342, %v2343, %v2180
      %v2345 = vmul.u32.u64.compose %v2344, 3817748708
      %v2346 = vextract.low.u32 %v2345
      %v2347 = vextract.high.u32 %v2345
      %v2348 = vshrl.u32 %v2347, 4
      %v2349 = vmul.u32 %v2348, 18
      %v2350 = vsub.s32 %v2344, %v2349
      %v2351 = vsub.s32 0, %v2350
      %v2352 = vsel %vm2342, %v2351, %v2350
      %vm2353 = vcmp.lt.s32.totalorder %v2181, 0
      %v2354 = vsub.s32 0, %v2181
      %v2355 = vsel %vm2353, %v2354, %v2181
      %v2356 = vmul.u32.u64.compose %v2355, 3817748708
      %v2357 = vextract.low.u32 %v2356
      %v2358 = vextract.high.u32 %v2356
      %v2359 = vshrl.u32 %v2358, 4
      %v2360 = vmul.u32 %v2359, 18
      %v2361 = vsub.s32 %v2355, %v2360
      %v2362 = vsub.s32 0, %v2361
      %v2363 = vsel %vm2353, %v2362, %v2361
      %vm2364 = vcmp.lt.s32.totalorder %v2182, 0
      %v2365 = vsub.s32 0, %v2182
      %v2366 = vsel %vm2364, %v2365, %v2182
      %v2367 = vmul.u32.u64.compose %v2366, 3817748708
      %v2368 = vextract.low.u32 %v2367
      %v2369 = vextract.high.u32 %v2367
      %v2370 = vshrl.u32 %v2369, 4
      %v2371 = vmul.u32 %v2370, 18
      %v2372 = vsub.s32 %v2366, %v2371
      %v2373 = vsub.s32 0, %v2372
      %v2374 = vsel %vm2364, %v2373, %v2372
      %vm2375 = vcmp.ne.s32.totalorder %v2209, 0
      %vm2376 = vcmp.ne.s32.totalorder %v2220, 0
      %vm2377 = vcmp.ne.s32.totalorder %v2231, 0
      %vm2378 = vcmp.ne.s32.totalorder %v2242, 0
      %vm2379 = vcmp.ne.s32.totalorder %v2253, 0
      %vm2380 = vcmp.ne.s32.totalorder %v2264, 0
      %vm2381 = vcmp.ne.s32.totalorder %v2275, 0
      %vm2382 = vcmp.ne.s32.totalorder %v2286, 0
      %vm2383 = vcmp.ne.s32.totalorder %v2297, 0
      %vm2384 = vcmp.ne.s32.totalorder %v2308, 0
      %vm2385 = vcmp.ne.s32.totalorder %v2319, 0
      %vm2386 = vcmp.ne.s32.totalorder %v2330, 0
      %vm2387 = vcmp.ne.s32.totalorder %v2341, 0
      %vm2388 = vcmp.ne.s32.totalorder %v2352, 0
      %vm2389 = vcmp.ne.s32.totalorder %v2363, 0
      %vm2390 = vcmp.ne.s32.totalorder %v2374, 0
      %vm2391 = vcmp.lt.s32.totalorder %v2209, 0
      %vm2392 = vcmp.lt.s32.totalorder %v2220, 0
      %vm2393 = vcmp.lt.s32.totalorder %v2231, 0
      %vm2394 = vcmp.lt.s32.totalorder %v2242, 0
      %vm2395 = vcmp.lt.s32.totalorder %v2253, 0
      %vm2396 = vcmp.lt.s32.totalorder %v2264, 0
      %vm2397 = vcmp.lt.s32.totalorder %v2275, 0
      %vm2398 = vcmp.lt.s32.totalorder %v2286, 0
      %vm2399 = vcmp.lt.s32.totalorder %v2297, 0
      %vm2400 = vcmp.lt.s32.totalorder %v2308, 0
      %vm2401 = vcmp.lt.s32.totalorder %v2319, 0
      %vm2402 = vcmp.lt.s32.totalorder %v2330, 0
      %vm2403 = vcmp.lt.s32.totalorder %v2341, 0
      %vm2404 = vcmp.lt.s32.totalorder %v2352, 0
      %vm2405 = vcmp.lt.s32.totalorder %v2363, 0
      %vm2406 = vcmp.lt.s32.totalorder %v2374, 0
      %vm2407 = vmand %vm2391, %vm2375
      %vm2408 = vmand %vm2392, %vm2376
      %vm2409 = vmand %vm2393, %vm2377
      %vm2410 = vmand %vm2394, %vm2378
      %vm2411 = vmand %vm2395, %vm2379
      %vm2412 = vmand %vm2396, %vm2380
      %vm2413 = vmand %vm2397, %vm2381
      %vm2414 = vmand %vm2398, %vm2382
      %vm2415 = vmand %vm2399, %vm2383
      %vm2416 = vmand %vm2400, %vm2384
      %vm2417 = vmand %vm2401, %vm2385
      %vm2418 = vmand %vm2402, %vm2386
      %vm2419 = vmand %vm2403, %vm2387
      %vm2420 = vmand %vm2404, %vm2388
      %vm2421 = vmand %vm2405, %vm2389
      %vm2422 = vmand %vm2406, %vm2390
      %v2423 = vadd.s32 %v2209, 18
      %v2424 = vadd.s32 %v2220, 18
      %v2425 = vadd.s32 %v2231, 18
      %v2426 = vadd.s32 %v2242, 18
      %v2427 = vadd.s32 %v2253, 18
      %v2428 = vadd.s32 %v2264, 18
      %v2429 = vadd.s32 %v2275, 18
      %v2430 = vadd.s32 %v2286, 18
      %v2431 = vadd.s32 %v2297, 18
      %v2432 = vadd.s32 %v2308, 18
      %v2433 = vadd.s32 %v2319, 18
      %v2434 = vadd.s32 %v2330, 18
      %v2435 = vadd.s32 %v2341, 18
      %v2436 = vadd.s32 %v2352, 18
      %v2437 = vadd.s32 %v2363, 18
      %v2438 = vadd.s32 %v2374, 18
      %v2439 = vsel %vm2407, %v2423, %v2209
      %v2440 = vsel %vm2408, %v2424, %v2220
      %v2441 = vsel %vm2409, %v2425, %v2231
      %v2442 = vsel %vm2410, %v2426, %v2242
      %v2443 = vsel %vm2411, %v2427, %v2253
      %v2444 = vsel %vm2412, %v2428, %v2264
      %v2445 = vsel %vm2413, %v2429, %v2275
      %v2446 = vsel %vm2414, %v2430, %v2286
      %v2447 = vsel %vm2415, %v2431, %v2297
      %v2448 = vsel %vm2416, %v2432, %v2308
      %v2449 = vsel %vm2417, %v2433, %v2319
      %v2450 = vsel %vm2418, %v2434, %v2330
      %v2451 = vsel %vm2419, %v2435, %v2341
      %v2452 = vsel %vm2420, %v2436, %v2352
      %v2453 = vsel %vm2421, %v2437, %v2363
      %v2454 = vsel %vm2422, %v2438, %v2374
      %vm2455 = vcmp.lt.s32.totalorder %v2439, 16
      %vm2456 = vcmp.lt.s32.totalorder %v2440, 16
      %vm2457 = vcmp.lt.s32.totalorder %v2441, 16
      %vm2458 = vcmp.lt.s32.totalorder %v2442, 16
      %vm2459 = vcmp.lt.s32.totalorder %v2443, 16
      %vm2460 = vcmp.lt.s32.totalorder %v2444, 16
      %vm2461 = vcmp.lt.s32.totalorder %v2445, 16
      %vm2462 = vcmp.lt.s32.totalorder %v2446, 16
      %vm2463 = vcmp.lt.s32.totalorder %v2447, 16
      %vm2464 = vcmp.lt.s32.totalorder %v2448, 16
      %vm2465 = vcmp.lt.s32.totalorder %v2449, 16
      %vm2466 = vcmp.lt.s32.totalorder %v2450, 16
      %vm2467 = vcmp.lt.s32.totalorder %v2451, 16
      %vm2468 = vcmp.lt.s32.totalorder %v2452, 16
      %vm2469 = vcmp.lt.s32.totalorder %v2453, 16
      %vm2470 = vcmp.lt.s32.totalorder %v2454, 16
      %vm2471 = vmand %vm2183, %vm2455
      %vm2472 = vmand %vm2184, %vm2456
      %vm2473 = vmand %vm2185, %vm2457
      %vm2474 = vmand %vm2186, %vm2458
      %vm2475 = vmand %vm2187, %vm2459
      %vm2476 = vmand %vm2188, %vm2460
      %vm2477 = vmand %vm2189, %vm2461
      %vm2478 = vmand %vm2190, %vm2462
      %vm2479 = vmand %vm2191, %vm2463
      %vm2480 = vmand %vm2192, %vm2464
      %vm2481 = vmand %vm2193, %vm2465
      %vm2482 = vmand %vm2194, %vm2466
      %vm2483 = vmand %vm2195, %vm2467
      %vm2484 = vmand %vm2196, %vm2468
      %vm2485 = vmand %vm2197, %vm2469
      %vm2486 = vmand %vm2198, %vm2470
      %v2487 = vsel %vm2471, 1, 0
      %v2488 = vsel %vm2472, 1, 0
      %v2489 = vsel %vm2473, 1, 0
      %v2490 = vsel %vm2474, 1, 0
      %v2491 = vsel %vm2475, 1, 0
      %v2492 = vsel %vm2476, 1, 0
      %v2493 = vsel %vm2477, 1, 0
      %v2494 = vsel %vm2478, 1, 0
      %v2495 = vsel %vm2479, 1, 0
      %v2496 = vsel %vm2480, 1, 0
      %v2497 = vsel %vm2481, 1, 0
      %v2498 = vsel %vm2482, 1, 0
      %v2499 = vsel %vm2483, 1, 0
      %v2500 = vsel %vm2484, 1, 0
      %v2501 = vsel %vm2485, 1, 0
      %v2502 = vsel %vm2486, 1, 0
      %v2503 = vcvt.s32.f32 %v2487
      %v2504 = vcvt.s32.f32 %v2488
      %v2505 = vcvt.s32.f32 %v2489
      %v2506 = vcvt.s32.f32 %v2490
      %v2507 = vcvt.s32.f32 %v2491
      %v2508 = vcvt.s32.f32 %v2492
      %v2509 = vcvt.s32.f32 %v2493
      %v2510 = vcvt.s32.f32 %v2494
      %v2511 = vcvt.s32.f32 %v2495
      %v2512 = vcvt.s32.f32 %v2496
      %v2513 = vcvt.s32.f32 %v2497
      %v2514 = vcvt.s32.f32 %v2498
      %v2515 = vcvt.s32.f32 %v2499
      %v2516 = vcvt.s32.f32 %v2500
      %v2517 = vcvt.s32.f32 %v2501
      %v2518 = vcvt.s32.f32 %v2502
      %v2519 = vmul.f32 %v2133, %v2503
      %v2520 = vmul.f32 %v2134, %v2504
      %v2521 = vmul.f32 %v2135, %v2505
      %v2522 = vmul.f32 %v2136, %v2506
      %v2523 = vmul.f32 %v2137, %v2507
      %v2524 = vmul.f32 %v2138, %v2508
      %v2525 = vmul.f32 %v2139, %v2509
      %v2526 = vmul.f32 %v2140, %v2510
      %v2527 = vmul.f32 %v2141, %v2511
      %v2528 = vmul.f32 %v2142, %v2512
      %v2529 = vmul.f32 %v2143, %v2513
      %v2530 = vmul.f32 %v2144, %v2514
      %v2531 = vmul.f32 %v2145, %v2515
      %v2532 = vmul.f32 %v2146, %v2516
      %v2533 = vmul.f32 %v2147, %v2517
      %v2534 = vmul.f32 %v2148, %v2518
      %v2535 = vpack.c.bf16 %v2520, %v2519
      %v2536 = vpack.c.bf16 %v2522, %v2521
      %v2537 = vpack.c.bf16 %v2524, %v2523
      %v2538 = vpack.c.bf16 %v2526, %v2525
      %v2539 = vpack.c.bf16 %v2528, %v2527
      %v2540 = vpack.c.bf16 %v2530, %v2529
      %v2541 = vpack.c.bf16 %v2532, %v2531
      %v2542 = vpack.c.bf16 %v2534, %v2533
      %v2551 = vunpack.c.l.b16 %v2535
      %v2552 = vunpack.c.h.b16 %v2535
      %v2553 = vunpack.c.l.b16 %v2536
      %v2554 = vunpack.c.h.b16 %v2536
      %v2555 = vunpack.c.l.b16 %v2537
      %v2556 = vunpack.c.h.b16 %v2537
      %v2557 = vunpack.c.l.b16 %v2538
      %v2558 = vunpack.c.h.b16 %v2538
      %v2559 = vunpack.c.l.b16 %v2539
      %v2560 = vunpack.c.h.b16 %v2539
      %v2561 = vunpack.c.l.b16 %v2540
      %v2562 = vunpack.c.h.b16 %v2540
      %v2563 = vunpack.c.l.b16 %v2541
      %v2564 = vunpack.c.h.b16 %v2541
      %v2565 = vunpack.c.l.b16 %v2542
      %v2566 = vunpack.c.h.b16 %v2542
      %v2567 = vpack.c.b16 %v2551, %v2551
      %v2568 = vpack.c.b16 %v2552, %v2552
      %v2569 = vpack.c.b16 %v2553, %v2553
      %v2570 = vpack.c.b16 %v2554, %v2554
      %v2571 = vpack.c.b16 %v2555, %v2555
      %v2572 = vpack.c.b16 %v2556, %v2556
      %v2573 = vpack.c.b16 %v2557, %v2557
      %v2574 = vpack.c.b16 %v2558, %v2558
      %v2575 = vpack.c.b16 %v2559, %v2559
      %v2576 = vpack.c.b16 %v2560, %v2560
      %v2577 = vpack.c.b16 %v2561, %v2561
      %v2578 = vpack.c.b16 %v2562, %v2562
      %v2579 = vpack.c.b16 %v2563, %v2563
      %v2580 = vpack.c.b16 %v2564, %v2564
      %v2581 = vpack.c.b16 %v2565, %v2565
      %v2582 = vpack.c.b16 %v2566, %v2566
      %2599 = vst [vmem:[%s205] sm:$0xf] %v2567
      %2600 = vst [vmem:[%s205 + $0x4] sm:$0xf] %v2568
      %2601 = vst [vmem:[%s205 + $0x8] sm:$0xf] %v2569
      %2602 = vst [vmem:[%s205 + $0xc] sm:$0xf] %v2570
      %2603 = vst [vmem:[%s205 + $0x10] sm:$0xf] %v2571
      %2604 = vst [vmem:[%s205 + $0x14] sm:$0xf] %v2572
      %2605 = vst [vmem:[%s205 + $0x18] sm:$0xf] %v2573
      %2606 = vst [vmem:[%s205 + $0x1c] sm:$0xf] %v2574
      %2607 = vst [vmem:[%s205 + $0x20] sm:$0xf] %v2575
      %2608 = vst [vmem:[%s205 + $0x24] sm:$0xf] %v2576
      %2609 = vst [vmem:[%s205 + $0x28] sm:$0xf] %v2577
      %2610 = vst [vmem:[%s205 + $0x2c] sm:$0xf] %v2578
      %2611 = vst [vmem:[%s205 + $0x30] sm:$0xf] %v2579
      %2612 = vst [vmem:[%s205 + $0x34] sm:$0xf] %v2580
      %2613 = vst [vmem:[%s205 + $0x38] sm:$0xf] %v2581
      %2614 = vst [vmem:[%s205 + $0x3c] sm:$0xf] %v2582
      %vm2615 = vcmask 7168
      %v2616 = vsel %vm2615, %v2503, 0.0
      %v2617 = vsel %vm2615, %v2504, 0.0
      %v2618 = vadd.f32 %v2616, %v2617
      %v2619 = vsel %vm2615, %v2505, 0.0
      %v2620 = vadd.f32 %v2618, %v2619
      %v2621 = vsel %vm2615, %v2506, 0.0
      %v2622 = vadd.f32 %v2620, %v2621
      %v2623 = vsel %vm2615, %v2507, 0.0
      %v2624 = vadd.f32 %v2622, %v2623
      %v2625 = vsel %vm2615, %v2508, 0.0
      %v2626 = vadd.f32 %v2624, %v2625
      %v2627 = vsel %vm2615, %v2509, 0.0
      %v2628 = vadd.f32 %v2626, %v2627
      %v2629 = vsel %vm2615, %v2510, 0.0
      %v2630 = vadd.f32 %v2628, %v2629
      %v2631 = vsel %vm2615, %v2511, 0.0
      %v2632 = vadd.f32 %v2630, %v2631
      %v2633 = vsel %vm2615, %v2512, 0.0
      %v2634 = vadd.f32 %v2632, %v2633
      %v2635 = vsel %vm2615, %v2513, 0.0
      %v2636 = vadd.f32 %v2634, %v2635
      %v2637 = vsel %vm2615, %v2514, 0.0
      %v2638 = vadd.f32 %v2636, %v2637
      %v2639 = vsel %vm2615, %v2515, 0.0
      %v2640 = vadd.f32 %v2638, %v2639
      %v2641 = vsel %vm2615, %v2516, 0.0
      %v2642 = vadd.f32 %v2640, %v2641
      %v2643 = vsel %vm2615, %v2517, 0.0
      %v2644 = vadd.f32 %v2642, %v2643
      %v2645 = vsel %vm2615, %v2518, 0.0
      %v2646 = vadd.f32 %v2644, %v2645
      %2647 = vadd.xlane.f32.xlu0 %v2646
      %v2648 = vpop.xlane.xlu0 %2647
      %v2649 = vrot.slane %v2648, 4
      %v2650 = vadd.f32 %v2648, %v2649
      %v2651 = vrot.slane %v2650, 2
      %v2652 = vadd.f32 %v2650, %v2651
      %v2653 = vrot.slane %v2652, 1
      %v2654 = vadd.f32 %v2652, %v2653
      %s2655 = vtos %v2654
      %s2656 = smax.f32 %s2655, 1.0
      %v2657 = vstv %s2656
      %v2658 = vrcp.pop %v2657
      %s2659 = vtos %v2658
      %v2660 = vadd.f32 %v2519, %v2520
      %v2661 = vadd.f32 %v2660, %v2521
      %v2662 = vadd.f32 %v2661, %v2522
      %v2663 = vadd.f32 %v2662, %v2523
      %v2664 = vadd.f32 %v2663, %v2524
      %v2665 = vadd.f32 %v2664, %v2525
      %v2666 = vadd.f32 %v2665, %v2526
      %v2667 = vadd.f32 %v2666, %v2527
      %v2668 = vadd.f32 %v2667, %v2528
      %v2669 = vadd.f32 %v2668, %v2529
      %v2670 = vadd.f32 %v2669, %v2530
      %v2671 = vadd.f32 %v2670, %v2531
      %v2672 = vadd.f32 %v2671, %v2532
      %v2673 = vadd.f32 %v2672, %v2533
      %v2674 = vadd.f32 %v2673, %v2534
      %v2675 = vrot.slane %v2674, 4
      %v2676 = vadd.f32 %v2674, %v2675
      %v2677 = vrot.slane %v2676, 2
      %v2678 = vadd.f32 %v2676, %v2677
      %v2679 = vrot.slane %v2678, 1
      %v2680 = vadd.f32 %v2678, %v2679
      %v2681 = vstv %s2659
      %v2682 = vmul.f32 %v2680, %v2681
      %v2683 = vsub.f32 %v2133, %v2682
      %v2684 = vsub.f32 %v2134, %v2682
      %v2685 = vsub.f32 %v2135, %v2682
      %v2686 = vsub.f32 %v2136, %v2682
      %v2687 = vsub.f32 %v2137, %v2682
      %v2688 = vsub.f32 %v2138, %v2682
      %v2689 = vsub.f32 %v2139, %v2682
      %v2690 = vsub.f32 %v2140, %v2682
      %v2691 = vsub.f32 %v2141, %v2682
      %v2692 = vsub.f32 %v2142, %v2682
      %v2693 = vsub.f32 %v2143, %v2682
      %v2694 = vsub.f32 %v2144, %v2682
      %v2695 = vsub.f32 %v2145, %v2682
      %v2696 = vsub.f32 %v2146, %v2682
      %v2697 = vsub.f32 %v2147, %v2682
      %v2698 = vsub.f32 %v2148, %v2682
      %v2699 = vmul.f32 %v2683, %v2503
      %v2700 = vmul.f32 %v2684, %v2504
      %v2701 = vmul.f32 %v2685, %v2505
      %v2702 = vmul.f32 %v2686, %v2506
      %v2703 = vmul.f32 %v2687, %v2507
      %v2704 = vmul.f32 %v2688, %v2508
      %v2705 = vmul.f32 %v2689, %v2509
      %v2706 = vmul.f32 %v2690, %v2510
      %v2707 = vmul.f32 %v2691, %v2511
      %v2708 = vmul.f32 %v2692, %v2512
      %v2709 = vmul.f32 %v2693, %v2513
      %v2710 = vmul.f32 %v2694, %v2514
      %v2711 = vmul.f32 %v2695, %v2515
      %v2712 = vmul.f32 %v2696, %v2516
      %v2713 = vmul.f32 %v2697, %v2517
      %v2714 = vmul.f32 %v2698, %v2518
      %v2715 = vmul.f32 %v2699, %v2699
      %v2716 = vmul.f32 %v2700, %v2700
      %v2717 = vmul.f32 %v2701, %v2701
      %v2718 = vmul.f32 %v2702, %v2702
      %v2719 = vmul.f32 %v2703, %v2703
      %v2720 = vmul.f32 %v2704, %v2704
      %v2721 = vmul.f32 %v2705, %v2705
      %v2722 = vmul.f32 %v2706, %v2706
      %v2723 = vmul.f32 %v2707, %v2707
      %v2724 = vmul.f32 %v2708, %v2708
      %v2725 = vmul.f32 %v2709, %v2709
      %v2726 = vmul.f32 %v2710, %v2710
      %v2727 = vmul.f32 %v2711, %v2711
      %v2728 = vmul.f32 %v2712, %v2712
      %v2729 = vmul.f32 %v2713, %v2713
      %v2730 = vmul.f32 %v2714, %v2714
      %v2731 = vadd.f32 %v2715, %v2716
      %v2732 = vadd.f32 %v2731, %v2717
      %v2733 = vadd.f32 %v2732, %v2718
      %v2734 = vadd.f32 %v2733, %v2719
      %v2735 = vadd.f32 %v2734, %v2720
      %v2736 = vadd.f32 %v2735, %v2721
      %v2737 = vadd.f32 %v2736, %v2722
      %v2738 = vadd.f32 %v2737, %v2723
      %v2739 = vadd.f32 %v2738, %v2724
      %v2740 = vadd.f32 %v2739, %v2725
      %v2741 = vadd.f32 %v2740, %v2726
      %v2742 = vadd.f32 %v2741, %v2727
      %v2743 = vadd.f32 %v2742, %v2728
      %v2744 = vadd.f32 %v2743, %v2729
      %v2745 = vadd.f32 %v2744, %v2730
      %v2746 = vrot.slane %v2745, 4
      %v2747 = vadd.f32 %v2745, %v2746
      %v2748 = vrot.slane %v2747, 2
      %v2749 = vadd.f32 %v2747, %v2748
      %v2750 = vrot.slane %v2749, 1
      %v2751 = vadd.f32 %v2749, %v2750
      %vm2752 = vcmp.eq.s32.totalorder %v2150, 0
      %v2753 = vsel %vm2752, %v2680, %v2751
      %2754 = vst [vmem:[%s214] sm:$0x3] %v2753
      %s2755 = smul.u32 16, %s20
      %p2756 = scmp.lt.s32.totalorder %s19, 1
      %s2757 = scalar_select %p2756, %s19, 1
      %p2758 = scmp.lt.s32.totalorder %s2755, 47
      %s2759 = scalar_select %p2758, %s2755, 47
      %s2760 = smul.addr %s2757, 48
      %s2761 = sadd.s32 %s2759, %s2760
      %s2762 = smul.addr %s2761, 4
      %s2763 = scalar_lea.vmem %s2, %s2762
      %p2764 = scmp.lt.s32.totalorder %s19, 1
      %s2765 = scalar_select %p2764, %s19, 1
      %p2766 = scmp.lt.s32.totalorder %s20, 2
      %s2767 = scalar_select %p2766, %s20, 2
      %s2768 = smul.addr %s2765, 3
      %s2769 = sadd.s32 %s2767, %s2768
      %s2770 = smul.addr %s2769, 2
      %s2771 = scalar_lea.vmem %s3, %s2770
      // Predicated region
      $region29: #{double_conv.6} parent=27 // pred_check
        %p2772 = pneg %p94
      $region30: #{double_conv.6} parent=27 // pred_check_branch
        %2774 = sbr.rel (%p2772) target = $region32
      $region31: #{double_conv.6} parent=27 // pred_region
        %s2775 = smul.u32 16, %s20
      $region32: #{double_conv.6} parent=27 // pred_fallthru
        _
      // Predicated region
      $region33: #{double_conv.6} parent=27 // pred_check
        %p2776 = pneg %p122
      $region34: #{double_conv.6} parent=27 // pred_check_branch
        %2778 = sbr.rel (%p2776) target = $region36
      $region35: #{double_conv.6} parent=27 // pred_region
        _
      $region36: #{double_conv.6} parent=27 // pred_fallthru
        _
    $region28: #{double_conv.6} parent=5 // pred_fallthru
      _
    %p2779 = scmp.le.s32.totalorder 2, %s10
    // Predicated region
    $region37: #{double_conv.6} parent=5 // pred_check
      %p2780 = pneg %p2779
    $region38: #{double_conv.6} parent=5 // pred_check_branch
      %2782 = sbr.rel (%p2780) target = $region40
    $region39: #{double_conv.6} parent=5 // pred_region
      %s2783 = ssub.s32 %s10, 2
      // Predicated region
      $region41: #{double_conv.6} parent=39 // pred_check
        %p2784 = pneg %p100
      $region42: #{double_conv.6} parent=39 // pred_check_branch
        %2786 = sbr.rel (%p2784) target = $region44
      $region43: #{double_conv.6} parent=39 // pred_region
        %s2787 = smul.u32 16, %s22
        %p2788 = scmp.lt.s32.totalorder %s21, 1
        %s2789 = scalar_select %p2788, %s21, 1
        %p2790 = scmp.lt.s32.totalorder %s2787, 47
        %s2791 = scalar_select %p2790, %s2787, 47
        %s2792 = smul.addr %s2789, 48
        %s2793 = sadd.s32 %s2791, %s2792
        %s2794 = smul.addr %s2793, 4
        %s2795 = scalar_lea.vmem %s2, %s2794
      $region44: #{double_conv.6} parent=39 // pred_fallthru
        _
      // Predicated region
      $region45: #{double_conv.6} parent=39 // pred_check
        %p2796 = pneg %p128
      $region46: #{double_conv.6} parent=39 // pred_check_branch
        %2798 = sbr.rel (%p2796) target = $region48
      $region47: #{double_conv.6} parent=39 // pred_region
        %p2799 = scmp.lt.s32.totalorder %s21, 1
        %s2800 = scalar_select %p2799, %s21, 1
        %p2801 = scmp.lt.s32.totalorder %s22, 2
        %s2802 = scalar_select %p2801, %s22, 2
        %s2803 = smul.addr %s2800, 3
        %s2804 = sadd.s32 %s2802, %s2803
        %s2805 = smul.addr %s2804, 2
        %s2806 = scalar_lea.vmem %s3, %s2805
      $region48: #{double_conv.6} parent=39 // pred_fallthru
        _
    $region40: #{double_conv.6} parent=5 // pred_fallthru
      _
  $region6: #{double_conv.6} parent=0 // loop_footer
    %s14 = sadd.s32 1, %s10
  $region7: #{double_conv.6} parent=0 // loop_footer_branch
    %9 = sbr.rel target = $region3
  $region8: #{double_conv.6} parent=0 // loop_exit
    _

</llo_original>
